<compile_context>
chip_gen: v5e
topology: v5e:2x2
jax: 0.10.0
libtpu: 0.0.40
codegen_flags: <defaults>
</compile_context>

<pallas_src>
import functools
import numpy as np

import jax
import jax.numpy as jnp
from jax.experimental import pallas as pl
from jax.experimental.pallas import tpu as pltpu


LANE = 128  # TPU lane width; every channel axis inside the kernel is padded to this

# slots in the packed [8, LANE, LANE] bf16 "1x1-style" weight bank
W_STEM, W_S1P, W_S2E, W_SE1, W_SE2, W_S2P, W_HD, W_FC = range(8)
# slots in the packed [8, LANE] f32 folded-BN scale bank
S_STEM, S_S1E, S_S1P, S_S2E, S_S2D, S_S2P, S_HD = range(7)
# slots in the packed [16, LANE] f32 shift / bias bank
(T_STEM, T_S1E, T_S1P, T_S2E, T_S2D,
 T_SE1, T_SE2, T_S2P, T_HD, T_FC) = range(10)


# ----------------------------------------------------------------------------
# Fused whole-network Pallas kernel (one grid step == one image)
# ----------------------------------------------------------------------------

def _build_fused_kernel(h1, w1, pad_lead, pad_trail):
    r1 = h1 * w1                      # rows at the 16x16 resolution
    # stage-1 3x3/s1 conv: TF-SAME pad (1,1) -> centered taps
    offs_s1 = [(dh - 1, dw - 1) for dh in range(3) for dw in range(3)]
    # stage-2 3x3/s2 depthwise: TF-SAME pad (0,1) -> forward-looking taps
    offs_dw = [(dh, dw) for dh in range(3) for dw in range(3)]

    def silu(x):
        return x * jax.nn.sigmoid(x)

    def kernel(a_ref, w1e_ref, wk_ref, wd_ref, sel_ref, sc_ref, sh_ref,
               o_ref, buf):
        def mm(a, slot):                        # bf16 MXU matmul, f32 accumulate
            return jnp.dot(a.astype(jnp.bfloat16), wk_ref[slot],
                           preferred_element_type=jnp.float32)

        def bn(y, s_slot, t_slot):              # folded BN, f32 epilogue
            return (y * sc_ref[s_slot:s_slot + 1, :]
                    + sh_ref[t_slot:t_slot + 1, :])

        # ---- zero ONLY the halo rows (interior always overwritten by z0/z3) -
        buf[0:pad_lead, :] = jnp.zeros((pad_lead, LANE), jnp.float32)
        buf[pad_lead + r1:pad_lead + r1 + pad_trail, :] = jnp.zeros(
            (pad_trail, LANE), jnp.float32)

        # ---- stem: 3x3/s2 conv (im2col'd once in the wrapper) + BN + SiLU ---
        z0 = silu(bn(mm(a_ref[...], W_STEM), S_STEM, T_STEM))       # [r1, 128]

        # column masks, built ONCE and reused by every tap that needs one;
        # vertical overruns never need a mask (zero halo absorbs them).
        jj = jax.lax.broadcasted_iota(jnp.int32, (r1, LANE), 0) % w1
        mask_l = jj >= 1            # column offset -1
        mask_r1 = jj < (w1 - 1)     # column offset +1
        mask_r2 = jj < (w1 - 2)     # column offset +2 (depthwise only)

        # ---- stage 1 expand: 9 shifted halo reads fused into ONE K=1152 dot -
        buf[pad_lead:pad_lead + r1, :] = z0
        pieces = []
        for oh, ow in offs_s1:
            start = pad_lead + oh * w1 + ow
            xs = buf[start:start + r1, :]
            if ow == -1:
                xs = jnp.where(mask_l, xs, 0.0)
            elif ow == 1:
                xs = jnp.where(mask_r1, xs, 0.0)
            pieces.append(xs.astype(jnp.bfloat16))
        a_cat = jnp.concatenate(pieces, axis=-1)                     # [r1, 1152]
        z1 = silu(bn(jnp.dot(a_cat, w1e_ref[...],
                             preferred_element_type=jnp.float32),
                     S_S1E, T_S1E))

        # ---- stage 1 project 1x1 + BN, fused residual add -------------------
        x1 = z0 + bn(mm(z1, W_S1P), S_S1P, T_S1P)

        # ---- stage 2 expand 1x1 + BN + SiLU ----------------------------------
        z3 = silu(bn(mm(x1, W_S2E), S_S2E, T_S2E))

        # ---- stage 2 depthwise 3x3/s2: stride-1 taps, raw accumulation ------
        buf[pad_lead:pad_lead + r1, :] = z3
        dwf = None
        for t, (oh, ow) in enumerate(offs_dw):
            start = pad_lead + oh * w1 + ow
            xs = buf[start:start + r1, :]
            if ow == 2:                          # only tap that can wrap at an
                xs = jnp.where(mask_r2, xs, 0.0)  # output (even) column
            term = xs * wd_ref[t:t + 1, :]
            dwf = term if dwf is None else dwf + term
        # stride-2 subsample via exact 0/1 selection matmul (bf16 -> lossless)
        dws = jnp.dot(sel_ref[...], dwf.astype(jnp.bfloat16),
                      preferred_element_type=jnp.float32)            # [64, 128]
        # BN + SiLU AFTER the subsample (commutes exactly with 0/1 selection)
        dws = silu(bn(dws, S_S2D, T_S2D))

        # ---- squeeze-excite: GAP + reduce + expand + gate (all fused) --------
        pooled = jnp.mean(dws, axis=0, keepdims=True)                # [1, 128]
        hid = silu(mm(pooled, W_SE1) + sh_ref[T_SE1:T_SE1 + 1, :])
        gate = jax.nn.sigmoid(mm(hid, W_SE2) + sh_ref[T_SE2:T_SE2 + 1, :])
        dws = dws * gate

        # ---- stage 2 project 1x1 + BN (no activation) ------------------------
        x2 = bn(mm(dws, W_S2P), S_S2P, T_S2P)

        # ---- head 1x1 + BN + SiLU, global average pool, classifier ----------
        hd = silu(bn(mm(x2, W_HD), S_HD, T_HD))
        gap = jnp.mean(hd, axis=0, keepdims=True)                    # [1, 128]
        logits = mm(gap, W_FC) + sh_ref[T_FC:T_FC + 1, :]            # [1, 128]
        o_ref[...] = jnp.broadcast_to(logits, (8, LANE))

    return kernel


def _fused_forward(prep, a_stem, h1, w1, num_classes):
    n, r1, _ = a_stem.shape
    assert r1 == h1 * w1 and h1 % 2 == 0 and w1 % 2 == 0
    # leading halo only needs the stage-1 backward reach (w1+1 rows);
    # trailing halo needs the depthwise forward reach (2*w1+2 rows); 8-aligned.
    pad_lead = ((w1 + 1 + 7) // 8) * 8
    pad_trail = ((2 * w1 + 2 + 7) // 8) * 8
    kernel = _build_fused_kernel(h1, w1, pad_lead, pad_trail)

    def full(arr):
        nd = arr.ndim
        return pl.BlockSpec(arr.shape, lambda i, nd=nd: (0,) * nd)

    out = pl.pallas_call(
        kernel,
        out_shape=jax.ShapeDtypeStruct((n, 8, LANE), jnp.float32),
        grid=(n,),
        in_specs=[
            pl.BlockSpec((None, r1, LANE), lambda i: (i, 0, 0)),      # stem im2col
            full(prep["w1e"]), full(prep["wk"]), full(prep["wd"]),
            full(prep["sel"]), full(prep["scales"]), full(prep["shifts"]),
        ],
        out_specs=pl.BlockSpec((None, 8, LANE), lambda i: (i, 0, 0)),
        scratch_shapes=[
            pltpu.VMEM((pad_lead + r1 + pad_trail, LANE), jnp.float32)],
        compiler_params=pltpu.CompilerParams(
            dimension_semantics=("parallel",)),       # v7x: shard batch on 2 TCs
    )(a_stem, prep["w1e"], prep["wk"], prep["wd"], prep["sel"],
      prep["scales"], prep["shifts"])
    return out[:, 0, :num_classes]


# ----------------------------------------------------------------------------
# Glue (stem im2col / TF-SAME padding) — plain JAX, runs once per forward
# ----------------------------------------------------------------------------

def tf_same_pad(x, k, s):
    """TensorFlow-'SAME' asymmetric padding (as in timm tf_ variants)."""
    _, h, w, _ = x.shape

    def pads(d):
        out = -(-d // s)
        total = max((out - 1) * s + k - d, 0)
        return (total // 2, total - total // 2)

    return jnp.pad(x, ((0, 0), pads(h), pads(w), (0, 0)))


def extract_patches(x, k, s):
    """x: [N,Hp,Wp,C] -> patches [N,OH,OW,k*k,C] (dh-major, dw-minor)."""
    _, hp, wp, _ = x.shape
    oh = (hp - k) // s + 1
    ow = (wp - k) // s + 1
    cols = []
    for dh in range(k):
        for dw in range(k):
            cols.append(x[:, dh:dh + s * oh:s, dw:dw + s * ow:s, :])
    return jnp.stack(cols, axis=3), oh, ow


def maxvit_v2_forward(prep, x_nchw, num_classes):
    """NCHW input -> class logits; all layer compute runs in one fused kernel."""
    n = x_nchw.shape[0]
    x = jnp.transpose(x_nchw, (0, 2, 3, 1)).astype(jnp.float32)      # NHWC
    # stem im2col on the raw 3-channel image (tiny, one-time; K = 27 -> pad 128)
    xp = tf_same_pad(x, 3, 2)
    patches, oh, ow = extract_patches(xp, 3, 2)                      # [N,16,16,9,3]
    a = patches.reshape(n, oh * ow, 9 * x.shape[-1])
    a = jnp.pad(a, ((0, 0), (0, 0), (0, LANE - a.shape[-1])))
    return _fused_forward(prep, a.astype(jnp.bfloat16), oh, ow, num_classes)


# ----------------------------------------------------------------------------
# Deterministic parameter construction + packing into lane-dense banks
# ----------------------------------------------------------------------------

def fold_bn(gamma, beta, mean, var, eps=1e-3):
    scale = gamma / jnp.sqrt(var + eps)
    shift = beta - mean * scale
    return scale, shift


def make_params(key, num_classes):
    ks = iter(jax.random.split(key, 32))

    def conv_w(k, cin, cout):
        return 0.1 * jax.random.normal(next(ks), (k, k, cin, cout), jnp.float32)

    def bn(c):
        gamma = 1.0 + 0.1 * jax.random.normal(next(ks), (c,), jnp.float32)
        beta = 0.1 * jax.random.normal(next(ks), (c,), jnp.float32)
        return fold_bn(gamma, beta, jnp.zeros((c,)), jnp.ones((c,)))

    p = {}
    # stem: 3 -> 16, 3x3 s2
    p["stem_w"] = conv_w(3, 3, 16);  p["stem_s"], p["stem_t"] = bn(16)
    # stage1: FusedMBConv 16 -> 16 (expand 4x)
    p["s1e_w"] = conv_w(3, 16, 64); p["s1e_s"], p["s1e_t"] = bn(64)
    p["s1p_w"] = conv_w(1, 64, 16); p["s1p_s"], p["s1p_t"] = bn(16)
    # stage2: MBConv+SE 16 -> 32, stride 2 (expand 4x, se_ratio 0.25 of in_chs)
    p["s2e_w"] = conv_w(1, 16, 64); p["s2e_s"], p["s2e_t"] = bn(64)
    p["s2d_w"] = 0.1 * jax.random.normal(next(ks), (9, 64), jnp.float32)
    p["s2d_s"], p["s2d_t"] = bn(64)
    p["se_w1"] = 0.1 * jax.random.normal(next(ks), (64, 4), jnp.float32)
    p["se_b1"] = 0.01 * jax.random.normal(next(ks), (4,), jnp.float32)
    p["se_w2"] = 0.1 * jax.random.normal(next(ks), (4, 64), jnp.float32)
    p["se_b2"] = 0.01 * jax.random.normal(next(ks), (64,), jnp.float32)
    p["s2p_w"] = conv_w(1, 64, 32); p["s2p_s"], p["s2p_t"] = bn(32)
    # head conv 1x1: 32 -> 64
    p["hd_w"] = conv_w(1, 32, 64); p["hd_s"], p["hd_t"] = bn(64)
    # classifier
    p["fc_w"] = 0.1 * jax.random.normal(next(ks), (64, num_classes), jnp.float32)
    p["fc_b"] = 0.01 * jax.random.normal(next(ks), (num_classes,), jnp.float32)
    return p


def prepare_params(p, h1, w1):
    """Pad / pack weights into lane-dense (128-wide) banks, cast MXU weights to bf16."""
    def pad_to(a, shape):
        out = np.zeros(shape, np.float32)
        a = np.asarray(a, np.float32)
        out[tuple(slice(0, s) for s in a.shape)] = a
        return out

    # 1x1-style weights (incl. stem im2col weight, SE and FC), padded [128,128]
    wk = np.zeros((8, LANE, LANE), np.float32)
    wk[W_STEM] = pad_to(np.asarray(p["stem_w"]).reshape(27, 16), (LANE, LANE))
    wk[W_S1P] = pad_to(np.asarray(p["s1p_w"]).reshape(64, 16), (LANE, LANE))
    wk[W_S2E] = pad_to(np.asarray(p["s2e_w"]).reshape(16, 64), (LANE, LANE))
    wk[W_SE1] = pad_to(p["se_w1"], (LANE, LANE))
    wk[W_SE2] = pad_to(p["se_w2"], (LANE, LANE))
    wk[W_S2P] = pad_to(np.asarray(p["s2p_w"]).reshape(64, 32), (LANE, LANE))
    wk[W_HD] = pad_to(np.asarray(p["hd_w"]).reshape(32, 64), (LANE, LANE))
    wk[W_FC] = pad_to(p["fc_w"], (LANE, LANE))

    # stage-1 expand 3x3 conv: one padded [128,128] weight per tap (dh-major),
    # pre-flattened to [9*128, 128] so the kernel does ONE K=1152 matmul.
    w1e = np.zeros((9, LANE, LANE), np.float32)
    s1e = np.asarray(p["s1e_w"])                       # [3,3,16,64]
    for dh in range(3):
        for dw in range(3):
            w1e[dh * 3 + dw] = pad_to(s1e[dh, dw], (LANE, LANE))
    w1e_flat = w1e.reshape(9 * LANE, LANE)

    wd = pad_to(p["s2d_w"], (9, LANE))                 # depthwise taps (f32, VPU)

    scales = np.zeros((8, LANE), np.float32)
    shifts = np.zeros((16, LANE), np.float32)
    scales[S_STEM] = pad_to(p["stem_s"], (LANE,)); shifts[T_STEM] = pad_to(p["stem_t"], (LANE,))
    scales[S_S1E] = pad_to(p["s1e_s"], (LANE,));   shifts[T_S1E] = pad_to(p["s1e_t"], (LANE,))
    scales[S_S1P] = pad_to(p["s1p_s"], (LANE,));   shifts[T_S1P] = pad_to(p["s1p_t"], (LANE,))
    scales[S_S2E] = pad_to(p["s2e_s"], (LANE,));   shifts[T_S2E] = pad_to(p["s2e_t"], (LANE,))
    scales[S_S2D] = pad_to(p["s2d_s"], (LANE,));   shifts[T_S2D] = pad_to(p["s2d_t"], (LANE,))
    scales[S_S2P] = pad_to(p["s2p_s"], (LANE,));   shifts[T_S2P] = pad_to(p["s2p_t"], (LANE,))
    scales[S_HD] = pad_to(p["hd_s"], (LANE,));     shifts[T_HD] = pad_to(p["hd_t"], (LANE,))
    shifts[T_SE1] = pad_to(p["se_b1"], (LANE,))
    shifts[T_SE2] = pad_to(p["se_b2"], (LANE,))
    shifts[T_FC] = pad_to(p["fc_b"], (LANE,))

    # 0/1 matrix selecting the stride-2 (even i, even j) rows of the 16x16 raster
    # (exact in bf16 -> MXU-native selection matmul on every TPU generation)
    h2, w2 = h1 // 2, w1 // 2
    sel = np.zeros((h2 * w2, h1 * w1), np.float32)
    for io in range(h2):
        for jo in range(w2):
            sel[io * w2 + jo, (2 * io) * w1 + 2 * jo] = 1.0

    return {
        "wk": jnp.asarray(wk, jnp.bfloat16),
        "w1e": jnp.asarray(w1e_flat, jnp.bfloat16),
        "wd": jnp.asarray(wd, jnp.float32),
        "sel": jnp.asarray(sel, jnp.bfloat16),
        "scales": jnp.asarray(scales, jnp.float32),
        "shifts": jnp.asarray(shifts, jnp.float32),
    }


# ----------------------------------------------------------------------------
# Main
# ----------------------------------------------------------------------------

if __name__ == "__main__":
    num_classes = 10
    key = jax.random.PRNGKey(0)
    x = jax.random.normal(key, (2, 3, 32, 32), dtype=jnp.float32)     # NCHW input

    params = make_params(jax.random.PRNGKey(42), num_classes)
    prep = prepare_params(params, h1=16, w1=16)

    fwd = jax.jit(functools.partial(maxvit_v2_forward, prep,
                                    num_classes=num_classes))
    logits = fwd(x)
    jax.block_until_ready(logits)

    assert logits.shape == (2, num_classes), logits.shape
    assert bool(jnp.all(jnp.isfinite(logits))), "non-finite logits"
    print("KERNEL_OK")
</pallas_src>

<mosaic_0001>
module attributes {stable_mosaic.version = 11 : i64} {
  func.func @kernel(%arg0: i32, %arg1: memref<1x256x128xbf16, #tpu.memory_space<vmem>>, %arg2: memref<1152x128xbf16, #tpu.memory_space<vmem>>, %arg3: memref<8x128x128xbf16, #tpu.memory_space<vmem>>, %arg4: memref<9x128xf32, #tpu.memory_space<vmem>>, %arg5: memref<64x256xbf16, #tpu.memory_space<vmem>>, %arg6: memref<8x128xf32, #tpu.memory_space<vmem>>, %arg7: memref<16x128xf32, #tpu.memory_space<vmem>>, %arg8: memref<1x8x128xf32, #tpu.memory_space<vmem>>, %arg9: memref<320x128xf32, #tpu.memory_space<vmem>>) attributes {dimension_semantics = [#tpu.dimension_semantics<parallel>], iteration_bounds = array<i64: 2>, scalar_prefetch = 0 : i64, scratch_operands = 1 : i64, tpu.core_type = #tpu.core_type<tc>, window_params = [{transform_indices = @transform_0, window_bounds = array<i64: 1, 256, 128>}, {pipeline_mode = #tpu.pipeline_mode<synchronous>, transform_indices = @transform_1, window_bounds = array<i64: 1152, 128>}, {pipeline_mode = #tpu.pipeline_mode<synchronous>, transform_indices = @transform_2, window_bounds = array<i64: 8, 128, 128>}, {pipeline_mode = #tpu.pipeline_mode<synchronous>, transform_indices = @transform_3, window_bounds = array<i64: 9, 128>}, {pipeline_mode = #tpu.pipeline_mode<synchronous>, transform_indices = @transform_4, window_bounds = array<i64: 64, 256>}, {pipeline_mode = #tpu.pipeline_mode<synchronous>, transform_indices = @transform_5, window_bounds = array<i64: 8, 128>}, {pipeline_mode = #tpu.pipeline_mode<synchronous>, transform_indices = @transform_6, window_bounds = array<i64: 16, 128>}, {transform_indices = @transform_7, window_bounds = array<i64: 1, 8, 128>}]} {
    %cst = arith.constant 0.000000e+00 : f32
    %0 = vector.broadcast %cst : f32 to vector<24x128xf32>
    %c0 = arith.constant 0 : index
    %c0_0 = arith.constant 0 : index
    %1 = vector.load %arg9[%c0, %c0_0] : memref<320x128xf32, #tpu.memory_space<vmem>>, vector<24x128xf32>
    tpu.vector_store %arg9[%c0, %c0_0], %0 {strides = array<i32>} : memref<320x128xf32, #tpu.memory_space<vmem>>, vector<24x128xf32>,
    %cst_1 = arith.constant 0.000000e+00 : f32
    %2 = vector.broadcast %cst_1 : f32 to vector<40x128xf32>
    %c280 = arith.constant 280 : index
    %c0_2 = arith.constant 0 : index
    %3 = vector.load %arg9[%c280, %c0_2] : memref<320x128xf32, #tpu.memory_space<vmem>>, vector<40x128xf32>
    tpu.vector_store %arg9[%c280, %c0_2], %2 {strides = array<i32>} : memref<320x128xf32, #tpu.memory_space<vmem>>, vector<40x128xf32>,
    %c0_3 = arith.constant 0 : index
    %c0_4 = arith.constant 0 : index
    %c0_5 = arith.constant 0 : index
    %4 = vector.load %arg1[%c0_3, %c0_4, %c0_5] : memref<1x256x128xbf16, #tpu.memory_space<vmem>>, vector<1x256x128xbf16>
    %5 = vector.shape_cast %4 : vector<1x256x128xbf16> to vector<256x128xbf16>
    %c0_6 = arith.constant 0 : index
    %c0_7 = arith.constant 0 : index
    %c0_8 = arith.constant 0 : index
    %6 = vector.load %arg3[%c0_6, %c0_7, %c0_8] : memref<8x128x128xbf16, #tpu.memory_space<vmem>>, vector<1x128x128xbf16>
    %7 = vector.shape_cast %6 : vector<1x128x128xbf16> to vector<128x128xbf16>
    %cst_9 = arith.constant dense<0.000000e+00> : vector<256x128xf32>
    %8 = tpu.matmul %5, %7, %cst_9 {dimension_numbers = #tpu.dot_dimension_numbers<[1], [0], [0], [1], [0, 0, 1, 1], [], []>} : vector<256x128xbf16>, vector<128x128xbf16>, vector<256x128xf32> -> vector<256x128xf32>
    %c0_10 = arith.constant 0 : index
    %c0_11 = arith.constant 0 : index
    %9 = vector.load %arg6[%c0_10, %c0_11] : memref<8x128xf32, #tpu.memory_space<vmem>>, vector<1x128xf32>
    %10 = vector.broadcast %9 : vector<1x128xf32> to vector<256x128xf32>
    %11 = arith.mulf %8, %10 : vector<256x128xf32>
    %c0_12 = arith.constant 0 : index
    %c0_13 = arith.constant 0 : index
    %12 = vector.load %arg7[%c0_12, %c0_13] : memref<16x128xf32, #tpu.memory_space<vmem>>, vector<1x128xf32>
    %13 = vector.broadcast %12 : vector<1x128xf32> to vector<256x128xf32>
    %14 = arith.addf %11, %13 : vector<256x128xf32>
    %15 = arith.negf %14 : vector<256x128xf32>
    %16 = math.exp %15 : vector<256x128xf32>
    %cst_14 = arith.constant 1.000000e+00 : f32
    %17 = vector.broadcast %cst_14 : f32 to vector<256x128xf32>
    %18 = arith.addf %17, %16 : vector<256x128xf32>
    %19 = arith.divf %17, %18 : vector<256x128xf32>
    %20 = arith.mulf %14, %19 : vector<256x128xf32>
    %21 = tpu.iota {dimensions = array<i32: 0>} : vector<256x128xi32>
    %c16_i32 = arith.constant 16 : i32
    %c0_i32 = arith.constant 0 : i32
    %22 = arith.cmpi eq, %c16_i32, %c0_i32 : i32
    %c1_i32 = arith.constant 1 : i32
    %23 = arith.select %22, %c1_i32, %c16_i32 : i32
    %24 = vector.broadcast %23 : i32 to vector<256x128xi32>
    %25 = arith.remsi %21, %24 : vector<256x128xi32>
    %c0_i32_15 = arith.constant 0 : i32
    %26 = vector.broadcast %c0_i32_15 : i32 to vector<256x128xi32>
    %27 = arith.cmpi ne, %25, %26 : vector<256x128xi32>
    %c0_i32_16 = arith.constant 0 : i32
    %28 = vector.broadcast %c0_i32_16 : i32 to vector<256x128xi32>
    %29 = arith.cmpi slt, %25, %28 : vector<256x128xi32>
    %c0_i32_17 = arith.constant 0 : i32
    %30 = arith.cmpi slt, %23, %c0_i32_17 : i32
    %31 = vector.broadcast %30 : i1 to vector<256x128xi1>
    %32 = vector.broadcast %31 : vector<256x128xi1> to vector<256x128xi1>
    %33 = arith.xori %29, %32 : vector<256x128xi1>
    %34 = arith.andi %33, %27 : vector<256x128xi1>
    %35 = vector.broadcast %23 : i32 to vector<256x128xi32>
    %36 = arith.addi %25, %35 : vector<256x128xi32>
    %37 = arith.select %34, %36, %25 : vector<256x128xi1>, vector<256x128xi32>
    %c1_i32_18 = arith.constant 1 : i32
    %38 = vector.broadcast %c1_i32_18 : i32 to vector<256x128xi32>
    %39 = arith.cmpi sge, %37, %38 : vector<256x128xi32>
    %c15_i32 = arith.constant 15 : i32
    %40 = vector.broadcast %c15_i32 : i32 to vector<256x128xi32>
    %41 = arith.cmpi slt, %37, %40 : vector<256x128xi32>
    %c14_i32 = arith.constant 14 : i32
    %42 = vector.broadcast %c14_i32 : i32 to vector<256x128xi32>
    %43 = arith.cmpi slt, %37, %42 : vector<256x128xi32>
    %c24 = arith.constant 24 : index
    %c0_19 = arith.constant 0 : index
    %44 = vector.load %arg9[%c24, %c0_19] : memref<320x128xf32, #tpu.memory_space<vmem>>, vector<256x128xf32>
    tpu.vector_store %arg9[%c24, %c0_19], %20 {strides = array<i32>} : memref<320x128xf32, #tpu.memory_space<vmem>>, vector<256x128xf32>,
    %c7 = arith.constant 7 : index
    %c0_20 = arith.constant 0 : index
    %45 = vector.load %arg9[%c7, %c0_20] : memref<320x128xf32, #tpu.memory_space<vmem>>, vector<256x128xf32>
    %cst_21 = arith.constant 0.000000e+00 : f32
    %46 = vector.broadcast %cst_21 : f32 to vector<256x128xf32>
    %47 = arith.select %39, %45, %46 : vector<256x128xi1>, vector<256x128xf32>
    %48 = arith.truncf %47 : vector<256x128xf32> to vector<256x128xbf16>
    %c8 = arith.constant 8 : index
    %c0_22 = arith.constant 0 : index
    %49 = vector.load %arg9[%c8, %c0_22] : memref<320x128xf32, #tpu.memory_space<vmem>>, vector<256x128xf32>
    %50 = arith.truncf %49 : vector<256x128xf32> to vector<256x128xbf16>
    %c9 = arith.constant 9 : index
    %c0_23 = arith.constant 0 : index
    %51 = vector.load %arg9[%c9, %c0_23] : memref<320x128xf32, #tpu.memory_space<vmem>>, vector<256x128xf32>
    %cst_24 = arith.constant 0.000000e+00 : f32
    %52 = vector.broadcast %cst_24 : f32 to vector<256x128xf32>
    %53 = arith.select %41, %51, %52 : vector<256x128xi1>, vector<256x128xf32>
    %54 = arith.truncf %53 : vector<256x128xf32> to vector<256x128xbf16>
    %c23 = arith.constant 23 : index
    %c0_25 = arith.constant 0 : index
    %55 = vector.load %arg9[%c23, %c0_25] : memref<320x128xf32, #tpu.memory_space<vmem>>, vector<256x128xf32>
    %cst_26 = arith.constant 0.000000e+00 : f32
    %56 = vector.broadcast %cst_26 : f32 to vector<256x128xf32>
    %57 = arith.select %39, %55, %56 : vector<256x128xi1>, vector<256x128xf32>
    %58 = arith.truncf %57 : vector<256x128xf32> to vector<256x128xbf16>
    %c24_27 = arith.constant 24 : index
    %c0_28 = arith.constant 0 : index
    %59 = vector.load %arg9[%c24_27, %c0_28] : memref<320x128xf32, #tpu.memory_space<vmem>>, vector<256x128xf32>
    %60 = arith.truncf %59 : vector<256x128xf32> to vector<256x128xbf16>
    %c25 = arith.constant 25 : index
    %c0_29 = arith.constant 0 : index
    %61 = vector.load %arg9[%c25, %c0_29] : memref<320x128xf32, #tpu.memory_space<vmem>>, vector<256x128xf32>
    %cst_30 = arith.constant 0.000000e+00 : f32
    %62 = vector.broadcast %cst_30 : f32 to vector<256x128xf32>
    %63 = arith.select %41, %61, %62 : vector<256x128xi1>, vector<256x128xf32>
    %64 = arith.truncf %63 : vector<256x128xf32> to vector<256x128xbf16>
    %c39 = arith.constant 39 : index
    %c0_31 = arith.constant 0 : index
    %65 = vector.load %arg9[%c39, %c0_31] : memref<320x128xf32, #tpu.memory_space<vmem>>, vector<256x128xf32>
    %cst_32 = arith.constant 0.000000e+00 : f32
    %66 = vector.broadcast %cst_32 : f32 to vector<256x128xf32>
    %67 = arith.select %39, %65, %66 : vector<256x128xi1>, vector<256x128xf32>
    %68 = arith.truncf %67 : vector<256x128xf32> to vector<256x128xbf16>
    %c40 = arith.constant 40 : index
    %c0_33 = arith.constant 0 : index
    %69 = vector.load %arg9[%c40, %c0_33] : memref<320x128xf32, #tpu.memory_space<vmem>>, vector<256x128xf32>
    %70 = arith.truncf %69 : vector<256x128xf32> to vector<256x128xbf16>
    %c41 = arith.constant 41 : index
    %c0_34 = arith.constant 0 : index
    %71 = vector.load %arg9[%c41, %c0_34] : memref<320x128xf32, #tpu.memory_space<vmem>>, vector<256x128xf32>
    %cst_35 = arith.constant 0.000000e+00 : f32
    %72 = vector.broadcast %cst_35 : f32 to vector<256x128xf32>
    %73 = arith.select %41, %71, %72 : vector<256x128xi1>, vector<256x128xf32>
    %74 = arith.truncf %73 : vector<256x128xf32> to vector<256x128xbf16>
    %75 = tpu.concatenate %48, %50, %54, %58, %60, %64, %68, %70, %74 in 1 : vector<256x128xbf16>, vector<256x128xbf16>, vector<256x128xbf16>, vector<256x128xbf16>, vector<256x128xbf16>, vector<256x128xbf16>, vector<256x128xbf16>, vector<256x128xbf16>, vector<256x128xbf16> -> vector<256x1152xbf16>
    %c0_36 = arith.constant 0 : index
    %c0_37 = arith.constant 0 : index
    %76 = vector.load %arg2[%c0_36, %c0_37] : memref<1152x128xbf16, #tpu.memory_space<vmem>>, vector<1152x128xbf16>
    %cst_38 = arith.constant dense<0.000000e+00> : vector<256x128xf32>
    %77 = tpu.matmul %75, %76, %cst_38 {dimension_numbers = #tpu.dot_dimension_numbers<[1], [0], [0], [1], [0, 0, 1, 1], [], []>} : vector<256x1152xbf16>, vector<1152x128xbf16>, vector<256x128xf32> -> vector<256x128xf32>
    %c1 = arith.constant 1 : index
    %c0_39 = arith.constant 0 : index
    %78 = vector.load %arg6[%c1, %c0_39] : memref<8x128xf32, #tpu.memory_space<vmem>>, vector<1x128xf32>
    %79 = vector.broadcast %78 : vector<1x128xf32> to vector<256x128xf32>
    %80 = arith.mulf %77, %79 : vector<256x128xf32>
    %c1_40 = arith.constant 1 : index
    %c0_41 = arith.constant 0 : index
    %81 = vector.load %arg7[%c1_40, %c0_41] : memref<16x128xf32, #tpu.memory_space<vmem>>, vector<1x128xf32>
    %82 = vector.broadcast %81 : vector<1x128xf32> to vector<256x128xf32>
    %83 = arith.addf %80, %82 : vector<256x128xf32>
    %84 = arith.negf %83 : vector<256x128xf32>
    %85 = math.exp %84 : vector<256x128xf32>
    %cst_42 = arith.constant 1.000000e+00 : f32
    %86 = vector.broadcast %cst_42 : f32 to vector<256x128xf32>
    %87 = arith.addf %86, %85 : vector<256x128xf32>
    %88 = arith.divf %86, %87 : vector<256x128xf32>
    %89 = arith.mulf %83, %88 : vector<256x128xf32>
    %90 = arith.truncf %89 : vector<256x128xf32> to vector<256x128xbf16>
    %c1_43 = arith.constant 1 : index
    %c0_44 = arith.constant 0 : index
    %c0_45 = arith.constant 0 : index
    %91 = vector.load %arg3[%c1_43, %c0_44, %c0_45] : memref<8x128x128xbf16, #tpu.memory_space<vmem>>, vector<1x128x128xbf16>
    %92 = vector.shape_cast %91 : vector<1x128x128xbf16> to vector<128x128xbf16>
    %cst_46 = arith.constant dense<0.000000e+00> : vector<256x128xf32>
    %93 = tpu.matmul %90, %92, %cst_46 {dimension_numbers = #tpu.dot_dimension_numbers<[1], [0], [0], [1], [0, 0, 1, 1], [], []>} : vector<256x128xbf16>, vector<128x128xbf16>, vector<256x128xf32> -> vector<256x128xf32>
    %c2 = arith.constant 2 : index
    %c0_47 = arith.constant 0 : index
    %94 = vector.load %arg6[%c2, %c0_47] : memref<8x128xf32, #tpu.memory_space<vmem>>, vector<1x128xf32>
    %95 = vector.broadcast %94 : vector<1x128xf32> to vector<256x128xf32>
    %96 = arith.mulf %93, %95 : vector<256x128xf32>
    %c2_48 = arith.constant 2 : index
    %c0_49 = arith.constant 0 : index
    %97 = vector.load %arg7[%c2_48, %c0_49] : memref<16x128xf32, #tpu.memory_space<vmem>>, vector<1x128xf32>
    %98 = vector.broadcast %97 : vector<1x128xf32> to vector<256x128xf32>
    %99 = arith.addf %96, %98 : vector<256x128xf32>
    %100 = arith.addf %20, %99 : vector<256x128xf32>
    %101 = arith.truncf %100 : vector<256x128xf32> to vector<256x128xbf16>
    %c2_50 = arith.constant 2 : index
    %c0_51 = arith.constant 0 : index
    %c0_52 = arith.constant 0 : index
    %102 = vector.load %arg3[%c2_50, %c0_51, %c0_52] : memref<8x128x128xbf16, #tpu.memory_space<vmem>>, vector<1x128x128xbf16>
    %103 = vector.shape_cast %102 : vector<1x128x128xbf16> to vector<128x128xbf16>
    %cst_53 = arith.constant dense<0.000000e+00> : vector<256x128xf32>
    %104 = tpu.matmul %101, %103, %cst_53 {dimension_numbers = #tpu.dot_dimension_numbers<[1], [0], [0], [1], [0, 0, 1, 1], [], []>} : vector<256x128xbf16>, vector<128x128xbf16>, vector<256x128xf32> -> vector<256x128xf32>
    %c3 = arith.constant 3 : index
    %c0_54 = arith.constant 0 : index
    %105 = vector.load %arg6[%c3, %c0_54] : memref<8x128xf32, #tpu.memory_space<vmem>>, vector<1x128xf32>
    %106 = vector.broadcast %105 : vector<1x128xf32> to vector<256x128xf32>
    %107 = arith.mulf %104, %106 : vector<256x128xf32>
    %c3_55 = arith.constant 3 : index
    %c0_56 = arith.constant 0 : index
    %108 = vector.load %arg7[%c3_55, %c0_56] : memref<16x128xf32, #tpu.memory_space<vmem>>, vector<1x128xf32>
    %109 = vector.broadcast %108 : vector<1x128xf32> to vector<256x128xf32>
    %110 = arith.addf %107, %109 : vector<256x128xf32>
    %111 = arith.negf %110 : vector<256x128xf32>
    %112 = math.exp %111 : vector<256x128xf32>
    %cst_57 = arith.constant 1.000000e+00 : f32
    %113 = vector.broadcast %cst_57 : f32 to vector<256x128xf32>
    %114 = arith.addf %113, %112 : vector<256x128xf32>
    %115 = arith.divf %113, %114 : vector<256x128xf32>
    %116 = arith.mulf %110, %115 : vector<256x128xf32>
    %c24_58 = arith.constant 24 : index
    %c0_59 = arith.constant 0 : index
    %117 = vector.load %arg9[%c24_58, %c0_59] : memref<320x128xf32, #tpu.memory_space<vmem>>, vector<256x128xf32>
    tpu.vector_store %arg9[%c24_58, %c0_59], %116 {strides = array<i32>} : memref<320x128xf32, #tpu.memory_space<vmem>>, vector<256x128xf32>,
    %c24_60 = arith.constant 24 : index
    %c0_61 = arith.constant 0 : index
    %118 = vector.load %arg9[%c24_60, %c0_61] : memref<320x128xf32, #tpu.memory_space<vmem>>, vector<256x128xf32>
    %c0_62 = arith.constant 0 : index
    %c0_63 = arith.constant 0 : index
    %119 = vector.load %arg4[%c0_62, %c0_63] : memref<9x128xf32, #tpu.memory_space<vmem>>, vector<1x128xf32>
    %120 = vector.broadcast %119 : vector<1x128xf32> to vector<256x128xf32>
    %121 = arith.mulf %118, %120 : vector<256x128xf32>
    %c25_64 = arith.constant 25 : index
    %c0_65 = arith.constant 0 : index
    %122 = vector.load %arg9[%c25_64, %c0_65] : memref<320x128xf32, #tpu.memory_space<vmem>>, vector<256x128xf32>
    %c1_66 = arith.constant 1 : index
    %c0_67 = arith.constant 0 : index
    %123 = vector.load %arg4[%c1_66, %c0_67] : memref<9x128xf32, #tpu.memory_space<vmem>>, vector<1x128xf32>
    %124 = vector.broadcast %123 : vector<1x128xf32> to vector<256x128xf32>
    %125 = arith.mulf %122, %124 : vector<256x128xf32>
    %126 = arith.addf %121, %125 : vector<256x128xf32>
    %c26 = arith.constant 26 : index
    %c0_68 = arith.constant 0 : index
    %127 = vector.load %arg9[%c26, %c0_68] : memref<320x128xf32, #tpu.memory_space<vmem>>, vector<256x128xf32>
    %cst_69 = arith.constant 0.000000e+00 : f32
    %128 = vector.broadcast %cst_69 : f32 to vector<256x128xf32>
    %129 = arith.select %43, %127, %128 : vector<256x128xi1>, vector<256x128xf32>
    %c2_70 = arith.constant 2 : index
    %c0_71 = arith.constant 0 : index
    %130 = vector.load %arg4[%c2_70, %c0_71] : memref<9x128xf32, #tpu.memory_space<vmem>>, vector<1x128xf32>
    %131 = vector.broadcast %130 : vector<1x128xf32> to vector<256x128xf32>
    %132 = arith.mulf %129, %131 : vector<256x128xf32>
    %133 = arith.addf %126, %132 : vector<256x128xf32>
    %c40_72 = arith.constant 40 : index
    %c0_73 = arith.constant 0 : index
    %134 = vector.load %arg9[%c40_72, %c0_73] : memref<320x128xf32, #tpu.memory_space<vmem>>, vector<256x128xf32>
    %c3_74 = arith.constant 3 : index
    %c0_75 = arith.constant 0 : index
    %135 = vector.load %arg4[%c3_74, %c0_75] : memref<9x128xf32, #tpu.memory_space<vmem>>, vector<1x128xf32>
    %136 = vector.broadcast %135 : vector<1x128xf32> to vector<256x128xf32>
    %137 = arith.mulf %134, %136 : vector<256x128xf32>
    %138 = arith.addf %133, %137 : vector<256x128xf32>
    %c41_76 = arith.constant 41 : index
    %c0_77 = arith.constant 0 : index
    %139 = vector.load %arg9[%c41_76, %c0_77] : memref<320x128xf32, #tpu.memory_space<vmem>>, vector<256x128xf32>
    %c4 = arith.constant 4 : index
    %c0_78 = arith.constant 0 : index
    %140 = vector.load %arg4[%c4, %c0_78] : memref<9x128xf32, #tpu.memory_space<vmem>>, vector<1x128xf32>
    %141 = vector.broadcast %140 : vector<1x128xf32> to vector<256x128xf32>
    %142 = arith.mulf %139, %141 : vector<256x128xf32>
    %143 = arith.addf %138, %142 : vector<256x128xf32>
    %c42 = arith.constant 42 : index
    %c0_79 = arith.constant 0 : index
    %144 = vector.load %arg9[%c42, %c0_79] : memref<320x128xf32, #tpu.memory_space<vmem>>, vector<256x128xf32>
    %cst_80 = arith.constant 0.000000e+00 : f32
    %145 = vector.broadcast %cst_80 : f32 to vector<256x128xf32>
    %146 = arith.select %43, %144, %145 : vector<256x128xi1>, vector<256x128xf32>
    %c5 = arith.constant 5 : index
    %c0_81 = arith.constant 0 : index
    %147 = vector.load %arg4[%c5, %c0_81] : memref<9x128xf32, #tpu.memory_space<vmem>>, vector<1x128xf32>
    %148 = vector.broadcast %147 : vector<1x128xf32> to vector<256x128xf32>
    %149 = arith.mulf %146, %148 : vector<256x128xf32>
    %150 = arith.addf %143, %149 : vector<256x128xf32>
    %c56 = arith.constant 56 : index
    %c0_82 = arith.constant 0 : index
    %151 = vector.load %arg9[%c56, %c0_82] : memref<320x128xf32, #tpu.memory_space<vmem>>, vector<256x128xf32>
    %c6 = arith.constant 6 : index
    %c0_83 = arith.constant 0 : index
    %152 = vector.load %arg4[%c6, %c0_83] : memref<9x128xf32, #tpu.memory_space<vmem>>, vector<1x128xf32>
    %153 = vector.broadcast %152 : vector<1x128xf32> to vector<256x128xf32>
    %154 = arith.mulf %151, %153 : vector<256x128xf32>
    %155 = arith.addf %150, %154 : vector<256x128xf32>
    %c57 = arith.constant 57 : index
    %c0_84 = arith.constant 0 : index
    %156 = vector.load %arg9[%c57, %c0_84] : memref<320x128xf32, #tpu.memory_space<vmem>>, vector<256x128xf32>
    %c7_85 = arith.constant 7 : index
    %c0_86 = arith.constant 0 : index
    %157 = vector.load %arg4[%c7_85, %c0_86] : memref<9x128xf32, #tpu.memory_space<vmem>>, vector<1x128xf32>
    %158 = vector.broadcast %157 : vector<1x128xf32> to vector<256x128xf32>
    %159 = arith.mulf %156, %158 : vector<256x128xf32>
    %160 = arith.addf %155, %159 : vector<256x128xf32>
    %c58 = arith.constant 58 : index
    %c0_87 = arith.constant 0 : index
    %161 = vector.load %arg9[%c58, %c0_87] : memref<320x128xf32, #tpu.memory_space<vmem>>, vector<256x128xf32>
    %cst_88 = arith.constant 0.000000e+00 : f32
    %162 = vector.broadcast %cst_88 : f32 to vector<256x128xf32>
    %163 = arith.select %43, %161, %162 : vector<256x128xi1>, vector<256x128xf32>
    %c8_89 = arith.constant 8 : index
    %c0_90 = arith.constant 0 : index
    %164 = vector.load %arg4[%c8_89, %c0_90] : memref<9x128xf32, #tpu.memory_space<vmem>>, vector<1x128xf32>
    %165 = vector.broadcast %164 : vector<1x128xf32> to vector<256x128xf32>
    %166 = arith.mulf %163, %165 : vector<256x128xf32>
    %167 = arith.addf %160, %166 : vector<256x128xf32>
    %c0_91 = arith.constant 0 : index
    %c0_92 = arith.constant 0 : index
    %168 = vector.load %arg5[%c0_91, %c0_92] : memref<64x256xbf16, #tpu.memory_space<vmem>>, vector<64x256xbf16>
    %169 = arith.truncf %167 : vector<256x128xf32> to vector<256x128xbf16>
    %cst_93 = arith.constant dense<0.000000e+00> : vector<64x128xf32>
    %170 = tpu.matmul %168, %169, %cst_93 {dimension_numbers = #tpu.dot_dimension_numbers<[1], [0], [0], [1], [0, 0, 1, 1], [], []>} : vector<64x256xbf16>, vector<256x128xbf16>, vector<64x128xf32> -> vector<64x128xf32>
    %c4_94 = arith.constant 4 : index
    %c0_95 = arith.constant 0 : index
    %171 = vector.load %arg6[%c4_94, %c0_95] : memref<8x128xf32, #tpu.memory_space<vmem>>, vector<1x128xf32>
    %172 = vector.broadcast %171 : vector<1x128xf32> to vector<64x128xf32>
    %173 = arith.mulf %170, %172 : vector<64x128xf32>
    %c4_96 = arith.constant 4 : index
    %c0_97 = arith.constant 0 : index
    %174 = vector.load %arg7[%c4_96, %c0_97] : memref<16x128xf32, #tpu.memory_space<vmem>>, vector<1x128xf32>
    %175 = vector.broadcast %174 : vector<1x128xf32> to vector<64x128xf32>
    %176 = arith.addf %173, %175 : vector<64x128xf32>
    %177 = arith.negf %176 : vector<64x128xf32>
    %178 = math.exp %177 : vector<64x128xf32>
    %cst_98 = arith.constant 1.000000e+00 : f32
    %179 = vector.broadcast %cst_98 : f32 to vector<64x128xf32>
    %180 = arith.addf %179, %178 : vector<64x128xf32>
    %181 = arith.divf %179, %180 : vector<64x128xf32>
    %182 = arith.mulf %176, %181 : vector<64x128xf32>
    %cst_99 = arith.constant dense<0.000000e+00> : vector<128xf32>
    %183 = vector.multi_reduction <add>, %182, %cst_99 [0] : vector<64x128xf32> to vector<128xf32>
    %184 = vector.shape_cast %183 : vector<128xf32> to vector<1x128xf32>
    %cst_100 = arith.constant 6.400000e+01 : f32
    %185 = vector.broadcast %cst_100 : f32 to vector<1x128xf32>
    %186 = arith.divf %184, %185 : vector<1x128xf32>
    %187 = arith.truncf %186 : vector<1x128xf32> to vector<1x128xbf16>
    %c3_101 = arith.constant 3 : index
    %c0_102 = arith.constant 0 : index
    %c0_103 = arith.constant 0 : index
    %188 = vector.load %arg3[%c3_101, %c0_102, %c0_103] : memref<8x128x128xbf16, #tpu.memory_space<vmem>>, vector<1x128x128xbf16>
    %189 = vector.shape_cast %188 : vector<1x128x128xbf16> to vector<128x128xbf16>
    %cst_104 = arith.constant dense<0.000000e+00> : vector<1x128xf32>
    %190 = tpu.matmul %187, %189, %cst_104 {dimension_numbers = #tpu.dot_dimension_numbers<[1], [0], [0], [1], [0, 0, 1, 1], [], []>} : vector<1x128xbf16>, vector<128x128xbf16>, vector<1x128xf32> -> vector<1x128xf32>
    %c5_105 = arith.constant 5 : index
    %c0_106 = arith.constant 0 : index
    %191 = vector.load %arg7[%c5_105, %c0_106] : memref<16x128xf32, #tpu.memory_space<vmem>>, vector<1x128xf32>
    %192 = arith.addf %190, %191 : vector<1x128xf32>
    %193 = arith.negf %192 : vector<1x128xf32>
    %194 = math.exp %193 : vector<1x128xf32>
    %cst_107 = arith.constant 1.000000e+00 : f32
    %195 = vector.broadcast %cst_107 : f32 to vector<1x128xf32>
    %196 = arith.addf %195, %194 : vector<1x128xf32>
    %197 = arith.divf %195, %196 : vector<1x128xf32>
    %198 = arith.mulf %192, %197 : vector<1x128xf32>
    %199 = arith.truncf %198 : vector<1x128xf32> to vector<1x128xbf16>
    %c4_108 = arith.constant 4 : index
    %c0_109 = arith.constant 0 : index
    %c0_110 = arith.constant 0 : index
    %200 = vector.load %arg3[%c4_108, %c0_109, %c0_110] : memref<8x128x128xbf16, #tpu.memory_space<vmem>>, vector<1x128x128xbf16>
    %201 = vector.shape_cast %200 : vector<1x128x128xbf16> to vector<128x128xbf16>
    %cst_111 = arith.constant dense<0.000000e+00> : vector<1x128xf32>
    %202 = tpu.matmul %199, %201, %cst_111 {dimension_numbers = #tpu.dot_dimension_numbers<[1], [0], [0], [1], [0, 0, 1, 1], [], []>} : vector<1x128xbf16>, vector<128x128xbf16>, vector<1x128xf32> -> vector<1x128xf32>
    %c6_112 = arith.constant 6 : index
    %c0_113 = arith.constant 0 : index
    %203 = vector.load %arg7[%c6_112, %c0_113] : memref<16x128xf32, #tpu.memory_space<vmem>>, vector<1x128xf32>
    %204 = arith.addf %202, %203 : vector<1x128xf32>
    %205 = arith.negf %204 : vector<1x128xf32>
    %206 = math.exp %205 : vector<1x128xf32>
    %cst_114 = arith.constant 1.000000e+00 : f32
    %207 = vector.broadcast %cst_114 : f32 to vector<1x128xf32>
    %208 = arith.addf %207, %206 : vector<1x128xf32>
    %209 = arith.divf %207, %208 : vector<1x128xf32>
    %210 = vector.broadcast %209 : vector<1x128xf32> to vector<64x128xf32>
    %211 = arith.mulf %182, %210 : vector<64x128xf32>
    %212 = arith.truncf %211 : vector<64x128xf32> to vector<64x128xbf16>
    %c5_115 = arith.constant 5 : index
    %c0_116 = arith.constant 0 : index
    %c0_117 = arith.constant 0 : index
    %213 = vector.load %arg3[%c5_115, %c0_116, %c0_117] : memref<8x128x128xbf16, #tpu.memory_space<vmem>>, vector<1x128x128xbf16>
    %214 = vector.shape_cast %213 : vector<1x128x128xbf16> to vector<128x128xbf16>
    %cst_118 = arith.constant dense<0.000000e+00> : vector<64x128xf32>
    %215 = tpu.matmul %212, %214, %cst_118 {dimension_numbers = #tpu.dot_dimension_numbers<[1], [0], [0], [1], [0, 0, 1, 1], [], []>} : vector<64x128xbf16>, vector<128x128xbf16>, vector<64x128xf32> -> vector<64x128xf32>
    %c5_119 = arith.constant 5 : index
    %c0_120 = arith.constant 0 : index
    %216 = vector.load %arg6[%c5_119, %c0_120] : memref<8x128xf32, #tpu.memory_space<vmem>>, vector<1x128xf32>
    %217 = vector.broadcast %216 : vector<1x128xf32> to vector<64x128xf32>
    %218 = arith.mulf %215, %217 : vector<64x128xf32>
    %c7_121 = arith.constant 7 : index
    %c0_122 = arith.constant 0 : index
    %219 = vector.load %arg7[%c7_121, %c0_122] : memref<16x128xf32, #tpu.memory_space<vmem>>, vector<1x128xf32>
    %220 = vector.broadcast %219 : vector<1x128xf32> to vector<64x128xf32>
    %221 = arith.addf %218, %220 : vector<64x128xf32>
    %222 = arith.truncf %221 : vector<64x128xf32> to vector<64x128xbf16>
    %c6_123 = arith.constant 6 : index
    %c0_124 = arith.constant 0 : index
    %c0_125 = arith.constant 0 : index
    %223 = vector.load %arg3[%c6_123, %c0_124, %c0_125] : memref<8x128x128xbf16, #tpu.memory_space<vmem>>, vector<1x128x128xbf16>
    %224 = vector.shape_cast %223 : vector<1x128x128xbf16> to vector<128x128xbf16>
    %cst_126 = arith.constant dense<0.000000e+00> : vector<64x128xf32>
    %225 = tpu.matmul %222, %224, %cst_126 {dimension_numbers = #tpu.dot_dimension_numbers<[1], [0], [0], [1], [0, 0, 1, 1], [], []>} : vector<64x128xbf16>, vector<128x128xbf16>, vector<64x128xf32> -> vector<64x128xf32>
    %c6_127 = arith.constant 6 : index
    %c0_128 = arith.constant 0 : index
    %226 = vector.load %arg6[%c6_127, %c0_128] : memref<8x128xf32, #tpu.memory_space<vmem>>, vector<1x128xf32>
    %227 = vector.broadcast %226 : vector<1x128xf32> to vector<64x128xf32>
    %228 = arith.mulf %225, %227 : vector<64x128xf32>
    %c8_129 = arith.constant 8 : index
    %c0_130 = arith.constant 0 : index
    %229 = vector.load %arg7[%c8_129, %c0_130] : memref<16x128xf32, #tpu.memory_space<vmem>>, vector<1x128xf32>
    %230 = vector.broadcast %229 : vector<1x128xf32> to vector<64x128xf32>
    %231 = arith.addf %228, %230 : vector<64x128xf32>
    %232 = arith.negf %231 : vector<64x128xf32>
    %233 = math.exp %232 : vector<64x128xf32>
    %cst_131 = arith.constant 1.000000e+00 : f32
    %234 = vector.broadcast %cst_131 : f32 to vector<64x128xf32>
    %235 = arith.addf %234, %233 : vector<64x128xf32>
    %236 = arith.divf %234, %235 : vector<64x128xf32>
    %237 = arith.mulf %231, %236 : vector<64x128xf32>
    %cst_132 = arith.constant dense<0.000000e+00> : vector<128xf32>
    %238 = vector.multi_reduction <add>, %237, %cst_132 [0] : vector<64x128xf32> to vector<128xf32>
    %239 = vector.shape_cast %238 : vector<128xf32> to vector<1x128xf32>
    %cst_133 = arith.constant 6.400000e+01 : f32
    %240 = vector.broadcast %cst_133 : f32 to vector<1x128xf32>
    %241 = arith.divf %239, %240 : vector<1x128xf32>
    %242 = arith.truncf %241 : vector<1x128xf32> to vector<1x128xbf16>
    %c7_134 = arith.constant 7 : index
    %c0_135 = arith.constant 0 : index
    %c0_136 = arith.constant 0 : index
    %243 = vector.load %arg3[%c7_134, %c0_135, %c0_136] : memref<8x128x128xbf16, #tpu.memory_space<vmem>>, vector<1x128x128xbf16>
    %244 = vector.shape_cast %243 : vector<1x128x128xbf16> to vector<128x128xbf16>
    %cst_137 = arith.constant dense<0.000000e+00> : vector<1x128xf32>
    %245 = tpu.matmul %242, %244, %cst_137 {dimension_numbers = #tpu.dot_dimension_numbers<[1], [0], [0], [1], [0, 0, 1, 1], [], []>} : vector<1x128xbf16>, vector<128x128xbf16>, vector<1x128xf32> -> vector<1x128xf32>
    %c9_138 = arith.constant 9 : index
    %c0_139 = arith.constant 0 : index
    %246 = vector.load %arg7[%c9_138, %c0_139] : memref<16x128xf32, #tpu.memory_space<vmem>>, vector<1x128xf32>
    %247 = arith.addf %245, %246 : vector<1x128xf32>
    %248 = vector.shape_cast %247 : vector<1x128xf32> to vector<1x128xf32>
    %249 = vector.broadcast %248 : vector<1x128xf32> to vector<8x128xf32>
    %c0_140 = arith.constant 0 : index
    %c0_141 = arith.constant 0 : index
    %c0_142 = arith.constant 0 : index
    %250 = vector.load %arg8[%c0_140, %c0_141, %c0_142] : memref<1x8x128xf32, #tpu.memory_space<vmem>>, vector<1x8x128xf32>
    %251 = vector.shape_cast %250 : vector<1x8x128xf32> to vector<8x128xf32>
    %252 = vector.shape_cast %249 : vector<8x128xf32> to vector<1x8x128xf32>
    tpu.vector_store %arg8[%c0_140, %c0_141, %c0_142], %252 {strides = array<i32>} : memref<1x8x128xf32, #tpu.memory_space<vmem>>, vector<1x8x128xf32>,
    return
  }
  func.func @transform_0(%arg0: i32) -> (i32, i32, i32) {
    %c0_i32 = arith.constant 0 : i32
    %c0_i32_0 = arith.constant 0 : i32
    %c0_i32_1 = arith.constant 0 : i32
    return %arg0, %c0_i32, %c0_i32_0 : i32, i32, i32
  }
  func.func @transform_1(%arg0: i32) -> (i32, i32) {
    %c0_i32 = arith.constant 0 : i32
    %c0_i32_0 = arith.constant 0 : i32
    %c0_i32_1 = arith.constant 0 : i32
    return %c0_i32, %c0_i32_0 : i32, i32
  }
  func.func @transform_2(%arg0: i32) -> (i32, i32, i32) {
    %c0_i32 = arith.constant 0 : i32
    %c0_i32_0 = arith.constant 0 : i32
    %c0_i32_1 = arith.constant 0 : i32
    %c0_i32_2 = arith.constant 0 : i32
    return %c0_i32, %c0_i32_0, %c0_i32_1 : i32, i32, i32
  }
  func.func @transform_3(%arg0: i32) -> (i32, i32) {
    %c0_i32 = arith.constant 0 : i32
    %c0_i32_0 = arith.constant 0 : i32
    %c0_i32_1 = arith.constant 0 : i32
    return %c0_i32, %c0_i32_0 : i32, i32
  }
  func.func @transform_4(%arg0: i32) -> (i32, i32) {
    %c0_i32 = arith.constant 0 : i32
    %c0_i32_0 = arith.constant 0 : i32
    %c0_i32_1 = arith.constant 0 : i32
    return %c0_i32, %c0_i32_0 : i32, i32
  }
  func.func @transform_5(%arg0: i32) -> (i32, i32) {
    %c0_i32 = arith.constant 0 : i32
    %c0_i32_0 = arith.constant 0 : i32
    %c0_i32_1 = arith.constant 0 : i32
    return %c0_i32, %c0_i32_0 : i32, i32
  }
  func.func @transform_6(%arg0: i32) -> (i32, i32) {
    %c0_i32 = arith.constant 0 : i32
    %c0_i32_0 = arith.constant 0 : i32
    %c0_i32_1 = arith.constant 0 : i32
    return %c0_i32, %c0_i32_0 : i32, i32
  }
  func.func @transform_7(%arg0: i32) -> (i32, i32, i32) {
    %c0_i32 = arith.constant 0 : i32
    %c0_i32_0 = arith.constant 0 : i32
    %c0_i32_1 = arith.constant 0 : i32
    return %arg0, %c0_i32, %c0_i32_0 : i32, i32, i32
  }
}

</mosaic_0001>

<llo_original>
// kernel: maxvit_v2_forward.1
$region0: #{maxvit_v2_forward.1}
  #allocation0 [shape = 'u32[]', space=smem, size = 0x4, offset = 0x4, fixed_abs, tag = 'smem constant byte address 0x4 - core index']
  #allocation1 [shape = 'u32[72,128]{1,0:T(1,128)}', space=vmem, size = 0x9000, scoped, tag = 'internal scratch']
  #allocation2 [shape = 'f32[320,128]{1,0:T(8,128)}', space=vmem, size = 0x28000, scoped, tag = 'scratch operand']
  %s0 = inlined_call_operand.vmem [shape: bf16[2,256,128], index: 0, kind: input, shape index: {}]
  %s1 = inlined_call_operand.vmem [shape: bf16[1152,128], index: 1, kind: input, shape index: {}]
  %s2 = inlined_call_operand.vmem [shape: bf16[8,128,128], index: 2, kind: input, shape index: {}]
  %s3 = inlined_call_operand.vmem [shape: f32[9,128], index: 3, kind: input, shape index: {}]
  %s4 = inlined_call_operand.vmem [shape: bf16[64,256], index: 4, kind: input, shape index: {}]
  %s5 = inlined_call_operand.vmem [shape: f32[8,128], index: 5, kind: input, shape index: {}]
  %s6 = inlined_call_operand.vmem [shape: f32[16,128], index: 6, kind: input, shape index: {}]
  %s7 = inlined_call_operand.vmem [shape: f32[2,8,128], index: 7, kind: output, shape index: {}]
  %s8 = sld [smem:[#allocation0]]
  $region61: #{maxvit_v2_forward.1} parent=0
    _
  %s10 = ssub.s32 1, %s8
  %s11 = scalar_select 0, %s10, %s8
  loop: start=0, step=1, limit=4
  $region2: #{maxvit_v2_forward.1} parent=0 // loop_pre_header
    _
  $region3: #{maxvit_v2_forward.1} parent=0 // loop_header
    %s13 = sphi 0, %s17
    %p14 = scmp.ge.s32.totalorder %s13, 4
    %s23 = sphi 0, %s25
    %s26 = sphi 0, %s23
    %s27 = sphi 0, %s26
    %s43 = sphi 0, %s27
    %s47 = sphi 0, %s47
    %s49 = sphi 0, %s47
    %s50 = sphi 0, %s49
    %s64 = sphi 0, %s50
    %s68 = sphi 0, %s68
    %s70 = sphi 0, %s68
    %s71 = sphi 0, %s70
    %s85 = sphi 0, %s71
    %s89 = sphi 0, %s89
    %s91 = sphi 0, %s89
    %s92 = sphi 0, %s91
    %s106 = sphi 0, %s92
    %s110 = sphi 0, %s110
    %s112 = sphi 0, %s110
    %s113 = sphi 0, %s112
    %s127 = sphi 0, %s113
    %s131 = sphi 0, %s131
    %s133 = sphi 0, %s131
    %s134 = sphi 0, %s133
    %s148 = sphi 0, %s134
    %s152 = sphi 0, %s152
    %s154 = sphi 0, %s152
    %s155 = sphi 0, %s154
    %s169 = sphi 0, %s155
    %s175 = sphi 0, %s177
    %s178 = sphi 0, %s175
    %s179 = sphi 0, %s178
    %s195 = sphi 0, %s179
  $region4: #{maxvit_v2_forward.1} parent=0 // loop_header_branch
    %16 = sbr.rel (%p14) target = $region8
  $region5: #{maxvit_v2_forward.1} parent=0 // loop_body
    %s18 = ssub.s32 %s13, 1
    %s19 = ssub.s32 %s13, 2
    %s20 = sadd.s32 %s13, 1
    %s21 = ssub.s32 %s13, %s20
    %p22 = scmp.eq.s32.totalorder %s21, 0
    %s24 = sadd.s32 %s23, 1
    %s25 = scalar_select %p22, %s23, %s24
    %p28 = pneg %p22
    %p29 = scmp.eq.s32.totalorder %s13, 1
    %p30 = por %p28, %p29
    %p31 = scmp.ne.s32.totalorder %s23, %s26
    %p32 = scmp.eq.s32.totalorder %s13, 0
    %p33 = por %p31, %p32
    %p34 = scmp.ne.s32.totalorder %s23, %s26
    %p35 = scmp.eq.s32.totalorder %s18, 1
    %p36 = por %p34, %p35
    %p37 = scmp.ne.s32.totalorder %s26, %s27
    %p38 = scmp.eq.s32.totalorder %s18, 0
    %p39 = por %p37, %p38
    %p40 = scmp.ne.s32.totalorder %s26, %s27
    %p41 = scmp.eq.s32.totalorder %s19, 1
    %p42 = por %p40, %p41
    %p44 = scmp.ne.s32.totalorder %s27, %s43
    %p45 = scmp.eq.s32.totalorder %s19, 0
    %p46 = por %p44, %p45
    %s48 = sadd.s32 %s47, 1
    %p51 = scmp.eq.s32.totalorder %s13, 1
    %p52 = scmp.ne.s32.totalorder %s47, %s49
    %p53 = scmp.eq.s32.totalorder %s13, 0
    %p54 = por %p52, %p53
    %p55 = scmp.ne.s32.totalorder %s47, %s49
    %p56 = scmp.eq.s32.totalorder %s18, 1
    %p57 = por %p55, %p56
    %p58 = scmp.ne.s32.totalorder %s49, %s50
    %p59 = scmp.eq.s32.totalorder %s18, 0
    %p60 = por %p58, %p59
    %p61 = scmp.ne.s32.totalorder %s49, %s50
    %p62 = scmp.eq.s32.totalorder %s19, 1
    %p63 = por %p61, %p62
    %p65 = scmp.ne.s32.totalorder %s50, %s64
    %p66 = scmp.eq.s32.totalorder %s19, 0
    %p67 = por %p65, %p66
    %s69 = sadd.s32 %s68, 1
    %p72 = scmp.eq.s32.totalorder %s13, 1
    %p73 = scmp.ne.s32.totalorder %s68, %s70
    %p74 = scmp.eq.s32.totalorder %s13, 0
    %p75 = por %p73, %p74
    %p76 = scmp.ne.s32.totalorder %s68, %s70
    %p77 = scmp.eq.s32.totalorder %s18, 1
    %p78 = por %p76, %p77
    %p79 = scmp.ne.s32.totalorder %s70, %s71
    %p80 = scmp.eq.s32.totalorder %s18, 0
    %p81 = por %p79, %p80
    %p82 = scmp.ne.s32.totalorder %s70, %s71
    %p83 = scmp.eq.s32.totalorder %s19, 1
    %p84 = por %p82, %p83
    %p86 = scmp.ne.s32.totalorder %s71, %s85
    %p87 = scmp.eq.s32.totalorder %s19, 0
    %p88 = por %p86, %p87
    %s90 = sadd.s32 %s89, 1
    %p93 = scmp.eq.s32.totalorder %s13, 1
    %p94 = scmp.ne.s32.totalorder %s89, %s91
    %p95 = scmp.eq.s32.totalorder %s13, 0
    %p96 = por %p94, %p95
    %p97 = scmp.ne.s32.totalorder %s89, %s91
    %p98 = scmp.eq.s32.totalorder %s18, 1
    %p99 = por %p97, %p98
    %p100 = scmp.ne.s32.totalorder %s91, %s92
    %p101 = scmp.eq.s32.totalorder %s18, 0
    %p102 = por %p100, %p101
    %p103 = scmp.ne.s32.totalorder %s91, %s92
    %p104 = scmp.eq.s32.totalorder %s19, 1
    %p105 = por %p103, %p104
    %p107 = scmp.ne.s32.totalorder %s92, %s106
    %p108 = scmp.eq.s32.totalorder %s19, 0
    %p109 = por %p107, %p108
    %s111 = sadd.s32 %s110, 1
    %p114 = scmp.eq.s32.totalorder %s13, 1
    %p115 = scmp.ne.s32.totalorder %s110, %s112
    %p116 = scmp.eq.s32.totalorder %s13, 0
    %p117 = por %p115, %p116
    %p118 = scmp.ne.s32.totalorder %s110, %s112
    %p119 = scmp.eq.s32.totalorder %s18, 1
    %p120 = por %p118, %p119
    %p121 = scmp.ne.s32.totalorder %s112, %s113
    %p122 = scmp.eq.s32.totalorder %s18, 0
    %p123 = por %p121, %p122
    %p124 = scmp.ne.s32.totalorder %s112, %s113
    %p125 = scmp.eq.s32.totalorder %s19, 1
    %p126 = por %p124, %p125
    %p128 = scmp.ne.s32.totalorder %s113, %s127
    %p129 = scmp.eq.s32.totalorder %s19, 0
    %p130 = por %p128, %p129
    %s132 = sadd.s32 %s131, 1
    %p135 = scmp.eq.s32.totalorder %s13, 1
    %p136 = scmp.ne.s32.totalorder %s131, %s133
    %p137 = scmp.eq.s32.totalorder %s13, 0
    %p138 = por %p136, %p137
    %p139 = scmp.ne.s32.totalorder %s131, %s133
    %p140 = scmp.eq.s32.totalorder %s18, 1
    %p141 = por %p139, %p140
    %p142 = scmp.ne.s32.totalorder %s133, %s134
    %p143 = scmp.eq.s32.totalorder %s18, 0
    %p144 = por %p142, %p143
    %p145 = scmp.ne.s32.totalorder %s133, %s134
    %p146 = scmp.eq.s32.totalorder %s19, 1
    %p147 = por %p145, %p146
    %p149 = scmp.ne.s32.totalorder %s134, %s148
    %p150 = scmp.eq.s32.totalorder %s19, 0
    %p151 = por %p149, %p150
    %s153 = sadd.s32 %s152, 1
    %p156 = scmp.eq.s32.totalorder %s13, 1
    %p157 = scmp.ne.s32.totalorder %s152, %s154
    %p158 = scmp.eq.s32.totalorder %s13, 0
    %p159 = por %p157, %p158
    %p160 = scmp.ne.s32.totalorder %s152, %s154
    %p161 = scmp.eq.s32.totalorder %s18, 1
    %p162 = por %p160, %p161
    %p163 = scmp.ne.s32.totalorder %s154, %s155
    %p164 = scmp.eq.s32.totalorder %s18, 0
    %p165 = por %p163, %p164
    %p166 = scmp.ne.s32.totalorder %s154, %s155
    %p167 = scmp.eq.s32.totalorder %s19, 1
    %p168 = por %p166, %p167
    %p170 = scmp.ne.s32.totalorder %s155, %s169
    %p171 = scmp.eq.s32.totalorder %s19, 0
    %p172 = por %p170, %p171
    %s173 = ssub.s32 %s13, %s20
    %p174 = scmp.eq.s32.totalorder %s173, 0
    %s176 = sadd.s32 %s175, 1
    %s177 = scalar_select %p174, %s175, %s176
    %p180 = pneg %p174
    %p181 = scmp.eq.s32.totalorder %s13, 1
    %p182 = por %p180, %p181
    %p183 = scmp.ne.s32.totalorder %s175, %s178
    %p184 = scmp.eq.s32.totalorder %s13, 0
    %p185 = por %p183, %p184
    %p186 = scmp.ne.s32.totalorder %s175, %s178
    %p187 = scmp.eq.s32.totalorder %s18, 1
    %p188 = por %p186, %p187
    %p189 = scmp.ne.s32.totalorder %s178, %s179
    %p190 = scmp.eq.s32.totalorder %s18, 0
    %p191 = por %p189, %p190
    %p192 = scmp.ne.s32.totalorder %s178, %s179
    %p193 = scmp.eq.s32.totalorder %s19, 1
    %p194 = por %p192, %p193
    %p196 = scmp.ne.s32.totalorder %s179, %s195
    %p197 = scmp.eq.s32.totalorder %s19, 0
    %p198 = por %p196, %p197
    %p199 = scmp.le.s32.totalorder 1, %s13
    %p200 = scmp.lt.s32.totalorder %s13, 3
    %p201 = pnand %p199, %p200
    %p202 = pneg %p201
    // Predicated region
    $region9: #{maxvit_v2_forward.1} parent=5 // pred_check
      _
    $region10: #{maxvit_v2_forward.1} parent=5 // pred_check_branch
      %204 = sbr.rel (%p201) target = $region12
    $region11: #{maxvit_v2_forward.1} parent=5 // pred_region
      %s205 = ssub.s32 %s13, 1
      // Predicated region
      $region13: #{maxvit_v2_forward.1} parent=11 // pred_check
        %p206 = pneg %p60
      $region14: #{maxvit_v2_forward.1} parent=11 // pred_check_branch
        %208 = sbr.rel (%p206) target = $region16
      $region15: #{maxvit_v2_forward.1} parent=11 // pred_region
        _
      $region16: #{maxvit_v2_forward.1} parent=11 // pred_fallthru
        _
      // Predicated region
      $region17: #{maxvit_v2_forward.1} parent=11 // pred_check
        %p209 = pneg %p81
      $region18: #{maxvit_v2_forward.1} parent=11 // pred_check_branch
        %211 = sbr.rel (%p209) target = $region20
      $region19: #{maxvit_v2_forward.1} parent=11 // pred_region
        _
      $region20: #{maxvit_v2_forward.1} parent=11 // pred_fallthru
        _
      // Predicated region
      $region21: #{maxvit_v2_forward.1} parent=11 // pred_check
        %p212 = pneg %p102
      $region22: #{maxvit_v2_forward.1} parent=11 // pred_check_branch
        %214 = sbr.rel (%p212) target = $region24
      $region23: #{maxvit_v2_forward.1} parent=11 // pred_region
        _
      $region24: #{maxvit_v2_forward.1} parent=11 // pred_fallthru
        _
      // Predicated region
      $region25: #{maxvit_v2_forward.1} parent=11 // pred_check
        %p215 = pneg %p123
      $region26: #{maxvit_v2_forward.1} parent=11 // pred_check_branch
        %217 = sbr.rel (%p215) target = $region28
      $region27: #{maxvit_v2_forward.1} parent=11 // pred_region
        _
      $region28: #{maxvit_v2_forward.1} parent=11 // pred_fallthru
        _
      // Predicated region
      $region29: #{maxvit_v2_forward.1} parent=11 // pred_check
        %p218 = pneg %p144
      $region30: #{maxvit_v2_forward.1} parent=11 // pred_check_branch
        %220 = sbr.rel (%p218) target = $region32
      $region31: #{maxvit_v2_forward.1} parent=11 // pred_region
        _
      $region32: #{maxvit_v2_forward.1} parent=11 // pred_fallthru
        _
      // Predicated region
      $region33: #{maxvit_v2_forward.1} parent=11 // pred_check
        %p221 = pneg %p165
      $region34: #{maxvit_v2_forward.1} parent=11 // pred_check_branch
        %223 = sbr.rel (%p221) target = $region36
      $region35: #{maxvit_v2_forward.1} parent=11 // pred_region
        _
      $region36: #{maxvit_v2_forward.1} parent=11 // pred_fallthru
        _
    $region12: #{maxvit_v2_forward.1} parent=5 // pred_fallthru
      _
    %p224 = scmp.lt.s32.totalorder %s13, 2
    // Predicated region
    $region37: #{maxvit_v2_forward.1} parent=5 // pred_check
      %p225 = pneg %p224
    $region38: #{maxvit_v2_forward.1} parent=5 // pred_check_branch
      %227 = sbr.rel (%p225) target = $region40
    $region39: #{maxvit_v2_forward.1} parent=5 // pred_region
      // Predicated region
      $region41: #{maxvit_v2_forward.1} parent=39 // pred_check
        %p228 = pneg %p33
      $region42: #{maxvit_v2_forward.1} parent=39 // pred_check_branch
        %230 = sbr.rel (%p228) target = $region44
      $region43: #{maxvit_v2_forward.1} parent=39 // pred_region
        %p231 = scmp.lt.s32.totalorder %s13, 1
        %s232 = scalar_select %p231, %s13, 1
        %s233 = smul.addr %s232, 32
        %s234 = smul.addr %s233, 4
        %s235 = scalar_lea.vmem %s0, %s234
      $region44: #{maxvit_v2_forward.1} parent=39 // pred_fallthru
        _
    $region40: #{maxvit_v2_forward.1} parent=5 // pred_fallthru
      _
    %p236 = scmp.le.s32.totalorder 1, %s13
    %p237 = scmp.lt.s32.totalorder %s13, 3
    %p238 = pnand %p236, %p237
    %p239 = pneg %p238
    // Predicated region
    $region45: #{maxvit_v2_forward.1} parent=5 // pred_check
      _
    $region46: #{maxvit_v2_forward.1} parent=5 // pred_check_branch
      %241 = sbr.rel (%p238) target = $region48
    $region47: #{maxvit_v2_forward.1} parent=5 // pred_region
      %s242 = ssub.s32 %s13, 1
      %p243 = scmp.lt.s32.totalorder %s18, 1
      %s244 = scalar_select %p243, %s18, 1
      %s245 = smul.addr %s244, 32
      %s246 = smul.addr %s245, 4
      %s247 = scalar_lea.vmem %s0, %s246
      %p248 = pneg %p39
      %p249 = pneg %p36
      %p250 = pneg %p60
      %p251 = pneg %p57
      %p252 = pneg %p81
      %p253 = pneg %p78
      %p254 = pneg %p102
      %p255 = pneg %p99
      %p256 = pneg %p123
      %p257 = pneg %p120
      %p258 = pneg %p144
      %p259 = pneg %p141
      %p260 = pneg %p165
      %p261 = pneg %p162
      %p262 = pneg %p191
      %p263 = pneg %p188
      %p264 = scmp.lt.s32.totalorder %s18, 1
      %s265 = scalar_select %p264, %s18, 1
      %s266 = smul.addr %s265, 8
      %s267 = scalar_lea.vmem %s7, %s266
      %p268 = scmp.lt.s32.totalorder %s18, 1
      %s269 = scalar_select %p268, %s18, 1
      %s270 = smul.addr %s269, 32
      %s271 = smul.addr %s270, 4
      %s272 = scalar_lea.vmem %s0, %s271
      %p273 = scmp.lt.s32.totalorder %s18, 1
      %s274 = scalar_select %p273, %s18, 1
      %s275 = smul.addr %s274, 8
      %s276 = scalar_lea.vmem %s7, %s275
      %277 = vst [vmem:[#allocation2] sm:$0xff] 0.0
      %278 = vst [vmem:[#allocation2 + $0x8] sm:$0xff] 0.0
      %279 = vst [vmem:[#allocation2 + $0x10] sm:$0xff] 0.0
      %280 = vst [vmem:[#allocation2 + $0x118] sm:$0xff] 0.0
      %281 = vst [vmem:[#allocation2 + $0x120] sm:$0xff] 0.0
      %282 = vst [vmem:[#allocation2 + $0x128] sm:$0xff] 0.0
      %283 = vst [vmem:[#allocation2 + $0x130] sm:$0xff] 0.0
      %284 = vst [vmem:[#allocation2 + $0x138] sm:$0xff] 0.0
      %v285 = vld [vmem:[%s272] sm:$0xf]
      %v286 = vld [vmem:[%s272 + $0x4] sm:$0xf]
      %v287 = vld [vmem:[%s272 + $0x8] sm:$0xf]
      %v288 = vld [vmem:[%s272 + $0xc] sm:$0xf]
      %v289 = vld [vmem:[%s272 + $0x10] sm:$0xf]
      %v290 = vld [vmem:[%s272 + $0x14] sm:$0xf]
      %v291 = vld [vmem:[%s272 + $0x18] sm:$0xf]
      %v292 = vld [vmem:[%s272 + $0x1c] sm:$0xf]
      %v293 = vld [vmem:[%s272 + $0x20] sm:$0xf]
      %v294 = vld [vmem:[%s272 + $0x24] sm:$0xf]
      %v295 = vld [vmem:[%s272 + $0x28] sm:$0xf]
      %v296 = vld [vmem:[%s272 + $0x2c] sm:$0xf]
      %v297 = vld [vmem:[%s272 + $0x30] sm:$0xf]
      %v298 = vld [vmem:[%s272 + $0x34] sm:$0xf]
      %v299 = vld [vmem:[%s272 + $0x38] sm:$0xf]
      %v300 = vld [vmem:[%s272 + $0x3c] sm:$0xf]
      %v301 = vld [vmem:[%s272 + $0x40] sm:$0xf]
      %v302 = vld [vmem:[%s272 + $0x44] sm:$0xf]
      %v303 = vld [vmem:[%s272 + $0x48] sm:$0xf]
      %v304 = vld [vmem:[%s272 + $0x4c] sm:$0xf]
      %v305 = vld [vmem:[%s272 + $0x50] sm:$0xf]
      %v306 = vld [vmem:[%s272 + $0x54] sm:$0xf]
      %v307 = vld [vmem:[%s272 + $0x58] sm:$0xf]
      %v308 = vld [vmem:[%s272 + $0x5c] sm:$0xf]
      %v309 = vld [vmem:[%s272 + $0x60] sm:$0xf]
      %v310 = vld [vmem:[%s272 + $0x64] sm:$0xf]
      %v311 = vld [vmem:[%s272 + $0x68] sm:$0xf]
      %v312 = vld [vmem:[%s272 + $0x6c] sm:$0xf]
      %v313 = vld [vmem:[%s272 + $0x70] sm:$0xf]
      %v314 = vld [vmem:[%s272 + $0x74] sm:$0xf]
      %v315 = vld [vmem:[%s272 + $0x78] sm:$0xf]
      %v316 = vld [vmem:[%s272 + $0x7c] sm:$0xf]
      %v317 = vld [vmem:[%s2] sm:$0xf]
      %v318 = vld [vmem:[%s2 + $0x4] sm:$0xf]
      %v319 = vld [vmem:[%s2 + $0x8] sm:$0xf]
      %v320 = vld [vmem:[%s2 + $0xc] sm:$0xf]
      %v321 = vld [vmem:[%s2 + $0x10] sm:$0xf]
      %v322 = vld [vmem:[%s2 + $0x14] sm:$0xf]
      %v323 = vld [vmem:[%s2 + $0x18] sm:$0xf]
      %v324 = vld [vmem:[%s2 + $0x1c] sm:$0xf]
      %v325 = vld [vmem:[%s2 + $0x20] sm:$0xf]
      %v326 = vld [vmem:[%s2 + $0x24] sm:$0xf]
      %v327 = vld [vmem:[%s2 + $0x28] sm:$0xf]
      %v328 = vld [vmem:[%s2 + $0x2c] sm:$0xf]
      %v329 = vld [vmem:[%s2 + $0x30] sm:$0xf]
      %v330 = vld [vmem:[%s2 + $0x34] sm:$0xf]
      %v331 = vld [vmem:[%s2 + $0x38] sm:$0xf]
      %v332 = vld [vmem:[%s2 + $0x3c] sm:$0xf]
      %v365 = vunpack.c.l.b16 %v285
      %v366 = vunpack.c.l.b16 %v286
      %v367 = vunpack.c.l.b16 %v287
      %v368 = vunpack.c.l.b16 %v288
      %v369 = vunpack.c.l.b16 %v289
      %v370 = vunpack.c.l.b16 %v290
      %v371 = vunpack.c.l.b16 %v291
      %v372 = vunpack.c.l.b16 %v292
      %v373 = vunpack.c.l.b16 %v293
      %v374 = vunpack.c.l.b16 %v294
      %v375 = vunpack.c.l.b16 %v295
      %v376 = vunpack.c.l.b16 %v296
      %v377 = vunpack.c.l.b16 %v297
      %v378 = vunpack.c.l.b16 %v298
      %v379 = vunpack.c.l.b16 %v299
      %v380 = vunpack.c.l.b16 %v300
      %v381 = vunpack.c.l.b16 %v301
      %v382 = vunpack.c.l.b16 %v302
      %v383 = vunpack.c.l.b16 %v303
      %v384 = vunpack.c.l.b16 %v304
      %v385 = vunpack.c.l.b16 %v305
      %v386 = vunpack.c.l.b16 %v306
      %v387 = vunpack.c.l.b16 %v307
      %v388 = vunpack.c.l.b16 %v308
      %v389 = vunpack.c.l.b16 %v309
      %v390 = vunpack.c.l.b16 %v310
      %v391 = vunpack.c.l.b16 %v311
      %v392 = vunpack.c.l.b16 %v312
      %v393 = vunpack.c.l.b16 %v313
      %v394 = vunpack.c.l.b16 %v314
      %v395 = vunpack.c.l.b16 %v315
      %v396 = vunpack.c.l.b16 %v316
      %v397 = vpack.c.b16 %v366, %v365
      %v398 = vpack.c.b16 %v368, %v367
      %v399 = vpack.c.b16 %v370, %v369
      %v400 = vpack.c.b16 %v372, %v371
      %v401 = vpack.c.b16 %v374, %v373
      %v402 = vpack.c.b16 %v376, %v375
      %v403 = vpack.c.b16 %v378, %v377
      %v404 = vpack.c.b16 %v380, %v379
      %v405 = vpack.c.b16 %v382, %v381
      %v406 = vpack.c.b16 %v384, %v383
      %v407 = vpack.c.b16 %v386, %v385
      %v408 = vpack.c.b16 %v388, %v387
      %v409 = vpack.c.b16 %v390, %v389
      %v410 = vpack.c.b16 %v392, %v391
      %v411 = vpack.c.b16 %v394, %v393
      %v412 = vpack.c.b16 %v396, %v395
      %v445 = vunpack.c.l.b16 %v317
      %v446 = vunpack.c.l.b16 %v318
      %v447 = vunpack.c.l.b16 %v319
      %v448 = vunpack.c.l.b16 %v320
      %v449 = vunpack.c.l.b16 %v321
      %v450 = vunpack.c.l.b16 %v322
      %v451 = vunpack.c.l.b16 %v323
      %v452 = vunpack.c.l.b16 %v324
      %v453 = vunpack.c.l.b16 %v325
      %v454 = vunpack.c.l.b16 %v326
      %v455 = vunpack.c.l.b16 %v327
      %v456 = vunpack.c.l.b16 %v328
      %v457 = vunpack.c.l.b16 %v329
      %v458 = vunpack.c.l.b16 %v330
      %v459 = vunpack.c.l.b16 %v331
      %v460 = vunpack.c.l.b16 %v332
      %v461 = vpack.c.b16 %v446, %v445
      %v462 = vpack.c.b16 %v448, %v447
      %v463 = vpack.c.b16 %v450, %v449
      %v464 = vpack.c.b16 %v452, %v451
      %v465 = vpack.c.b16 %v454, %v453
      %v466 = vpack.c.b16 %v456, %v455
      %v467 = vpack.c.b16 %v458, %v457
      %v468 = vpack.c.b16 %v460, %v459
      %477 = vmatpush.bf16.msra.mxu0 %v468
      %478 = vmatpush.bf16.msra.mxu0 %v467
      %479 = vmatpush.bf16.msra.mxu0 %v466
      %480 = vmatpush.bf16.msra.mxu0 %v465
      %481 = vmatpush.bf16.msra.mxu0 %v464
      %482 = vmatpush.bf16.msra.mxu0 %v463
      %483 = vmatpush.bf16.msra.mxu0 %v462
      %484 = vmatpush.bf16.msra.mxu0 %v461
      %485 = vmatmul.bf16.gmra.mxu0 %v397
      %v486 = vpop.f32.mrf.mxu0
      %v487 = vadd.f32 0.0, %v486
      %v488 = vpop.f32.mrf.mxu0
      %v489 = vadd.f32 0.0, %v488
      %490 = vmatmul.bf16.gmra.mxu0 %v398
      %v491 = vpop.f32.mrf.mxu0
      %v492 = vadd.f32 0.0, %v491
      %v493 = vpop.f32.mrf.mxu0
      %v494 = vadd.f32 0.0, %v493
      %495 = vmatmul.bf16.gmra.mxu0 %v399
      %v496 = vpop.f32.mrf.mxu0
      %v497 = vadd.f32 0.0, %v496
      %v498 = vpop.f32.mrf.mxu0
      %v499 = vadd.f32 0.0, %v498
      %500 = vmatmul.bf16.gmra.mxu0 %v400
      %v501 = vpop.f32.mrf.mxu0
      %v502 = vadd.f32 0.0, %v501
      %v503 = vpop.f32.mrf.mxu0
      %v504 = vadd.f32 0.0, %v503
      %505 = vmatmul.bf16.gmra.mxu0 %v401
      %v506 = vpop.f32.mrf.mxu0
      %v507 = vadd.f32 0.0, %v506
      %v508 = vpop.f32.mrf.mxu0
      %v509 = vadd.f32 0.0, %v508
      %510 = vmatmul.bf16.gmra.mxu0 %v402
      %v511 = vpop.f32.mrf.mxu0
      %v512 = vadd.f32 0.0, %v511
      %v513 = vpop.f32.mrf.mxu0
      %v514 = vadd.f32 0.0, %v513
      %515 = vmatmul.bf16.gmra.mxu0 %v403
      %v516 = vpop.f32.mrf.mxu0
      %v517 = vadd.f32 0.0, %v516
      %v518 = vpop.f32.mrf.mxu0
      %v519 = vadd.f32 0.0, %v518
      %520 = vmatmul.bf16.gmra.mxu0 %v404
      %v521 = vpop.f32.mrf.mxu0
      %v522 = vadd.f32 0.0, %v521
      %v523 = vpop.f32.mrf.mxu0
      %v524 = vadd.f32 0.0, %v523
      %525 = vmatmul.bf16.gmra.mxu0 %v405
      %v526 = vpop.f32.mrf.mxu0
      %v527 = vadd.f32 0.0, %v526
      %v528 = vpop.f32.mrf.mxu0
      %v529 = vadd.f32 0.0, %v528
      %530 = vmatmul.bf16.gmra.mxu0 %v406
      %v531 = vpop.f32.mrf.mxu0
      %v532 = vadd.f32 0.0, %v531
      %v533 = vpop.f32.mrf.mxu0
      %v534 = vadd.f32 0.0, %v533
      %535 = vmatmul.bf16.gmra.mxu0 %v407
      %v536 = vpop.f32.mrf.mxu0
      %v537 = vadd.f32 0.0, %v536
      %v538 = vpop.f32.mrf.mxu0
      %v539 = vadd.f32 0.0, %v538
      %540 = vmatmul.bf16.gmra.mxu0 %v408
      %v541 = vpop.f32.mrf.mxu0
      %v542 = vadd.f32 0.0, %v541
      %v543 = vpop.f32.mrf.mxu0
      %v544 = vadd.f32 0.0, %v543
      %545 = vmatmul.bf16.gmra.mxu0 %v409
      %v546 = vpop.f32.mrf.mxu0
      %v547 = vadd.f32 0.0, %v546
      %v548 = vpop.f32.mrf.mxu0
      %v549 = vadd.f32 0.0, %v548
      %550 = vmatmul.bf16.gmra.mxu0 %v410
      %v551 = vpop.f32.mrf.mxu0
      %v552 = vadd.f32 0.0, %v551
      %v553 = vpop.f32.mrf.mxu0
      %v554 = vadd.f32 0.0, %v553
      %555 = vmatmul.bf16.gmra.mxu0 %v411
      %v556 = vpop.f32.mrf.mxu0
      %v557 = vadd.f32 0.0, %v556
      %v558 = vpop.f32.mrf.mxu0
      %v559 = vadd.f32 0.0, %v558
      %560 = vmatmul.bf16.gmra.mxu0 %v412
      %v561 = vpop.f32.mrf.mxu0
      %v562 = vadd.f32 0.0, %v561
      %v563 = vpop.f32.mrf.mxu0
      %v564 = vadd.f32 0.0, %v563
      %565 = vdwg.mxu0
      %v566 = vld [vmem:[%s5] sm:$0x1]
      %v567 = vperm.slane %v566, 0
      %v568 = vmul.f32 %v487, %v567
      %v569 = vmul.f32 %v489, %v567
      %v570 = vmul.f32 %v492, %v567
      %v571 = vmul.f32 %v494, %v567
      %v572 = vmul.f32 %v497, %v567
      %v573 = vmul.f32 %v499, %v567
      %v574 = vmul.f32 %v502, %v567
      %v575 = vmul.f32 %v504, %v567
      %v576 = vmul.f32 %v507, %v567
      %v577 = vmul.f32 %v509, %v567
      %v578 = vmul.f32 %v512, %v567
      %v579 = vmul.f32 %v514, %v567
      %v580 = vmul.f32 %v517, %v567
      %v581 = vmul.f32 %v519, %v567
      %v582 = vmul.f32 %v522, %v567
      %v583 = vmul.f32 %v524, %v567
      %v584 = vmul.f32 %v527, %v567
      %v585 = vmul.f32 %v529, %v567
      %v586 = vmul.f32 %v532, %v567
      %v587 = vmul.f32 %v534, %v567
      %v588 = vmul.f32 %v537, %v567
      %v589 = vmul.f32 %v539, %v567
      %v590 = vmul.f32 %v542, %v567
      %v591 = vmul.f32 %v544, %v567
      %v592 = vmul.f32 %v547, %v567
      %v593 = vmul.f32 %v549, %v567
      %v594 = vmul.f32 %v552, %v567
      %v595 = vmul.f32 %v554, %v567
      %v596 = vmul.f32 %v557, %v567
      %v597 = vmul.f32 %v559, %v567
      %v598 = vmul.f32 %v562, %v567
      %v599 = vmul.f32 %v564, %v567
      %v600 = vld [vmem:[%s6] sm:$0x1]
      %v601 = vperm.slane %v600, 0
      %v602 = vadd.f32 %v568, %v601
      %v603 = vadd.f32 %v569, %v601
      %v604 = vadd.f32 %v570, %v601
      %v605 = vadd.f32 %v571, %v601
      %v606 = vadd.f32 %v572, %v601
      %v607 = vadd.f32 %v573, %v601
      %v608 = vadd.f32 %v574, %v601
      %v609 = vadd.f32 %v575, %v601
      %v610 = vadd.f32 %v576, %v601
      %v611 = vadd.f32 %v577, %v601
      %v612 = vadd.f32 %v578, %v601
      %v613 = vadd.f32 %v579, %v601
      %v614 = vadd.f32 %v580, %v601
      %v615 = vadd.f32 %v581, %v601
      %v616 = vadd.f32 %v582, %v601
      %v617 = vadd.f32 %v583, %v601
      %v618 = vadd.f32 %v584, %v601
      %v619 = vadd.f32 %v585, %v601
      %v620 = vadd.f32 %v586, %v601
      %v621 = vadd.f32 %v587, %v601
      %v622 = vadd.f32 %v588, %v601
      %v623 = vadd.f32 %v589, %v601
      %v624 = vadd.f32 %v590, %v601
      %v625 = vadd.f32 %v591, %v601
      %v626 = vadd.f32 %v592, %v601
      %v627 = vadd.f32 %v593, %v601
      %v628 = vadd.f32 %v594, %v601
      %v629 = vadd.f32 %v595, %v601
      %v630 = vadd.f32 %v596, %v601
      %v631 = vadd.f32 %v597, %v601
      %v632 = vadd.f32 %v598, %v601
      %v633 = vadd.f32 %v599, %v601
      %v634 = vxor.u32 %v602, 2147483648
      %v635 = vxor.u32 %v603, 2147483648
      %v636 = vxor.u32 %v604, 2147483648
      %v637 = vxor.u32 %v605, 2147483648
      %v638 = vxor.u32 %v606, 2147483648
      %v639 = vxor.u32 %v607, 2147483648
      %v640 = vxor.u32 %v608, 2147483648
      %v641 = vxor.u32 %v609, 2147483648
      %v642 = vxor.u32 %v610, 2147483648
      %v643 = vxor.u32 %v611, 2147483648
      %v644 = vxor.u32 %v612, 2147483648
      %v645 = vxor.u32 %v613, 2147483648
      %v646 = vxor.u32 %v614, 2147483648
      %v647 = vxor.u32 %v615, 2147483648
      %v648 = vxor.u32 %v616, 2147483648
      %v649 = vxor.u32 %v617, 2147483648
      %v650 = vxor.u32 %v618, 2147483648
      %v651 = vxor.u32 %v619, 2147483648
      %v652 = vxor.u32 %v620, 2147483648
      %v653 = vxor.u32 %v621, 2147483648
      %v654 = vxor.u32 %v622, 2147483648
      %v655 = vxor.u32 %v623, 2147483648
      %v656 = vxor.u32 %v624, 2147483648
      %v657 = vxor.u32 %v625, 2147483648
      %v658 = vxor.u32 %v626, 2147483648
      %v659 = vxor.u32 %v627, 2147483648
      %v660 = vxor.u32 %v628, 2147483648
      %v661 = vxor.u32 %v629, 2147483648
      %v662 = vxor.u32 %v630, 2147483648
      %v663 = vxor.u32 %v631, 2147483648
      %v664 = vxor.u32 %v632, 2147483648
      %v665 = vxor.u32 %v633, 2147483648
      %v666 = vmul.f32 %v634, 1.442695
      %v667 = vpow.pop %v666
      %v668 = vmul.f32 %v635, 1.442695
      %v669 = vpow.pop %v668
      %v670 = vmul.f32 %v636, 1.442695
      %v671 = vpow.pop %v670
      %v672 = vmul.f32 %v637, 1.442695
      %v673 = vpow.pop %v672
      %v674 = vmul.f32 %v638, 1.442695
      %v675 = vpow.pop %v674
      %v676 = vmul.f32 %v639, 1.442695
      %v677 = vpow.pop %v676
      %v678 = vmul.f32 %v640, 1.442695
      %v679 = vpow.pop %v678
      %v680 = vmul.f32 %v641, 1.442695
      %v681 = vpow.pop %v680
      %v682 = vmul.f32 %v642, 1.442695
      %v683 = vpow.pop %v682
      %v684 = vmul.f32 %v643, 1.442695
      %v685 = vpow.pop %v684
      %v686 = vmul.f32 %v644, 1.442695
      %v687 = vpow.pop %v686
      %v688 = vmul.f32 %v645, 1.442695
      %v689 = vpow.pop %v688
      %v690 = vmul.f32 %v646, 1.442695
      %v691 = vpow.pop %v690
      %v692 = vmul.f32 %v647, 1.442695
      %v693 = vpow.pop %v692
      %v694 = vmul.f32 %v648, 1.442695
      %v695 = vpow.pop %v694
      %v696 = vmul.f32 %v649, 1.442695
      %v697 = vpow.pop %v696
      %v698 = vmul.f32 %v650, 1.442695
      %v699 = vpow.pop %v698
      %v700 = vmul.f32 %v651, 1.442695
      %v701 = vpow.pop %v700
      %v702 = vmul.f32 %v652, 1.442695
      %v703 = vpow.pop %v702
      %v704 = vmul.f32 %v653, 1.442695
      %v705 = vpow.pop %v704
      %v706 = vmul.f32 %v654, 1.442695
      %v707 = vpow.pop %v706
      %v708 = vmul.f32 %v655, 1.442695
      %v709 = vpow.pop %v708
      %v710 = vmul.f32 %v656, 1.442695
      %v711 = vpow.pop %v710
      %v712 = vmul.f32 %v657, 1.442695
      %v713 = vpow.pop %v712
      %v714 = vmul.f32 %v658, 1.442695
      %v715 = vpow.pop %v714
      %v716 = vmul.f32 %v659, 1.442695
      %v717 = vpow.pop %v716
      %v718 = vmul.f32 %v660, 1.442695
      %v719 = vpow.pop %v718
      %v720 = vmul.f32 %v661, 1.442695
      %v721 = vpow.pop %v720
      %v722 = vmul.f32 %v662, 1.442695
      %v723 = vpow.pop %v722
      %v724 = vmul.f32 %v663, 1.442695
      %v725 = vpow.pop %v724
      %v726 = vmul.f32 %v664, 1.442695
      %v727 = vpow.pop %v726
      %v728 = vmul.f32 %v665, 1.442695
      %v729 = vpow.pop %v728
      %v730 = vadd.f32 %v667, 1.0
      %v731 = vadd.f32 %v669, 1.0
      %v732 = vadd.f32 %v671, 1.0
      %v733 = vadd.f32 %v673, 1.0
      %v734 = vadd.f32 %v675, 1.0
      %v735 = vadd.f32 %v677, 1.0
      %v736 = vadd.f32 %v679, 1.0
      %v737 = vadd.f32 %v681, 1.0
      %v738 = vadd.f32 %v683, 1.0
      %v739 = vadd.f32 %v685, 1.0
      %v740 = vadd.f32 %v687, 1.0
      %v741 = vadd.f32 %v689, 1.0
      %v742 = vadd.f32 %v691, 1.0
      %v743 = vadd.f32 %v693, 1.0
      %v744 = vadd.f32 %v695, 1.0
      %v745 = vadd.f32 %v697, 1.0
      %v746 = vadd.f32 %v699, 1.0
      %v747 = vadd.f32 %v701, 1.0
      %v748 = vadd.f32 %v703, 1.0
      %v749 = vadd.f32 %v705, 1.0
      %v750 = vadd.f32 %v707, 1.0
      %v751 = vadd.f32 %v709, 1.0
      %v752 = vadd.f32 %v711, 1.0
      %v753 = vadd.f32 %v713, 1.0
      %v754 = vadd.f32 %v715, 1.0
      %v755 = vadd.f32 %v717, 1.0
      %v756 = vadd.f32 %v719, 1.0
      %v757 = vadd.f32 %v721, 1.0
      %v758 = vadd.f32 %v723, 1.0
      %v759 = vadd.f32 %v725, 1.0
      %v760 = vadd.f32 %v727, 1.0
      %v761 = vadd.f32 %v729, 1.0
      %v762 = vrcp.pop %v730
      %v763 = vmul.f32 %v730, %v762
      %v764 = vsub.f32 1.0, %v763
      %v765 = vmul.f32 %v762, %v764
      %v766 = vadd.f32 %v762, %v765
      %vm767 = vweird.f32 %v730
      %vm768 = vweird.f32 %v762
      %vm769 = vmor %vm767, %vm768
      %v770 = vsel %vm769, %v762, %v766
      %v771 = vand.u32 2147483647, %v730
      %vm772 = vcmp.eq.f32.partialorder %v771, 8.507059e+37
      %v773 = vand.u32 %v730, 2147483648
      %v774 = vor.u32 1.1754944e-38, %v773
      %v775 = vsel %vm772, %v774, %v770
      %v776 = vmul.f32 1.0, %v775
      %v777 = vrcp.pop %v731
      %v778 = vmul.f32 %v731, %v777
      %v779 = vsub.f32 1.0, %v778
      %v780 = vmul.f32 %v777, %v779
      %v781 = vadd.f32 %v777, %v780
      %vm782 = vweird.f32 %v731
      %vm783 = vweird.f32 %v777
      %vm784 = vmor %vm782, %vm783
      %v785 = vsel %vm784, %v777, %v781
      %v786 = vand.u32 2147483647, %v731
      %vm787 = vcmp.eq.f32.partialorder %v786, 8.507059e+37
      %v788 = vand.u32 %v731, 2147483648
      %v789 = vor.u32 1.1754944e-38, %v788
      %v790 = vsel %vm787, %v789, %v785
      %v791 = vmul.f32 1.0, %v790
      %v792 = vrcp.pop %v732
      %v793 = vmul.f32 %v732, %v792
      %v794 = vsub.f32 1.0, %v793
      %v795 = vmul.f32 %v792, %v794
      %v796 = vadd.f32 %v792, %v795
      %vm797 = vweird.f32 %v732
      %vm798 = vweird.f32 %v792
      %vm799 = vmor %vm797, %vm798
      %v800 = vsel %vm799, %v792, %v796
      %v801 = vand.u32 2147483647, %v732
      %vm802 = vcmp.eq.f32.partialorder %v801, 8.507059e+37
      %v803 = vand.u32 %v732, 2147483648
      %v804 = vor.u32 1.1754944e-38, %v803
      %v805 = vsel %vm802, %v804, %v800
      %v806 = vmul.f32 1.0, %v805
      %v807 = vrcp.pop %v733
      %v808 = vmul.f32 %v733, %v807
      %v809 = vsub.f32 1.0, %v808
      %v810 = vmul.f32 %v807, %v809
      %v811 = vadd.f32 %v807, %v810
      %vm812 = vweird.f32 %v733
      %vm813 = vweird.f32 %v807
      %vm814 = vmor %vm812, %vm813
      %v815 = vsel %vm814, %v807, %v811
      %v816 = vand.u32 2147483647, %v733
      %vm817 = vcmp.eq.f32.partialorder %v816, 8.507059e+37
      %v818 = vand.u32 %v733, 2147483648
      %v819 = vor.u32 1.1754944e-38, %v818
      %v820 = vsel %vm817, %v819, %v815
      %v821 = vmul.f32 1.0, %v820
      %v822 = vrcp.pop %v734
      %v823 = vmul.f32 %v734, %v822
      %v824 = vsub.f32 1.0, %v823
      %v825 = vmul.f32 %v822, %v824
      %v826 = vadd.f32 %v822, %v825
      %vm827 = vweird.f32 %v734
      %vm828 = vweird.f32 %v822
      %vm829 = vmor %vm827, %vm828
      %v830 = vsel %vm829, %v822, %v826
      %v831 = vand.u32 2147483647, %v734
      %vm832 = vcmp.eq.f32.partialorder %v831, 8.507059e+37
      %v833 = vand.u32 %v734, 2147483648
      %v834 = vor.u32 1.1754944e-38, %v833
      %v835 = vsel %vm832, %v834, %v830
      %v836 = vmul.f32 1.0, %v835
      %v837 = vrcp.pop %v735
      %v838 = vmul.f32 %v735, %v837
      %v839 = vsub.f32 1.0, %v838
      %v840 = vmul.f32 %v837, %v839
      %v841 = vadd.f32 %v837, %v840
      %vm842 = vweird.f32 %v735
      %vm843 = vweird.f32 %v837
      %vm844 = vmor %vm842, %vm843
      %v845 = vsel %vm844, %v837, %v841
      %v846 = vand.u32 2147483647, %v735
      %vm847 = vcmp.eq.f32.partialorder %v846, 8.507059e+37
      %v848 = vand.u32 %v735, 2147483648
      %v849 = vor.u32 1.1754944e-38, %v848
      %v850 = vsel %vm847, %v849, %v845
      %v851 = vmul.f32 1.0, %v850
      %v852 = vrcp.pop %v736
      %v853 = vmul.f32 %v736, %v852
      %v854 = vsub.f32 1.0, %v853
      %v855 = vmul.f32 %v852, %v854
      %v856 = vadd.f32 %v852, %v855
      %vm857 = vweird.f32 %v736
      %vm858 = vweird.f32 %v852
      %vm859 = vmor %vm857, %vm858
      %v860 = vsel %vm859, %v852, %v856
      %v861 = vand.u32 2147483647, %v736
      %vm862 = vcmp.eq.f32.partialorder %v861, 8.507059e+37
      %v863 = vand.u32 %v736, 2147483648
      %v864 = vor.u32 1.1754944e-38, %v863
      %v865 = vsel %vm862, %v864, %v860
      %v866 = vmul.f32 1.0, %v865
      %v867 = vrcp.pop %v737
      %v868 = vmul.f32 %v737, %v867
      %v869 = vsub.f32 1.0, %v868
      %v870 = vmul.f32 %v867, %v869
      %v871 = vadd.f32 %v867, %v870
      %vm872 = vweird.f32 %v737
      %vm873 = vweird.f32 %v867
      %vm874 = vmor %vm872, %vm873
      %v875 = vsel %vm874, %v867, %v871
      %v876 = vand.u32 2147483647, %v737
      %vm877 = vcmp.eq.f32.partialorder %v876, 8.507059e+37
      %v878 = vand.u32 %v737, 2147483648
      %v879 = vor.u32 1.1754944e-38, %v878
      %v880 = vsel %vm877, %v879, %v875
      %v881 = vmul.f32 1.0, %v880
      %v882 = vrcp.pop %v738
      %v883 = vmul.f32 %v738, %v882
      %v884 = vsub.f32 1.0, %v883
      %v885 = vmul.f32 %v882, %v884
      %v886 = vadd.f32 %v882, %v885
      %vm887 = vweird.f32 %v738
      %vm888 = vweird.f32 %v882
      %vm889 = vmor %vm887, %vm888
      %v890 = vsel %vm889, %v882, %v886
      %v891 = vand.u32 2147483647, %v738
      %vm892 = vcmp.eq.f32.partialorder %v891, 8.507059e+37
      %v893 = vand.u32 %v738, 2147483648
      %v894 = vor.u32 1.1754944e-38, %v893
      %v895 = vsel %vm892, %v894, %v890
      %v896 = vmul.f32 1.0, %v895
      %v897 = vrcp.pop %v739
      %v898 = vmul.f32 %v739, %v897
      %v899 = vsub.f32 1.0, %v898
      %v900 = vmul.f32 %v897, %v899
      %v901 = vadd.f32 %v897, %v900
      %vm902 = vweird.f32 %v739
      %vm903 = vweird.f32 %v897
      %vm904 = vmor %vm902, %vm903
      %v905 = vsel %vm904, %v897, %v901
      %v906 = vand.u32 2147483647, %v739
      %vm907 = vcmp.eq.f32.partialorder %v906, 8.507059e+37
      %v908 = vand.u32 %v739, 2147483648
      %v909 = vor.u32 1.1754944e-38, %v908
      %v910 = vsel %vm907, %v909, %v905
      %v911 = vmul.f32 1.0, %v910
      %v912 = vrcp.pop %v740
      %v913 = vmul.f32 %v740, %v912
      %v914 = vsub.f32 1.0, %v913
      %v915 = vmul.f32 %v912, %v914
      %v916 = vadd.f32 %v912, %v915
      %vm917 = vweird.f32 %v740
      %vm918 = vweird.f32 %v912
      %vm919 = vmor %vm917, %vm918
      %v920 = vsel %vm919, %v912, %v916
      %v921 = vand.u32 2147483647, %v740
      %vm922 = vcmp.eq.f32.partialorder %v921, 8.507059e+37
      %v923 = vand.u32 %v740, 2147483648
      %v924 = vor.u32 1.1754944e-38, %v923
      %v925 = vsel %vm922, %v924, %v920
      %v926 = vmul.f32 1.0, %v925
      %v927 = vrcp.pop %v741
      %v928 = vmul.f32 %v741, %v927
      %v929 = vsub.f32 1.0, %v928
      %v930 = vmul.f32 %v927, %v929
      %v931 = vadd.f32 %v927, %v930
      %vm932 = vweird.f32 %v741
      %vm933 = vweird.f32 %v927
      %vm934 = vmor %vm932, %vm933
      %v935 = vsel %vm934, %v927, %v931
      %v936 = vand.u32 2147483647, %v741
      %vm937 = vcmp.eq.f32.partialorder %v936, 8.507059e+37
      %v938 = vand.u32 %v741, 2147483648
      %v939 = vor.u32 1.1754944e-38, %v938
      %v940 = vsel %vm937, %v939, %v935
      %v941 = vmul.f32 1.0, %v940
      %v942 = vrcp.pop %v742
      %v943 = vmul.f32 %v742, %v942
      %v944 = vsub.f32 1.0, %v943
      %v945 = vmul.f32 %v942, %v944
      %v946 = vadd.f32 %v942, %v945
      %vm947 = vweird.f32 %v742
      %vm948 = vweird.f32 %v942
      %vm949 = vmor %vm947, %vm948
      %v950 = vsel %vm949, %v942, %v946
      %v951 = vand.u32 2147483647, %v742
      %vm952 = vcmp.eq.f32.partialorder %v951, 8.507059e+37
      %v953 = vand.u32 %v742, 2147483648
      %v954 = vor.u32 1.1754944e-38, %v953
      %v955 = vsel %vm952, %v954, %v950
      %v956 = vmul.f32 1.0, %v955
      %v957 = vrcp.pop %v743
      %v958 = vmul.f32 %v743, %v957
      %v959 = vsub.f32 1.0, %v958
      %v960 = vmul.f32 %v957, %v959
      %v961 = vadd.f32 %v957, %v960
      %vm962 = vweird.f32 %v743
      %vm963 = vweird.f32 %v957
      %vm964 = vmor %vm962, %vm963
      %v965 = vsel %vm964, %v957, %v961
      %v966 = vand.u32 2147483647, %v743
      %vm967 = vcmp.eq.f32.partialorder %v966, 8.507059e+37
      %v968 = vand.u32 %v743, 2147483648
      %v969 = vor.u32 1.1754944e-38, %v968
      %v970 = vsel %vm967, %v969, %v965
      %v971 = vmul.f32 1.0, %v970
      %v972 = vrcp.pop %v744
      %v973 = vmul.f32 %v744, %v972
      %v974 = vsub.f32 1.0, %v973
      %v975 = vmul.f32 %v972, %v974
      %v976 = vadd.f32 %v972, %v975
      %vm977 = vweird.f32 %v744
      %vm978 = vweird.f32 %v972
      %vm979 = vmor %vm977, %vm978
      %v980 = vsel %vm979, %v972, %v976
      %v981 = vand.u32 2147483647, %v744
      %vm982 = vcmp.eq.f32.partialorder %v981, 8.507059e+37
      %v983 = vand.u32 %v744, 2147483648
      %v984 = vor.u32 1.1754944e-38, %v983
      %v985 = vsel %vm982, %v984, %v980
      %v986 = vmul.f32 1.0, %v985
      %v987 = vrcp.pop %v745
      %v988 = vmul.f32 %v745, %v987
      %v989 = vsub.f32 1.0, %v988
      %v990 = vmul.f32 %v987, %v989
      %v991 = vadd.f32 %v987, %v990
      %vm992 = vweird.f32 %v745
      %vm993 = vweird.f32 %v987
      %vm994 = vmor %vm992, %vm993
      %v995 = vsel %vm994, %v987, %v991
      %v996 = vand.u32 2147483647, %v745
      %vm997 = vcmp.eq.f32.partialorder %v996, 8.507059e+37
      %v998 = vand.u32 %v745, 2147483648
      %v999 = vor.u32 1.1754944e-38, %v998
      %v1000 = vsel %vm997, %v999, %v995
      %v1001 = vmul.f32 1.0, %v1000
      %v1002 = vrcp.pop %v746
      %v1003 = vmul.f32 %v746, %v1002
      %v1004 = vsub.f32 1.0, %v1003
      %v1005 = vmul.f32 %v1002, %v1004
      %v1006 = vadd.f32 %v1002, %v1005
      %vm1007 = vweird.f32 %v746
      %vm1008 = vweird.f32 %v1002
      %vm1009 = vmor %vm1007, %vm1008
      %v1010 = vsel %vm1009, %v1002, %v1006
      %v1011 = vand.u32 2147483647, %v746
      %vm1012 = vcmp.eq.f32.partialorder %v1011, 8.507059e+37
      %v1013 = vand.u32 %v746, 2147483648
      %v1014 = vor.u32 1.1754944e-38, %v1013
      %v1015 = vsel %vm1012, %v1014, %v1010
      %v1016 = vmul.f32 1.0, %v1015
      %v1017 = vrcp.pop %v747
      %v1018 = vmul.f32 %v747, %v1017
      %v1019 = vsub.f32 1.0, %v1018
      %v1020 = vmul.f32 %v1017, %v1019
      %v1021 = vadd.f32 %v1017, %v1020
      %vm1022 = vweird.f32 %v747
      %vm1023 = vweird.f32 %v1017
      %vm1024 = vmor %vm1022, %vm1023
      %v1025 = vsel %vm1024, %v1017, %v1021
      %v1026 = vand.u32 2147483647, %v747
      %vm1027 = vcmp.eq.f32.partialorder %v1026, 8.507059e+37
      %v1028 = vand.u32 %v747, 2147483648
      %v1029 = vor.u32 1.1754944e-38, %v1028
      %v1030 = vsel %vm1027, %v1029, %v1025
      %v1031 = vmul.f32 1.0, %v1030
      %v1032 = vrcp.pop %v748
      %v1033 = vmul.f32 %v748, %v1032
      %v1034 = vsub.f32 1.0, %v1033
      %v1035 = vmul.f32 %v1032, %v1034
      %v1036 = vadd.f32 %v1032, %v1035
      %vm1037 = vweird.f32 %v748
      %vm1038 = vweird.f32 %v1032
      %vm1039 = vmor %vm1037, %vm1038
      %v1040 = vsel %vm1039, %v1032, %v1036
      %v1041 = vand.u32 2147483647, %v748
      %vm1042 = vcmp.eq.f32.partialorder %v1041, 8.507059e+37
      %v1043 = vand.u32 %v748, 2147483648
      %v1044 = vor.u32 1.1754944e-38, %v1043
      %v1045 = vsel %vm1042, %v1044, %v1040
      %v1046 = vmul.f32 1.0, %v1045
      %v1047 = vrcp.pop %v749
      %v1048 = vmul.f32 %v749, %v1047
      %v1049 = vsub.f32 1.0, %v1048
      %v1050 = vmul.f32 %v1047, %v1049
      %v1051 = vadd.f32 %v1047, %v1050
      %vm1052 = vweird.f32 %v749
      %vm1053 = vweird.f32 %v1047
      %vm1054 = vmor %vm1052, %vm1053
      %v1055 = vsel %vm1054, %v1047, %v1051
      %v1056 = vand.u32 2147483647, %v749
      %vm1057 = vcmp.eq.f32.partialorder %v1056, 8.507059e+37
      %v1058 = vand.u32 %v749, 2147483648
      %v1059 = vor.u32 1.1754944e-38, %v1058
      %v1060 = vsel %vm1057, %v1059, %v1055
      %v1061 = vmul.f32 1.0, %v1060
      %v1062 = vrcp.pop %v750
      %v1063 = vmul.f32 %v750, %v1062
      %v1064 = vsub.f32 1.0, %v1063
      %v1065 = vmul.f32 %v1062, %v1064
      %v1066 = vadd.f32 %v1062, %v1065
      %vm1067 = vweird.f32 %v750
      %vm1068 = vweird.f32 %v1062
      %vm1069 = vmor %vm1067, %vm1068
      %v1070 = vsel %vm1069, %v1062, %v1066
      %v1071 = vand.u32 2147483647, %v750
      %vm1072 = vcmp.eq.f32.partialorder %v1071, 8.507059e+37
      %v1073 = vand.u32 %v750, 2147483648
      %v1074 = vor.u32 1.1754944e-38, %v1073
      %v1075 = vsel %vm1072, %v1074, %v1070
      %v1076 = vmul.f32 1.0, %v1075
      %v1077 = vrcp.pop %v751
      %v1078 = vmul.f32 %v751, %v1077
      %v1079 = vsub.f32 1.0, %v1078
      %v1080 = vmul.f32 %v1077, %v1079
      %v1081 = vadd.f32 %v1077, %v1080
      %vm1082 = vweird.f32 %v751
      %vm1083 = vweird.f32 %v1077
      %vm1084 = vmor %vm1082, %vm1083
      %v1085 = vsel %vm1084, %v1077, %v1081
      %v1086 = vand.u32 2147483647, %v751
      %vm1087 = vcmp.eq.f32.partialorder %v1086, 8.507059e+37
      %v1088 = vand.u32 %v751, 2147483648
      %v1089 = vor.u32 1.1754944e-38, %v1088
      %v1090 = vsel %vm1087, %v1089, %v1085
      %v1091 = vmul.f32 1.0, %v1090
      %v1092 = vrcp.pop %v752
      %v1093 = vmul.f32 %v752, %v1092
      %v1094 = vsub.f32 1.0, %v1093
      %v1095 = vmul.f32 %v1092, %v1094
      %v1096 = vadd.f32 %v1092, %v1095
      %vm1097 = vweird.f32 %v752
      %vm1098 = vweird.f32 %v1092
      %vm1099 = vmor %vm1097, %vm1098
      %v1100 = vsel %vm1099, %v1092, %v1096
      %v1101 = vand.u32 2147483647, %v752
      %vm1102 = vcmp.eq.f32.partialorder %v1101, 8.507059e+37
      %v1103 = vand.u32 %v752, 2147483648
      %v1104 = vor.u32 1.1754944e-38, %v1103
      %v1105 = vsel %vm1102, %v1104, %v1100
      %v1106 = vmul.f32 1.0, %v1105
      %v1107 = vrcp.pop %v753
      %v1108 = vmul.f32 %v753, %v1107
      %v1109 = vsub.f32 1.0, %v1108
      %v1110 = vmul.f32 %v1107, %v1109
      %v1111 = vadd.f32 %v1107, %v1110
      %vm1112 = vweird.f32 %v753
      %vm1113 = vweird.f32 %v1107
      %vm1114 = vmor %vm1112, %vm1113
      %v1115 = vsel %vm1114, %v1107, %v1111
      %v1116 = vand.u32 2147483647, %v753
      %vm1117 = vcmp.eq.f32.partialorder %v1116, 8.507059e+37
      %v1118 = vand.u32 %v753, 2147483648
      %v1119 = vor.u32 1.1754944e-38, %v1118
      %v1120 = vsel %vm1117, %v1119, %v1115
      %v1121 = vmul.f32 1.0, %v1120
      %v1122 = vrcp.pop %v754
      %v1123 = vmul.f32 %v754, %v1122
      %v1124 = vsub.f32 1.0, %v1123
      %v1125 = vmul.f32 %v1122, %v1124
      %v1126 = vadd.f32 %v1122, %v1125
      %vm1127 = vweird.f32 %v754
      %vm1128 = vweird.f32 %v1122
      %vm1129 = vmor %vm1127, %vm1128
      %v1130 = vsel %vm1129, %v1122, %v1126
      %v1131 = vand.u32 2147483647, %v754
      %vm1132 = vcmp.eq.f32.partialorder %v1131, 8.507059e+37
      %v1133 = vand.u32 %v754, 2147483648
      %v1134 = vor.u32 1.1754944e-38, %v1133
      %v1135 = vsel %vm1132, %v1134, %v1130
      %v1136 = vmul.f32 1.0, %v1135
      %v1137 = vrcp.pop %v755
      %v1138 = vmul.f32 %v755, %v1137
      %v1139 = vsub.f32 1.0, %v1138
      %v1140 = vmul.f32 %v1137, %v1139
      %v1141 = vadd.f32 %v1137, %v1140
      %vm1142 = vweird.f32 %v755
      %vm1143 = vweird.f32 %v1137
      %vm1144 = vmor %vm1142, %vm1143
      %v1145 = vsel %vm1144, %v1137, %v1141
      %v1146 = vand.u32 2147483647, %v755
      %vm1147 = vcmp.eq.f32.partialorder %v1146, 8.507059e+37
      %v1148 = vand.u32 %v755, 2147483648
      %v1149 = vor.u32 1.1754944e-38, %v1148
      %v1150 = vsel %vm1147, %v1149, %v1145
      %v1151 = vmul.f32 1.0, %v1150
      %v1152 = vrcp.pop %v756
      %v1153 = vmul.f32 %v756, %v1152
      %v1154 = vsub.f32 1.0, %v1153
      %v1155 = vmul.f32 %v1152, %v1154
      %v1156 = vadd.f32 %v1152, %v1155
      %vm1157 = vweird.f32 %v756
      %vm1158 = vweird.f32 %v1152
      %vm1159 = vmor %vm1157, %vm1158
      %v1160 = vsel %vm1159, %v1152, %v1156
      %v1161 = vand.u32 2147483647, %v756
      %vm1162 = vcmp.eq.f32.partialorder %v1161, 8.507059e+37
      %v1163 = vand.u32 %v756, 2147483648
      %v1164 = vor.u32 1.1754944e-38, %v1163
      %v1165 = vsel %vm1162, %v1164, %v1160
      %v1166 = vmul.f32 1.0, %v1165
      %v1167 = vrcp.pop %v757
      %v1168 = vmul.f32 %v757, %v1167
      %v1169 = vsub.f32 1.0, %v1168
      %v1170 = vmul.f32 %v1167, %v1169
      %v1171 = vadd.f32 %v1167, %v1170
      %vm1172 = vweird.f32 %v757
      %vm1173 = vweird.f32 %v1167
      %vm1174 = vmor %vm1172, %vm1173
      %v1175 = vsel %vm1174, %v1167, %v1171
      %v1176 = vand.u32 2147483647, %v757
      %vm1177 = vcmp.eq.f32.partialorder %v1176, 8.507059e+37
      %v1178 = vand.u32 %v757, 2147483648
      %v1179 = vor.u32 1.1754944e-38, %v1178
      %v1180 = vsel %vm1177, %v1179, %v1175
      %v1181 = vmul.f32 1.0, %v1180
      %v1182 = vrcp.pop %v758
      %v1183 = vmul.f32 %v758, %v1182
      %v1184 = vsub.f32 1.0, %v1183
      %v1185 = vmul.f32 %v1182, %v1184
      %v1186 = vadd.f32 %v1182, %v1185
      %vm1187 = vweird.f32 %v758
      %vm1188 = vweird.f32 %v1182
      %vm1189 = vmor %vm1187, %vm1188
      %v1190 = vsel %vm1189, %v1182, %v1186
      %v1191 = vand.u32 2147483647, %v758
      %vm1192 = vcmp.eq.f32.partialorder %v1191, 8.507059e+37
      %v1193 = vand.u32 %v758, 2147483648
      %v1194 = vor.u32 1.1754944e-38, %v1193
      %v1195 = vsel %vm1192, %v1194, %v1190
      %v1196 = vmul.f32 1.0, %v1195
      %v1197 = vrcp.pop %v759
      %v1198 = vmul.f32 %v759, %v1197
      %v1199 = vsub.f32 1.0, %v1198
      %v1200 = vmul.f32 %v1197, %v1199
      %v1201 = vadd.f32 %v1197, %v1200
      %vm1202 = vweird.f32 %v759
      %vm1203 = vweird.f32 %v1197
      %vm1204 = vmor %vm1202, %vm1203
      %v1205 = vsel %vm1204, %v1197, %v1201
      %v1206 = vand.u32 2147483647, %v759
      %vm1207 = vcmp.eq.f32.partialorder %v1206, 8.507059e+37
      %v1208 = vand.u32 %v759, 2147483648
      %v1209 = vor.u32 1.1754944e-38, %v1208
      %v1210 = vsel %vm1207, %v1209, %v1205
      %v1211 = vmul.f32 1.0, %v1210
      %v1212 = vrcp.pop %v760
      %v1213 = vmul.f32 %v760, %v1212
      %v1214 = vsub.f32 1.0, %v1213
      %v1215 = vmul.f32 %v1212, %v1214
      %v1216 = vadd.f32 %v1212, %v1215
      %vm1217 = vweird.f32 %v760
      %vm1218 = vweird.f32 %v1212
      %vm1219 = vmor %vm1217, %vm1218
      %v1220 = vsel %vm1219, %v1212, %v1216
      %v1221 = vand.u32 2147483647, %v760
      %vm1222 = vcmp.eq.f32.partialorder %v1221, 8.507059e+37
      %v1223 = vand.u32 %v760, 2147483648
      %v1224 = vor.u32 1.1754944e-38, %v1223
      %v1225 = vsel %vm1222, %v1224, %v1220
      %v1226 = vmul.f32 1.0, %v1225
      %v1227 = vrcp.pop %v761
      %v1228 = vmul.f32 %v761, %v1227
      %v1229 = vsub.f32 1.0, %v1228
      %v1230 = vmul.f32 %v1227, %v1229
      %v1231 = vadd.f32 %v1227, %v1230
      %vm1232 = vweird.f32 %v761
      %vm1233 = vweird.f32 %v1227
      %vm1234 = vmor %vm1232, %vm1233
      %v1235 = vsel %vm1234, %v1227, %v1231
      %v1236 = vand.u32 2147483647, %v761
      %vm1237 = vcmp.eq.f32.partialorder %v1236, 8.507059e+37
      %v1238 = vand.u32 %v761, 2147483648
      %v1239 = vor.u32 1.1754944e-38, %v1238
      %v1240 = vsel %vm1237, %v1239, %v1235
      %v1241 = vmul.f32 1.0, %v1240
      %v1242 = vmul.f32 %v602, %v776
      %v1243 = vmul.f32 %v603, %v791
      %v1244 = vmul.f32 %v604, %v806
      %v1245 = vmul.f32 %v605, %v821
      %v1246 = vmul.f32 %v606, %v836
      %v1247 = vmul.f32 %v607, %v851
      %v1248 = vmul.f32 %v608, %v866
      %v1249 = vmul.f32 %v609, %v881
      %v1250 = vmul.f32 %v610, %v896
      %v1251 = vmul.f32 %v611, %v911
      %v1252 = vmul.f32 %v612, %v926
      %v1253 = vmul.f32 %v613, %v941
      %v1254 = vmul.f32 %v614, %v956
      %v1255 = vmul.f32 %v615, %v971
      %v1256 = vmul.f32 %v616, %v986
      %v1257 = vmul.f32 %v617, %v1001
      %v1258 = vmul.f32 %v618, %v1016
      %v1259 = vmul.f32 %v619, %v1031
      %v1260 = vmul.f32 %v620, %v1046
      %v1261 = vmul.f32 %v621, %v1061
      %v1262 = vmul.f32 %v622, %v1076
      %v1263 = vmul.f32 %v623, %v1091
      %v1264 = vmul.f32 %v624, %v1106
      %v1265 = vmul.f32 %v625, %v1121
      %v1266 = vmul.f32 %v626, %v1136
      %v1267 = vmul.f32 %v627, %v1151
      %v1268 = vmul.f32 %v628, %v1166
      %v1269 = vmul.f32 %v629, %v1181
      %v1270 = vmul.f32 %v630, %v1196
      %v1271 = vmul.f32 %v631, %v1211
      %v1272 = vmul.f32 %v632, %v1226
      %v1273 = vmul.f32 %v633, %v1241
      %v1274 = vlaneseq
      %v1275 = vshrl.u32 %v1274, 7
      %v1276 = vadd.s32 %v1275, 8
      %v1277 = vadd.s32 %v1275, 16
      %v1278 = vadd.s32 %v1275, 24
      %v1279 = vadd.s32 %v1275, 32
      %v1280 = vadd.s32 %v1275, 40
      %v1281 = vadd.s32 %v1275, 48
      %v1282 = vadd.s32 %v1275, 56
      %v1283 = vadd.s32 %v1275, 64
      %v1284 = vadd.s32 %v1275, 72
      %v1285 = vadd.s32 %v1275, 80
      %v1286 = vadd.s32 %v1275, 88
      %v1287 = vadd.s32 %v1275, 96
      %v1288 = vadd.s32 %v1275, 104
      %v1289 = vadd.s32 %v1275, 112
      %v1290 = vadd.s32 %v1275, 120
      %v1291 = vadd.s32 %v1275, 128
      %v1292 = vadd.s32 %v1275, 136
      %v1293 = vadd.s32 %v1275, 144
      %v1294 = vadd.s32 %v1275, 152
      %v1295 = vadd.s32 %v1275, 160
      %v1296 = vadd.s32 %v1275, 168
      %v1297 = vadd.s32 %v1275, 176
      %v1298 = vadd.s32 %v1275, 184
      %v1299 = vadd.s32 %v1275, 192
      %v1300 = vadd.s32 %v1275, 200
      %v1301 = vadd.s32 %v1275, 208
      %v1302 = vadd.s32 %v1275, 216
      %v1303 = vadd.s32 %v1275, 224
      %v1304 = vadd.s32 %v1275, 232
      %v1305 = vadd.s32 %v1275, 240
      %v1306 = vadd.s32 %v1275, 248
      %vm1307 = vcmp.lt.s32.totalorder %v1275, 0
      %v1308 = vsub.s32 0, %v1275
      %v1309 = vsel %vm1307, %v1308, %v1275
      %v1310 = vshrl.u32 %v1309, 4
      %v1311 = vand.u32 %v1309, 15
      %v1312 = vsub.s32 0, %v1311
      %v1313 = vsel %vm1307, %v1312, %v1311
      %vm1314 = vcmp.lt.s32.totalorder %v1276, 0
      %v1315 = vsub.s32 0, %v1276
      %v1316 = vsel %vm1314, %v1315, %v1276
      %v1317 = vshrl.u32 %v1316, 4
      %v1318 = vand.u32 %v1316, 15
      %v1319 = vsub.s32 0, %v1318
      %v1320 = vsel %vm1314, %v1319, %v1318
      %vm1321 = vcmp.lt.s32.totalorder %v1277, 0
      %v1322 = vsub.s32 0, %v1277
      %v1323 = vsel %vm1321, %v1322, %v1277
      %v1324 = vshrl.u32 %v1323, 4
      %v1325 = vand.u32 %v1323, 15
      %v1326 = vsub.s32 0, %v1325
      %v1327 = vsel %vm1321, %v1326, %v1325
      %vm1328 = vcmp.lt.s32.totalorder %v1278, 0
      %v1329 = vsub.s32 0, %v1278
      %v1330 = vsel %vm1328, %v1329, %v1278
      %v1331 = vshrl.u32 %v1330, 4
      %v1332 = vand.u32 %v1330, 15
      %v1333 = vsub.s32 0, %v1332
      %v1334 = vsel %vm1328, %v1333, %v1332
      %vm1335 = vcmp.lt.s32.totalorder %v1279, 0
      %v1336 = vsub.s32 0, %v1279
      %v1337 = vsel %vm1335, %v1336, %v1279
      %v1338 = vshrl.u32 %v1337, 4
      %v1339 = vand.u32 %v1337, 15
      %v1340 = vsub.s32 0, %v1339
      %v1341 = vsel %vm1335, %v1340, %v1339
      %vm1342 = vcmp.lt.s32.totalorder %v1280, 0
      %v1343 = vsub.s32 0, %v1280
      %v1344 = vsel %vm1342, %v1343, %v1280
      %v1345 = vshrl.u32 %v1344, 4
      %v1346 = vand.u32 %v1344, 15
      %v1347 = vsub.s32 0, %v1346
      %v1348 = vsel %vm1342, %v1347, %v1346
      %vm1349 = vcmp.lt.s32.totalorder %v1281, 0
      %v1350 = vsub.s32 0, %v1281
      %v1351 = vsel %vm1349, %v1350, %v1281
      %v1352 = vshrl.u32 %v1351, 4
      %v1353 = vand.u32 %v1351, 15
      %v1354 = vsub.s32 0, %v1353
      %v1355 = vsel %vm1349, %v1354, %v1353
      %vm1356 = vcmp.lt.s32.totalorder %v1282, 0
      %v1357 = vsub.s32 0, %v1282
      %v1358 = vsel %vm1356, %v1357, %v1282
      %v1359 = vshrl.u32 %v1358, 4
      %v1360 = vand.u32 %v1358, 15
      %v1361 = vsub.s32 0, %v1360
      %v1362 = vsel %vm1356, %v1361, %v1360
      %vm1363 = vcmp.lt.s32.totalorder %v1283, 0
      %v1364 = vsub.s32 0, %v1283
      %v1365 = vsel %vm1363, %v1364, %v1283
      %v1366 = vshrl.u32 %v1365, 4
      %v1367 = vand.u32 %v1365, 15
      %v1368 = vsub.s32 0, %v1367
      %v1369 = vsel %vm1363, %v1368, %v1367
      %vm1370 = vcmp.lt.s32.totalorder %v1284, 0
      %v1371 = vsub.s32 0, %v1284
      %v1372 = vsel %vm1370, %v1371, %v1284
      %v1373 = vshrl.u32 %v1372, 4
      %v1374 = vand.u32 %v1372, 15
      %v1375 = vsub.s32 0, %v1374
      %v1376 = vsel %vm1370, %v1375, %v1374
      %vm1377 = vcmp.lt.s32.totalorder %v1285, 0
      %v1378 = vsub.s32 0, %v1285
      %v1379 = vsel %vm1377, %v1378, %v1285
      %v1380 = vshrl.u32 %v1379, 4
      %v1381 = vand.u32 %v1379, 15
      %v1382 = vsub.s32 0, %v1381
      %v1383 = vsel %vm1377, %v1382, %v1381
      %vm1384 = vcmp.lt.s32.totalorder %v1286, 0
      %v1385 = vsub.s32 0, %v1286
      %v1386 = vsel %vm1384, %v1385, %v1286
      %v1387 = vshrl.u32 %v1386, 4
      %v1388 = vand.u32 %v1386, 15
      %v1389 = vsub.s32 0, %v1388
      %v1390 = vsel %vm1384, %v1389, %v1388
      %vm1391 = vcmp.lt.s32.totalorder %v1287, 0
      %v1392 = vsub.s32 0, %v1287
      %v1393 = vsel %vm1391, %v1392, %v1287
      %v1394 = vshrl.u32 %v1393, 4
      %v1395 = vand.u32 %v1393, 15
      %v1396 = vsub.s32 0, %v1395
      %v1397 = vsel %vm1391, %v1396, %v1395
      %vm1398 = vcmp.lt.s32.totalorder %v1288, 0
      %v1399 = vsub.s32 0, %v1288
      %v1400 = vsel %vm1398, %v1399, %v1288
      %v1401 = vshrl.u32 %v1400, 4
      %v1402 = vand.u32 %v1400, 15
      %v1403 = vsub.s32 0, %v1402
      %v1404 = vsel %vm1398, %v1403, %v1402
      %vm1405 = vcmp.lt.s32.totalorder %v1289, 0
      %v1406 = vsub.s32 0, %v1289
      %v1407 = vsel %vm1405, %v1406, %v1289
      %v1408 = vshrl.u32 %v1407, 4
      %v1409 = vand.u32 %v1407, 15
      %v1410 = vsub.s32 0, %v1409
      %v1411 = vsel %vm1405, %v1410, %v1409
      %vm1412 = vcmp.lt.s32.totalorder %v1290, 0
      %v1413 = vsub.s32 0, %v1290
      %v1414 = vsel %vm1412, %v1413, %v1290
      %v1415 = vshrl.u32 %v1414, 4
      %v1416 = vand.u32 %v1414, 15
      %v1417 = vsub.s32 0, %v1416
      %v1418 = vsel %vm1412, %v1417, %v1416
      %vm1419 = vcmp.lt.s32.totalorder %v1291, 0
      %v1420 = vsub.s32 0, %v1291
      %v1421 = vsel %vm1419, %v1420, %v1291
      %v1422 = vshrl.u32 %v1421, 4
      %v1423 = vand.u32 %v1421, 15
      %v1424 = vsub.s32 0, %v1423
      %v1425 = vsel %vm1419, %v1424, %v1423
      %vm1426 = vcmp.lt.s32.totalorder %v1292, 0
      %v1427 = vsub.s32 0, %v1292
      %v1428 = vsel %vm1426, %v1427, %v1292
      %v1429 = vshrl.u32 %v1428, 4
      %v1430 = vand.u32 %v1428, 15
      %v1431 = vsub.s32 0, %v1430
      %v1432 = vsel %vm1426, %v1431, %v1430
      %vm1433 = vcmp.lt.s32.totalorder %v1293, 0
      %v1434 = vsub.s32 0, %v1293
      %v1435 = vsel %vm1433, %v1434, %v1293
      %v1436 = vshrl.u32 %v1435, 4
      %v1437 = vand.u32 %v1435, 15
      %v1438 = vsub.s32 0, %v1437
      %v1439 = vsel %vm1433, %v1438, %v1437
      %vm1440 = vcmp.lt.s32.totalorder %v1294, 0
      %v1441 = vsub.s32 0, %v1294
      %v1442 = vsel %vm1440, %v1441, %v1294
      %v1443 = vshrl.u32 %v1442, 4
      %v1444 = vand.u32 %v1442, 15
      %v1445 = vsub.s32 0, %v1444
      %v1446 = vsel %vm1440, %v1445, %v1444
      %vm1447 = vcmp.lt.s32.totalorder %v1295, 0
      %v1448 = vsub.s32 0, %v1295
      %v1449 = vsel %vm1447, %v1448, %v1295
      %v1450 = vshrl.u32 %v1449, 4
      %v1451 = vand.u32 %v1449, 15
      %v1452 = vsub.s32 0, %v1451
      %v1453 = vsel %vm1447, %v1452, %v1451
      %vm1454 = vcmp.lt.s32.totalorder %v1296, 0
      %v1455 = vsub.s32 0, %v1296
      %v1456 = vsel %vm1454, %v1455, %v1296
      %v1457 = vshrl.u32 %v1456, 4
      %v1458 = vand.u32 %v1456, 15
      %v1459 = vsub.s32 0, %v1458
      %v1460 = vsel %vm1454, %v1459, %v1458
      %vm1461 = vcmp.lt.s32.totalorder %v1297, 0
      %v1462 = vsub.s32 0, %v1297
      %v1463 = vsel %vm1461, %v1462, %v1297
      %v1464 = vshrl.u32 %v1463, 4
      %v1465 = vand.u32 %v1463, 15
      %v1466 = vsub.s32 0, %v1465
      %v1467 = vsel %vm1461, %v1466, %v1465
      %vm1468 = vcmp.lt.s32.totalorder %v1298, 0
      %v1469 = vsub.s32 0, %v1298
      %v1470 = vsel %vm1468, %v1469, %v1298
      %v1471 = vshrl.u32 %v1470, 4
      %v1472 = vand.u32 %v1470, 15
      %v1473 = vsub.s32 0, %v1472
      %v1474 = vsel %vm1468, %v1473, %v1472
      %vm1475 = vcmp.lt.s32.totalorder %v1299, 0
      %v1476 = vsub.s32 0, %v1299
      %v1477 = vsel %vm1475, %v1476, %v1299
      %v1478 = vshrl.u32 %v1477, 4
      %v1479 = vand.u32 %v1477, 15
      %v1480 = vsub.s32 0, %v1479
      %v1481 = vsel %vm1475, %v1480, %v1479
      %vm1482 = vcmp.lt.s32.totalorder %v1300, 0
      %v1483 = vsub.s32 0, %v1300
      %v1484 = vsel %vm1482, %v1483, %v1300
      %v1485 = vshrl.u32 %v1484, 4
      %v1486 = vand.u32 %v1484, 15
      %v1487 = vsub.s32 0, %v1486
      %v1488 = vsel %vm1482, %v1487, %v1486
      %vm1489 = vcmp.lt.s32.totalorder %v1301, 0
      %v1490 = vsub.s32 0, %v1301
      %v1491 = vsel %vm1489, %v1490, %v1301
      %v1492 = vshrl.u32 %v1491, 4
      %v1493 = vand.u32 %v1491, 15
      %v1494 = vsub.s32 0, %v1493
      %v1495 = vsel %vm1489, %v1494, %v1493
      %vm1496 = vcmp.lt.s32.totalorder %v1302, 0
      %v1497 = vsub.s32 0, %v1302
      %v1498 = vsel %vm1496, %v1497, %v1302
      %v1499 = vshrl.u32 %v1498, 4
      %v1500 = vand.u32 %v1498, 15
      %v1501 = vsub.s32 0, %v1500
      %v1502 = vsel %vm1496, %v1501, %v1500
      %vm1503 = vcmp.lt.s32.totalorder %v1303, 0
      %v1504 = vsub.s32 0, %v1303
      %v1505 = vsel %vm1503, %v1504, %v1303
      %v1506 = vshrl.u32 %v1505, 4
      %v1507 = vand.u32 %v1505, 15
      %v1508 = vsub.s32 0, %v1507
      %v1509 = vsel %vm1503, %v1508, %v1507
      %vm1510 = vcmp.lt.s32.totalorder %v1304, 0
      %v1511 = vsub.s32 0, %v1304
      %v1512 = vsel %vm1510, %v1511, %v1304
      %v1513 = vshrl.u32 %v1512, 4
      %v1514 = vand.u32 %v1512, 15
      %v1515 = vsub.s32 0, %v1514
      %v1516 = vsel %vm1510, %v1515, %v1514
      %vm1517 = vcmp.lt.s32.totalorder %v1305, 0
      %v1518 = vsub.s32 0, %v1305
      %v1519 = vsel %vm1517, %v1518, %v1305
      %v1520 = vshrl.u32 %v1519, 4
      %v1521 = vand.u32 %v1519, 15
      %v1522 = vsub.s32 0, %v1521
      %v1523 = vsel %vm1517, %v1522, %v1521
      %vm1524 = vcmp.lt.s32.totalorder %v1306, 0
      %v1525 = vsub.s32 0, %v1306
      %v1526 = vsel %vm1524, %v1525, %v1306
      %v1527 = vshrl.u32 %v1526, 4
      %v1528 = vand.u32 %v1526, 15
      %v1529 = vsub.s32 0, %v1528
      %v1530 = vsel %vm1524, %v1529, %v1528
      %vm1531 = vcmp.ne.s32.totalorder %v1313, 0
      %vm1532 = vcmp.ne.s32.totalorder %v1320, 0
      %vm1533 = vcmp.ne.s32.totalorder %v1327, 0
      %vm1534 = vcmp.ne.s32.totalorder %v1334, 0
      %vm1535 = vcmp.ne.s32.totalorder %v1341, 0
      %vm1536 = vcmp.ne.s32.totalorder %v1348, 0
      %vm1537 = vcmp.ne.s32.totalorder %v1355, 0
      %vm1538 = vcmp.ne.s32.totalorder %v1362, 0
      %vm1539 = vcmp.ne.s32.totalorder %v1369, 0
      %vm1540 = vcmp.ne.s32.totalorder %v1376, 0
      %vm1541 = vcmp.ne.s32.totalorder %v1383, 0
      %vm1542 = vcmp.ne.s32.totalorder %v1390, 0
      %vm1543 = vcmp.ne.s32.totalorder %v1397, 0
      %vm1544 = vcmp.ne.s32.totalorder %v1404, 0
      %vm1545 = vcmp.ne.s32.totalorder %v1411, 0
      %vm1546 = vcmp.ne.s32.totalorder %v1418, 0
      %vm1547 = vcmp.ne.s32.totalorder %v1425, 0
      %vm1548 = vcmp.ne.s32.totalorder %v1432, 0
      %vm1549 = vcmp.ne.s32.totalorder %v1439, 0
      %vm1550 = vcmp.ne.s32.totalorder %v1446, 0
      %vm1551 = vcmp.ne.s32.totalorder %v1453, 0
      %vm1552 = vcmp.ne.s32.totalorder %v1460, 0
      %vm1553 = vcmp.ne.s32.totalorder %v1467, 0
      %vm1554 = vcmp.ne.s32.totalorder %v1474, 0
      %vm1555 = vcmp.ne.s32.totalorder %v1481, 0
      %vm1556 = vcmp.ne.s32.totalorder %v1488, 0
      %vm1557 = vcmp.ne.s32.totalorder %v1495, 0
      %vm1558 = vcmp.ne.s32.totalorder %v1502, 0
      %vm1559 = vcmp.ne.s32.totalorder %v1509, 0
      %vm1560 = vcmp.ne.s32.totalorder %v1516, 0
      %vm1561 = vcmp.ne.s32.totalorder %v1523, 0
      %vm1562 = vcmp.ne.s32.totalorder %v1530, 0
      %vm1563 = vcmp.lt.s32.totalorder %v1313, 0
      %vm1564 = vcmp.lt.s32.totalorder %v1320, 0
      %vm1565 = vcmp.lt.s32.totalorder %v1327, 0
      %vm1566 = vcmp.lt.s32.totalorder %v1334, 0
      %vm1567 = vcmp.lt.s32.totalorder %v1341, 0
      %vm1568 = vcmp.lt.s32.totalorder %v1348, 0
      %vm1569 = vcmp.lt.s32.totalorder %v1355, 0
      %vm1570 = vcmp.lt.s32.totalorder %v1362, 0
      %vm1571 = vcmp.lt.s32.totalorder %v1369, 0
      %vm1572 = vcmp.lt.s32.totalorder %v1376, 0
      %vm1573 = vcmp.lt.s32.totalorder %v1383, 0
      %vm1574 = vcmp.lt.s32.totalorder %v1390, 0
      %vm1575 = vcmp.lt.s32.totalorder %v1397, 0
      %vm1576 = vcmp.lt.s32.totalorder %v1404, 0
      %vm1577 = vcmp.lt.s32.totalorder %v1411, 0
      %vm1578 = vcmp.lt.s32.totalorder %v1418, 0
      %vm1579 = vcmp.lt.s32.totalorder %v1425, 0
      %vm1580 = vcmp.lt.s32.totalorder %v1432, 0
      %vm1581 = vcmp.lt.s32.totalorder %v1439, 0
      %vm1582 = vcmp.lt.s32.totalorder %v1446, 0
      %vm1583 = vcmp.lt.s32.totalorder %v1453, 0
      %vm1584 = vcmp.lt.s32.totalorder %v1460, 0
      %vm1585 = vcmp.lt.s32.totalorder %v1467, 0
      %vm1586 = vcmp.lt.s32.totalorder %v1474, 0
      %vm1587 = vcmp.lt.s32.totalorder %v1481, 0
      %vm1588 = vcmp.lt.s32.totalorder %v1488, 0
      %vm1589 = vcmp.lt.s32.totalorder %v1495, 0
      %vm1590 = vcmp.lt.s32.totalorder %v1502, 0
      %vm1591 = vcmp.lt.s32.totalorder %v1509, 0
      %vm1592 = vcmp.lt.s32.totalorder %v1516, 0
      %vm1593 = vcmp.lt.s32.totalorder %v1523, 0
      %vm1594 = vcmp.lt.s32.totalorder %v1530, 0
      %vm1595 = vmand %vm1563, %vm1531
      %vm1596 = vmand %vm1564, %vm1532
      %vm1597 = vmand %vm1565, %vm1533
      %vm1598 = vmand %vm1566, %vm1534
      %vm1599 = vmand %vm1567, %vm1535
      %vm1600 = vmand %vm1568, %vm1536
      %vm1601 = vmand %vm1569, %vm1537
      %vm1602 = vmand %vm1570, %vm1538
      %vm1603 = vmand %vm1571, %vm1539
      %vm1604 = vmand %vm1572, %vm1540
      %vm1605 = vmand %vm1573, %vm1541
      %vm1606 = vmand %vm1574, %vm1542
      %vm1607 = vmand %vm1575, %vm1543
      %vm1608 = vmand %vm1576, %vm1544
      %vm1609 = vmand %vm1577, %vm1545
      %vm1610 = vmand %vm1578, %vm1546
      %vm1611 = vmand %vm1579, %vm1547
      %vm1612 = vmand %vm1580, %vm1548
      %vm1613 = vmand %vm1581, %vm1549
      %vm1614 = vmand %vm1582, %vm1550
      %vm1615 = vmand %vm1583, %vm1551
      %vm1616 = vmand %vm1584, %vm1552
      %vm1617 = vmand %vm1585, %vm1553
      %vm1618 = vmand %vm1586, %vm1554
      %vm1619 = vmand %vm1587, %vm1555
      %vm1620 = vmand %vm1588, %vm1556
      %vm1621 = vmand %vm1589, %vm1557
      %vm1622 = vmand %vm1590, %vm1558
      %vm1623 = vmand %vm1591, %vm1559
      %vm1624 = vmand %vm1592, %vm1560
      %vm1625 = vmand %vm1593, %vm1561
      %vm1626 = vmand %vm1594, %vm1562
      %v1627 = vadd.s32 %v1313, 16
      %v1628 = vadd.s32 %v1320, 16
      %v1629 = vadd.s32 %v1327, 16
      %v1630 = vadd.s32 %v1334, 16
      %v1631 = vadd.s32 %v1341, 16
      %v1632 = vadd.s32 %v1348, 16
      %v1633 = vadd.s32 %v1355, 16
      %v1634 = vadd.s32 %v1362, 16
      %v1635 = vadd.s32 %v1369, 16
      %v1636 = vadd.s32 %v1376, 16
      %v1637 = vadd.s32 %v1383, 16
      %v1638 = vadd.s32 %v1390, 16
      %v1639 = vadd.s32 %v1397, 16
      %v1640 = vadd.s32 %v1404, 16
      %v1641 = vadd.s32 %v1411, 16
      %v1642 = vadd.s32 %v1418, 16
      %v1643 = vadd.s32 %v1425, 16
      %v1644 = vadd.s32 %v1432, 16
      %v1645 = vadd.s32 %v1439, 16
      %v1646 = vadd.s32 %v1446, 16
      %v1647 = vadd.s32 %v1453, 16
      %v1648 = vadd.s32 %v1460, 16
      %v1649 = vadd.s32 %v1467, 16
      %v1650 = vadd.s32 %v1474, 16
      %v1651 = vadd.s32 %v1481, 16
      %v1652 = vadd.s32 %v1488, 16
      %v1653 = vadd.s32 %v1495, 16
      %v1654 = vadd.s32 %v1502, 16
      %v1655 = vadd.s32 %v1509, 16
      %v1656 = vadd.s32 %v1516, 16
      %v1657 = vadd.s32 %v1523, 16
      %v1658 = vadd.s32 %v1530, 16
      %v1659 = vsel %vm1595, %v1627, %v1313
      %v1660 = vsel %vm1596, %v1628, %v1320
      %v1661 = vsel %vm1597, %v1629, %v1327
      %v1662 = vsel %vm1598, %v1630, %v1334
      %v1663 = vsel %vm1599, %v1631, %v1341
      %v1664 = vsel %vm1600, %v1632, %v1348
      %v1665 = vsel %vm1601, %v1633, %v1355
      %v1666 = vsel %vm1602, %v1634, %v1362
      %v1667 = vsel %vm1603, %v1635, %v1369
      %v1668 = vsel %vm1604, %v1636, %v1376
      %v1669 = vsel %vm1605, %v1637, %v1383
      %v1670 = vsel %vm1606, %v1638, %v1390
      %v1671 = vsel %vm1607, %v1639, %v1397
      %v1672 = vsel %vm1608, %v1640, %v1404
      %v1673 = vsel %vm1609, %v1641, %v1411
      %v1674 = vsel %vm1610, %v1642, %v1418
      %v1675 = vsel %vm1611, %v1643, %v1425
      %v1676 = vsel %vm1612, %v1644, %v1432
      %v1677 = vsel %vm1613, %v1645, %v1439
      %v1678 = vsel %vm1614, %v1646, %v1446
      %v1679 = vsel %vm1615, %v1647, %v1453
      %v1680 = vsel %vm1616, %v1648, %v1460
      %v1681 = vsel %vm1617, %v1649, %v1467
      %v1682 = vsel %vm1618, %v1650, %v1474
      %v1683 = vsel %vm1619, %v1651, %v1481
      %v1684 = vsel %vm1620, %v1652, %v1488
      %v1685 = vsel %vm1621, %v1653, %v1495
      %v1686 = vsel %vm1622, %v1654, %v1502
      %v1687 = vsel %vm1623, %v1655, %v1509
      %v1688 = vsel %vm1624, %v1656, %v1516
      %v1689 = vsel %vm1625, %v1657, %v1523
      %v1690 = vsel %vm1626, %v1658, %v1530
      %vm1691 = vcmp.ge.s32.totalorder %v1659, 1
      %vm1692 = vcmp.ge.s32.totalorder %v1660, 1
      %vm1693 = vcmp.ge.s32.totalorder %v1661, 1
      %vm1694 = vcmp.ge.s32.totalorder %v1662, 1
      %vm1695 = vcmp.ge.s32.totalorder %v1663, 1
      %vm1696 = vcmp.ge.s32.totalorder %v1664, 1
      %vm1697 = vcmp.ge.s32.totalorder %v1665, 1
      %vm1698 = vcmp.ge.s32.totalorder %v1666, 1
      %vm1699 = vcmp.ge.s32.totalorder %v1667, 1
      %vm1700 = vcmp.ge.s32.totalorder %v1668, 1
      %vm1701 = vcmp.ge.s32.totalorder %v1669, 1
      %vm1702 = vcmp.ge.s32.totalorder %v1670, 1
      %vm1703 = vcmp.ge.s32.totalorder %v1671, 1
      %vm1704 = vcmp.ge.s32.totalorder %v1672, 1
      %vm1705 = vcmp.ge.s32.totalorder %v1673, 1
      %vm1706 = vcmp.ge.s32.totalorder %v1674, 1
      %vm1707 = vcmp.ge.s32.totalorder %v1675, 1
      %vm1708 = vcmp.ge.s32.totalorder %v1676, 1
      %vm1709 = vcmp.ge.s32.totalorder %v1677, 1
      %vm1710 = vcmp.ge.s32.totalorder %v1678, 1
      %vm1711 = vcmp.ge.s32.totalorder %v1679, 1
      %vm1712 = vcmp.ge.s32.totalorder %v1680, 1
      %vm1713 = vcmp.ge.s32.totalorder %v1681, 1
      %vm1714 = vcmp.ge.s32.totalorder %v1682, 1
      %vm1715 = vcmp.ge.s32.totalorder %v1683, 1
      %vm1716 = vcmp.ge.s32.totalorder %v1684, 1
      %vm1717 = vcmp.ge.s32.totalorder %v1685, 1
      %vm1718 = vcmp.ge.s32.totalorder %v1686, 1
      %vm1719 = vcmp.ge.s32.totalorder %v1687, 1
      %vm1720 = vcmp.ge.s32.totalorder %v1688, 1
      %vm1721 = vcmp.ge.s32.totalorder %v1689, 1
      %vm1722 = vcmp.ge.s32.totalorder %v1690, 1
      %vm1723 = vcmp.lt.s32.totalorder %v1659, 15
      %vm1724 = vcmp.lt.s32.totalorder %v1660, 15
      %vm1725 = vcmp.lt.s32.totalorder %v1661, 15
      %vm1726 = vcmp.lt.s32.totalorder %v1662, 15
      %vm1727 = vcmp.lt.s32.totalorder %v1663, 15
      %vm1728 = vcmp.lt.s32.totalorder %v1664, 15
      %vm1729 = vcmp.lt.s32.totalorder %v1665, 15
      %vm1730 = vcmp.lt.s32.totalorder %v1666, 15
      %vm1731 = vcmp.lt.s32.totalorder %v1667, 15
      %vm1732 = vcmp.lt.s32.totalorder %v1668, 15
      %vm1733 = vcmp.lt.s32.totalorder %v1669, 15
      %vm1734 = vcmp.lt.s32.totalorder %v1670, 15
      %vm1735 = vcmp.lt.s32.totalorder %v1671, 15
      %vm1736 = vcmp.lt.s32.totalorder %v1672, 15
      %vm1737 = vcmp.lt.s32.totalorder %v1673, 15
      %vm1738 = vcmp.lt.s32.totalorder %v1674, 15
      %vm1739 = vcmp.lt.s32.totalorder %v1675, 15
      %vm1740 = vcmp.lt.s32.totalorder %v1676, 15
      %vm1741 = vcmp.lt.s32.totalorder %v1677, 15
      %vm1742 = vcmp.lt.s32.totalorder %v1678, 15
      %vm1743 = vcmp.lt.s32.totalorder %v1679, 15
      %vm1744 = vcmp.lt.s32.totalorder %v1680, 15
      %vm1745 = vcmp.lt.s32.totalorder %v1681, 15
      %vm1746 = vcmp.lt.s32.totalorder %v1682, 15
      %vm1747 = vcmp.lt.s32.totalorder %v1683, 15
      %vm1748 = vcmp.lt.s32.totalorder %v1684, 15
      %vm1749 = vcmp.lt.s32.totalorder %v1685, 15
      %vm1750 = vcmp.lt.s32.totalorder %v1686, 15
      %vm1751 = vcmp.lt.s32.totalorder %v1687, 15
      %vm1752 = vcmp.lt.s32.totalorder %v1688, 15
      %vm1753 = vcmp.lt.s32.totalorder %v1689, 15
      %vm1754 = vcmp.lt.s32.totalorder %v1690, 15
      %vm1755 = vcmp.lt.s32.totalorder %v1659, 14
      %vm1756 = vcmp.lt.s32.totalorder %v1660, 14
      %vm1757 = vcmp.lt.s32.totalorder %v1661, 14
      %vm1758 = vcmp.lt.s32.totalorder %v1662, 14
      %vm1759 = vcmp.lt.s32.totalorder %v1663, 14
      %vm1760 = vcmp.lt.s32.totalorder %v1664, 14
      %vm1761 = vcmp.lt.s32.totalorder %v1665, 14
      %vm1762 = vcmp.lt.s32.totalorder %v1666, 14
      %vm1763 = vcmp.lt.s32.totalorder %v1667, 14
      %vm1764 = vcmp.lt.s32.totalorder %v1668, 14
      %vm1765 = vcmp.lt.s32.totalorder %v1669, 14
      %vm1766 = vcmp.lt.s32.totalorder %v1670, 14
      %vm1767 = vcmp.lt.s32.totalorder %v1671, 14
      %vm1768 = vcmp.lt.s32.totalorder %v1672, 14
      %vm1769 = vcmp.lt.s32.totalorder %v1673, 14
      %vm1770 = vcmp.lt.s32.totalorder %v1674, 14
      %vm1771 = vcmp.lt.s32.totalorder %v1675, 14
      %vm1772 = vcmp.lt.s32.totalorder %v1676, 14
      %vm1773 = vcmp.lt.s32.totalorder %v1677, 14
      %vm1774 = vcmp.lt.s32.totalorder %v1678, 14
      %vm1775 = vcmp.lt.s32.totalorder %v1679, 14
      %vm1776 = vcmp.lt.s32.totalorder %v1680, 14
      %vm1777 = vcmp.lt.s32.totalorder %v1681, 14
      %vm1778 = vcmp.lt.s32.totalorder %v1682, 14
      %vm1779 = vcmp.lt.s32.totalorder %v1683, 14
      %vm1780 = vcmp.lt.s32.totalorder %v1684, 14
      %vm1781 = vcmp.lt.s32.totalorder %v1685, 14
      %vm1782 = vcmp.lt.s32.totalorder %v1686, 14
      %vm1783 = vcmp.lt.s32.totalorder %v1687, 14
      %vm1784 = vcmp.lt.s32.totalorder %v1688, 14
      %vm1785 = vcmp.lt.s32.totalorder %v1689, 14
      %vm1786 = vcmp.lt.s32.totalorder %v1690, 14
      %1787 = vst [vmem:[#allocation2 + $0x18] sm:$0xff] %v1242
      %1788 = vst [vmem:[#allocation2 + $0x20] sm:$0xff] %v1243
      %1789 = vst [vmem:[#allocation2 + $0x28] sm:$0xff] %v1244
      %1790 = vst [vmem:[#allocation2 + $0x30] sm:$0xff] %v1245
      %1791 = vst [vmem:[#allocation2 + $0x38] sm:$0xff] %v1246
      %1792 = vst [vmem:[#allocation2 + $0x40] sm:$0xff] %v1247
      %1793 = vst [vmem:[#allocation2 + $0x48] sm:$0xff] %v1248
      %1794 = vst [vmem:[#allocation2 + $0x50] sm:$0xff] %v1249
      %1795 = vst [vmem:[#allocation2 + $0x58] sm:$0xff] %v1250
      %1796 = vst [vmem:[#allocation2 + $0x60] sm:$0xff] %v1251
      %1797 = vst [vmem:[#allocation2 + $0x68] sm:$0xff] %v1252
      %1798 = vst [vmem:[#allocation2 + $0x70] sm:$0xff] %v1253
      %1799 = vst [vmem:[#allocation2 + $0x78] sm:$0xff] %v1254
      %1800 = vst [vmem:[#allocation2 + $0x80] sm:$0xff] %v1255
      %1801 = vst [vmem:[#allocation2 + $0x88] sm:$0xff] %v1256
      %1802 = vst [vmem:[#allocation2 + $0x90] sm:$0xff] %v1257
      %1803 = vst [vmem:[#allocation2 + $0x98] sm:$0xff] %v1258
      %1804 = vst [vmem:[#allocation2 + $0xa0] sm:$0xff] %v1259
      %1805 = vst [vmem:[#allocation2 + $0xa8] sm:$0xff] %v1260
      %1806 = vst [vmem:[#allocation2 + $0xb0] sm:$0xff] %v1261
      %1807 = vst [vmem:[#allocation2 + $0xb8] sm:$0xff] %v1262
      %1808 = vst [vmem:[#allocation2 + $0xc0] sm:$0xff] %v1263
      %1809 = vst [vmem:[#allocation2 + $0xc8] sm:$0xff] %v1264
      %1810 = vst [vmem:[#allocation2 + $0xd0] sm:$0xff] %v1265
      %1811 = vst [vmem:[#allocation2 + $0xd8] sm:$0xff] %v1266
      %1812 = vst [vmem:[#allocation2 + $0xe0] sm:$0xff] %v1267
      %1813 = vst [vmem:[#allocation2 + $0xe8] sm:$0xff] %v1268
      %1814 = vst [vmem:[#allocation2 + $0xf0] sm:$0xff] %v1269
      %1815 = vst [vmem:[#allocation2 + $0xf8] sm:$0xff] %v1270
      %1816 = vst [vmem:[#allocation2 + $0x100] sm:$0xff] %v1271
      %1817 = vst [vmem:[#allocation2 + $0x108] sm:$0xff] %v1272
      %1818 = vst [vmem:[#allocation2 + $0x110] sm:$0xff] %v1273
      %v1819 = vld [vmem:[#allocation2 + $0x7] sm:$0xff]
      %v1820 = vld [vmem:[#allocation2 + $0xf] sm:$0xff]
      %v1821 = vld [vmem:[#allocation2 + $0x17] sm:$0xff]
      %v1822 = vld [vmem:[#allocation2 + $0x1f] sm:$0xff]
      %v1823 = vld [vmem:[#allocation2 + $0x27] sm:$0xff]
      %v1824 = vld [vmem:[#allocation2 + $0x2f] sm:$0xff]
      %v1825 = vld [vmem:[#allocation2 + $0x37] sm:$0xff]
      %v1826 = vld [vmem:[#allocation2 + $0x3f] sm:$0xff]
      %v1827 = vld [vmem:[#allocation2 + $0x47] sm:$0xff]
      %v1828 = vld [vmem:[#allocation2 + $0x4f] sm:$0xff]
      %v1829 = vld [vmem:[#allocation2 + $0x57] sm:$0xff]
      %v1830 = vld [vmem:[#allocation2 + $0x5f] sm:$0xff]
      %v1831 = vld [vmem:[#allocation2 + $0x67] sm:$0xff]
      %v1832 = vld [vmem:[#allocation2 + $0x6f] sm:$0xff]
      %v1833 = vld [vmem:[#allocation2 + $0x77] sm:$0xff]
      %v1834 = vld [vmem:[#allocation2 + $0x7f] sm:$0xff]
      %v1835 = vld [vmem:[#allocation2 + $0x87] sm:$0xff]
      %v1836 = vld [vmem:[#allocation2 + $0x8f] sm:$0xff]
      %v1837 = vld [vmem:[#allocation2 + $0x97] sm:$0xff]
      %v1838 = vld [vmem:[#allocation2 + $0x9f] sm:$0xff]
      %v1839 = vld [vmem:[#allocation2 + $0xa7] sm:$0xff]
      %v1840 = vld [vmem:[#allocation2 + $0xaf] sm:$0xff]
      %v1841 = vld [vmem:[#allocation2 + $0xb7] sm:$0xff]
      %v1842 = vld [vmem:[#allocation2 + $0xbf] sm:$0xff]
      %v1843 = vld [vmem:[#allocation2 + $0xc7] sm:$0xff]
      %v1844 = vld [vmem:[#allocation2 + $0xcf] sm:$0xff]
      %v1845 = vld [vmem:[#allocation2 + $0xd7] sm:$0xff]
      %v1846 = vld [vmem:[#allocation2 + $0xdf] sm:$0xff]
      %v1847 = vld [vmem:[#allocation2 + $0xe7] sm:$0xff]
      %v1848 = vld [vmem:[#allocation2 + $0xef] sm:$0xff]
      %v1849 = vld [vmem:[#allocation2 + $0xf7] sm:$0xff]
      %v1850 = vld [vmem:[#allocation2 + $0xff] sm:$0xff]
      %v1851 = vsel %vm1691, %v1819, 0.0
      %v1852 = vsel %vm1692, %v1820, 0.0
      %v1853 = vsel %vm1693, %v1821, 0.0
      %v1854 = vsel %vm1694, %v1822, 0.0
      %v1855 = vsel %vm1695, %v1823, 0.0
      %v1856 = vsel %vm1696, %v1824, 0.0
      %v1857 = vsel %vm1697, %v1825, 0.0
      %v1858 = vsel %vm1698, %v1826, 0.0
      %v1859 = vsel %vm1699, %v1827, 0.0
      %v1860 = vsel %vm1700, %v1828, 0.0
      %v1861 = vsel %vm1701, %v1829, 0.0
      %v1862 = vsel %vm1702, %v1830, 0.0
      %v1863 = vsel %vm1703, %v1831, 0.0
      %v1864 = vsel %vm1704, %v1832, 0.0
      %v1865 = vsel %vm1705, %v1833, 0.0
      %v1866 = vsel %vm1706, %v1834, 0.0
      %v1867 = vsel %vm1707, %v1835, 0.0
      %v1868 = vsel %vm1708, %v1836, 0.0
      %v1869 = vsel %vm1709, %v1837, 0.0
      %v1870 = vsel %vm1710, %v1838, 0.0
      %v1871 = vsel %vm1711, %v1839, 0.0
      %v1872 = vsel %vm1712, %v1840, 0.0
      %v1873 = vsel %vm1713, %v1841, 0.0
      %v1874 = vsel %vm1714, %v1842, 0.0
      %v1875 = vsel %vm1715, %v1843, 0.0
      %v1876 = vsel %vm1716, %v1844, 0.0
      %v1877 = vsel %vm1717, %v1845, 0.0
      %v1878 = vsel %vm1718, %v1846, 0.0
      %v1879 = vsel %vm1719, %v1847, 0.0
      %v1880 = vsel %vm1720, %v1848, 0.0
      %v1881 = vsel %vm1721, %v1849, 0.0
      %v1882 = vsel %vm1722, %v1850, 0.0
      %v1883 = vpack.c.bf16 %v1851, %v1851
      %v1884 = vpack.c.bf16 %v1852, %v1852
      %v1885 = vpack.c.bf16 %v1853, %v1853
      %v1886 = vpack.c.bf16 %v1854, %v1854
      %v1887 = vpack.c.bf16 %v1855, %v1855
      %v1888 = vpack.c.bf16 %v1856, %v1856
      %v1889 = vpack.c.bf16 %v1857, %v1857
      %v1890 = vpack.c.bf16 %v1858, %v1858
      %v1891 = vpack.c.bf16 %v1859, %v1859
      %v1892 = vpack.c.bf16 %v1860, %v1860
      %v1893 = vpack.c.bf16 %v1861, %v1861
      %v1894 = vpack.c.bf16 %v1862, %v1862
      %v1895 = vpack.c.bf16 %v1863, %v1863
      %v1896 = vpack.c.bf16 %v1864, %v1864
      %v1897 = vpack.c.bf16 %v1865, %v1865
      %v1898 = vpack.c.bf16 %v1866, %v1866
      %v1899 = vpack.c.bf16 %v1867, %v1867
      %v1900 = vpack.c.bf16 %v1868, %v1868
      %v1901 = vpack.c.bf16 %v1869, %v1869
      %v1902 = vpack.c.bf16 %v1870, %v1870
      %v1903 = vpack.c.bf16 %v1871, %v1871
      %v1904 = vpack.c.bf16 %v1872, %v1872
      %v1905 = vpack.c.bf16 %v1873, %v1873
      %v1906 = vpack.c.bf16 %v1874, %v1874
      %v1907 = vpack.c.bf16 %v1875, %v1875
      %v1908 = vpack.c.bf16 %v1876, %v1876
      %v1909 = vpack.c.bf16 %v1877, %v1877
      %v1910 = vpack.c.bf16 %v1878, %v1878
      %v1911 = vpack.c.bf16 %v1879, %v1879
      %v1912 = vpack.c.bf16 %v1880, %v1880
      %v1913 = vpack.c.bf16 %v1881, %v1881
      %v1914 = vpack.c.bf16 %v1882, %v1882
      %v1915 = vld [vmem:[#allocation2 + $0x8] sm:$0xff]
      %v1916 = vld [vmem:[#allocation2 + $0x10] sm:$0xff]
      %v1917 = vld [vmem:[#allocation2 + $0x18] sm:$0xff]
      %v1918 = vld [vmem:[#allocation2 + $0x20] sm:$0xff]
      %v1919 = vld [vmem:[#allocation2 + $0x28] sm:$0xff]
      %v1920 = vld [vmem:[#allocation2 + $0x30] sm:$0xff]
      %v1921 = vld [vmem:[#allocation2 + $0x38] sm:$0xff]
      %v1922 = vld [vmem:[#allocation2 + $0x40] sm:$0xff]
      %v1923 = vld [vmem:[#allocation2 + $0x48] sm:$0xff]
      %v1924 = vld [vmem:[#allocation2 + $0x50] sm:$0xff]
      %v1925 = vld [vmem:[#allocation2 + $0x58] sm:$0xff]
      %v1926 = vld [vmem:[#allocation2 + $0x60] sm:$0xff]
      %v1927 = vld [vmem:[#allocation2 + $0x68] sm:$0xff]
      %v1928 = vld [vmem:[#allocation2 + $0x70] sm:$0xff]
      %v1929 = vld [vmem:[#allocation2 + $0x78] sm:$0xff]
      %v1930 = vld [vmem:[#allocation2 + $0x80] sm:$0xff]
      %v1931 = vld [vmem:[#allocation2 + $0x88] sm:$0xff]
      %v1932 = vld [vmem:[#allocation2 + $0x90] sm:$0xff]
      %v1933 = vld [vmem:[#allocation2 + $0x98] sm:$0xff]
      %v1934 = vld [vmem:[#allocation2 + $0xa0] sm:$0xff]
      %v1935 = vld [vmem:[#allocation2 + $0xa8] sm:$0xff]
      %v1936 = vld [vmem:[#allocation2 + $0xb0] sm:$0xff]
      %v1937 = vld [vmem:[#allocation2 + $0xb8] sm:$0xff]
      %v1938 = vld [vmem:[#allocation2 + $0xc0] sm:$0xff]
      %v1939 = vld [vmem:[#allocation2 + $0xc8] sm:$0xff]
      %v1940 = vld [vmem:[#allocation2 + $0xd0] sm:$0xff]
      %v1941 = vld [vmem:[#allocation2 + $0xd8] sm:$0xff]
      %v1942 = vld [vmem:[#allocation2 + $0xe0] sm:$0xff]
      %v1943 = vld [vmem:[#allocation2 + $0xe8] sm:$0xff]
      %v1944 = vld [vmem:[#allocation2 + $0xf0] sm:$0xff]
      %v1945 = vld [vmem:[#allocation2 + $0xf8] sm:$0xff]
      %v1946 = vld [vmem:[#allocation2 + $0x100] sm:$0xff]
      %v1947 = vpack.c.bf16 %v1915, %v1915
      %v1948 = vpack.c.bf16 %v1916, %v1916
      %v1949 = vpack.c.bf16 %v1917, %v1917
      %v1950 = vpack.c.bf16 %v1918, %v1918
      %v1951 = vpack.c.bf16 %v1919, %v1919
      %v1952 = vpack.c.bf16 %v1920, %v1920
      %v1953 = vpack.c.bf16 %v1921, %v1921
      %v1954 = vpack.c.bf16 %v1922, %v1922
      %v1955 = vpack.c.bf16 %v1923, %v1923
      %v1956 = vpack.c.bf16 %v1924, %v1924
      %v1957 = vpack.c.bf16 %v1925, %v1925
      %v1958 = vpack.c.bf16 %v1926, %v1926
      %v1959 = vpack.c.bf16 %v1927, %v1927
      %v1960 = vpack.c.bf16 %v1928, %v1928
      %v1961 = vpack.c.bf16 %v1929, %v1929
      %v1962 = vpack.c.bf16 %v1930, %v1930
      %v1963 = vpack.c.bf16 %v1931, %v1931
      %v1964 = vpack.c.bf16 %v1932, %v1932
      %v1965 = vpack.c.bf16 %v1933, %v1933
      %v1966 = vpack.c.bf16 %v1934, %v1934
      %v1967 = vpack.c.bf16 %v1935, %v1935
      %v1968 = vpack.c.bf16 %v1936, %v1936
      %v1969 = vpack.c.bf16 %v1937, %v1937
      %v1970 = vpack.c.bf16 %v1938, %v1938
      %v1971 = vpack.c.bf16 %v1939, %v1939
      %v1972 = vpack.c.bf16 %v1940, %v1940
      %v1973 = vpack.c.bf16 %v1941, %v1941
      %v1974 = vpack.c.bf16 %v1942, %v1942
      %v1975 = vpack.c.bf16 %v1943, %v1943
      %v1976 = vpack.c.bf16 %v1944, %v1944
      %v1977 = vpack.c.bf16 %v1945, %v1945
      %v1978 = vpack.c.bf16 %v1946, %v1946
      %v1979 = vld [vmem:[#allocation2 + $0x9] sm:$0xff]
      %v1980 = vld [vmem:[#allocation2 + $0x11] sm:$0xff]
      %v1981 = vld [vmem:[#allocation2 + $0x19] sm:$0xff]
      %v1982 = vld [vmem:[#allocation2 + $0x21] sm:$0xff]
      %v1983 = vld [vmem:[#allocation2 + $0x29] sm:$0xff]
      %v1984 = vld [vmem:[#allocation2 + $0x31] sm:$0xff]
      %v1985 = vld [vmem:[#allocation2 + $0x39] sm:$0xff]
      %v1986 = vld [vmem:[#allocation2 + $0x41] sm:$0xff]
      %v1987 = vld [vmem:[#allocation2 + $0x49] sm:$0xff]
      %v1988 = vld [vmem:[#allocation2 + $0x51] sm:$0xff]
      %v1989 = vld [vmem:[#allocation2 + $0x59] sm:$0xff]
      %v1990 = vld [vmem:[#allocation2 + $0x61] sm:$0xff]
      %v1991 = vld [vmem:[#allocation2 + $0x69] sm:$0xff]
      %v1992 = vld [vmem:[#allocation2 + $0x71] sm:$0xff]
      %v1993 = vld [vmem:[#allocation2 + $0x79] sm:$0xff]
      %v1994 = vld [vmem:[#allocation2 + $0x81] sm:$0xff]
      %v1995 = vld [vmem:[#allocation2 + $0x89] sm:$0xff]
      %v1996 = vld [vmem:[#allocation2 + $0x91] sm:$0xff]
      %v1997 = vld [vmem:[#allocation2 + $0x99] sm:$0xff]
      %v1998 = vld [vmem:[#allocation2 + $0xa1] sm:$0xff]
      %v1999 = vld [vmem:[#allocation2 + $0xa9] sm:$0xff]
      %v2000 = vld [vmem:[#allocation2 + $0xb1] sm:$0xff]
      %v2001 = vld [vmem:[#allocation2 + $0xb9] sm:$0xff]
      %v2002 = vld [vmem:[#allocation2 + $0xc1] sm:$0xff]
      %v2003 = vld [vmem:[#allocation2 + $0xc9] sm:$0xff]
      %v2004 = vld [vmem:[#allocation2 + $0xd1] sm:$0xff]
      %v2005 = vld [vmem:[#allocation2 + $0xd9] sm:$0xff]
      %v2006 = vld [vmem:[#allocation2 + $0xe1] sm:$0xff]
      %v2007 = vld [vmem:[#allocation2 + $0xe9] sm:$0xff]
      %v2008 = vld [vmem:[#allocation2 + $0xf1] sm:$0xff]
      %v2009 = vld [vmem:[#allocation2 + $0xf9] sm:$0xff]
      %v2010 = vld [vmem:[#allocation2 + $0x101] sm:$0xff]
      %v2011 = vsel %vm1723, %v1979, 0.0
      %v2012 = vsel %vm1724, %v1980, 0.0
      %v2013 = vsel %vm1725, %v1981, 0.0
      %v2014 = vsel %vm1726, %v1982, 0.0
      %v2015 = vsel %vm1727, %v1983, 0.0
      %v2016 = vsel %vm1728, %v1984, 0.0
      %v2017 = vsel %vm1729, %v1985, 0.0
      %v2018 = vsel %vm1730, %v1986, 0.0
      %v2019 = vsel %vm1731, %v1987, 0.0
      %v2020 = vsel %vm1732, %v1988, 0.0
      %v2021 = vsel %vm1733, %v1989, 0.0
      %v2022 = vsel %vm1734, %v1990, 0.0
      %v2023 = vsel %vm1735, %v1991, 0.0
      %v2024 = vsel %vm1736, %v1992, 0.0
      %v2025 = vsel %vm1737, %v1993, 0.0
      %v2026 = vsel %vm1738, %v1994, 0.0
      %v2027 = vsel %vm1739, %v1995, 0.0
      %v2028 = vsel %vm1740, %v1996, 0.0
      %v2029 = vsel %vm1741, %v1997, 0.0
      %v2030 = vsel %vm1742, %v1998, 0.0
      %v2031 = vsel %vm1743, %v1999, 0.0
      %v2032 = vsel %vm1744, %v2000, 0.0
      %v2033 = vsel %vm1745, %v2001, 0.0
      %v2034 = vsel %vm1746, %v2002, 0.0
      %v2035 = vsel %vm1747, %v2003, 0.0
      %v2036 = vsel %vm1748, %v2004, 0.0
      %v2037 = vsel %vm1749, %v2005, 0.0
      %v2038 = vsel %vm1750, %v2006, 0.0
      %v2039 = vsel %vm1751, %v2007, 0.0
      %v2040 = vsel %vm1752, %v2008, 0.0
      %v2041 = vsel %vm1753, %v2009, 0.0
      %v2042 = vsel %vm1754, %v2010, 0.0
      %v2043 = vpack.c.bf16 %v2011, %v2011
      %v2044 = vpack.c.bf16 %v2012, %v2012
      %v2045 = vpack.c.bf16 %v2013, %v2013
      %v2046 = vpack.c.bf16 %v2014, %v2014
      %v2047 = vpack.c.bf16 %v2015, %v2015
      %v2048 = vpack.c.bf16 %v2016, %v2016
      %v2049 = vpack.c.bf16 %v2017, %v2017
      %v2050 = vpack.c.bf16 %v2018, %v2018
      %v2051 = vpack.c.bf16 %v2019, %v2019
      %v2052 = vpack.c.bf16 %v2020, %v2020
      %v2053 = vpack.c.bf16 %v2021, %v2021
      %v2054 = vpack.c.bf16 %v2022, %v2022
      %v2055 = vpack.c.bf16 %v2023, %v2023
      %v2056 = vpack.c.bf16 %v2024, %v2024
      %v2057 = vpack.c.bf16 %v2025, %v2025
      %v2058 = vpack.c.bf16 %v2026, %v2026
      %v2059 = vpack.c.bf16 %v2027, %v2027
      %v2060 = vpack.c.bf16 %v2028, %v2028
      %v2061 = vpack.c.bf16 %v2029, %v2029
      %v2062 = vpack.c.bf16 %v2030, %v2030
      %v2063 = vpack.c.bf16 %v2031, %v2031
      %v2064 = vpack.c.bf16 %v2032, %v2032
      %v2065 = vpack.c.bf16 %v2033, %v2033
      %v2066 = vpack.c.bf16 %v2034, %v2034
      %v2067 = vpack.c.bf16 %v2035, %v2035
      %v2068 = vpack.c.bf16 %v2036, %v2036
      %v2069 = vpack.c.bf16 %v2037, %v2037
      %v2070 = vpack.c.bf16 %v2038, %v2038
      %v2071 = vpack.c.bf16 %v2039, %v2039
      %v2072 = vpack.c.bf16 %v2040, %v2040
      %v2073 = vpack.c.bf16 %v2041, %v2041
      %v2074 = vpack.c.bf16 %v2042, %v2042
      %v2075 = vld [vmem:[#allocation2 + $0x107] sm:$0xff]
      %v2076 = vld [vmem:[#allocation2 + $0x10f] sm:$0xff]
      %v2077 = vsel %vm1691, %v1821, 0.0
      %v2078 = vsel %vm1692, %v1822, 0.0
      %v2079 = vsel %vm1693, %v1823, 0.0
      %v2080 = vsel %vm1694, %v1824, 0.0
      %v2081 = vsel %vm1695, %v1825, 0.0
      %v2082 = vsel %vm1696, %v1826, 0.0
      %v2083 = vsel %vm1697, %v1827, 0.0
      %v2084 = vsel %vm1698, %v1828, 0.0
      %v2085 = vsel %vm1699, %v1829, 0.0
      %v2086 = vsel %vm1700, %v1830, 0.0
      %v2087 = vsel %vm1701, %v1831, 0.0
      %v2088 = vsel %vm1702, %v1832, 0.0
      %v2089 = vsel %vm1703, %v1833, 0.0
      %v2090 = vsel %vm1704, %v1834, 0.0
      %v2091 = vsel %vm1705, %v1835, 0.0
      %v2092 = vsel %vm1706, %v1836, 0.0
      %v2093 = vsel %vm1707, %v1837, 0.0
      %v2094 = vsel %vm1708, %v1838, 0.0
      %v2095 = vsel %vm1709, %v1839, 0.0
      %v2096 = vsel %vm1710, %v1840, 0.0
      %v2097 = vsel %vm1711, %v1841, 0.0
      %v2098 = vsel %vm1712, %v1842, 0.0
      %v2099 = vsel %vm1713, %v1843, 0.0
      %v2100 = vsel %vm1714, %v1844, 0.0
      %v2101 = vsel %vm1715, %v1845, 0.0
      %v2102 = vsel %vm1716, %v1846, 0.0
      %v2103 = vsel %vm1717, %v1847, 0.0
      %v2104 = vsel %vm1718, %v1848, 0.0
      %v2105 = vsel %vm1719, %v1849, 0.0
      %v2106 = vsel %vm1720, %v1850, 0.0
      %v2107 = vsel %vm1721, %v2075, 0.0
      %v2108 = vsel %vm1722, %v2076, 0.0
      %v2109 = vpack.c.bf16 %v2077, %v2077
      %v2110 = vpack.c.bf16 %v2078, %v2078
      %v2111 = vpack.c.bf16 %v2079, %v2079
      %v2112 = vpack.c.bf16 %v2080, %v2080
      %v2113 = vpack.c.bf16 %v2081, %v2081
      %v2114 = vpack.c.bf16 %v2082, %v2082
      %v2115 = vpack.c.bf16 %v2083, %v2083
      %v2116 = vpack.c.bf16 %v2084, %v2084
      %v2117 = vpack.c.bf16 %v2085, %v2085
      %v2118 = vpack.c.bf16 %v2086, %v2086
      %v2119 = vpack.c.bf16 %v2087, %v2087
      %v2120 = vpack.c.bf16 %v2088, %v2088
      %v2121 = vpack.c.bf16 %v2089, %v2089
      %v2122 = vpack.c.bf16 %v2090, %v2090
      %v2123 = vpack.c.bf16 %v2091, %v2091
      %v2124 = vpack.c.bf16 %v2092, %v2092
      %v2125 = vpack.c.bf16 %v2093, %v2093
      %v2126 = vpack.c.bf16 %v2094, %v2094
      %v2127 = vpack.c.bf16 %v2095, %v2095
      %v2128 = vpack.c.bf16 %v2096, %v2096
      %v2129 = vpack.c.bf16 %v2097, %v2097
      %v2130 = vpack.c.bf16 %v2098, %v2098
      %v2131 = vpack.c.bf16 %v2099, %v2099
      %v2132 = vpack.c.bf16 %v2100, %v2100
      %v2133 = vpack.c.bf16 %v2101, %v2101
      %v2134 = vpack.c.bf16 %v2102, %v2102
      %v2135 = vpack.c.bf16 %v2103, %v2103
      %v2136 = vpack.c.bf16 %v2104, %v2104
      %v2137 = vpack.c.bf16 %v2105, %v2105
      %v2138 = vpack.c.bf16 %v2106, %v2106
      %v2139 = vpack.c.bf16 %v2107, %v2107
      %v2140 = vpack.c.bf16 %v2108, %v2108
      %v2141 = vld [vmem:[#allocation2 + $0x108] sm:$0xff]
      %v2142 = vld [vmem:[#allocation2 + $0x110] sm:$0xff]
      %v2143 = vpack.c.bf16 %v2141, %v2141
      %v2144 = vpack.c.bf16 %v2142, %v2142
      %v2145 = vld [vmem:[#allocation2 + $0x109] sm:$0xff]
      %v2146 = vld [vmem:[#allocation2 + $0x111] sm:$0xff]
      %v2147 = vsel %vm1723, %v1981, 0.0
      %v2148 = vsel %vm1724, %v1982, 0.0
      %v2149 = vsel %vm1725, %v1983, 0.0
      %v2150 = vsel %vm1726, %v1984, 0.0
      %v2151 = vsel %vm1727, %v1985, 0.0
      %v2152 = vsel %vm1728, %v1986, 0.0
      %v2153 = vsel %vm1729, %v1987, 0.0
      %v2154 = vsel %vm1730, %v1988, 0.0
      %v2155 = vsel %vm1731, %v1989, 0.0
      %v2156 = vsel %vm1732, %v1990, 0.0
      %v2157 = vsel %vm1733, %v1991, 0.0
      %v2158 = vsel %vm1734, %v1992, 0.0
      %v2159 = vsel %vm1735, %v1993, 0.0
      %v2160 = vsel %vm1736, %v1994, 0.0
      %v2161 = vsel %vm1737, %v1995, 0.0
      %v2162 = vsel %vm1738, %v1996, 0.0
      %v2163 = vsel %vm1739, %v1997, 0.0
      %v2164 = vsel %vm1740, %v1998, 0.0
      %v2165 = vsel %vm1741, %v1999, 0.0
      %v2166 = vsel %vm1742, %v2000, 0.0
      %v2167 = vsel %vm1743, %v2001, 0.0
      %v2168 = vsel %vm1744, %v2002, 0.0
      %v2169 = vsel %vm1745, %v2003, 0.0
      %v2170 = vsel %vm1746, %v2004, 0.0
      %v2171 = vsel %vm1747, %v2005, 0.0
      %v2172 = vsel %vm1748, %v2006, 0.0
      %v2173 = vsel %vm1749, %v2007, 0.0
      %v2174 = vsel %vm1750, %v2008, 0.0
      %v2175 = vsel %vm1751, %v2009, 0.0
      %v2176 = vsel %vm1752, %v2010, 0.0
      %v2177 = vsel %vm1753, %v2145, 0.0
      %v2178 = vsel %vm1754, %v2146, 0.0
      %v2179 = vpack.c.bf16 %v2147, %v2147
      %v2180 = vpack.c.bf16 %v2148, %v2148
      %v2181 = vpack.c.bf16 %v2149, %v2149
      %v2182 = vpack.c.bf16 %v2150, %v2150
      %v2183 = vpack.c.bf16 %v2151, %v2151
      %v2184 = vpack.c.bf16 %v2152, %v2152
      %v2185 = vpack.c.bf16 %v2153, %v2153
      %v2186 = vpack.c.bf16 %v2154, %v2154
      %v2187 = vpack.c.bf16 %v2155, %v2155
      %v2188 = vpack.c.bf16 %v2156, %v2156
      %v2189 = vpack.c.bf16 %v2157, %v2157
      %v2190 = vpack.c.bf16 %v2158, %v2158
      %v2191 = vpack.c.bf16 %v2159, %v2159
      %v2192 = vpack.c.bf16 %v2160, %v2160
      %v2193 = vpack.c.bf16 %v2161, %v2161
      %v2194 = vpack.c.bf16 %v2162, %v2162
      %v2195 = vpack.c.bf16 %v2163, %v2163
      %v2196 = vpack.c.bf16 %v2164, %v2164
      %v2197 = vpack.c.bf16 %v2165, %v2165
      %v2198 = vpack.c.bf16 %v2166, %v2166
      %v2199 = vpack.c.bf16 %v2167, %v2167
      %v2200 = vpack.c.bf16 %v2168, %v2168
      %v2201 = vpack.c.bf16 %v2169, %v2169
      %v2202 = vpack.c.bf16 %v2170, %v2170
      %v2203 = vpack.c.bf16 %v2171, %v2171
      %v2204 = vpack.c.bf16 %v2172, %v2172
      %v2205 = vpack.c.bf16 %v2173, %v2173
      %v2206 = vpack.c.bf16 %v2174, %v2174
      %v2207 = vpack.c.bf16 %v2175, %v2175
      %v2208 = vpack.c.bf16 %v2176, %v2176
      %v2209 = vpack.c.bf16 %v2177, %v2177
      %v2210 = vpack.c.bf16 %v2178, %v2178
      %v2211 = vld [vmem:[#allocation2 + $0x117] sm:$0xff]
      %v2212 = vld [vmem:[#allocation2 + $0x11f] sm:$0xff]
      %v2213 = vsel %vm1691, %v1823, 0.0
      %v2214 = vsel %vm1692, %v1824, 0.0
      %v2215 = vsel %vm1693, %v1825, 0.0
      %v2216 = vsel %vm1694, %v1826, 0.0
      %v2217 = vsel %vm1695, %v1827, 0.0
      %v2218 = vsel %vm1696, %v1828, 0.0
      %v2219 = vsel %vm1697, %v1829, 0.0
      %v2220 = vsel %vm1698, %v1830, 0.0
      %v2221 = vsel %vm1699, %v1831, 0.0
      %v2222 = vsel %vm1700, %v1832, 0.0
      %v2223 = vsel %vm1701, %v1833, 0.0
      %v2224 = vsel %vm1702, %v1834, 0.0
      %v2225 = vsel %vm1703, %v1835, 0.0
      %v2226 = vsel %vm1704, %v1836, 0.0
      %v2227 = vsel %vm1705, %v1837, 0.0
      %v2228 = vsel %vm1706, %v1838, 0.0
      %v2229 = vsel %vm1707, %v1839, 0.0
      %v2230 = vsel %vm1708, %v1840, 0.0
      %v2231 = vsel %vm1709, %v1841, 0.0
      %v2232 = vsel %vm1710, %v1842, 0.0
      %v2233 = vsel %vm1711, %v1843, 0.0
      %v2234 = vsel %vm1712, %v1844, 0.0
      %v2235 = vsel %vm1713, %v1845, 0.0
      %v2236 = vsel %vm1714, %v1846, 0.0
      %v2237 = vsel %vm1715, %v1847, 0.0
      %v2238 = vsel %vm1716, %v1848, 0.0
      %v2239 = vsel %vm1717, %v1849, 0.0
      %v2240 = vsel %vm1718, %v1850, 0.0
      %v2241 = vsel %vm1719, %v2075, 0.0
      %v2242 = vsel %vm1720, %v2076, 0.0
      %v2243 = vsel %vm1721, %v2211, 0.0
      %v2244 = vsel %vm1722, %v2212, 0.0
      %v2245 = vpack.c.bf16 %v2213, %v2213
      %v2246 = vpack.c.bf16 %v2214, %v2214
      %v2247 = vpack.c.bf16 %v2215, %v2215
      %v2248 = vpack.c.bf16 %v2216, %v2216
      %v2249 = vpack.c.bf16 %v2217, %v2217
      %v2250 = vpack.c.bf16 %v2218, %v2218
      %v2251 = vpack.c.bf16 %v2219, %v2219
      %v2252 = vpack.c.bf16 %v2220, %v2220
      %v2253 = vpack.c.bf16 %v2221, %v2221
      %v2254 = vpack.c.bf16 %v2222, %v2222
      %v2255 = vpack.c.bf16 %v2223, %v2223
      %v2256 = vpack.c.bf16 %v2224, %v2224
      %v2257 = vpack.c.bf16 %v2225, %v2225
      %v2258 = vpack.c.bf16 %v2226, %v2226
      %v2259 = vpack.c.bf16 %v2227, %v2227
      %v2260 = vpack.c.bf16 %v2228, %v2228
      %v2261 = vpack.c.bf16 %v2229, %v2229
      %v2262 = vpack.c.bf16 %v2230, %v2230
      %v2263 = vpack.c.bf16 %v2231, %v2231
      %v2264 = vpack.c.bf16 %v2232, %v2232
      %v2265 = vpack.c.bf16 %v2233, %v2233
      %v2266 = vpack.c.bf16 %v2234, %v2234
      %v2267 = vpack.c.bf16 %v2235, %v2235
      %v2268 = vpack.c.bf16 %v2236, %v2236
      %v2269 = vpack.c.bf16 %v2237, %v2237
      %v2270 = vpack.c.bf16 %v2238, %v2238
      %v2271 = vpack.c.bf16 %v2239, %v2239
      %v2272 = vpack.c.bf16 %v2240, %v2240
      %v2273 = vpack.c.bf16 %v2241, %v2241
      %v2274 = vpack.c.bf16 %v2242, %v2242
      %v2275 = vpack.c.bf16 %v2243, %v2243
      %v2276 = vpack.c.bf16 %v2244, %v2244
      %v2277 = vld [vmem:[#allocation2 + $0x118] sm:$0xff]
      %v2278 = vld [vmem:[#allocation2 + $0x120] sm:$0xff]
      %v2279 = vpack.c.bf16 %v2277, %v2277
      %v2280 = vpack.c.bf16 %v2278, %v2278
      %v2281 = vld [vmem:[#allocation2 + $0x119] sm:$0xff]
      %v2282 = vld [vmem:[#allocation2 + $0x121] sm:$0xff]
      %v2283 = vsel %vm1723, %v1983, 0.0
      %v2284 = vsel %vm1724, %v1984, 0.0
      %v2285 = vsel %vm1725, %v1985, 0.0
      %v2286 = vsel %vm1726, %v1986, 0.0
      %v2287 = vsel %vm1727, %v1987, 0.0
      %v2288 = vsel %vm1728, %v1988, 0.0
      %v2289 = vsel %vm1729, %v1989, 0.0
      %v2290 = vsel %vm1730, %v1990, 0.0
      %v2291 = vsel %vm1731, %v1991, 0.0
      %v2292 = vsel %vm1732, %v1992, 0.0
      %v2293 = vsel %vm1733, %v1993, 0.0
      %v2294 = vsel %vm1734, %v1994, 0.0
      %v2295 = vsel %vm1735, %v1995, 0.0
      %v2296 = vsel %vm1736, %v1996, 0.0
      %v2297 = vsel %vm1737, %v1997, 0.0
      %v2298 = vsel %vm1738, %v1998, 0.0
      %v2299 = vsel %vm1739, %v1999, 0.0
      %v2300 = vsel %vm1740, %v2000, 0.0
      %v2301 = vsel %vm1741, %v2001, 0.0
      %v2302 = vsel %vm1742, %v2002, 0.0
      %v2303 = vsel %vm1743, %v2003, 0.0
      %v2304 = vsel %vm1744, %v2004, 0.0
      %v2305 = vsel %vm1745, %v2005, 0.0
      %v2306 = vsel %vm1746, %v2006, 0.0
      %v2307 = vsel %vm1747, %v2007, 0.0
      %v2308 = vsel %vm1748, %v2008, 0.0
      %v2309 = vsel %vm1749, %v2009, 0.0
      %v2310 = vsel %vm1750, %v2010, 0.0
      %v2311 = vsel %vm1751, %v2145, 0.0
      %v2312 = vsel %vm1752, %v2146, 0.0
      %v2313 = vsel %vm1753, %v2281, 0.0
      %v2314 = vsel %vm1754, %v2282, 0.0
      %v2315 = vpack.c.bf16 %v2283, %v2283
      %v2316 = vpack.c.bf16 %v2284, %v2284
      %v2317 = vpack.c.bf16 %v2285, %v2285
      %v2318 = vpack.c.bf16 %v2286, %v2286
      %v2319 = vpack.c.bf16 %v2287, %v2287
      %v2320 = vpack.c.bf16 %v2288, %v2288
      %v2321 = vpack.c.bf16 %v2289, %v2289
      %v2322 = vpack.c.bf16 %v2290, %v2290
      %v2323 = vpack.c.bf16 %v2291, %v2291
      %v2324 = vpack.c.bf16 %v2292, %v2292
      %v2325 = vpack.c.bf16 %v2293, %v2293
      %v2326 = vpack.c.bf16 %v2294, %v2294
      %v2327 = vpack.c.bf16 %v2295, %v2295
      %v2328 = vpack.c.bf16 %v2296, %v2296
      %v2329 = vpack.c.bf16 %v2297, %v2297
      %v2330 = vpack.c.bf16 %v2298, %v2298
      %v2331 = vpack.c.bf16 %v2299, %v2299
      %v2332 = vpack.c.bf16 %v2300, %v2300
      %v2333 = vpack.c.bf16 %v2301, %v2301
      %v2334 = vpack.c.bf16 %v2302, %v2302
      %v2335 = vpack.c.bf16 %v2303, %v2303
      %v2336 = vpack.c.bf16 %v2304, %v2304
      %v2337 = vpack.c.bf16 %v2305, %v2305
      %v2338 = vpack.c.bf16 %v2306, %v2306
      %v2339 = vpack.c.bf16 %v2307, %v2307
      %v2340 = vpack.c.bf16 %v2308, %v2308
      %v2341 = vpack.c.bf16 %v2309, %v2309
      %v2342 = vpack.c.bf16 %v2310, %v2310
      %v2343 = vpack.c.bf16 %v2311, %v2311
      %v2344 = vpack.c.bf16 %v2312, %v2312
      %v2345 = vpack.c.bf16 %v2313, %v2313
      %v2346 = vpack.c.bf16 %v2314, %v2314
      %v2379 = vunpack.c.l.b16 %v1883
      %v2380 = vunpack.c.l.b16 %v1884
      %v2381 = vunpack.c.l.b16 %v1885
      %v2382 = vunpack.c.l.b16 %v1886
      %v2383 = vunpack.c.l.b16 %v1887
      %v2384 = vunpack.c.l.b16 %v1888
      %v2385 = vunpack.c.l.b16 %v1889
      %v2386 = vunpack.c.l.b16 %v1890
      %v2387 = vunpack.c.l.b16 %v1891
      %v2388 = vunpack.c.l.b16 %v1892
      %v2389 = vunpack.c.l.b16 %v1893
      %v2390 = vunpack.c.l.b16 %v1894
      %v2391 = vunpack.c.l.b16 %v1895
      %v2392 = vunpack.c.l.b16 %v1896
      %v2393 = vunpack.c.l.b16 %v1897
      %v2394 = vunpack.c.l.b16 %v1898
      %v2395 = vunpack.c.l.b16 %v1899
      %v2396 = vunpack.c.l.b16 %v1900
      %v2397 = vunpack.c.l.b16 %v1901
      %v2398 = vunpack.c.l.b16 %v1902
      %v2399 = vunpack.c.l.b16 %v1903
      %v2400 = vunpack.c.l.b16 %v1904
      %v2401 = vunpack.c.l.b16 %v1905
      %v2402 = vunpack.c.l.b16 %v1906
      %v2403 = vunpack.c.l.b16 %v1907
      %v2404 = vunpack.c.l.b16 %v1908
      %v2405 = vunpack.c.l.b16 %v1909
      %v2406 = vunpack.c.l.b16 %v1910
      %v2407 = vunpack.c.l.b16 %v1911
      %v2408 = vunpack.c.l.b16 %v1912
      %v2409 = vunpack.c.l.b16 %v1913
      %v2410 = vunpack.c.l.b16 %v1914
      %v2411 = vpack.c.b16 %v2380, %v2379
      %v2412 = vpack.c.b16 %v2382, %v2381
      %v2413 = vpack.c.b16 %v2384, %v2383
      %v2414 = vpack.c.b16 %v2386, %v2385
      %v2415 = vpack.c.b16 %v2388, %v2387
      %v2416 = vpack.c.b16 %v2390, %v2389
      %v2417 = vpack.c.b16 %v2392, %v2391
      %v2418 = vpack.c.b16 %v2394, %v2393
      %v2419 = vpack.c.b16 %v2396, %v2395
      %v2420 = vpack.c.b16 %v2398, %v2397
      %v2421 = vpack.c.b16 %v2400, %v2399
      %v2422 = vpack.c.b16 %v2402, %v2401
      %v2423 = vpack.c.b16 %v2404, %v2403
      %v2424 = vpack.c.b16 %v2406, %v2405
      %v2425 = vpack.c.b16 %v2408, %v2407
      %v2426 = vpack.c.b16 %v2410, %v2409
      %v2475 = vunpack.c.l.b16 %v1947
      %v2476 = vunpack.c.l.b16 %v1948
      %v2477 = vunpack.c.l.b16 %v1949
      %v2478 = vunpack.c.l.b16 %v1950
      %v2479 = vunpack.c.l.b16 %v1951
      %v2480 = vunpack.c.l.b16 %v1952
      %v2481 = vunpack.c.l.b16 %v1953
      %v2482 = vunpack.c.l.b16 %v1954
      %v2483 = vunpack.c.l.b16 %v1955
      %v2484 = vunpack.c.l.b16 %v1956
      %v2485 = vunpack.c.l.b16 %v1957
      %v2486 = vunpack.c.l.b16 %v1958
      %v2487 = vunpack.c.l.b16 %v1959
      %v2488 = vunpack.c.l.b16 %v1960
      %v2489 = vunpack.c.l.b16 %v1961
      %v2490 = vunpack.c.l.b16 %v1962
      %v2491 = vunpack.c.l.b16 %v1963
      %v2492 = vunpack.c.l.b16 %v1964
      %v2493 = vunpack.c.l.b16 %v1965
      %v2494 = vunpack.c.l.b16 %v1966
      %v2495 = vunpack.c.l.b16 %v1967
      %v2496 = vunpack.c.l.b16 %v1968
      %v2497 = vunpack.c.l.b16 %v1969
      %v2498 = vunpack.c.l.b16 %v1970
      %v2499 = vunpack.c.l.b16 %v1971
      %v2500 = vunpack.c.l.b16 %v1972
      %v2501 = vunpack.c.l.b16 %v1973
      %v2502 = vunpack.c.l.b16 %v1974
      %v2503 = vunpack.c.l.b16 %v1975
      %v2504 = vunpack.c.l.b16 %v1976
      %v2505 = vunpack.c.l.b16 %v1977
      %v2506 = vunpack.c.l.b16 %v1978
      %v2507 = vpack.c.b16 %v2476, %v2475
      %v2508 = vpack.c.b16 %v2478, %v2477
      %v2509 = vpack.c.b16 %v2480, %v2479
      %v2510 = vpack.c.b16 %v2482, %v2481
      %v2511 = vpack.c.b16 %v2484, %v2483
      %v2512 = vpack.c.b16 %v2486, %v2485
      %v2513 = vpack.c.b16 %v2488, %v2487
      %v2514 = vpack.c.b16 %v2490, %v2489
      %v2515 = vpack.c.b16 %v2492, %v2491
      %v2516 = vpack.c.b16 %v2494, %v2493
      %v2517 = vpack.c.b16 %v2496, %v2495
      %v2518 = vpack.c.b16 %v2498, %v2497
      %v2519 = vpack.c.b16 %v2500, %v2499
      %v2520 = vpack.c.b16 %v2502, %v2501
      %v2521 = vpack.c.b16 %v2504, %v2503
      %v2522 = vpack.c.b16 %v2506, %v2505
      %v2571 = vunpack.c.l.b16 %v2043
      %v2572 = vunpack.c.l.b16 %v2044
      %v2573 = vunpack.c.l.b16 %v2045
      %v2574 = vunpack.c.l.b16 %v2046
      %v2575 = vunpack.c.l.b16 %v2047
      %v2576 = vunpack.c.l.b16 %v2048
      %v2577 = vunpack.c.l.b16 %v2049
      %v2578 = vunpack.c.l.b16 %v2050
      %v2579 = vunpack.c.l.b16 %v2051
      %v2580 = vunpack.c.l.b16 %v2052
      %v2581 = vunpack.c.l.b16 %v2053
      %v2582 = vunpack.c.l.b16 %v2054
      %v2583 = vunpack.c.l.b16 %v2055
      %v2584 = vunpack.c.l.b16 %v2056
      %v2585 = vunpack.c.l.b16 %v2057
      %v2586 = vunpack.c.l.b16 %v2058
      %v2587 = vunpack.c.l.b16 %v2059
      %v2588 = vunpack.c.l.b16 %v2060
      %v2589 = vunpack.c.l.b16 %v2061
      %v2590 = vunpack.c.l.b16 %v2062
      %v2591 = vunpack.c.l.b16 %v2063
      %v2592 = vunpack.c.l.b16 %v2064
      %v2593 = vunpack.c.l.b16 %v2065
      %v2594 = vunpack.c.l.b16 %v2066
      %v2595 = vunpack.c.l.b16 %v2067
      %v2596 = vunpack.c.l.b16 %v2068
      %v2597 = vunpack.c.l.b16 %v2069
      %v2598 = vunpack.c.l.b16 %v2070
      %v2599 = vunpack.c.l.b16 %v2071
      %v2600 = vunpack.c.l.b16 %v2072
      %v2601 = vunpack.c.l.b16 %v2073
      %v2602 = vunpack.c.l.b16 %v2074
      %v2603 = vpack.c.b16 %v2572, %v2571
      %v2604 = vpack.c.b16 %v2574, %v2573
      %v2605 = vpack.c.b16 %v2576, %v2575
      %v2606 = vpack.c.b16 %v2578, %v2577
      %v2607 = vpack.c.b16 %v2580, %v2579
      %v2608 = vpack.c.b16 %v2582, %v2581
      %v2609 = vpack.c.b16 %v2584, %v2583
      %v2610 = vpack.c.b16 %v2586, %v2585
      %v2611 = vpack.c.b16 %v2588, %v2587
      %v2612 = vpack.c.b16 %v2590, %v2589
      %v2613 = vpack.c.b16 %v2592, %v2591
      %v2614 = vpack.c.b16 %v2594, %v2593
      %v2615 = vpack.c.b16 %v2596, %v2595
      %v2616 = vpack.c.b16 %v2598, %v2597
      %v2617 = vpack.c.b16 %v2600, %v2599
      %v2618 = vpack.c.b16 %v2602, %v2601
      %v2667 = vunpack.c.l.b16 %v2109
      %v2668 = vunpack.c.l.b16 %v2110
      %v2669 = vunpack.c.l.b16 %v2111
      %v2670 = vunpack.c.l.b16 %v2112
      %v2671 = vunpack.c.l.b16 %v2113
      %v2672 = vunpack.c.l.b16 %v2114
      %v2673 = vunpack.c.l.b16 %v2115
      %v2674 = vunpack.c.l.b16 %v2116
      %v2675 = vunpack.c.l.b16 %v2117
      %v2676 = vunpack.c.l.b16 %v2118
      %v2677 = vunpack.c.l.b16 %v2119
      %v2678 = vunpack.c.l.b16 %v2120
      %v2679 = vunpack.c.l.b16 %v2121
      %v2680 = vunpack.c.l.b16 %v2122
      %v2681 = vunpack.c.l.b16 %v2123
      %v2682 = vunpack.c.l.b16 %v2124
      %v2683 = vunpack.c.l.b16 %v2125
      %v2684 = vunpack.c.l.b16 %v2126
      %v2685 = vunpack.c.l.b16 %v2127
      %v2686 = vunpack.c.l.b16 %v2128
      %v2687 = vunpack.c.l.b16 %v2129
      %v2688 = vunpack.c.l.b16 %v2130
      %v2689 = vunpack.c.l.b16 %v2131
      %v2690 = vunpack.c.l.b16 %v2132
      %v2691 = vunpack.c.l.b16 %v2133
      %v2692 = vunpack.c.l.b16 %v2134
      %v2693 = vunpack.c.l.b16 %v2135
      %v2694 = vunpack.c.l.b16 %v2136
      %v2695 = vunpack.c.l.b16 %v2137
      %v2696 = vunpack.c.l.b16 %v2138
      %v2697 = vunpack.c.l.b16 %v2139
      %v2698 = vunpack.c.l.b16 %v2140
      %v2699 = vpack.c.b16 %v2668, %v2667
      %v2700 = vpack.c.b16 %v2670, %v2669
      %v2701 = vpack.c.b16 %v2672, %v2671
      %v2702 = vpack.c.b16 %v2674, %v2673
      %v2703 = vpack.c.b16 %v2676, %v2675
      %v2704 = vpack.c.b16 %v2678, %v2677
      %v2705 = vpack.c.b16 %v2680, %v2679
      %v2706 = vpack.c.b16 %v2682, %v2681
      %v2707 = vpack.c.b16 %v2684, %v2683
      %v2708 = vpack.c.b16 %v2686, %v2685
      %v2709 = vpack.c.b16 %v2688, %v2687
      %v2710 = vpack.c.b16 %v2690, %v2689
      %v2711 = vpack.c.b16 %v2692, %v2691
      %v2712 = vpack.c.b16 %v2694, %v2693
      %v2713 = vpack.c.b16 %v2696, %v2695
      %v2714 = vpack.c.b16 %v2698, %v2697
      %v2733 = vunpack.c.l.b16 %v2143
      %v2734 = vunpack.c.l.b16 %v2144
      %v2735 = vpack.c.b16 %v2734, %v2733
      %v2769 = vunpack.c.l.b16 %v2179
      %v2770 = vunpack.c.l.b16 %v2180
      %v2771 = vunpack.c.l.b16 %v2181
      %v2772 = vunpack.c.l.b16 %v2182
      %v2773 = vunpack.c.l.b16 %v2183
      %v2774 = vunpack.c.l.b16 %v2184
      %v2775 = vunpack.c.l.b16 %v2185
      %v2776 = vunpack.c.l.b16 %v2186
      %v2777 = vunpack.c.l.b16 %v2187
      %v2778 = vunpack.c.l.b16 %v2188
      %v2779 = vunpack.c.l.b16 %v2189
      %v2780 = vunpack.c.l.b16 %v2190
      %v2781 = vunpack.c.l.b16 %v2191
      %v2782 = vunpack.c.l.b16 %v2192
      %v2783 = vunpack.c.l.b16 %v2193
      %v2784 = vunpack.c.l.b16 %v2194
      %v2785 = vunpack.c.l.b16 %v2195
      %v2786 = vunpack.c.l.b16 %v2196
      %v2787 = vunpack.c.l.b16 %v2197
      %v2788 = vunpack.c.l.b16 %v2198
      %v2789 = vunpack.c.l.b16 %v2199
      %v2790 = vunpack.c.l.b16 %v2200
      %v2791 = vunpack.c.l.b16 %v2201
      %v2792 = vunpack.c.l.b16 %v2202
      %v2793 = vunpack.c.l.b16 %v2203
      %v2794 = vunpack.c.l.b16 %v2204
      %v2795 = vunpack.c.l.b16 %v2205
      %v2796 = vunpack.c.l.b16 %v2206
      %v2797 = vunpack.c.l.b16 %v2207
      %v2798 = vunpack.c.l.b16 %v2208
      %v2799 = vunpack.c.l.b16 %v2209
      %v2800 = vunpack.c.l.b16 %v2210
      %v2801 = vpack.c.b16 %v2770, %v2769
      %v2802 = vpack.c.b16 %v2772, %v2771
      %v2803 = vpack.c.b16 %v2774, %v2773
      %v2804 = vpack.c.b16 %v2776, %v2775
      %v2805 = vpack.c.b16 %v2778, %v2777
      %v2806 = vpack.c.b16 %v2780, %v2779
      %v2807 = vpack.c.b16 %v2782, %v2781
      %v2808 = vpack.c.b16 %v2784, %v2783
      %v2809 = vpack.c.b16 %v2786, %v2785
      %v2810 = vpack.c.b16 %v2788, %v2787
      %v2811 = vpack.c.b16 %v2790, %v2789
      %v2812 = vpack.c.b16 %v2792, %v2791
      %v2813 = vpack.c.b16 %v2794, %v2793
      %v2814 = vpack.c.b16 %v2796, %v2795
      %v2815 = vpack.c.b16 %v2798, %v2797
      %v2816 = vpack.c.b16 %v2800, %v2799
      %v2865 = vunpack.c.l.b16 %v2245
      %v2866 = vunpack.c.l.b16 %v2246
      %v2867 = vunpack.c.l.b16 %v2247
      %v2868 = vunpack.c.l.b16 %v2248
      %v2869 = vunpack.c.l.b16 %v2249
      %v2870 = vunpack.c.l.b16 %v2250
      %v2871 = vunpack.c.l.b16 %v2251
      %v2872 = vunpack.c.l.b16 %v2252
      %v2873 = vunpack.c.l.b16 %v2253
      %v2874 = vunpack.c.l.b16 %v2254
      %v2875 = vunpack.c.l.b16 %v2255
      %v2876 = vunpack.c.l.b16 %v2256
      %v2877 = vunpack.c.l.b16 %v2257
      %v2878 = vunpack.c.l.b16 %v2258
      %v2879 = vunpack.c.l.b16 %v2259
      %v2880 = vunpack.c.l.b16 %v2260
      %v2881 = vunpack.c.l.b16 %v2261
      %v2882 = vunpack.c.l.b16 %v2262
      %v2883 = vunpack.c.l.b16 %v2263
      %v2884 = vunpack.c.l.b16 %v2264
      %v2885 = vunpack.c.l.b16 %v2265
      %v2886 = vunpack.c.l.b16 %v2266
      %v2887 = vunpack.c.l.b16 %v2267
      %v2888 = vunpack.c.l.b16 %v2268
      %v2889 = vunpack.c.l.b16 %v2269
      %v2890 = vunpack.c.l.b16 %v2270
      %v2891 = vunpack.c.l.b16 %v2271
      %v2892 = vunpack.c.l.b16 %v2272
      %v2893 = vunpack.c.l.b16 %v2273
      %v2894 = vunpack.c.l.b16 %v2274
      %v2895 = vunpack.c.l.b16 %v2275
      %v2896 = vunpack.c.l.b16 %v2276
      %v2897 = vpack.c.b16 %v2866, %v2865
      %v2898 = vpack.c.b16 %v2868, %v2867
      %v2899 = vpack.c.b16 %v2870, %v2869
      %v2900 = vpack.c.b16 %v2872, %v2871
      %v2901 = vpack.c.b16 %v2874, %v2873
      %v2902 = vpack.c.b16 %v2876, %v2875
      %v2903 = vpack.c.b16 %v2878, %v2877
      %v2904 = vpack.c.b16 %v2880, %v2879
      %v2905 = vpack.c.b16 %v2882, %v2881
      %v2906 = vpack.c.b16 %v2884, %v2883
      %v2907 = vpack.c.b16 %v2886, %v2885
      %v2908 = vpack.c.b16 %v2888, %v2887
      %v2909 = vpack.c.b16 %v2890, %v2889
      %v2910 = vpack.c.b16 %v2892, %v2891
      %v2911 = vpack.c.b16 %v2894, %v2893
      %v2912 = vpack.c.b16 %v2896, %v2895
      %v2931 = vunpack.c.l.b16 %v2279
      %v2932 = vunpack.c.l.b16 %v2280
      %v2933 = vpack.c.b16 %v2932, %v2931
      %v2967 = vunpack.c.l.b16 %v2315
      %v2968 = vunpack.c.l.b16 %v2316
      %v2969 = vunpack.c.l.b16 %v2317
      %v2970 = vunpack.c.l.b16 %v2318
      %v2971 = vunpack.c.l.b16 %v2319
      %v2972 = vunpack.c.l.b16 %v2320
      %v2973 = vunpack.c.l.b16 %v2321
      %v2974 = vunpack.c.l.b16 %v2322
      %v2975 = vunpack.c.l.b16 %v2323
      %v2976 = vunpack.c.l.b16 %v2324
      %v2977 = vunpack.c.l.b16 %v2325
      %v2978 = vunpack.c.l.b16 %v2326
      %v2979 = vunpack.c.l.b16 %v2327
      %v2980 = vunpack.c.l.b16 %v2328
      %v2981 = vunpack.c.l.b16 %v2329
      %v2982 = vunpack.c.l.b16 %v2330
      %v2983 = vunpack.c.l.b16 %v2331
      %v2984 = vunpack.c.l.b16 %v2332
      %v2985 = vunpack.c.l.b16 %v2333
      %v2986 = vunpack.c.l.b16 %v2334
      %v2987 = vunpack.c.l.b16 %v2335
      %v2988 = vunpack.c.l.b16 %v2336
      %v2989 = vunpack.c.l.b16 %v2337
      %v2990 = vunpack.c.l.b16 %v2338
      %v2991 = vunpack.c.l.b16 %v2339
      %v2992 = vunpack.c.l.b16 %v2340
      %v2993 = vunpack.c.l.b16 %v2341
      %v2994 = vunpack.c.l.b16 %v2342
      %v2995 = vunpack.c.l.b16 %v2343
      %v2996 = vunpack.c.l.b16 %v2344
      %v2997 = vunpack.c.l.b16 %v2345
      %v2998 = vunpack.c.l.b16 %v2346
      %v2999 = vpack.c.b16 %v2968, %v2967
      %v3000 = vpack.c.b16 %v2970, %v2969
      %v3001 = vpack.c.b16 %v2972, %v2971
      %v3002 = vpack.c.b16 %v2974, %v2973
      %v3003 = vpack.c.b16 %v2976, %v2975
      %v3004 = vpack.c.b16 %v2978, %v2977
      %v3005 = vpack.c.b16 %v2980, %v2979
      %v3006 = vpack.c.b16 %v2982, %v2981
      %v3007 = vpack.c.b16 %v2984, %v2983
      %v3008 = vpack.c.b16 %v2986, %v2985
      %v3009 = vpack.c.b16 %v2988, %v2987
      %v3010 = vpack.c.b16 %v2990, %v2989
      %v3011 = vpack.c.b16 %v2992, %v2991
      %v3012 = vpack.c.b16 %v2994, %v2993
      %v3013 = vpack.c.b16 %v2996, %v2995
      %v3014 = vpack.c.b16 %v2998, %v2997
      %v3031 = vld [vmem:[%s1] sm:$0xf]
      %v3032 = vld [vmem:[%s1 + $0x4] sm:$0xf]
      %v3033 = vld [vmem:[%s1 + $0x8] sm:$0xf]
      %v3034 = vld [vmem:[%s1 + $0xc] sm:$0xf]
      %v3035 = vld [vmem:[%s1 + $0x10] sm:$0xf]
      %v3036 = vld [vmem:[%s1 + $0x14] sm:$0xf]
      %v3037 = vld [vmem:[%s1 + $0x18] sm:$0xf]
      %v3038 = vld [vmem:[%s1 + $0x1c] sm:$0xf]
      %v3039 = vld [vmem:[%s1 + $0x20] sm:$0xf]
      %v3040 = vld [vmem:[%s1 + $0x24] sm:$0xf]
      %v3041 = vld [vmem:[%s1 + $0x28] sm:$0xf]
      %v3042 = vld [vmem:[%s1 + $0x2c] sm:$0xf]
      %v3043 = vld [vmem:[%s1 + $0x30] sm:$0xf]
      %v3044 = vld [vmem:[%s1 + $0x34] sm:$0xf]
      %v3045 = vld [vmem:[%s1 + $0x38] sm:$0xf]
      %v3046 = vld [vmem:[%s1 + $0x3c] sm:$0xf]
      %v3047 = vld [vmem:[%s1 + $0x40] sm:$0xf]
      %v3048 = vld [vmem:[%s1 + $0x44] sm:$0xf]
      %v3049 = vld [vmem:[%s1 + $0x48] sm:$0xf]
      %v3050 = vld [vmem:[%s1 + $0x4c] sm:$0xf]
      %v3051 = vld [vmem:[%s1 + $0x50] sm:$0xf]
      %v3052 = vld [vmem:[%s1 + $0x54] sm:$0xf]
      %v3053 = vld [vmem:[%s1 + $0x58] sm:$0xf]
      %v3054 = vld [vmem:[%s1 + $0x5c] sm:$0xf]
      %v3055 = vld [vmem:[%s1 + $0x60] sm:$0xf]
      %v3056 = vld [vmem:[%s1 + $0x64] sm:$0xf]
      %v3057 = vld [vmem:[%s1 + $0x68] sm:$0xf]
      %v3058 = vld [vmem:[%s1 + $0x6c] sm:$0xf]
      %v3059 = vld [vmem:[%s1 + $0x70] sm:$0xf]
      %v3060 = vld [vmem:[%s1 + $0x74] sm:$0xf]
      %v3061 = vld [vmem:[%s1 + $0x78] sm:$0xf]
      %v3062 = vld [vmem:[%s1 + $0x7c] sm:$0xf]
      %v3063 = vld [vmem:[%s1 + $0x80] sm:$0xf]
      %v3064 = vld [vmem:[%s1 + $0x84] sm:$0xf]
      %v3065 = vld [vmem:[%s1 + $0x88] sm:$0xf]
      %v3066 = vld [vmem:[%s1 + $0x8c] sm:$0xf]
      %v3067 = vld [vmem:[%s1 + $0x90] sm:$0xf]
      %v3068 = vld [vmem:[%s1 + $0x94] sm:$0xf]
      %v3069 = vld [vmem:[%s1 + $0x98] sm:$0xf]
      %v3070 = vld [vmem:[%s1 + $0x9c] sm:$0xf]
      %v3071 = vld [vmem:[%s1 + $0xa0] sm:$0xf]
      %v3072 = vld [vmem:[%s1 + $0xa4] sm:$0xf]
      %v3073 = vld [vmem:[%s1 + $0xa8] sm:$0xf]
      %v3074 = vld [vmem:[%s1 + $0xac] sm:$0xf]
      %v3075 = vld [vmem:[%s1 + $0xb0] sm:$0xf]
      %v3076 = vld [vmem:[%s1 + $0xb4] sm:$0xf]
      %v3077 = vld [vmem:[%s1 + $0xb8] sm:$0xf]
      %v3078 = vld [vmem:[%s1 + $0xbc] sm:$0xf]
      %v3079 = vld [vmem:[%s1 + $0xc0] sm:$0xf]
      %v3080 = vld [vmem:[%s1 + $0xc4] sm:$0xf]
      %v3081 = vld [vmem:[%s1 + $0xc8] sm:$0xf]
      %v3082 = vld [vmem:[%s1 + $0xcc] sm:$0xf]
      %v3083 = vld [vmem:[%s1 + $0xd0] sm:$0xf]
      %v3084 = vld [vmem:[%s1 + $0xd4] sm:$0xf]
      %v3085 = vld [vmem:[%s1 + $0xd8] sm:$0xf]
      %v3086 = vld [vmem:[%s1 + $0xdc] sm:$0xf]
      %v3087 = vld [vmem:[%s1 + $0xe0] sm:$0xf]
      %v3088 = vld [vmem:[%s1 + $0xe4] sm:$0xf]
      %v3089 = vld [vmem:[%s1 + $0xe8] sm:$0xf]
      %v3090 = vld [vmem:[%s1 + $0xec] sm:$0xf]
      %v3091 = vld [vmem:[%s1 + $0xf0] sm:$0xf]
      %v3092 = vld [vmem:[%s1 + $0xf4] sm:$0xf]
      %v3093 = vld [vmem:[%s1 + $0xf8] sm:$0xf]
      %v3094 = vld [vmem:[%s1 + $0xfc] sm:$0xf]
      %v3095 = vld [vmem:[%s1 + $0x100] sm:$0xf]
      %v3096 = vld [vmem:[%s1 + $0x104] sm:$0xf]
      %v3097 = vld [vmem:[%s1 + $0x108] sm:$0xf]
      %v3098 = vld [vmem:[%s1 + $0x10c] sm:$0xf]
      %v3099 = vld [vmem:[%s1 + $0x110] sm:$0xf]
      %v3100 = vld [vmem:[%s1 + $0x114] sm:$0xf]
      %v3101 = vld [vmem:[%s1 + $0x118] sm:$0xf]
      %v3102 = vld [vmem:[%s1 + $0x11c] sm:$0xf]
      %v3103 = vld [vmem:[%s1 + $0x120] sm:$0xf]
      %v3104 = vld [vmem:[%s1 + $0x124] sm:$0xf]
      %v3105 = vld [vmem:[%s1 + $0x128] sm:$0xf]
      %v3106 = vld [vmem:[%s1 + $0x12c] sm:$0xf]
      %v3107 = vld [vmem:[%s1 + $0x130] sm:$0xf]
      %v3108 = vld [vmem:[%s1 + $0x134] sm:$0xf]
      %v3109 = vld [vmem:[%s1 + $0x138] sm:$0xf]
      %v3110 = vld [vmem:[%s1 + $0x13c] sm:$0xf]
      %v3111 = vld [vmem:[%s1 + $0x140] sm:$0xf]
      %v3112 = vld [vmem:[%s1 + $0x144] sm:$0xf]
      %v3113 = vld [vmem:[%s1 + $0x148] sm:$0xf]
      %v3114 = vld [vmem:[%s1 + $0x14c] sm:$0xf]
      %v3115 = vld [vmem:[%s1 + $0x150] sm:$0xf]
      %v3116 = vld [vmem:[%s1 + $0x154] sm:$0xf]
      %v3117 = vld [vmem:[%s1 + $0x158] sm:$0xf]
      %v3118 = vld [vmem:[%s1 + $0x15c] sm:$0xf]
      %v3119 = vld [vmem:[%s1 + $0x160] sm:$0xf]
      %v3120 = vld [vmem:[%s1 + $0x164] sm:$0xf]
      %v3121 = vld [vmem:[%s1 + $0x168] sm:$0xf]
      %v3122 = vld [vmem:[%s1 + $0x16c] sm:$0xf]
      %v3123 = vld [vmem:[%s1 + $0x170] sm:$0xf]
      %v3124 = vld [vmem:[%s1 + $0x174] sm:$0xf]
      %v3125 = vld [vmem:[%s1 + $0x178] sm:$0xf]
      %v3126 = vld [vmem:[%s1 + $0x17c] sm:$0xf]
      %v3127 = vld [vmem:[%s1 + $0x180] sm:$0xf]
      %v3128 = vld [vmem:[%s1 + $0x184] sm:$0xf]
      %v3129 = vld [vmem:[%s1 + $0x188] sm:$0xf]
      %v3130 = vld [vmem:[%s1 + $0x18c] sm:$0xf]
      %v3131 = vld [vmem:[%s1 + $0x190] sm:$0xf]
      %v3132 = vld [vmem:[%s1 + $0x194] sm:$0xf]
      %v3133 = vld [vmem:[%s1 + $0x198] sm:$0xf]
      %v3134 = vld [vmem:[%s1 + $0x19c] sm:$0xf]
      %v3135 = vld [vmem:[%s1 + $0x1a0] sm:$0xf]
      %v3136 = vld [vmem:[%s1 + $0x1a4] sm:$0xf]
      %v3137 = vld [vmem:[%s1 + $0x1a8] sm:$0xf]
      %v3138 = vld [vmem:[%s1 + $0x1ac] sm:$0xf]
      %v3139 = vld [vmem:[%s1 + $0x1b0] sm:$0xf]
      %v3140 = vld [vmem:[%s1 + $0x1b4] sm:$0xf]
      %v3141 = vld [vmem:[%s1 + $0x1b8] sm:$0xf]
      %v3142 = vld [vmem:[%s1 + $0x1bc] sm:$0xf]
      %v3143 = vld [vmem:[%s1 + $0x1c0] sm:$0xf]
      %v3144 = vld [vmem:[%s1 + $0x1c4] sm:$0xf]
      %v3145 = vld [vmem:[%s1 + $0x1c8] sm:$0xf]
      %v3146 = vld [vmem:[%s1 + $0x1cc] sm:$0xf]
      %v3147 = vld [vmem:[%s1 + $0x1d0] sm:$0xf]
      %v3148 = vld [vmem:[%s1 + $0x1d4] sm:$0xf]
      %v3149 = vld [vmem:[%s1 + $0x1d8] sm:$0xf]
      %v3150 = vld [vmem:[%s1 + $0x1dc] sm:$0xf]
      %v3151 = vld [vmem:[%s1 + $0x1e0] sm:$0xf]
      %v3152 = vld [vmem:[%s1 + $0x1e4] sm:$0xf]
      %v3153 = vld [vmem:[%s1 + $0x1e8] sm:$0xf]
      %v3154 = vld [vmem:[%s1 + $0x1ec] sm:$0xf]
      %v3155 = vld [vmem:[%s1 + $0x1f0] sm:$0xf]
      %v3156 = vld [vmem:[%s1 + $0x1f4] sm:$0xf]
      %v3157 = vld [vmem:[%s1 + $0x1f8] sm:$0xf]
      %v3158 = vld [vmem:[%s1 + $0x1fc] sm:$0xf]
      %v3159 = vld [vmem:[%s1 + $0x200] sm:$0xf]
      %v3160 = vld [vmem:[%s1 + $0x204] sm:$0xf]
      %v3161 = vld [vmem:[%s1 + $0x208] sm:$0xf]
      %v3162 = vld [vmem:[%s1 + $0x20c] sm:$0xf]
      %v3163 = vld [vmem:[%s1 + $0x210] sm:$0xf]
      %v3164 = vld [vmem:[%s1 + $0x214] sm:$0xf]
      %v3165 = vld [vmem:[%s1 + $0x218] sm:$0xf]
      %v3166 = vld [vmem:[%s1 + $0x21c] sm:$0xf]
      %v3167 = vld [vmem:[%s1 + $0x220] sm:$0xf]
      %v3168 = vld [vmem:[%s1 + $0x224] sm:$0xf]
      %v3169 = vld [vmem:[%s1 + $0x228] sm:$0xf]
      %v3170 = vld [vmem:[%s1 + $0x22c] sm:$0xf]
      %v3171 = vld [vmem:[%s1 + $0x230] sm:$0xf]
      %v3172 = vld [vmem:[%s1 + $0x234] sm:$0xf]
      %v3173 = vld [vmem:[%s1 + $0x238] sm:$0xf]
      %v3174 = vld [vmem:[%s1 + $0x23c] sm:$0xf]
      %v3319 = vunpack.c.l.b16 %v3031
      %v3320 = vunpack.c.l.b16 %v3032
      %v3321 = vunpack.c.l.b16 %v3033
      %v3322 = vunpack.c.l.b16 %v3034
      %v3323 = vunpack.c.l.b16 %v3035
      %v3324 = vunpack.c.l.b16 %v3036
      %v3325 = vunpack.c.l.b16 %v3037
      %v3326 = vunpack.c.l.b16 %v3038
      %v3327 = vunpack.c.l.b16 %v3039
      %v3328 = vunpack.c.l.b16 %v3040
      %v3329 = vunpack.c.l.b16 %v3041
      %v3330 = vunpack.c.l.b16 %v3042
      %v3331 = vunpack.c.l.b16 %v3043
      %v3332 = vunpack.c.l.b16 %v3044
      %v3333 = vunpack.c.l.b16 %v3045
      %v3334 = vunpack.c.l.b16 %v3046
      %v3335 = vunpack.c.l.b16 %v3047
      %v3336 = vunpack.c.l.b16 %v3048
      %v3337 = vunpack.c.l.b16 %v3049
      %v3338 = vunpack.c.l.b16 %v3050
      %v3339 = vunpack.c.l.b16 %v3051
      %v3340 = vunpack.c.l.b16 %v3052
      %v3341 = vunpack.c.l.b16 %v3053
      %v3342 = vunpack.c.l.b16 %v3054
      %v3343 = vunpack.c.l.b16 %v3055
      %v3344 = vunpack.c.l.b16 %v3056
      %v3345 = vunpack.c.l.b16 %v3057
      %v3346 = vunpack.c.l.b16 %v3058
      %v3347 = vunpack.c.l.b16 %v3059
      %v3348 = vunpack.c.l.b16 %v3060
      %v3349 = vunpack.c.l.b16 %v3061
      %v3350 = vunpack.c.l.b16 %v3062
      %v3351 = vunpack.c.l.b16 %v3063
      %v3352 = vunpack.c.l.b16 %v3064
      %v3353 = vunpack.c.l.b16 %v3065
      %v3354 = vunpack.c.l.b16 %v3066
      %v3355 = vunpack.c.l.b16 %v3067
      %v3356 = vunpack.c.l.b16 %v3068
      %v3357 = vunpack.c.l.b16 %v3069
      %v3358 = vunpack.c.l.b16 %v3070
      %v3359 = vunpack.c.l.b16 %v3071
      %v3360 = vunpack.c.l.b16 %v3072
      %v3361 = vunpack.c.l.b16 %v3073
      %v3362 = vunpack.c.l.b16 %v3074
      %v3363 = vunpack.c.l.b16 %v3075
      %v3364 = vunpack.c.l.b16 %v3076
      %v3365 = vunpack.c.l.b16 %v3077
      %v3366 = vunpack.c.l.b16 %v3078
      %v3367 = vunpack.c.l.b16 %v3079
      %v3368 = vunpack.c.l.b16 %v3080
      %v3369 = vunpack.c.l.b16 %v3081
      %v3370 = vunpack.c.l.b16 %v3082
      %v3371 = vunpack.c.l.b16 %v3083
      %v3372 = vunpack.c.l.b16 %v3084
      %v3373 = vunpack.c.l.b16 %v3085
      %v3374 = vunpack.c.l.b16 %v3086
      %v3375 = vunpack.c.l.b16 %v3087
      %v3376 = vunpack.c.l.b16 %v3088
      %v3377 = vunpack.c.l.b16 %v3089
      %v3378 = vunpack.c.l.b16 %v3090
      %v3379 = vunpack.c.l.b16 %v3091
      %v3380 = vunpack.c.l.b16 %v3092
      %v3381 = vunpack.c.l.b16 %v3093
      %v3382 = vunpack.c.l.b16 %v3094
      %v3383 = vunpack.c.l.b16 %v3095
      %v3384 = vunpack.c.l.b16 %v3096
      %v3385 = vunpack.c.l.b16 %v3097
      %v3386 = vunpack.c.l.b16 %v3098
      %v3387 = vunpack.c.l.b16 %v3099
      %v3388 = vunpack.c.l.b16 %v3100
      %v3389 = vunpack.c.l.b16 %v3101
      %v3390 = vunpack.c.l.b16 %v3102
      %v3391 = vunpack.c.l.b16 %v3103
      %v3392 = vunpack.c.l.b16 %v3104
      %v3393 = vunpack.c.l.b16 %v3105
      %v3394 = vunpack.c.l.b16 %v3106
      %v3395 = vunpack.c.l.b16 %v3107
      %v3396 = vunpack.c.l.b16 %v3108
      %v3397 = vunpack.c.l.b16 %v3109
      %v3398 = vunpack.c.l.b16 %v3110
      %v3399 = vunpack.c.l.b16 %v3111
      %v3400 = vunpack.c.l.b16 %v3112
      %v3401 = vunpack.c.l.b16 %v3113
      %v3402 = vunpack.c.l.b16 %v3114
      %v3403 = vunpack.c.l.b16 %v3115
      %v3404 = vunpack.c.l.b16 %v3116
      %v3405 = vunpack.c.l.b16 %v3117
      %v3406 = vunpack.c.l.b16 %v3118
      %v3407 = vunpack.c.l.b16 %v3119
      %v3408 = vunpack.c.l.b16 %v3120
      %v3409 = vunpack.c.l.b16 %v3121
      %v3410 = vunpack.c.l.b16 %v3122
      %v3411 = vunpack.c.l.b16 %v3123
      %v3412 = vunpack.c.l.b16 %v3124
      %v3413 = vunpack.c.l.b16 %v3125
      %v3414 = vunpack.c.l.b16 %v3126
      %v3415 = vunpack.c.l.b16 %v3127
      %v3416 = vunpack.c.l.b16 %v3128
      %v3417 = vunpack.c.l.b16 %v3129
      %v3418 = vunpack.c.l.b16 %v3130
      %v3419 = vunpack.c.l.b16 %v3131
      %v3420 = vunpack.c.l.b16 %v3132
      %v3421 = vunpack.c.l.b16 %v3133
      %v3422 = vunpack.c.l.b16 %v3134
      %v3423 = vunpack.c.l.b16 %v3135
      %v3424 = vunpack.c.l.b16 %v3136
      %v3425 = vunpack.c.l.b16 %v3137
      %v3426 = vunpack.c.l.b16 %v3138
      %v3427 = vunpack.c.l.b16 %v3139
      %v3428 = vunpack.c.l.b16 %v3140
      %v3429 = vunpack.c.l.b16 %v3141
      %v3430 = vunpack.c.l.b16 %v3142
      %v3431 = vunpack.c.l.b16 %v3143
      %v3432 = vunpack.c.l.b16 %v3144
      %v3433 = vunpack.c.l.b16 %v3145
      %v3434 = vunpack.c.l.b16 %v3146
      %v3435 = vunpack.c.l.b16 %v3147
      %v3436 = vunpack.c.l.b16 %v3148
      %v3437 = vunpack.c.l.b16 %v3149
      %v3438 = vunpack.c.l.b16 %v3150
      %v3439 = vunpack.c.l.b16 %v3151
      %v3440 = vunpack.c.l.b16 %v3152
      %v3441 = vunpack.c.l.b16 %v3153
      %v3442 = vunpack.c.l.b16 %v3154
      %v3443 = vunpack.c.l.b16 %v3155
      %v3444 = vunpack.c.l.b16 %v3156
      %v3445 = vunpack.c.l.b16 %v3157
      %v3446 = vunpack.c.l.b16 %v3158
      %v3447 = vunpack.c.l.b16 %v3159
      %v3448 = vunpack.c.l.b16 %v3160
      %v3449 = vunpack.c.l.b16 %v3161
      %v3450 = vunpack.c.l.b16 %v3162
      %v3451 = vunpack.c.l.b16 %v3163
      %v3452 = vunpack.c.l.b16 %v3164
      %v3453 = vunpack.c.l.b16 %v3165
      %v3454 = vunpack.c.l.b16 %v3166
      %v3455 = vunpack.c.l.b16 %v3167
      %v3456 = vunpack.c.l.b16 %v3168
      %v3457 = vunpack.c.l.b16 %v3169
      %v3458 = vunpack.c.l.b16 %v3170
      %v3459 = vunpack.c.l.b16 %v3171
      %v3460 = vunpack.c.l.b16 %v3172
      %v3461 = vunpack.c.l.b16 %v3173
      %v3462 = vunpack.c.l.b16 %v3174
      %v3463 = vpack.c.b16 %v3320, %v3319
      %v3464 = vpack.c.b16 %v3322, %v3321
      %v3465 = vpack.c.b16 %v3324, %v3323
      %v3466 = vpack.c.b16 %v3326, %v3325
      %v3467 = vpack.c.b16 %v3328, %v3327
      %v3468 = vpack.c.b16 %v3330, %v3329
      %v3469 = vpack.c.b16 %v3332, %v3331
      %v3470 = vpack.c.b16 %v3334, %v3333
      %v3471 = vpack.c.b16 %v3336, %v3335
      %v3472 = vpack.c.b16 %v3338, %v3337
      %v3473 = vpack.c.b16 %v3340, %v3339
      %v3474 = vpack.c.b16 %v3342, %v3341
      %v3475 = vpack.c.b16 %v3344, %v3343
      %v3476 = vpack.c.b16 %v3346, %v3345
      %v3477 = vpack.c.b16 %v3348, %v3347
      %v3478 = vpack.c.b16 %v3350, %v3349
      %v3479 = vpack.c.b16 %v3352, %v3351
      %v3480 = vpack.c.b16 %v3354, %v3353
      %v3481 = vpack.c.b16 %v3356, %v3355
      %v3482 = vpack.c.b16 %v3358, %v3357
      %v3483 = vpack.c.b16 %v3360, %v3359
      %v3484 = vpack.c.b16 %v3362, %v3361
      %v3485 = vpack.c.b16 %v3364, %v3363
      %v3486 = vpack.c.b16 %v3366, %v3365
      %v3487 = vpack.c.b16 %v3368, %v3367
      %v3488 = vpack.c.b16 %v3370, %v3369
      %v3489 = vpack.c.b16 %v3372, %v3371
      %v3490 = vpack.c.b16 %v3374, %v3373
      %v3491 = vpack.c.b16 %v3376, %v3375
      %v3492 = vpack.c.b16 %v3378, %v3377
      %v3493 = vpack.c.b16 %v3380, %v3379
      %v3494 = vpack.c.b16 %v3382, %v3381
      %v3495 = vpack.c.b16 %v3384, %v3383
      %v3496 = vpack.c.b16 %v3386, %v3385
      %v3497 = vpack.c.b16 %v3388, %v3387
      %v3498 = vpack.c.b16 %v3390, %v3389
      %v3499 = vpack.c.b16 %v3392, %v3391
      %v3500 = vpack.c.b16 %v3394, %v3393
      %v3501 = vpack.c.b16 %v3396, %v3395
      %v3502 = vpack.c.b16 %v3398, %v3397
      %v3503 = vpack.c.b16 %v3400, %v3399
      %v3504 = vpack.c.b16 %v3402, %v3401
      %v3505 = vpack.c.b16 %v3404, %v3403
      %v3506 = vpack.c.b16 %v3406, %v3405
      %v3507 = vpack.c.b16 %v3408, %v3407
      %v3508 = vpack.c.b16 %v3410, %v3409
      %v3509 = vpack.c.b16 %v3412, %v3411
      %v3510 = vpack.c.b16 %v3414, %v3413
      %v3511 = vpack.c.b16 %v3416, %v3415
      %v3512 = vpack.c.b16 %v3418, %v3417
      %v3513 = vpack.c.b16 %v3420, %v3419
      %v3514 = vpack.c.b16 %v3422, %v3421
      %v3515 = vpack.c.b16 %v3424, %v3423
      %v3516 = vpack.c.b16 %v3426, %v3425
      %v3517 = vpack.c.b16 %v3428, %v3427
      %v3518 = vpack.c.b16 %v3430, %v3429
      %v3519 = vpack.c.b16 %v3432, %v3431
      %v3520 = vpack.c.b16 %v3434, %v3433
      %v3521 = vpack.c.b16 %v3436, %v3435
      %v3522 = vpack.c.b16 %v3438, %v3437
      %v3523 = vpack.c.b16 %v3440, %v3439
      %v3524 = vpack.c.b16 %v3442, %v3441
      %v3525 = vpack.c.b16 %v3444, %v3443
      %v3526 = vpack.c.b16 %v3446, %v3445
      %v3527 = vpack.c.b16 %v3448, %v3447
      %v3528 = vpack.c.b16 %v3450, %v3449
      %v3529 = vpack.c.b16 %v3452, %v3451
      %v3530 = vpack.c.b16 %v3454, %v3453
      %v3531 = vpack.c.b16 %v3456, %v3455
      %v3532 = vpack.c.b16 %v3458, %v3457
      %v3533 = vpack.c.b16 %v3460, %v3459
      %v3534 = vpack.c.b16 %v3462, %v3461
      %3607 = vmatpush.bf16.msra.mxu0 %v3470
      %3608 = vmatpush.bf16.msra.mxu0 %v3469
      %3609 = vmatpush.bf16.msra.mxu0 %v3468
      %3610 = vmatpush.bf16.msra.mxu0 %v3467
      %3611 = vmatpush.bf16.msra.mxu0 %v3466
      %3612 = vmatpush.bf16.msra.mxu0 %v3465
      %3613 = vmatpush.bf16.msra.mxu0 %v3464
      %3614 = vmatpush.bf16.msra.mxu0 %v3463
      %3615 = vmatmul.bf16.gmra.mxu0 %v2411
      %v3616 = vpop.f32.mrf.mxu0
      %v3617 = vadd.f32 0.0, %v3616
      %v3618 = vpop.f32.mrf.mxu0
      %v3619 = vadd.f32 0.0, %v3618
      %3620 = vmatmul.bf16.gmra.mxu0 %v2412
      %v3621 = vpop.f32.mrf.mxu0
      %v3622 = vadd.f32 0.0, %v3621
      %v3623 = vpop.f32.mrf.mxu0
      %v3624 = vadd.f32 0.0, %v3623
      %3625 = vmatmul.bf16.gmra.mxu0 %v2413
      %v3626 = vpop.f32.mrf.mxu0
      %v3627 = vadd.f32 0.0, %v3626
      %v3628 = vpop.f32.mrf.mxu0
      %v3629 = vadd.f32 0.0, %v3628
      %3630 = vmatmul.bf16.gmra.mxu0 %v2414
      %v3631 = vpop.f32.mrf.mxu0
      %v3632 = vadd.f32 0.0, %v3631
      %v3633 = vpop.f32.mrf.mxu0
      %v3634 = vadd.f32 0.0, %v3633
      %3635 = vmatmul.bf16.gmra.mxu0 %v2415
      %v3636 = vpop.f32.mrf.mxu0
      %v3637 = vadd.f32 0.0, %v3636
      %v3638 = vpop.f32.mrf.mxu0
      %v3639 = vadd.f32 0.0, %v3638
      %3640 = vmatmul.bf16.gmra.mxu0 %v2416
      %v3641 = vpop.f32.mrf.mxu0
      %v3642 = vadd.f32 0.0, %v3641
      %v3643 = vpop.f32.mrf.mxu0
      %v3644 = vadd.f32 0.0, %v3643
      %3645 = vmatmul.bf16.gmra.mxu0 %v2417
      %v3646 = vpop.f32.mrf.mxu0
      %v3647 = vadd.f32 0.0, %v3646
      %v3648 = vpop.f32.mrf.mxu0
      %v3649 = vadd.f32 0.0, %v3648
      %3650 = vmatmul.bf16.gmra.mxu0 %v2418
      %v3651 = vpop.f32.mrf.mxu0
      %v3652 = vadd.f32 0.0, %v3651
      %v3653 = vpop.f32.mrf.mxu0
      %v3654 = vadd.f32 0.0, %v3653
      %3655 = vmatmul.bf16.gmra.mxu0 %v2419
      %v3656 = vpop.f32.mrf.mxu0
      %v3657 = vadd.f32 0.0, %v3656
      %v3658 = vpop.f32.mrf.mxu0
      %v3659 = vadd.f32 0.0, %v3658
      %3660 = vmatmul.bf16.gmra.mxu0 %v2420
      %v3661 = vpop.f32.mrf.mxu0
      %v3662 = vadd.f32 0.0, %v3661
      %v3663 = vpop.f32.mrf.mxu0
      %v3664 = vadd.f32 0.0, %v3663
      %3665 = vmatmul.bf16.gmra.mxu0 %v2421
      %v3666 = vpop.f32.mrf.mxu0
      %v3667 = vadd.f32 0.0, %v3666
      %v3668 = vpop.f32.mrf.mxu0
      %v3669 = vadd.f32 0.0, %v3668
      %3670 = vmatmul.bf16.gmra.mxu0 %v2422
      %v3671 = vpop.f32.mrf.mxu0
      %v3672 = vadd.f32 0.0, %v3671
      %v3673 = vpop.f32.mrf.mxu0
      %v3674 = vadd.f32 0.0, %v3673
      %3675 = vmatmul.bf16.gmra.mxu0 %v2423
      %v3676 = vpop.f32.mrf.mxu0
      %v3677 = vadd.f32 0.0, %v3676
      %v3678 = vpop.f32.mrf.mxu0
      %v3679 = vadd.f32 0.0, %v3678
      %3680 = vmatmul.bf16.gmra.mxu0 %v2424
      %v3681 = vpop.f32.mrf.mxu0
      %v3682 = vadd.f32 0.0, %v3681
      %v3683 = vpop.f32.mrf.mxu0
      %v3684 = vadd.f32 0.0, %v3683
      %3685 = vmatmul.bf16.gmra.mxu0 %v2425
      %v3686 = vpop.f32.mrf.mxu0
      %v3687 = vadd.f32 0.0, %v3686
      %v3688 = vpop.f32.mrf.mxu0
      %v3689 = vadd.f32 0.0, %v3688
      %3690 = vmatmul.bf16.gmra.mxu0 %v2426
      %v3691 = vpop.f32.mrf.mxu0
      %v3692 = vadd.f32 0.0, %v3691
      %v3693 = vpop.f32.mrf.mxu0
      %v3694 = vadd.f32 0.0, %v3693
      %3695 = vdwg.mxu0
      %3696 = vmatpush.bf16.msra.mxu0 %v3478
      %3697 = vmatpush.bf16.msra.mxu0 %v3477
      %3698 = vmatpush.bf16.msra.mxu0 %v3476
      %3699 = vmatpush.bf16.msra.mxu0 %v3475
      %3700 = vmatpush.bf16.msra.mxu0 %v3474
      %3701 = vmatpush.bf16.msra.mxu0 %v3473
      %3702 = vmatpush.bf16.msra.mxu0 %v3472
      %3703 = vmatpush.bf16.msra.mxu0 %v3471
      %3704 = vmatmul.bf16.gmra.mxu0 %v2507
      %v3705 = vpop.f32.mrf.mxu0
      %v3706 = vadd.f32 %v3617, %v3705
      %v3707 = vpop.f32.mrf.mxu0
      %v3708 = vadd.f32 %v3619, %v3707
      %3709 = vmatmul.bf16.gmra.mxu0 %v2508
      %v3710 = vpop.f32.mrf.mxu0
      %v3711 = vadd.f32 %v3622, %v3710
      %v3712 = vpop.f32.mrf.mxu0
      %v3713 = vadd.f32 %v3624, %v3712
      %3714 = vmatmul.bf16.gmra.mxu0 %v2509
      %v3715 = vpop.f32.mrf.mxu0
      %v3716 = vadd.f32 %v3627, %v3715
      %v3717 = vpop.f32.mrf.mxu0
      %v3718 = vadd.f32 %v3629, %v3717
      %3719 = vmatmul.bf16.gmra.mxu0 %v2510
      %v3720 = vpop.f32.mrf.mxu0
      %v3721 = vadd.f32 %v3632, %v3720
      %v3722 = vpop.f32.mrf.mxu0
      %v3723 = vadd.f32 %v3634, %v3722
      %3724 = vmatmul.bf16.gmra.mxu0 %v2511
      %v3725 = vpop.f32.mrf.mxu0
      %v3726 = vadd.f32 %v3637, %v3725
      %v3727 = vpop.f32.mrf.mxu0
      %v3728 = vadd.f32 %v3639, %v3727
      %3729 = vmatmul.bf16.gmra.mxu0 %v2512
      %v3730 = vpop.f32.mrf.mxu0
      %v3731 = vadd.f32 %v3642, %v3730
      %v3732 = vpop.f32.mrf.mxu0
      %v3733 = vadd.f32 %v3644, %v3732
      %3734 = vmatmul.bf16.gmra.mxu0 %v2513
      %v3735 = vpop.f32.mrf.mxu0
      %v3736 = vadd.f32 %v3647, %v3735
      %v3737 = vpop.f32.mrf.mxu0
      %v3738 = vadd.f32 %v3649, %v3737
      %3739 = vmatmul.bf16.gmra.mxu0 %v2514
      %v3740 = vpop.f32.mrf.mxu0
      %v3741 = vadd.f32 %v3652, %v3740
      %v3742 = vpop.f32.mrf.mxu0
      %v3743 = vadd.f32 %v3654, %v3742
      %3744 = vmatmul.bf16.gmra.mxu0 %v2515
      %v3745 = vpop.f32.mrf.mxu0
      %v3746 = vadd.f32 %v3657, %v3745
      %v3747 = vpop.f32.mrf.mxu0
      %v3748 = vadd.f32 %v3659, %v3747
      %3749 = vmatmul.bf16.gmra.mxu0 %v2516
      %v3750 = vpop.f32.mrf.mxu0
      %v3751 = vadd.f32 %v3662, %v3750
      %v3752 = vpop.f32.mrf.mxu0
      %v3753 = vadd.f32 %v3664, %v3752
      %3754 = vmatmul.bf16.gmra.mxu0 %v2517
      %v3755 = vpop.f32.mrf.mxu0
      %v3756 = vadd.f32 %v3667, %v3755
      %v3757 = vpop.f32.mrf.mxu0
      %v3758 = vadd.f32 %v3669, %v3757
      %3759 = vmatmul.bf16.gmra.mxu0 %v2518
      %v3760 = vpop.f32.mrf.mxu0
      %v3761 = vadd.f32 %v3672, %v3760
      %v3762 = vpop.f32.mrf.mxu0
      %v3763 = vadd.f32 %v3674, %v3762
      %3764 = vmatmul.bf16.gmra.mxu0 %v2519
      %v3765 = vpop.f32.mrf.mxu0
      %v3766 = vadd.f32 %v3677, %v3765
      %v3767 = vpop.f32.mrf.mxu0
      %v3768 = vadd.f32 %v3679, %v3767
      %3769 = vmatmul.bf16.gmra.mxu0 %v2520
      %v3770 = vpop.f32.mrf.mxu0
      %v3771 = vadd.f32 %v3682, %v3770
      %v3772 = vpop.f32.mrf.mxu0
      %v3773 = vadd.f32 %v3684, %v3772
      %3774 = vmatmul.bf16.gmra.mxu0 %v2521
      %v3775 = vpop.f32.mrf.mxu0
      %v3776 = vadd.f32 %v3687, %v3775
      %v3777 = vpop.f32.mrf.mxu0
      %v3778 = vadd.f32 %v3689, %v3777
      %3779 = vmatmul.bf16.gmra.mxu0 %v2522
      %v3780 = vpop.f32.mrf.mxu0
      %v3781 = vadd.f32 %v3692, %v3780
      %v3782 = vpop.f32.mrf.mxu0
      %v3783 = vadd.f32 %v3694, %v3782
      %3784 = vdwg.mxu0
      %3785 = vmatpush.bf16.msra.mxu0 %v3486
      %3786 = vmatpush.bf16.msra.mxu0 %v3485
      %3787 = vmatpush.bf16.msra.mxu0 %v3484
      %3788 = vmatpush.bf16.msra.mxu0 %v3483
      %3789 = vmatpush.bf16.msra.mxu0 %v3482
      %3790 = vmatpush.bf16.msra.mxu0 %v3481
      %3791 = vmatpush.bf16.msra.mxu0 %v3480
      %3792 = vmatpush.bf16.msra.mxu0 %v3479
      %3793 = vmatmul.bf16.gmra.mxu0 %v2603
      %v3794 = vpop.f32.mrf.mxu0
      %v3795 = vadd.f32 %v3706, %v3794
      %v3796 = vpop.f32.mrf.mxu0
      %v3797 = vadd.f32 %v3708, %v3796
      %3798 = vmatmul.bf16.gmra.mxu0 %v2604
      %v3799 = vpop.f32.mrf.mxu0
      %v3800 = vadd.f32 %v3711, %v3799
      %v3801 = vpop.f32.mrf.mxu0
      %v3802 = vadd.f32 %v3713, %v3801
      %3803 = vmatmul.bf16.gmra.mxu0 %v2605
      %v3804 = vpop.f32.mrf.mxu0
      %v3805 = vadd.f32 %v3716, %v3804
      %v3806 = vpop.f32.mrf.mxu0
      %v3807 = vadd.f32 %v3718, %v3806
      %3808 = vmatmul.bf16.gmra.mxu0 %v2606
      %v3809 = vpop.f32.mrf.mxu0
      %v3810 = vadd.f32 %v3721, %v3809
      %v3811 = vpop.f32.mrf.mxu0
      %v3812 = vadd.f32 %v3723, %v3811
      %3813 = vmatmul.bf16.gmra.mxu0 %v2607
      %v3814 = vpop.f32.mrf.mxu0
      %v3815 = vadd.f32 %v3726, %v3814
      %v3816 = vpop.f32.mrf.mxu0
      %v3817 = vadd.f32 %v3728, %v3816
      %3818 = vmatmul.bf16.gmra.mxu0 %v2608
      %v3819 = vpop.f32.mrf.mxu0
      %v3820 = vadd.f32 %v3731, %v3819
      %v3821 = vpop.f32.mrf.mxu0
      %v3822 = vadd.f32 %v3733, %v3821
      %3823 = vmatmul.bf16.gmra.mxu0 %v2609
      %v3824 = vpop.f32.mrf.mxu0
      %v3825 = vadd.f32 %v3736, %v3824
      %v3826 = vpop.f32.mrf.mxu0
      %v3827 = vadd.f32 %v3738, %v3826
      %3828 = vmatmul.bf16.gmra.mxu0 %v2610
      %v3829 = vpop.f32.mrf.mxu0
      %v3830 = vadd.f32 %v3741, %v3829
      %v3831 = vpop.f32.mrf.mxu0
      %v3832 = vadd.f32 %v3743, %v3831
      %3833 = vmatmul.bf16.gmra.mxu0 %v2611
      %v3834 = vpop.f32.mrf.mxu0
      %v3835 = vadd.f32 %v3746, %v3834
      %v3836 = vpop.f32.mrf.mxu0
      %v3837 = vadd.f32 %v3748, %v3836
      %3838 = vmatmul.bf16.gmra.mxu0 %v2612
      %v3839 = vpop.f32.mrf.mxu0
      %v3840 = vadd.f32 %v3751, %v3839
      %v3841 = vpop.f32.mrf.mxu0
      %v3842 = vadd.f32 %v3753, %v3841
      %3843 = vmatmul.bf16.gmra.mxu0 %v2613
      %v3844 = vpop.f32.mrf.mxu0
      %v3845 = vadd.f32 %v3756, %v3844
      %v3846 = vpop.f32.mrf.mxu0
      %v3847 = vadd.f32 %v3758, %v3846
      %3848 = vmatmul.bf16.gmra.mxu0 %v2614
      %v3849 = vpop.f32.mrf.mxu0
      %v3850 = vadd.f32 %v3761, %v3849
      %v3851 = vpop.f32.mrf.mxu0
      %v3852 = vadd.f32 %v3763, %v3851
      %3853 = vmatmul.bf16.gmra.mxu0 %v2615
      %v3854 = vpop.f32.mrf.mxu0
      %v3855 = vadd.f32 %v3766, %v3854
      %v3856 = vpop.f32.mrf.mxu0
      %v3857 = vadd.f32 %v3768, %v3856
      %3858 = vmatmul.bf16.gmra.mxu0 %v2616
      %v3859 = vpop.f32.mrf.mxu0
      %v3860 = vadd.f32 %v3771, %v3859
      %v3861 = vpop.f32.mrf.mxu0
      %v3862 = vadd.f32 %v3773, %v3861
      %3863 = vmatmul.bf16.gmra.mxu0 %v2617
      %v3864 = vpop.f32.mrf.mxu0
      %v3865 = vadd.f32 %v3776, %v3864
      %v3866 = vpop.f32.mrf.mxu0
      %v3867 = vadd.f32 %v3778, %v3866
      %3868 = vmatmul.bf16.gmra.mxu0 %v2618
      %v3869 = vpop.f32.mrf.mxu0
      %v3870 = vadd.f32 %v3781, %v3869
      %v3871 = vpop.f32.mrf.mxu0
      %v3872 = vadd.f32 %v3783, %v3871
      %3873 = vdwg.mxu0
      %3874 = vmatpush.bf16.msra.mxu0 %v3494
      %3875 = vmatpush.bf16.msra.mxu0 %v3493
      %3876 = vmatpush.bf16.msra.mxu0 %v3492
      %3877 = vmatpush.bf16.msra.mxu0 %v3491
      %3878 = vmatpush.bf16.msra.mxu0 %v3490
      %3879 = vmatpush.bf16.msra.mxu0 %v3489
      %3880 = vmatpush.bf16.msra.mxu0 %v3488
      %3881 = vmatpush.bf16.msra.mxu0 %v3487
      %3882 = vmatmul.bf16.gmra.mxu0 %v2699
      %v3883 = vpop.f32.mrf.mxu0
      %v3884 = vadd.f32 %v3795, %v3883
      %v3885 = vpop.f32.mrf.mxu0
      %v3886 = vadd.f32 %v3797, %v3885
      %3887 = vmatmul.bf16.gmra.mxu0 %v2700
      %v3888 = vpop.f32.mrf.mxu0
      %v3889 = vadd.f32 %v3800, %v3888
      %v3890 = vpop.f32.mrf.mxu0
      %v3891 = vadd.f32 %v3802, %v3890
      %3892 = vmatmul.bf16.gmra.mxu0 %v2701
      %v3893 = vpop.f32.mrf.mxu0
      %v3894 = vadd.f32 %v3805, %v3893
      %v3895 = vpop.f32.mrf.mxu0
      %v3896 = vadd.f32 %v3807, %v3895
      %3897 = vmatmul.bf16.gmra.mxu0 %v2702
      %v3898 = vpop.f32.mrf.mxu0
      %v3899 = vadd.f32 %v3810, %v3898
      %v3900 = vpop.f32.mrf.mxu0
      %v3901 = vadd.f32 %v3812, %v3900
      %3902 = vmatmul.bf16.gmra.mxu0 %v2703
      %v3903 = vpop.f32.mrf.mxu0
      %v3904 = vadd.f32 %v3815, %v3903
      %v3905 = vpop.f32.mrf.mxu0
      %v3906 = vadd.f32 %v3817, %v3905
      %3907 = vmatmul.bf16.gmra.mxu0 %v2704
      %v3908 = vpop.f32.mrf.mxu0
      %v3909 = vadd.f32 %v3820, %v3908
      %v3910 = vpop.f32.mrf.mxu0
      %v3911 = vadd.f32 %v3822, %v3910
      %3912 = vmatmul.bf16.gmra.mxu0 %v2705
      %v3913 = vpop.f32.mrf.mxu0
      %v3914 = vadd.f32 %v3825, %v3913
      %v3915 = vpop.f32.mrf.mxu0
      %v3916 = vadd.f32 %v3827, %v3915
      %3917 = vmatmul.bf16.gmra.mxu0 %v2706
      %v3918 = vpop.f32.mrf.mxu0
      %v3919 = vadd.f32 %v3830, %v3918
      %v3920 = vpop.f32.mrf.mxu0
      %v3921 = vadd.f32 %v3832, %v3920
      %3922 = vmatmul.bf16.gmra.mxu0 %v2707
      %v3923 = vpop.f32.mrf.mxu0
      %v3924 = vadd.f32 %v3835, %v3923
      %v3925 = vpop.f32.mrf.mxu0
      %v3926 = vadd.f32 %v3837, %v3925
      %3927 = vmatmul.bf16.gmra.mxu0 %v2708
      %v3928 = vpop.f32.mrf.mxu0
      %v3929 = vadd.f32 %v3840, %v3928
      %v3930 = vpop.f32.mrf.mxu0
      %v3931 = vadd.f32 %v3842, %v3930
      %3932 = vmatmul.bf16.gmra.mxu0 %v2709
      %v3933 = vpop.f32.mrf.mxu0
      %v3934 = vadd.f32 %v3845, %v3933
      %v3935 = vpop.f32.mrf.mxu0
      %v3936 = vadd.f32 %v3847, %v3935
      %3937 = vmatmul.bf16.gmra.mxu0 %v2710
      %v3938 = vpop.f32.mrf.mxu0
      %v3939 = vadd.f32 %v3850, %v3938
      %v3940 = vpop.f32.mrf.mxu0
      %v3941 = vadd.f32 %v3852, %v3940
      %3942 = vmatmul.bf16.gmra.mxu0 %v2711
      %v3943 = vpop.f32.mrf.mxu0
      %v3944 = vadd.f32 %v3855, %v3943
      %v3945 = vpop.f32.mrf.mxu0
      %v3946 = vadd.f32 %v3857, %v3945
      %3947 = vmatmul.bf16.gmra.mxu0 %v2712
      %v3948 = vpop.f32.mrf.mxu0
      %v3949 = vadd.f32 %v3860, %v3948
      %v3950 = vpop.f32.mrf.mxu0
      %v3951 = vadd.f32 %v3862, %v3950
      %3952 = vmatmul.bf16.gmra.mxu0 %v2713
      %v3953 = vpop.f32.mrf.mxu0
      %v3954 = vadd.f32 %v3865, %v3953
      %v3955 = vpop.f32.mrf.mxu0
      %v3956 = vadd.f32 %v3867, %v3955
      %3957 = vmatmul.bf16.gmra.mxu0 %v2714
      %v3958 = vpop.f32.mrf.mxu0
      %v3959 = vadd.f32 %v3870, %v3958
      %v3960 = vpop.f32.mrf.mxu0
      %v3961 = vadd.f32 %v3872, %v3960
      %3962 = vdwg.mxu0
      %3963 = vmatpush.bf16.msra.mxu0 %v3502
      %3964 = vmatpush.bf16.msra.mxu0 %v3501
      %3965 = vmatpush.bf16.msra.mxu0 %v3500
      %3966 = vmatpush.bf16.msra.mxu0 %v3499
      %3967 = vmatpush.bf16.msra.mxu0 %v3498
      %3968 = vmatpush.bf16.msra.mxu0 %v3497
      %3969 = vmatpush.bf16.msra.mxu0 %v3496
      %3970 = vmatpush.bf16.msra.mxu0 %v3495
      %3971 = vmatmul.bf16.gmra.mxu0 %v2508
      %v3972 = vpop.f32.mrf.mxu0
      %v3973 = vadd.f32 %v3884, %v3972
      %v3974 = vpop.f32.mrf.mxu0
      %v3975 = vadd.f32 %v3886, %v3974
      %3976 = vmatmul.bf16.gmra.mxu0 %v2509
      %v3977 = vpop.f32.mrf.mxu0
      %v3978 = vadd.f32 %v3889, %v3977
      %v3979 = vpop.f32.mrf.mxu0
      %v3980 = vadd.f32 %v3891, %v3979
      %3981 = vmatmul.bf16.gmra.mxu0 %v2510
      %v3982 = vpop.f32.mrf.mxu0
      %v3983 = vadd.f32 %v3894, %v3982
      %v3984 = vpop.f32.mrf.mxu0
      %v3985 = vadd.f32 %v3896, %v3984
      %3986 = vmatmul.bf16.gmra.mxu0 %v2511
      %v3987 = vpop.f32.mrf.mxu0
      %v3988 = vadd.f32 %v3899, %v3987
      %v3989 = vpop.f32.mrf.mxu0
      %v3990 = vadd.f32 %v3901, %v3989
      %3991 = vmatmul.bf16.gmra.mxu0 %v2512
      %v3992 = vpop.f32.mrf.mxu0
      %v3993 = vadd.f32 %v3904, %v3992
      %v3994 = vpop.f32.mrf.mxu0
      %v3995 = vadd.f32 %v3906, %v3994
      %3996 = vmatmul.bf16.gmra.mxu0 %v2513
      %v3997 = vpop.f32.mrf.mxu0
      %v3998 = vadd.f32 %v3909, %v3997
      %v3999 = vpop.f32.mrf.mxu0
      %v4000 = vadd.f32 %v3911, %v3999
      %4001 = vmatmul.bf16.gmra.mxu0 %v2514
      %v4002 = vpop.f32.mrf.mxu0
      %v4003 = vadd.f32 %v3914, %v4002
      %v4004 = vpop.f32.mrf.mxu0
      %v4005 = vadd.f32 %v3916, %v4004
      %4006 = vmatmul.bf16.gmra.mxu0 %v2515
      %v4007 = vpop.f32.mrf.mxu0
      %v4008 = vadd.f32 %v3919, %v4007
      %v4009 = vpop.f32.mrf.mxu0
      %v4010 = vadd.f32 %v3921, %v4009
      %4011 = vmatmul.bf16.gmra.mxu0 %v2516
      %v4012 = vpop.f32.mrf.mxu0
      %v4013 = vadd.f32 %v3924, %v4012
      %v4014 = vpop.f32.mrf.mxu0
      %v4015 = vadd.f32 %v3926, %v4014
      %4016 = vmatmul.bf16.gmra.mxu0 %v2517
      %v4017 = vpop.f32.mrf.mxu0
      %v4018 = vadd.f32 %v3929, %v4017
      %v4019 = vpop.f32.mrf.mxu0
      %v4020 = vadd.f32 %v3931, %v4019
      %4021 = vmatmul.bf16.gmra.mxu0 %v2518
      %v4022 = vpop.f32.mrf.mxu0
      %v4023 = vadd.f32 %v3934, %v4022
      %v4024 = vpop.f32.mrf.mxu0
      %v4025 = vadd.f32 %v3936, %v4024
      %4026 = vmatmul.bf16.gmra.mxu0 %v2519
      %v4027 = vpop.f32.mrf.mxu0
      %v4028 = vadd.f32 %v3939, %v4027
      %v4029 = vpop.f32.mrf.mxu0
      %v4030 = vadd.f32 %v3941, %v4029
      %4031 = vmatmul.bf16.gmra.mxu0 %v2520
      %v4032 = vpop.f32.mrf.mxu0
      %v4033 = vadd.f32 %v3944, %v4032
      %v4034 = vpop.f32.mrf.mxu0
      %v4035 = vadd.f32 %v3946, %v4034
      %4036 = vmatmul.bf16.gmra.mxu0 %v2521
      %v4037 = vpop.f32.mrf.mxu0
      %v4038 = vadd.f32 %v3949, %v4037
      %v4039 = vpop.f32.mrf.mxu0
      %v4040 = vadd.f32 %v3951, %v4039
      %4041 = vmatmul.bf16.gmra.mxu0 %v2522
      %v4042 = vpop.f32.mrf.mxu0
      %v4043 = vadd.f32 %v3954, %v4042
      %v4044 = vpop.f32.mrf.mxu0
      %v4045 = vadd.f32 %v3956, %v4044
      %4046 = vmatmul.bf16.gmra.mxu0 %v2735
      %v4047 = vpop.f32.mrf.mxu0
      %v4048 = vadd.f32 %v3959, %v4047
      %v4049 = vpop.f32.mrf.mxu0
      %v4050 = vadd.f32 %v3961, %v4049
      %4051 = vdwg.mxu0
      %4052 = vmatpush.bf16.msra.mxu0 %v3510
      %4053 = vmatpush.bf16.msra.mxu0 %v3509
      %4054 = vmatpush.bf16.msra.mxu0 %v3508
      %4055 = vmatpush.bf16.msra.mxu0 %v3507
      %4056 = vmatpush.bf16.msra.mxu0 %v3506
      %4057 = vmatpush.bf16.msra.mxu0 %v3505
      %4058 = vmatpush.bf16.msra.mxu0 %v3504
      %4059 = vmatpush.bf16.msra.mxu0 %v3503
      %4060 = vmatmul.bf16.gmra.mxu0 %v2801
      %v4061 = vpop.f32.mrf.mxu0
      %v4062 = vadd.f32 %v3973, %v4061
      %v4063 = vpop.f32.mrf.mxu0
      %v4064 = vadd.f32 %v3975, %v4063
      %4065 = vmatmul.bf16.gmra.mxu0 %v2802
      %v4066 = vpop.f32.mrf.mxu0
      %v4067 = vadd.f32 %v3978, %v4066
      %v4068 = vpop.f32.mrf.mxu0
      %v4069 = vadd.f32 %v3980, %v4068
      %4070 = vmatmul.bf16.gmra.mxu0 %v2803
      %v4071 = vpop.f32.mrf.mxu0
      %v4072 = vadd.f32 %v3983, %v4071
      %v4073 = vpop.f32.mrf.mxu0
      %v4074 = vadd.f32 %v3985, %v4073
      %4075 = vmatmul.bf16.gmra.mxu0 %v2804
      %v4076 = vpop.f32.mrf.mxu0
      %v4077 = vadd.f32 %v3988, %v4076
      %v4078 = vpop.f32.mrf.mxu0
      %v4079 = vadd.f32 %v3990, %v4078
      %4080 = vmatmul.bf16.gmra.mxu0 %v2805
      %v4081 = vpop.f32.mrf.mxu0
      %v4082 = vadd.f32 %v3993, %v4081
      %v4083 = vpop.f32.mrf.mxu0
      %v4084 = vadd.f32 %v3995, %v4083
      %4085 = vmatmul.bf16.gmra.mxu0 %v2806
      %v4086 = vpop.f32.mrf.mxu0
      %v4087 = vadd.f32 %v3998, %v4086
      %v4088 = vpop.f32.mrf.mxu0
      %v4089 = vadd.f32 %v4000, %v4088
      %4090 = vmatmul.bf16.gmra.mxu0 %v2807
      %v4091 = vpop.f32.mrf.mxu0
      %v4092 = vadd.f32 %v4003, %v4091
      %v4093 = vpop.f32.mrf.mxu0
      %v4094 = vadd.f32 %v4005, %v4093
      %4095 = vmatmul.bf16.gmra.mxu0 %v2808
      %v4096 = vpop.f32.mrf.mxu0
      %v4097 = vadd.f32 %v4008, %v4096
      %v4098 = vpop.f32.mrf.mxu0
      %v4099 = vadd.f32 %v4010, %v4098
      %4100 = vmatmul.bf16.gmra.mxu0 %v2809
      %v4101 = vpop.f32.mrf.mxu0
      %v4102 = vadd.f32 %v4013, %v4101
      %v4103 = vpop.f32.mrf.mxu0
      %v4104 = vadd.f32 %v4015, %v4103
      %4105 = vmatmul.bf16.gmra.mxu0 %v2810
      %v4106 = vpop.f32.mrf.mxu0
      %v4107 = vadd.f32 %v4018, %v4106
      %v4108 = vpop.f32.mrf.mxu0
      %v4109 = vadd.f32 %v4020, %v4108
      %4110 = vmatmul.bf16.gmra.mxu0 %v2811
      %v4111 = vpop.f32.mrf.mxu0
      %v4112 = vadd.f32 %v4023, %v4111
      %v4113 = vpop.f32.mrf.mxu0
      %v4114 = vadd.f32 %v4025, %v4113
      %4115 = vmatmul.bf16.gmra.mxu0 %v2812
      %v4116 = vpop.f32.mrf.mxu0
      %v4117 = vadd.f32 %v4028, %v4116
      %v4118 = vpop.f32.mrf.mxu0
      %v4119 = vadd.f32 %v4030, %v4118
      %4120 = vmatmul.bf16.gmra.mxu0 %v2813
      %v4121 = vpop.f32.mrf.mxu0
      %v4122 = vadd.f32 %v4033, %v4121
      %v4123 = vpop.f32.mrf.mxu0
      %v4124 = vadd.f32 %v4035, %v4123
      %4125 = vmatmul.bf16.gmra.mxu0 %v2814
      %v4126 = vpop.f32.mrf.mxu0
      %v4127 = vadd.f32 %v4038, %v4126
      %v4128 = vpop.f32.mrf.mxu0
      %v4129 = vadd.f32 %v4040, %v4128
      %4130 = vmatmul.bf16.gmra.mxu0 %v2815
      %v4131 = vpop.f32.mrf.mxu0
      %v4132 = vadd.f32 %v4043, %v4131
      %v4133 = vpop.f32.mrf.mxu0
      %v4134 = vadd.f32 %v4045, %v4133
      %4135 = vmatmul.bf16.gmra.mxu0 %v2816
      %v4136 = vpop.f32.mrf.mxu0
      %v4137 = vadd.f32 %v4048, %v4136
      %v4138 = vpop.f32.mrf.mxu0
      %v4139 = vadd.f32 %v4050, %v4138
      %4140 = vdwg.mxu0
      %4141 = vmatpush.bf16.msra.mxu0 %v3518
      %4142 = vmatpush.bf16.msra.mxu0 %v3517
      %4143 = vmatpush.bf16.msra.mxu0 %v3516
      %4144 = vmatpush.bf16.msra.mxu0 %v3515
      %4145 = vmatpush.bf16.msra.mxu0 %v3514
      %4146 = vmatpush.bf16.msra.mxu0 %v3513
      %4147 = vmatpush.bf16.msra.mxu0 %v3512
      %4148 = vmatpush.bf16.msra.mxu0 %v3511
      %4149 = vmatmul.bf16.gmra.mxu0 %v2897
      %v4150 = vpop.f32.mrf.mxu0
      %v4151 = vadd.f32 %v4062, %v4150
      %v4152 = vpop.f32.mrf.mxu0
      %v4153 = vadd.f32 %v4064, %v4152
      %4154 = vmatmul.bf16.gmra.mxu0 %v2898
      %v4155 = vpop.f32.mrf.mxu0
      %v4156 = vadd.f32 %v4067, %v4155
      %v4157 = vpop.f32.mrf.mxu0
      %v4158 = vadd.f32 %v4069, %v4157
      %4159 = vmatmul.bf16.gmra.mxu0 %v2899
      %v4160 = vpop.f32.mrf.mxu0
      %v4161 = vadd.f32 %v4072, %v4160
      %v4162 = vpop.f32.mrf.mxu0
      %v4163 = vadd.f32 %v4074, %v4162
      %4164 = vmatmul.bf16.gmra.mxu0 %v2900
      %v4165 = vpop.f32.mrf.mxu0
      %v4166 = vadd.f32 %v4077, %v4165
      %v4167 = vpop.f32.mrf.mxu0
      %v4168 = vadd.f32 %v4079, %v4167
      %4169 = vmatmul.bf16.gmra.mxu0 %v2901
      %v4170 = vpop.f32.mrf.mxu0
      %v4171 = vadd.f32 %v4082, %v4170
      %v4172 = vpop.f32.mrf.mxu0
      %v4173 = vadd.f32 %v4084, %v4172
      %4174 = vmatmul.bf16.gmra.mxu0 %v2902
      %v4175 = vpop.f32.mrf.mxu0
      %v4176 = vadd.f32 %v4087, %v4175
      %v4177 = vpop.f32.mrf.mxu0
      %v4178 = vadd.f32 %v4089, %v4177
      %4179 = vmatmul.bf16.gmra.mxu0 %v2903
      %v4180 = vpop.f32.mrf.mxu0
      %v4181 = vadd.f32 %v4092, %v4180
      %v4182 = vpop.f32.mrf.mxu0
      %v4183 = vadd.f32 %v4094, %v4182
      %4184 = vmatmul.bf16.gmra.mxu0 %v2904
      %v4185 = vpop.f32.mrf.mxu0
      %v4186 = vadd.f32 %v4097, %v4185
      %v4187 = vpop.f32.mrf.mxu0
      %v4188 = vadd.f32 %v4099, %v4187
      %4189 = vmatmul.bf16.gmra.mxu0 %v2905
      %v4190 = vpop.f32.mrf.mxu0
      %v4191 = vadd.f32 %v4102, %v4190
      %v4192 = vpop.f32.mrf.mxu0
      %v4193 = vadd.f32 %v4104, %v4192
      %4194 = vmatmul.bf16.gmra.mxu0 %v2906
      %v4195 = vpop.f32.mrf.mxu0
      %v4196 = vadd.f32 %v4107, %v4195
      %v4197 = vpop.f32.mrf.mxu0
      %v4198 = vadd.f32 %v4109, %v4197
      %4199 = vmatmul.bf16.gmra.mxu0 %v2907
      %v4200 = vpop.f32.mrf.mxu0
      %v4201 = vadd.f32 %v4112, %v4200
      %v4202 = vpop.f32.mrf.mxu0
      %v4203 = vadd.f32 %v4114, %v4202
      %4204 = vmatmul.bf16.gmra.mxu0 %v2908
      %v4205 = vpop.f32.mrf.mxu0
      %v4206 = vadd.f32 %v4117, %v4205
      %v4207 = vpop.f32.mrf.mxu0
      %v4208 = vadd.f32 %v4119, %v4207
      %4209 = vmatmul.bf16.gmra.mxu0 %v2909
      %v4210 = vpop.f32.mrf.mxu0
      %v4211 = vadd.f32 %v4122, %v4210
      %v4212 = vpop.f32.mrf.mxu0
      %v4213 = vadd.f32 %v4124, %v4212
      %4214 = vmatmul.bf16.gmra.mxu0 %v2910
      %v4215 = vpop.f32.mrf.mxu0
      %v4216 = vadd.f32 %v4127, %v4215
      %v4217 = vpop.f32.mrf.mxu0
      %v4218 = vadd.f32 %v4129, %v4217
      %4219 = vmatmul.bf16.gmra.mxu0 %v2911
      %v4220 = vpop.f32.mrf.mxu0
      %v4221 = vadd.f32 %v4132, %v4220
      %v4222 = vpop.f32.mrf.mxu0
      %v4223 = vadd.f32 %v4134, %v4222
      %4224 = vmatmul.bf16.gmra.mxu0 %v2912
      %v4225 = vpop.f32.mrf.mxu0
      %v4226 = vadd.f32 %v4137, %v4225
      %v4227 = vpop.f32.mrf.mxu0
      %v4228 = vadd.f32 %v4139, %v4227
      %4229 = vdwg.mxu0
      %4230 = vmatpush.bf16.msra.mxu0 %v3526
      %4231 = vmatpush.bf16.msra.mxu0 %v3525
      %4232 = vmatpush.bf16.msra.mxu0 %v3524
      %4233 = vmatpush.bf16.msra.mxu0 %v3523
      %4234 = vmatpush.bf16.msra.mxu0 %v3522
      %4235 = vmatpush.bf16.msra.mxu0 %v3521
      %4236 = vmatpush.bf16.msra.mxu0 %v3520
      %4237 = vmatpush.bf16.msra.mxu0 %v3519
      %4238 = vmatmul.bf16.gmra.mxu0 %v2509
      %v4239 = vpop.f32.mrf.mxu0
      %v4240 = vadd.f32 %v4151, %v4239
      %v4241 = vpop.f32.mrf.mxu0
      %v4242 = vadd.f32 %v4153, %v4241
      %4243 = vmatmul.bf16.gmra.mxu0 %v2510
      %v4244 = vpop.f32.mrf.mxu0
      %v4245 = vadd.f32 %v4156, %v4244
      %v4246 = vpop.f32.mrf.mxu0
      %v4247 = vadd.f32 %v4158, %v4246
      %4248 = vmatmul.bf16.gmra.mxu0 %v2511
      %v4249 = vpop.f32.mrf.mxu0
      %v4250 = vadd.f32 %v4161, %v4249
      %v4251 = vpop.f32.mrf.mxu0
      %v4252 = vadd.f32 %v4163, %v4251
      %4253 = vmatmul.bf16.gmra.mxu0 %v2512
      %v4254 = vpop.f32.mrf.mxu0
      %v4255 = vadd.f32 %v4166, %v4254
      %v4256 = vpop.f32.mrf.mxu0
      %v4257 = vadd.f32 %v4168, %v4256
      %4258 = vmatmul.bf16.gmra.mxu0 %v2513
      %v4259 = vpop.f32.mrf.mxu0
      %v4260 = vadd.f32 %v4171, %v4259
      %v4261 = vpop.f32.mrf.mxu0
      %v4262 = vadd.f32 %v4173, %v4261
      %4263 = vmatmul.bf16.gmra.mxu0 %v2514
      %v4264 = vpop.f32.mrf.mxu0
      %v4265 = vadd.f32 %v4176, %v4264
      %v4266 = vpop.f32.mrf.mxu0
      %v4267 = vadd.f32 %v4178, %v4266
      %4268 = vmatmul.bf16.gmra.mxu0 %v2515
      %v4269 = vpop.f32.mrf.mxu0
      %v4270 = vadd.f32 %v4181, %v4269
      %v4271 = vpop.f32.mrf.mxu0
      %v4272 = vadd.f32 %v4183, %v4271
      %4273 = vmatmul.bf16.gmra.mxu0 %v2516
      %v4274 = vpop.f32.mrf.mxu0
      %v4275 = vadd.f32 %v4186, %v4274
      %v4276 = vpop.f32.mrf.mxu0
      %v4277 = vadd.f32 %v4188, %v4276
      %4278 = vmatmul.bf16.gmra.mxu0 %v2517
      %v4279 = vpop.f32.mrf.mxu0
      %v4280 = vadd.f32 %v4191, %v4279
      %v4281 = vpop.f32.mrf.mxu0
      %v4282 = vadd.f32 %v4193, %v4281
      %4283 = vmatmul.bf16.gmra.mxu0 %v2518
      %v4284 = vpop.f32.mrf.mxu0
      %v4285 = vadd.f32 %v4196, %v4284
      %v4286 = vpop.f32.mrf.mxu0
      %v4287 = vadd.f32 %v4198, %v4286
      %4288 = vmatmul.bf16.gmra.mxu0 %v2519
      %v4289 = vpop.f32.mrf.mxu0
      %v4290 = vadd.f32 %v4201, %v4289
      %v4291 = vpop.f32.mrf.mxu0
      %v4292 = vadd.f32 %v4203, %v4291
      %4293 = vmatmul.bf16.gmra.mxu0 %v2520
      %v4294 = vpop.f32.mrf.mxu0
      %v4295 = vadd.f32 %v4206, %v4294
      %v4296 = vpop.f32.mrf.mxu0
      %v4297 = vadd.f32 %v4208, %v4296
      %4298 = vmatmul.bf16.gmra.mxu0 %v2521
      %v4299 = vpop.f32.mrf.mxu0
      %v4300 = vadd.f32 %v4211, %v4299
      %v4301 = vpop.f32.mrf.mxu0
      %v4302 = vadd.f32 %v4213, %v4301
      %4303 = vmatmul.bf16.gmra.mxu0 %v2522
      %v4304 = vpop.f32.mrf.mxu0
      %v4305 = vadd.f32 %v4216, %v4304
      %v4306 = vpop.f32.mrf.mxu0
      %v4307 = vadd.f32 %v4218, %v4306
      %4308 = vmatmul.bf16.gmra.mxu0 %v2735
      %v4309 = vpop.f32.mrf.mxu0
      %v4310 = vadd.f32 %v4221, %v4309
      %v4311 = vpop.f32.mrf.mxu0
      %v4312 = vadd.f32 %v4223, %v4311
      %4313 = vmatmul.bf16.gmra.mxu0 %v2933
      %v4314 = vpop.f32.mrf.mxu0
      %v4315 = vadd.f32 %v4226, %v4314
      %v4316 = vpop.f32.mrf.mxu0
      %v4317 = vadd.f32 %v4228, %v4316
      %4318 = vdwg.mxu0
      %4319 = vmatpush.bf16.msra.mxu0 %v3534
      %4320 = vmatpush.bf16.msra.mxu0 %v3533
      %4321 = vmatpush.bf16.msra.mxu0 %v3532
      %4322 = vmatpush.bf16.msra.mxu0 %v3531
      %4323 = vmatpush.bf16.msra.mxu0 %v3530
      %4324 = vmatpush.bf16.msra.mxu0 %v3529
      %4325 = vmatpush.bf16.msra.mxu0 %v3528
      %4326 = vmatpush.bf16.msra.mxu0 %v3527
      %4327 = vmatmul.bf16.gmra.mxu0 %v2999
      %v4328 = vpop.f32.mrf.mxu0
      %v4329 = vadd.f32 %v4240, %v4328
      %v4330 = vpop.f32.mrf.mxu0
      %v4331 = vadd.f32 %v4242, %v4330
      %4332 = vmatmul.bf16.gmra.mxu0 %v3000
      %v4333 = vpop.f32.mrf.mxu0
      %v4334 = vadd.f32 %v4245, %v4333
      %v4335 = vpop.f32.mrf.mxu0
      %v4336 = vadd.f32 %v4247, %v4335
      %4337 = vmatmul.bf16.gmra.mxu0 %v3001
      %v4338 = vpop.f32.mrf.mxu0
      %v4339 = vadd.f32 %v4250, %v4338
      %v4340 = vpop.f32.mrf.mxu0
      %v4341 = vadd.f32 %v4252, %v4340
      %4342 = vmatmul.bf16.gmra.mxu0 %v3002
      %v4343 = vpop.f32.mrf.mxu0
      %v4344 = vadd.f32 %v4255, %v4343
      %v4345 = vpop.f32.mrf.mxu0
      %v4346 = vadd.f32 %v4257, %v4345
      %4347 = vmatmul.bf16.gmra.mxu0 %v3003
      %v4348 = vpop.f32.mrf.mxu0
      %v4349 = vadd.f32 %v4260, %v4348
      %v4350 = vpop.f32.mrf.mxu0
      %v4351 = vadd.f32 %v4262, %v4350
      %4352 = vmatmul.bf16.gmra.mxu0 %v3004
      %v4353 = vpop.f32.mrf.mxu0
      %v4354 = vadd.f32 %v4265, %v4353
      %v4355 = vpop.f32.mrf.mxu0
      %v4356 = vadd.f32 %v4267, %v4355
      %4357 = vmatmul.bf16.gmra.mxu0 %v3005
      %v4358 = vpop.f32.mrf.mxu0
      %v4359 = vadd.f32 %v4270, %v4358
      %v4360 = vpop.f32.mrf.mxu0
      %v4361 = vadd.f32 %v4272, %v4360
      %4362 = vmatmul.bf16.gmra.mxu0 %v3006
      %v4363 = vpop.f32.mrf.mxu0
      %v4364 = vadd.f32 %v4275, %v4363
      %v4365 = vpop.f32.mrf.mxu0
      %v4366 = vadd.f32 %v4277, %v4365
      %4367 = vmatmul.bf16.gmra.mxu0 %v3007
      %v4368 = vpop.f32.mrf.mxu0
      %v4369 = vadd.f32 %v4280, %v4368
      %v4370 = vpop.f32.mrf.mxu0
      %v4371 = vadd.f32 %v4282, %v4370
      %4372 = vmatmul.bf16.gmra.mxu0 %v3008
      %v4373 = vpop.f32.mrf.mxu0
      %v4374 = vadd.f32 %v4285, %v4373
      %v4375 = vpop.f32.mrf.mxu0
      %v4376 = vadd.f32 %v4287, %v4375
      %4377 = vmatmul.bf16.gmra.mxu0 %v3009
      %v4378 = vpop.f32.mrf.mxu0
      %v4379 = vadd.f32 %v4290, %v4378
      %v4380 = vpop.f32.mrf.mxu0
      %v4381 = vadd.f32 %v4292, %v4380
      %4382 = vmatmul.bf16.gmra.mxu0 %v3010
      %v4383 = vpop.f32.mrf.mxu0
      %v4384 = vadd.f32 %v4295, %v4383
      %v4385 = vpop.f32.mrf.mxu0
      %v4386 = vadd.f32 %v4297, %v4385
      %4387 = vmatmul.bf16.gmra.mxu0 %v3011
      %v4388 = vpop.f32.mrf.mxu0
      %v4389 = vadd.f32 %v4300, %v4388
      %v4390 = vpop.f32.mrf.mxu0
      %v4391 = vadd.f32 %v4302, %v4390
      %4392 = vmatmul.bf16.gmra.mxu0 %v3012
      %v4393 = vpop.f32.mrf.mxu0
      %v4394 = vadd.f32 %v4305, %v4393
      %v4395 = vpop.f32.mrf.mxu0
      %v4396 = vadd.f32 %v4307, %v4395
      %4397 = vmatmul.bf16.gmra.mxu0 %v3013
      %v4398 = vpop.f32.mrf.mxu0
      %v4399 = vadd.f32 %v4310, %v4398
      %v4400 = vpop.f32.mrf.mxu0
      %v4401 = vadd.f32 %v4312, %v4400
      %4402 = vmatmul.bf16.gmra.mxu0 %v3014
      %v4403 = vpop.f32.mrf.mxu0
      %v4404 = vadd.f32 %v4315, %v4403
      %v4405 = vpop.f32.mrf.mxu0
      %v4406 = vadd.f32 %v4317, %v4405
      %4407 = vdwg.mxu0
      %v4408 = vld [vmem:[%s5 + $0x1] sm:$0x1]
      %v4409 = vperm.slane %v4408, 0
      %v4410 = vmul.f32 %v4329, %v4409
      %v4411 = vmul.f32 %v4331, %v4409
      %v4412 = vmul.f32 %v4334, %v4409
      %v4413 = vmul.f32 %v4336, %v4409
      %v4414 = vmul.f32 %v4339, %v4409
      %v4415 = vmul.f32 %v4341, %v4409
      %v4416 = vmul.f32 %v4344, %v4409
      %v4417 = vmul.f32 %v4346, %v4409
      %v4418 = vmul.f32 %v4349, %v4409
      %v4419 = vmul.f32 %v4351, %v4409
      %v4420 = vmul.f32 %v4354, %v4409
      %v4421 = vmul.f32 %v4356, %v4409
      %v4422 = vmul.f32 %v4359, %v4409
      %v4423 = vmul.f32 %v4361, %v4409
      %v4424 = vmul.f32 %v4364, %v4409
      %v4425 = vmul.f32 %v4366, %v4409
      %v4426 = vmul.f32 %v4369, %v4409
      %v4427 = vmul.f32 %v4371, %v4409
      %v4428 = vmul.f32 %v4374, %v4409
      %v4429 = vmul.f32 %v4376, %v4409
      %v4430 = vmul.f32 %v4379, %v4409
      %v4431 = vmul.f32 %v4381, %v4409
      %v4432 = vmul.f32 %v4384, %v4409
      %v4433 = vmul.f32 %v4386, %v4409
      %v4434 = vmul.f32 %v4389, %v4409
      %v4435 = vmul.f32 %v4391, %v4409
      %v4436 = vmul.f32 %v4394, %v4409
      %v4437 = vmul.f32 %v4396, %v4409
      %v4438 = vmul.f32 %v4399, %v4409
      %v4439 = vmul.f32 %v4401, %v4409
      %v4440 = vmul.f32 %v4404, %v4409
      %v4441 = vmul.f32 %v4406, %v4409
      %v4442 = vld [vmem:[%s6 + $0x1] sm:$0x1]
      %v4443 = vperm.slane %v4442, 0
      %v4444 = vadd.f32 %v4410, %v4443
      %v4445 = vadd.f32 %v4411, %v4443
      %v4446 = vadd.f32 %v4412, %v4443
      %v4447 = vadd.f32 %v4413, %v4443
      %v4448 = vadd.f32 %v4414, %v4443
      %v4449 = vadd.f32 %v4415, %v4443
      %v4450 = vadd.f32 %v4416, %v4443
      %v4451 = vadd.f32 %v4417, %v4443
      %v4452 = vadd.f32 %v4418, %v4443
      %v4453 = vadd.f32 %v4419, %v4443
      %v4454 = vadd.f32 %v4420, %v4443
      %v4455 = vadd.f32 %v4421, %v4443
      %v4456 = vadd.f32 %v4422, %v4443
      %v4457 = vadd.f32 %v4423, %v4443
      %v4458 = vadd.f32 %v4424, %v4443
      %v4459 = vadd.f32 %v4425, %v4443
      %v4460 = vadd.f32 %v4426, %v4443
      %v4461 = vadd.f32 %v4427, %v4443
      %v4462 = vadd.f32 %v4428, %v4443
      %v4463 = vadd.f32 %v4429, %v4443
      %v4464 = vadd.f32 %v4430, %v4443
      %v4465 = vadd.f32 %v4431, %v4443
      %v4466 = vadd.f32 %v4432, %v4443
      %v4467 = vadd.f32 %v4433, %v4443
      %v4468 = vadd.f32 %v4434, %v4443
      %v4469 = vadd.f32 %v4435, %v4443
      %v4470 = vadd.f32 %v4436, %v4443
      %v4471 = vadd.f32 %v4437, %v4443
      %v4472 = vadd.f32 %v4438, %v4443
      %v4473 = vadd.f32 %v4439, %v4443
      %v4474 = vadd.f32 %v4440, %v4443
      %v4475 = vadd.f32 %v4441, %v4443
      %v4476 = vxor.u32 %v4444, 2147483648
      %v4477 = vxor.u32 %v4445, 2147483648
      %v4478 = vxor.u32 %v4446, 2147483648
      %v4479 = vxor.u32 %v4447, 2147483648
      %v4480 = vxor.u32 %v4448, 2147483648
      %v4481 = vxor.u32 %v4449, 2147483648
      %v4482 = vxor.u32 %v4450, 2147483648
      %v4483 = vxor.u32 %v4451, 2147483648
      %v4484 = vxor.u32 %v4452, 2147483648
      %v4485 = vxor.u32 %v4453, 2147483648
      %v4486 = vxor.u32 %v4454, 2147483648
      %v4487 = vxor.u32 %v4455, 2147483648
      %v4488 = vxor.u32 %v4456, 2147483648
      %v4489 = vxor.u32 %v4457, 2147483648
      %v4490 = vxor.u32 %v4458, 2147483648
      %v4491 = vxor.u32 %v4459, 2147483648
      %v4492 = vxor.u32 %v4460, 2147483648
      %v4493 = vxor.u32 %v4461, 2147483648
      %v4494 = vxor.u32 %v4462, 2147483648
      %v4495 = vxor.u32 %v4463, 2147483648
      %v4496 = vxor.u32 %v4464, 2147483648
      %v4497 = vxor.u32 %v4465, 2147483648
      %v4498 = vxor.u32 %v4466, 2147483648
      %v4499 = vxor.u32 %v4467, 2147483648
      %v4500 = vxor.u32 %v4468, 2147483648
      %v4501 = vxor.u32 %v4469, 2147483648
      %v4502 = vxor.u32 %v4470, 2147483648
      %v4503 = vxor.u32 %v4471, 2147483648
      %v4504 = vxor.u32 %v4472, 2147483648
      %v4505 = vxor.u32 %v4473, 2147483648
      %v4506 = vxor.u32 %v4474, 2147483648
      %v4507 = vxor.u32 %v4475, 2147483648
      %v4508 = vmul.f32 %v4476, 1.442695
      %v4509 = vpow.pop %v4508
      %v4510 = vmul.f32 %v4477, 1.442695
      %v4511 = vpow.pop %v4510
      %v4512 = vmul.f32 %v4478, 1.442695
      %v4513 = vpow.pop %v4512
      %v4514 = vmul.f32 %v4479, 1.442695
      %v4515 = vpow.pop %v4514
      %v4516 = vmul.f32 %v4480, 1.442695
      %v4517 = vpow.pop %v4516
      %v4518 = vmul.f32 %v4481, 1.442695
      %v4519 = vpow.pop %v4518
      %v4520 = vmul.f32 %v4482, 1.442695
      %v4521 = vpow.pop %v4520
      %v4522 = vmul.f32 %v4483, 1.442695
      %v4523 = vpow.pop %v4522
      %v4524 = vmul.f32 %v4484, 1.442695
      %v4525 = vpow.pop %v4524
      %v4526 = vmul.f32 %v4485, 1.442695
      %v4527 = vpow.pop %v4526
      %v4528 = vmul.f32 %v4486, 1.442695
      %v4529 = vpow.pop %v4528
      %v4530 = vmul.f32 %v4487, 1.442695
      %v4531 = vpow.pop %v4530
      %v4532 = vmul.f32 %v4488, 1.442695
      %v4533 = vpow.pop %v4532
      %v4534 = vmul.f32 %v4489, 1.442695
      %v4535 = vpow.pop %v4534
      %v4536 = vmul.f32 %v4490, 1.442695
      %v4537 = vpow.pop %v4536
      %v4538 = vmul.f32 %v4491, 1.442695
      %v4539 = vpow.pop %v4538
      %v4540 = vmul.f32 %v4492, 1.442695
      %v4541 = vpow.pop %v4540
      %v4542 = vmul.f32 %v4493, 1.442695
      %v4543 = vpow.pop %v4542
      %v4544 = vmul.f32 %v4494, 1.442695
      %v4545 = vpow.pop %v4544
      %v4546 = vmul.f32 %v4495, 1.442695
      %v4547 = vpow.pop %v4546
      %v4548 = vmul.f32 %v4496, 1.442695
      %v4549 = vpow.pop %v4548
      %v4550 = vmul.f32 %v4497, 1.442695
      %v4551 = vpow.pop %v4550
      %v4552 = vmul.f32 %v4498, 1.442695
      %v4553 = vpow.pop %v4552
      %v4554 = vmul.f32 %v4499, 1.442695
      %v4555 = vpow.pop %v4554
      %v4556 = vmul.f32 %v4500, 1.442695
      %v4557 = vpow.pop %v4556
      %v4558 = vmul.f32 %v4501, 1.442695
      %v4559 = vpow.pop %v4558
      %v4560 = vmul.f32 %v4502, 1.442695
      %v4561 = vpow.pop %v4560
      %v4562 = vmul.f32 %v4503, 1.442695
      %v4563 = vpow.pop %v4562
      %v4564 = vmul.f32 %v4504, 1.442695
      %v4565 = vpow.pop %v4564
      %v4566 = vmul.f32 %v4505, 1.442695
      %v4567 = vpow.pop %v4566
      %v4568 = vmul.f32 %v4506, 1.442695
      %v4569 = vpow.pop %v4568
      %v4570 = vmul.f32 %v4507, 1.442695
      %v4571 = vpow.pop %v4570
      %v4572 = vadd.f32 %v4509, 1.0
      %v4573 = vadd.f32 %v4511, 1.0
      %v4574 = vadd.f32 %v4513, 1.0
      %v4575 = vadd.f32 %v4515, 1.0
      %v4576 = vadd.f32 %v4517, 1.0
      %v4577 = vadd.f32 %v4519, 1.0
      %v4578 = vadd.f32 %v4521, 1.0
      %v4579 = vadd.f32 %v4523, 1.0
      %v4580 = vadd.f32 %v4525, 1.0
      %v4581 = vadd.f32 %v4527, 1.0
      %v4582 = vadd.f32 %v4529, 1.0
      %v4583 = vadd.f32 %v4531, 1.0
      %v4584 = vadd.f32 %v4533, 1.0
      %v4585 = vadd.f32 %v4535, 1.0
      %v4586 = vadd.f32 %v4537, 1.0
      %v4587 = vadd.f32 %v4539, 1.0
      %v4588 = vadd.f32 %v4541, 1.0
      %v4589 = vadd.f32 %v4543, 1.0
      %v4590 = vadd.f32 %v4545, 1.0
      %v4591 = vadd.f32 %v4547, 1.0
      %v4592 = vadd.f32 %v4549, 1.0
      %v4593 = vadd.f32 %v4551, 1.0
      %v4594 = vadd.f32 %v4553, 1.0
      %v4595 = vadd.f32 %v4555, 1.0
      %v4596 = vadd.f32 %v4557, 1.0
      %v4597 = vadd.f32 %v4559, 1.0
      %v4598 = vadd.f32 %v4561, 1.0
      %v4599 = vadd.f32 %v4563, 1.0
      %v4600 = vadd.f32 %v4565, 1.0
      %v4601 = vadd.f32 %v4567, 1.0
      %v4602 = vadd.f32 %v4569, 1.0
      %v4603 = vadd.f32 %v4571, 1.0
      %v4604 = vrcp.pop %v4572
      %v4605 = vmul.f32 %v4572, %v4604
      %v4606 = vsub.f32 1.0, %v4605
      %v4607 = vmul.f32 %v4604, %v4606
      %v4608 = vadd.f32 %v4604, %v4607
      %vm4609 = vweird.f32 %v4572
      %vm4610 = vweird.f32 %v4604
      %vm4611 = vmor %vm4609, %vm4610
      %v4612 = vsel %vm4611, %v4604, %v4608
      %v4613 = vand.u32 2147483647, %v4572
      %vm4614 = vcmp.eq.f32.partialorder %v4613, 8.507059e+37
      %v4615 = vand.u32 %v4572, 2147483648
      %v4616 = vor.u32 1.1754944e-38, %v4615
      %v4617 = vsel %vm4614, %v4616, %v4612
      %v4618 = vmul.f32 1.0, %v4617
      %v4619 = vrcp.pop %v4573
      %v4620 = vmul.f32 %v4573, %v4619
      %v4621 = vsub.f32 1.0, %v4620
      %v4622 = vmul.f32 %v4619, %v4621
      %v4623 = vadd.f32 %v4619, %v4622
      %vm4624 = vweird.f32 %v4573
      %vm4625 = vweird.f32 %v4619
      %vm4626 = vmor %vm4624, %vm4625
      %v4627 = vsel %vm4626, %v4619, %v4623
      %v4628 = vand.u32 2147483647, %v4573
      %vm4629 = vcmp.eq.f32.partialorder %v4628, 8.507059e+37
      %v4630 = vand.u32 %v4573, 2147483648
      %v4631 = vor.u32 1.1754944e-38, %v4630
      %v4632 = vsel %vm4629, %v4631, %v4627
      %v4633 = vmul.f32 1.0, %v4632
      %v4634 = vrcp.pop %v4574
      %v4635 = vmul.f32 %v4574, %v4634
      %v4636 = vsub.f32 1.0, %v4635
      %v4637 = vmul.f32 %v4634, %v4636
      %v4638 = vadd.f32 %v4634, %v4637
      %vm4639 = vweird.f32 %v4574
      %vm4640 = vweird.f32 %v4634
      %vm4641 = vmor %vm4639, %vm4640
      %v4642 = vsel %vm4641, %v4634, %v4638
      %v4643 = vand.u32 2147483647, %v4574
      %vm4644 = vcmp.eq.f32.partialorder %v4643, 8.507059e+37
      %v4645 = vand.u32 %v4574, 2147483648
      %v4646 = vor.u32 1.1754944e-38, %v4645
      %v4647 = vsel %vm4644, %v4646, %v4642
      %v4648 = vmul.f32 1.0, %v4647
      %v4649 = vrcp.pop %v4575
      %v4650 = vmul.f32 %v4575, %v4649
      %v4651 = vsub.f32 1.0, %v4650
      %v4652 = vmul.f32 %v4649, %v4651
      %v4653 = vadd.f32 %v4649, %v4652
      %vm4654 = vweird.f32 %v4575
      %vm4655 = vweird.f32 %v4649
      %vm4656 = vmor %vm4654, %vm4655
      %v4657 = vsel %vm4656, %v4649, %v4653
      %v4658 = vand.u32 2147483647, %v4575
      %vm4659 = vcmp.eq.f32.partialorder %v4658, 8.507059e+37
      %v4660 = vand.u32 %v4575, 2147483648
      %v4661 = vor.u32 1.1754944e-38, %v4660
      %v4662 = vsel %vm4659, %v4661, %v4657
      %v4663 = vmul.f32 1.0, %v4662
      %v4664 = vrcp.pop %v4576
      %v4665 = vmul.f32 %v4576, %v4664
      %v4666 = vsub.f32 1.0, %v4665
      %v4667 = vmul.f32 %v4664, %v4666
      %v4668 = vadd.f32 %v4664, %v4667
      %vm4669 = vweird.f32 %v4576
      %vm4670 = vweird.f32 %v4664
      %vm4671 = vmor %vm4669, %vm4670
      %v4672 = vsel %vm4671, %v4664, %v4668
      %v4673 = vand.u32 2147483647, %v4576
      %vm4674 = vcmp.eq.f32.partialorder %v4673, 8.507059e+37
      %v4675 = vand.u32 %v4576, 2147483648
      %v4676 = vor.u32 1.1754944e-38, %v4675
      %v4677 = vsel %vm4674, %v4676, %v4672
      %v4678 = vmul.f32 1.0, %v4677
      %v4679 = vrcp.pop %v4577
      %v4680 = vmul.f32 %v4577, %v4679
      %v4681 = vsub.f32 1.0, %v4680
      %v4682 = vmul.f32 %v4679, %v4681
      %v4683 = vadd.f32 %v4679, %v4682
      %vm4684 = vweird.f32 %v4577
      %vm4685 = vweird.f32 %v4679
      %vm4686 = vmor %vm4684, %vm4685
      %v4687 = vsel %vm4686, %v4679, %v4683
      %v4688 = vand.u32 2147483647, %v4577
      %vm4689 = vcmp.eq.f32.partialorder %v4688, 8.507059e+37
      %v4690 = vand.u32 %v4577, 2147483648
      %v4691 = vor.u32 1.1754944e-38, %v4690
      %v4692 = vsel %vm4689, %v4691, %v4687
      %v4693 = vmul.f32 1.0, %v4692
      %v4694 = vrcp.pop %v4578
      %v4695 = vmul.f32 %v4578, %v4694
      %v4696 = vsub.f32 1.0, %v4695
      %v4697 = vmul.f32 %v4694, %v4696
      %v4698 = vadd.f32 %v4694, %v4697
      %vm4699 = vweird.f32 %v4578
      %vm4700 = vweird.f32 %v4694
      %vm4701 = vmor %vm4699, %vm4700
      %v4702 = vsel %vm4701, %v4694, %v4698
      %v4703 = vand.u32 2147483647, %v4578
      %vm4704 = vcmp.eq.f32.partialorder %v4703, 8.507059e+37
      %v4705 = vand.u32 %v4578, 2147483648
      %v4706 = vor.u32 1.1754944e-38, %v4705
      %v4707 = vsel %vm4704, %v4706, %v4702
      %v4708 = vmul.f32 1.0, %v4707
      %v4709 = vrcp.pop %v4579
      %v4710 = vmul.f32 %v4579, %v4709
      %v4711 = vsub.f32 1.0, %v4710
      %v4712 = vmul.f32 %v4709, %v4711
      %v4713 = vadd.f32 %v4709, %v4712
      %vm4714 = vweird.f32 %v4579
      %vm4715 = vweird.f32 %v4709
      %vm4716 = vmor %vm4714, %vm4715
      %v4717 = vsel %vm4716, %v4709, %v4713
      %v4718 = vand.u32 2147483647, %v4579
      %vm4719 = vcmp.eq.f32.partialorder %v4718, 8.507059e+37
      %v4720 = vand.u32 %v4579, 2147483648
      %v4721 = vor.u32 1.1754944e-38, %v4720
      %v4722 = vsel %vm4719, %v4721, %v4717
      %v4723 = vmul.f32 1.0, %v4722
      %v4724 = vrcp.pop %v4580
      %v4725 = vmul.f32 %v4580, %v4724
      %v4726 = vsub.f32 1.0, %v4725
      %v4727 = vmul.f32 %v4724, %v4726
      %v4728 = vadd.f32 %v4724, %v4727
      %vm4729 = vweird.f32 %v4580
      %vm4730 = vweird.f32 %v4724
      %vm4731 = vmor %vm4729, %vm4730
      %v4732 = vsel %vm4731, %v4724, %v4728
      %v4733 = vand.u32 2147483647, %v4580
      %vm4734 = vcmp.eq.f32.partialorder %v4733, 8.507059e+37
      %v4735 = vand.u32 %v4580, 2147483648
      %v4736 = vor.u32 1.1754944e-38, %v4735
      %v4737 = vsel %vm4734, %v4736, %v4732
      %v4738 = vmul.f32 1.0, %v4737
      %v4739 = vrcp.pop %v4581
      %v4740 = vmul.f32 %v4581, %v4739
      %v4741 = vsub.f32 1.0, %v4740
      %v4742 = vmul.f32 %v4739, %v4741
      %v4743 = vadd.f32 %v4739, %v4742
      %vm4744 = vweird.f32 %v4581
      %vm4745 = vweird.f32 %v4739
      %vm4746 = vmor %vm4744, %vm4745
      %v4747 = vsel %vm4746, %v4739, %v4743
      %v4748 = vand.u32 2147483647, %v4581
      %vm4749 = vcmp.eq.f32.partialorder %v4748, 8.507059e+37
      %v4750 = vand.u32 %v4581, 2147483648
      %v4751 = vor.u32 1.1754944e-38, %v4750
      %v4752 = vsel %vm4749, %v4751, %v4747
      %v4753 = vmul.f32 1.0, %v4752
      %v4754 = vrcp.pop %v4582
      %v4755 = vmul.f32 %v4582, %v4754
      %v4756 = vsub.f32 1.0, %v4755
      %v4757 = vmul.f32 %v4754, %v4756
      %v4758 = vadd.f32 %v4754, %v4757
      %vm4759 = vweird.f32 %v4582
      %vm4760 = vweird.f32 %v4754
      %vm4761 = vmor %vm4759, %vm4760
      %v4762 = vsel %vm4761, %v4754, %v4758
      %v4763 = vand.u32 2147483647, %v4582
      %vm4764 = vcmp.eq.f32.partialorder %v4763, 8.507059e+37
      %v4765 = vand.u32 %v4582, 2147483648
      %v4766 = vor.u32 1.1754944e-38, %v4765
      %v4767 = vsel %vm4764, %v4766, %v4762
      %v4768 = vmul.f32 1.0, %v4767
      %v4769 = vrcp.pop %v4583
      %v4770 = vmul.f32 %v4583, %v4769
      %v4771 = vsub.f32 1.0, %v4770
      %v4772 = vmul.f32 %v4769, %v4771
      %v4773 = vadd.f32 %v4769, %v4772
      %vm4774 = vweird.f32 %v4583
      %vm4775 = vweird.f32 %v4769
      %vm4776 = vmor %vm4774, %vm4775
      %v4777 = vsel %vm4776, %v4769, %v4773
      %v4778 = vand.u32 2147483647, %v4583
      %vm4779 = vcmp.eq.f32.partialorder %v4778, 8.507059e+37
      %v4780 = vand.u32 %v4583, 2147483648
      %v4781 = vor.u32 1.1754944e-38, %v4780
      %v4782 = vsel %vm4779, %v4781, %v4777
      %v4783 = vmul.f32 1.0, %v4782
      %v4784 = vrcp.pop %v4584
      %v4785 = vmul.f32 %v4584, %v4784
      %v4786 = vsub.f32 1.0, %v4785
      %v4787 = vmul.f32 %v4784, %v4786
      %v4788 = vadd.f32 %v4784, %v4787
      %vm4789 = vweird.f32 %v4584
      %vm4790 = vweird.f32 %v4784
      %vm4791 = vmor %vm4789, %vm4790
      %v4792 = vsel %vm4791, %v4784, %v4788
      %v4793 = vand.u32 2147483647, %v4584
      %vm4794 = vcmp.eq.f32.partialorder %v4793, 8.507059e+37
      %v4795 = vand.u32 %v4584, 2147483648
      %v4796 = vor.u32 1.1754944e-38, %v4795
      %v4797 = vsel %vm4794, %v4796, %v4792
      %v4798 = vmul.f32 1.0, %v4797
      %v4799 = vrcp.pop %v4585
      %v4800 = vmul.f32 %v4585, %v4799
      %v4801 = vsub.f32 1.0, %v4800
      %v4802 = vmul.f32 %v4799, %v4801
      %v4803 = vadd.f32 %v4799, %v4802
      %vm4804 = vweird.f32 %v4585
      %vm4805 = vweird.f32 %v4799
      %vm4806 = vmor %vm4804, %vm4805
      %v4807 = vsel %vm4806, %v4799, %v4803
      %v4808 = vand.u32 2147483647, %v4585
      %vm4809 = vcmp.eq.f32.partialorder %v4808, 8.507059e+37
      %v4810 = vand.u32 %v4585, 2147483648
      %v4811 = vor.u32 1.1754944e-38, %v4810
      %v4812 = vsel %vm4809, %v4811, %v4807
      %v4813 = vmul.f32 1.0, %v4812
      %v4814 = vrcp.pop %v4586
      %v4815 = vmul.f32 %v4586, %v4814
      %v4816 = vsub.f32 1.0, %v4815
      %v4817 = vmul.f32 %v4814, %v4816
      %v4818 = vadd.f32 %v4814, %v4817
      %vm4819 = vweird.f32 %v4586
      %vm4820 = vweird.f32 %v4814
      %vm4821 = vmor %vm4819, %vm4820
      %v4822 = vsel %vm4821, %v4814, %v4818
      %v4823 = vand.u32 2147483647, %v4586
      %vm4824 = vcmp.eq.f32.partialorder %v4823, 8.507059e+37
      %v4825 = vand.u32 %v4586, 2147483648
      %v4826 = vor.u32 1.1754944e-38, %v4825
      %v4827 = vsel %vm4824, %v4826, %v4822
      %v4828 = vmul.f32 1.0, %v4827
      %v4829 = vrcp.pop %v4587
      %v4830 = vmul.f32 %v4587, %v4829
      %v4831 = vsub.f32 1.0, %v4830
      %v4832 = vmul.f32 %v4829, %v4831
      %v4833 = vadd.f32 %v4829, %v4832
      %vm4834 = vweird.f32 %v4587
      %vm4835 = vweird.f32 %v4829
      %vm4836 = vmor %vm4834, %vm4835
      %v4837 = vsel %vm4836, %v4829, %v4833
      %v4838 = vand.u32 2147483647, %v4587
      %vm4839 = vcmp.eq.f32.partialorder %v4838, 8.507059e+37
      %v4840 = vand.u32 %v4587, 2147483648
      %v4841 = vor.u32 1.1754944e-38, %v4840
      %v4842 = vsel %vm4839, %v4841, %v4837
      %v4843 = vmul.f32 1.0, %v4842
      %v4844 = vrcp.pop %v4588
      %v4845 = vmul.f32 %v4588, %v4844
      %v4846 = vsub.f32 1.0, %v4845
      %v4847 = vmul.f32 %v4844, %v4846
      %v4848 = vadd.f32 %v4844, %v4847
      %vm4849 = vweird.f32 %v4588
      %vm4850 = vweird.f32 %v4844
      %vm4851 = vmor %vm4849, %vm4850
      %v4852 = vsel %vm4851, %v4844, %v4848
      %v4853 = vand.u32 2147483647, %v4588
      %vm4854 = vcmp.eq.f32.partialorder %v4853, 8.507059e+37
      %v4855 = vand.u32 %v4588, 2147483648
      %v4856 = vor.u32 1.1754944e-38, %v4855
      %v4857 = vsel %vm4854, %v4856, %v4852
      %v4858 = vmul.f32 1.0, %v4857
      %v4859 = vrcp.pop %v4589
      %v4860 = vmul.f32 %v4589, %v4859
      %v4861 = vsub.f32 1.0, %v4860
      %v4862 = vmul.f32 %v4859, %v4861
      %v4863 = vadd.f32 %v4859, %v4862
      %vm4864 = vweird.f32 %v4589
      %vm4865 = vweird.f32 %v4859
      %vm4866 = vmor %vm4864, %vm4865
      %v4867 = vsel %vm4866, %v4859, %v4863
      %v4868 = vand.u32 2147483647, %v4589
      %vm4869 = vcmp.eq.f32.partialorder %v4868, 8.507059e+37
      %v4870 = vand.u32 %v4589, 2147483648
      %v4871 = vor.u32 1.1754944e-38, %v4870
      %v4872 = vsel %vm4869, %v4871, %v4867
      %v4873 = vmul.f32 1.0, %v4872
      %v4874 = vrcp.pop %v4590
      %v4875 = vmul.f32 %v4590, %v4874
      %v4876 = vsub.f32 1.0, %v4875
      %v4877 = vmul.f32 %v4874, %v4876
      %v4878 = vadd.f32 %v4874, %v4877
      %vm4879 = vweird.f32 %v4590
      %vm4880 = vweird.f32 %v4874
      %vm4881 = vmor %vm4879, %vm4880
      %v4882 = vsel %vm4881, %v4874, %v4878
      %v4883 = vand.u32 2147483647, %v4590
      %vm4884 = vcmp.eq.f32.partialorder %v4883, 8.507059e+37
      %v4885 = vand.u32 %v4590, 2147483648
      %v4886 = vor.u32 1.1754944e-38, %v4885
      %v4887 = vsel %vm4884, %v4886, %v4882
      %v4888 = vmul.f32 1.0, %v4887
      %v4889 = vrcp.pop %v4591
      %v4890 = vmul.f32 %v4591, %v4889
      %v4891 = vsub.f32 1.0, %v4890
      %v4892 = vmul.f32 %v4889, %v4891
      %v4893 = vadd.f32 %v4889, %v4892
      %vm4894 = vweird.f32 %v4591
      %vm4895 = vweird.f32 %v4889
      %vm4896 = vmor %vm4894, %vm4895
      %v4897 = vsel %vm4896, %v4889, %v4893
      %v4898 = vand.u32 2147483647, %v4591
      %vm4899 = vcmp.eq.f32.partialorder %v4898, 8.507059e+37
      %v4900 = vand.u32 %v4591, 2147483648
      %v4901 = vor.u32 1.1754944e-38, %v4900
      %v4902 = vsel %vm4899, %v4901, %v4897
      %v4903 = vmul.f32 1.0, %v4902
      %v4904 = vrcp.pop %v4592
      %v4905 = vmul.f32 %v4592, %v4904
      %v4906 = vsub.f32 1.0, %v4905
      %v4907 = vmul.f32 %v4904, %v4906
      %v4908 = vadd.f32 %v4904, %v4907
      %vm4909 = vweird.f32 %v4592
      %vm4910 = vweird.f32 %v4904
      %vm4911 = vmor %vm4909, %vm4910
      %v4912 = vsel %vm4911, %v4904, %v4908
      %v4913 = vand.u32 2147483647, %v4592
      %vm4914 = vcmp.eq.f32.partialorder %v4913, 8.507059e+37
      %v4915 = vand.u32 %v4592, 2147483648
      %v4916 = vor.u32 1.1754944e-38, %v4915
      %v4917 = vsel %vm4914, %v4916, %v4912
      %v4918 = vmul.f32 1.0, %v4917
      %v4919 = vrcp.pop %v4593
      %v4920 = vmul.f32 %v4593, %v4919
      %v4921 = vsub.f32 1.0, %v4920
      %v4922 = vmul.f32 %v4919, %v4921
      %v4923 = vadd.f32 %v4919, %v4922
      %vm4924 = vweird.f32 %v4593
      %vm4925 = vweird.f32 %v4919
      %vm4926 = vmor %vm4924, %vm4925
      %v4927 = vsel %vm4926, %v4919, %v4923
      %v4928 = vand.u32 2147483647, %v4593
      %vm4929 = vcmp.eq.f32.partialorder %v4928, 8.507059e+37
      %v4930 = vand.u32 %v4593, 2147483648
      %v4931 = vor.u32 1.1754944e-38, %v4930
      %v4932 = vsel %vm4929, %v4931, %v4927
      %v4933 = vmul.f32 1.0, %v4932
      %v4934 = vrcp.pop %v4594
      %v4935 = vmul.f32 %v4594, %v4934
      %v4936 = vsub.f32 1.0, %v4935
      %v4937 = vmul.f32 %v4934, %v4936
      %v4938 = vadd.f32 %v4934, %v4937
      %vm4939 = vweird.f32 %v4594
      %vm4940 = vweird.f32 %v4934
      %vm4941 = vmor %vm4939, %vm4940
      %v4942 = vsel %vm4941, %v4934, %v4938
      %v4943 = vand.u32 2147483647, %v4594
      %vm4944 = vcmp.eq.f32.partialorder %v4943, 8.507059e+37
      %v4945 = vand.u32 %v4594, 2147483648
      %v4946 = vor.u32 1.1754944e-38, %v4945
      %v4947 = vsel %vm4944, %v4946, %v4942
      %v4948 = vmul.f32 1.0, %v4947
      %v4949 = vrcp.pop %v4595
      %v4950 = vmul.f32 %v4595, %v4949
      %v4951 = vsub.f32 1.0, %v4950
      %v4952 = vmul.f32 %v4949, %v4951
      %v4953 = vadd.f32 %v4949, %v4952
      %vm4954 = vweird.f32 %v4595
      %vm4955 = vweird.f32 %v4949
      %vm4956 = vmor %vm4954, %vm4955
      %v4957 = vsel %vm4956, %v4949, %v4953
      %v4958 = vand.u32 2147483647, %v4595
      %vm4959 = vcmp.eq.f32.partialorder %v4958, 8.507059e+37
      %v4960 = vand.u32 %v4595, 2147483648
      %v4961 = vor.u32 1.1754944e-38, %v4960
      %v4962 = vsel %vm4959, %v4961, %v4957
      %v4963 = vmul.f32 1.0, %v4962
      %v4964 = vrcp.pop %v4596
      %v4965 = vmul.f32 %v4596, %v4964
      %v4966 = vsub.f32 1.0, %v4965
      %v4967 = vmul.f32 %v4964, %v4966
      %v4968 = vadd.f32 %v4964, %v4967
      %vm4969 = vweird.f32 %v4596
      %vm4970 = vweird.f32 %v4964
      %vm4971 = vmor %vm4969, %vm4970
      %v4972 = vsel %vm4971, %v4964, %v4968
      %v4973 = vand.u32 2147483647, %v4596
      %vm4974 = vcmp.eq.f32.partialorder %v4973, 8.507059e+37
      %v4975 = vand.u32 %v4596, 2147483648
      %v4976 = vor.u32 1.1754944e-38, %v4975
      %v4977 = vsel %vm4974, %v4976, %v4972
      %v4978 = vmul.f32 1.0, %v4977
      %v4979 = vrcp.pop %v4597
      %v4980 = vmul.f32 %v4597, %v4979
      %v4981 = vsub.f32 1.0, %v4980
      %v4982 = vmul.f32 %v4979, %v4981
      %v4983 = vadd.f32 %v4979, %v4982
      %vm4984 = vweird.f32 %v4597
      %vm4985 = vweird.f32 %v4979
      %vm4986 = vmor %vm4984, %vm4985
      %v4987 = vsel %vm4986, %v4979, %v4983
      %v4988 = vand.u32 2147483647, %v4597
      %vm4989 = vcmp.eq.f32.partialorder %v4988, 8.507059e+37
      %v4990 = vand.u32 %v4597, 2147483648
      %v4991 = vor.u32 1.1754944e-38, %v4990
      %v4992 = vsel %vm4989, %v4991, %v4987
      %v4993 = vmul.f32 1.0, %v4992
      %v4994 = vrcp.pop %v4598
      %v4995 = vmul.f32 %v4598, %v4994
      %v4996 = vsub.f32 1.0, %v4995
      %v4997 = vmul.f32 %v4994, %v4996
      %v4998 = vadd.f32 %v4994, %v4997
      %vm4999 = vweird.f32 %v4598
      %vm5000 = vweird.f32 %v4994
      %vm5001 = vmor %vm4999, %vm5000
      %v5002 = vsel %vm5001, %v4994, %v4998
      %v5003 = vand.u32 2147483647, %v4598
      %vm5004 = vcmp.eq.f32.partialorder %v5003, 8.507059e+37
      %v5005 = vand.u32 %v4598, 2147483648
      %v5006 = vor.u32 1.1754944e-38, %v5005
      %v5007 = vsel %vm5004, %v5006, %v5002
      %v5008 = vmul.f32 1.0, %v5007
      %v5009 = vrcp.pop %v4599
      %v5010 = vmul.f32 %v4599, %v5009
      %v5011 = vsub.f32 1.0, %v5010
      %v5012 = vmul.f32 %v5009, %v5011
      %v5013 = vadd.f32 %v5009, %v5012
      %vm5014 = vweird.f32 %v4599
      %vm5015 = vweird.f32 %v5009
      %vm5016 = vmor %vm5014, %vm5015
      %v5017 = vsel %vm5016, %v5009, %v5013
      %v5018 = vand.u32 2147483647, %v4599
      %vm5019 = vcmp.eq.f32.partialorder %v5018, 8.507059e+37
      %v5020 = vand.u32 %v4599, 2147483648
      %v5021 = vor.u32 1.1754944e-38, %v5020
      %v5022 = vsel %vm5019, %v5021, %v5017
      %v5023 = vmul.f32 1.0, %v5022
      %v5024 = vrcp.pop %v4600
      %v5025 = vmul.f32 %v4600, %v5024
      %v5026 = vsub.f32 1.0, %v5025
      %v5027 = vmul.f32 %v5024, %v5026
      %v5028 = vadd.f32 %v5024, %v5027
      %vm5029 = vweird.f32 %v4600
      %vm5030 = vweird.f32 %v5024
      %vm5031 = vmor %vm5029, %vm5030
      %v5032 = vsel %vm5031, %v5024, %v5028
      %v5033 = vand.u32 2147483647, %v4600
      %vm5034 = vcmp.eq.f32.partialorder %v5033, 8.507059e+37
      %v5035 = vand.u32 %v4600, 2147483648
      %v5036 = vor.u32 1.1754944e-38, %v5035
      %v5037 = vsel %vm5034, %v5036, %v5032
      %v5038 = vmul.f32 1.0, %v5037
      %v5039 = vrcp.pop %v4601
      %v5040 = vmul.f32 %v4601, %v5039
      %v5041 = vsub.f32 1.0, %v5040
      %v5042 = vmul.f32 %v5039, %v5041
      %v5043 = vadd.f32 %v5039, %v5042
      %vm5044 = vweird.f32 %v4601
      %vm5045 = vweird.f32 %v5039
      %vm5046 = vmor %vm5044, %vm5045
      %v5047 = vsel %vm5046, %v5039, %v5043
      %v5048 = vand.u32 2147483647, %v4601
      %vm5049 = vcmp.eq.f32.partialorder %v5048, 8.507059e+37
      %v5050 = vand.u32 %v4601, 2147483648
      %v5051 = vor.u32 1.1754944e-38, %v5050
      %v5052 = vsel %vm5049, %v5051, %v5047
      %v5053 = vmul.f32 1.0, %v5052
      %v5054 = vrcp.pop %v4602
      %v5055 = vmul.f32 %v4602, %v5054
      %v5056 = vsub.f32 1.0, %v5055
      %v5057 = vmul.f32 %v5054, %v5056
      %v5058 = vadd.f32 %v5054, %v5057
      %vm5059 = vweird.f32 %v4602
      %vm5060 = vweird.f32 %v5054
      %vm5061 = vmor %vm5059, %vm5060
      %v5062 = vsel %vm5061, %v5054, %v5058
      %v5063 = vand.u32 2147483647, %v4602
      %vm5064 = vcmp.eq.f32.partialorder %v5063, 8.507059e+37
      %v5065 = vand.u32 %v4602, 2147483648
      %v5066 = vor.u32 1.1754944e-38, %v5065
      %v5067 = vsel %vm5064, %v5066, %v5062
      %v5068 = vmul.f32 1.0, %v5067
      %v5069 = vrcp.pop %v4603
      %v5070 = vmul.f32 %v4603, %v5069
      %v5071 = vsub.f32 1.0, %v5070
      %v5072 = vmul.f32 %v5069, %v5071
      %v5073 = vadd.f32 %v5069, %v5072
      %vm5074 = vweird.f32 %v4603
      %vm5075 = vweird.f32 %v5069
      %vm5076 = vmor %vm5074, %vm5075
      %v5077 = vsel %vm5076, %v5069, %v5073
      %v5078 = vand.u32 2147483647, %v4603
      %vm5079 = vcmp.eq.f32.partialorder %v5078, 8.507059e+37
      %v5080 = vand.u32 %v4603, 2147483648
      %v5081 = vor.u32 1.1754944e-38, %v5080
      %v5082 = vsel %vm5079, %v5081, %v5077
      %v5083 = vmul.f32 1.0, %v5082
      %v5084 = vmul.f32 %v4444, %v4618
      %v5085 = vmul.f32 %v4445, %v4633
      %v5086 = vmul.f32 %v4446, %v4648
      %v5087 = vmul.f32 %v4447, %v4663
      %v5088 = vmul.f32 %v4448, %v4678
      %v5089 = vmul.f32 %v4449, %v4693
      %v5090 = vmul.f32 %v4450, %v4708
      %v5091 = vmul.f32 %v4451, %v4723
      %v5092 = vmul.f32 %v4452, %v4738
      %v5093 = vmul.f32 %v4453, %v4753
      %v5094 = vmul.f32 %v4454, %v4768
      %v5095 = vmul.f32 %v4455, %v4783
      %v5096 = vmul.f32 %v4456, %v4798
      %v5097 = vmul.f32 %v4457, %v4813
      %v5098 = vmul.f32 %v4458, %v4828
      %v5099 = vmul.f32 %v4459, %v4843
      %v5100 = vmul.f32 %v4460, %v4858
      %v5101 = vmul.f32 %v4461, %v4873
      %v5102 = vmul.f32 %v4462, %v4888
      %v5103 = vmul.f32 %v4463, %v4903
      %v5104 = vmul.f32 %v4464, %v4918
      %v5105 = vmul.f32 %v4465, %v4933
      %v5106 = vmul.f32 %v4466, %v4948
      %v5107 = vmul.f32 %v4467, %v4963
      %v5108 = vmul.f32 %v4468, %v4978
      %v5109 = vmul.f32 %v4469, %v4993
      %v5110 = vmul.f32 %v4470, %v5008
      %v5111 = vmul.f32 %v4471, %v5023
      %v5112 = vmul.f32 %v4472, %v5038
      %v5113 = vmul.f32 %v4473, %v5053
      %v5114 = vmul.f32 %v4474, %v5068
      %v5115 = vmul.f32 %v4475, %v5083
      %v5116 = vpack.c.bf16 %v5085, %v5084
      %v5117 = vpack.c.bf16 %v5087, %v5086
      %v5118 = vpack.c.bf16 %v5089, %v5088
      %v5119 = vpack.c.bf16 %v5091, %v5090
      %v5120 = vpack.c.bf16 %v5093, %v5092
      %v5121 = vpack.c.bf16 %v5095, %v5094
      %v5122 = vpack.c.bf16 %v5097, %v5096
      %v5123 = vpack.c.bf16 %v5099, %v5098
      %v5124 = vpack.c.bf16 %v5101, %v5100
      %v5125 = vpack.c.bf16 %v5103, %v5102
      %v5126 = vpack.c.bf16 %v5105, %v5104
      %v5127 = vpack.c.bf16 %v5107, %v5106
      %v5128 = vpack.c.bf16 %v5109, %v5108
      %v5129 = vpack.c.bf16 %v5111, %v5110
      %v5130 = vpack.c.bf16 %v5113, %v5112
      %v5131 = vpack.c.bf16 %v5115, %v5114
      %s5132 = scalar_lea.vmem %s2, 64
      %v5133 = vld [vmem:[%s5132] sm:$0xf]
      %v5134 = vld [vmem:[%s5132 + $0x4] sm:$0xf]
      %v5135 = vld [vmem:[%s5132 + $0x8] sm:$0xf]
      %v5136 = vld [vmem:[%s5132 + $0xc] sm:$0xf]
      %v5137 = vld [vmem:[%s5132 + $0x10] sm:$0xf]
      %v5138 = vld [vmem:[%s5132 + $0x14] sm:$0xf]
      %v5139 = vld [vmem:[%s5132 + $0x18] sm:$0xf]
      %v5140 = vld [vmem:[%s5132 + $0x1c] sm:$0xf]
      %v5141 = vld [vmem:[%s5132 + $0x20] sm:$0xf]
      %v5142 = vld [vmem:[%s5132 + $0x24] sm:$0xf]
      %v5143 = vld [vmem:[%s5132 + $0x28] sm:$0xf]
      %v5144 = vld [vmem:[%s5132 + $0x2c] sm:$0xf]
      %v5145 = vld [vmem:[%s5132 + $0x30] sm:$0xf]
      %v5146 = vld [vmem:[%s5132 + $0x34] sm:$0xf]
      %v5147 = vld [vmem:[%s5132 + $0x38] sm:$0xf]
      %v5148 = vld [vmem:[%s5132 + $0x3c] sm:$0xf]
      %v5165 = vunpack.c.l.b16 %v5133
      %v5166 = vunpack.c.l.b16 %v5134
      %v5167 = vunpack.c.l.b16 %v5135
      %v5168 = vunpack.c.l.b16 %v5136
      %v5169 = vunpack.c.l.b16 %v5137
      %v5170 = vunpack.c.l.b16 %v5138
      %v5171 = vunpack.c.l.b16 %v5139
      %v5172 = vunpack.c.l.b16 %v5140
      %v5173 = vunpack.c.l.b16 %v5141
      %v5174 = vunpack.c.l.b16 %v5142
      %v5175 = vunpack.c.l.b16 %v5143
      %v5176 = vunpack.c.l.b16 %v5144
      %v5177 = vunpack.c.l.b16 %v5145
      %v5178 = vunpack.c.l.b16 %v5146
      %v5179 = vunpack.c.l.b16 %v5147
      %v5180 = vunpack.c.l.b16 %v5148
      %v5181 = vpack.c.b16 %v5166, %v5165
      %v5182 = vpack.c.b16 %v5168, %v5167
      %v5183 = vpack.c.b16 %v5170, %v5169
      %v5184 = vpack.c.b16 %v5172, %v5171
      %v5185 = vpack.c.b16 %v5174, %v5173
      %v5186 = vpack.c.b16 %v5176, %v5175
      %v5187 = vpack.c.b16 %v5178, %v5177
      %v5188 = vpack.c.b16 %v5180, %v5179
      %5197 = vmatpush.bf16.msra.mxu0 %v5188
      %5198 = vmatpush.bf16.msra.mxu0 %v5187
      %5199 = vmatpush.bf16.msra.mxu0 %v5186
      %5200 = vmatpush.bf16.msra.mxu0 %v5185
      %5201 = vmatpush.bf16.msra.mxu0 %v5184
      %5202 = vmatpush.bf16.msra.mxu0 %v5183
      %5203 = vmatpush.bf16.msra.mxu0 %v5182
      %5204 = vmatpush.bf16.msra.mxu0 %v5181
      %5205 = vmatmul.bf16.gmra.mxu0 %v5116
      %v5206 = vpop.f32.mrf.mxu0
      %v5207 = vadd.f32 0.0, %v5206
      %v5208 = vpop.f32.mrf.mxu0
      %v5209 = vadd.f32 0.0, %v5208
      %5210 = vmatmul.bf16.gmra.mxu0 %v5117
      %v5211 = vpop.f32.mrf.mxu0
      %v5212 = vadd.f32 0.0, %v5211
      %v5213 = vpop.f32.mrf.mxu0
      %v5214 = vadd.f32 0.0, %v5213
      %5215 = vmatmul.bf16.gmra.mxu0 %v5118
      %v5216 = vpop.f32.mrf.mxu0
      %v5217 = vadd.f32 0.0, %v5216
      %v5218 = vpop.f32.mrf.mxu0
      %v5219 = vadd.f32 0.0, %v5218
      %5220 = vmatmul.bf16.gmra.mxu0 %v5119
      %v5221 = vpop.f32.mrf.mxu0
      %v5222 = vadd.f32 0.0, %v5221
      %v5223 = vpop.f32.mrf.mxu0
      %v5224 = vadd.f32 0.0, %v5223
      %5225 = vmatmul.bf16.gmra.mxu0 %v5120
      %v5226 = vpop.f32.mrf.mxu0
      %v5227 = vadd.f32 0.0, %v5226
      %v5228 = vpop.f32.mrf.mxu0
      %v5229 = vadd.f32 0.0, %v5228
      %5230 = vmatmul.bf16.gmra.mxu0 %v5121
      %v5231 = vpop.f32.mrf.mxu0
      %v5232 = vadd.f32 0.0, %v5231
      %v5233 = vpop.f32.mrf.mxu0
      %v5234 = vadd.f32 0.0, %v5233
      %5235 = vmatmul.bf16.gmra.mxu0 %v5122
      %v5236 = vpop.f32.mrf.mxu0
      %v5237 = vadd.f32 0.0, %v5236
      %v5238 = vpop.f32.mrf.mxu0
      %v5239 = vadd.f32 0.0, %v5238
      %5240 = vmatmul.bf16.gmra.mxu0 %v5123
      %v5241 = vpop.f32.mrf.mxu0
      %v5242 = vadd.f32 0.0, %v5241
      %v5243 = vpop.f32.mrf.mxu0
      %v5244 = vadd.f32 0.0, %v5243
      %5245 = vmatmul.bf16.gmra.mxu0 %v5124
      %v5246 = vpop.f32.mrf.mxu0
      %v5247 = vadd.f32 0.0, %v5246
      %v5248 = vpop.f32.mrf.mxu0
      %v5249 = vadd.f32 0.0, %v5248
      %5250 = vmatmul.bf16.gmra.mxu0 %v5125
      %v5251 = vpop.f32.mrf.mxu0
      %v5252 = vadd.f32 0.0, %v5251
      %v5253 = vpop.f32.mrf.mxu0
      %v5254 = vadd.f32 0.0, %v5253
      %5255 = vmatmul.bf16.gmra.mxu0 %v5126
      %v5256 = vpop.f32.mrf.mxu0
      %v5257 = vadd.f32 0.0, %v5256
      %v5258 = vpop.f32.mrf.mxu0
      %v5259 = vadd.f32 0.0, %v5258
      %5260 = vmatmul.bf16.gmra.mxu0 %v5127
      %v5261 = vpop.f32.mrf.mxu0
      %v5262 = vadd.f32 0.0, %v5261
      %v5263 = vpop.f32.mrf.mxu0
      %v5264 = vadd.f32 0.0, %v5263
      %5265 = vmatmul.bf16.gmra.mxu0 %v5128
      %v5266 = vpop.f32.mrf.mxu0
      %v5267 = vadd.f32 0.0, %v5266
      %v5268 = vpop.f32.mrf.mxu0
      %v5269 = vadd.f32 0.0, %v5268
      %5270 = vmatmul.bf16.gmra.mxu0 %v5129
      %v5271 = vpop.f32.mrf.mxu0
      %v5272 = vadd.f32 0.0, %v5271
      %v5273 = vpop.f32.mrf.mxu0
      %v5274 = vadd.f32 0.0, %v5273
      %5275 = vmatmul.bf16.gmra.mxu0 %v5130
      %v5276 = vpop.f32.mrf.mxu0
      %v5277 = vadd.f32 0.0, %v5276
      %v5278 = vpop.f32.mrf.mxu0
      %v5279 = vadd.f32 0.0, %v5278
      %5280 = vmatmul.bf16.gmra.mxu0 %v5131
      %v5281 = vpop.f32.mrf.mxu0
      %v5282 = vadd.f32 0.0, %v5281
      %v5283 = vpop.f32.mrf.mxu0
      %v5284 = vadd.f32 0.0, %v5283
      %5285 = vdwg.mxu0
      %v5286 = vld [vmem:[%s5 + $0x2] sm:$0x1]
      %v5287 = vperm.slane %v5286, 0
      %v5288 = vmul.f32 %v5207, %v5287
      %v5289 = vmul.f32 %v5209, %v5287
      %v5290 = vmul.f32 %v5212, %v5287
      %v5291 = vmul.f32 %v5214, %v5287
      %v5292 = vmul.f32 %v5217, %v5287
      %v5293 = vmul.f32 %v5219, %v5287
      %v5294 = vmul.f32 %v5222, %v5287
      %v5295 = vmul.f32 %v5224, %v5287
      %v5296 = vmul.f32 %v5227, %v5287
      %v5297 = vmul.f32 %v5229, %v5287
      %v5298 = vmul.f32 %v5232, %v5287
      %v5299 = vmul.f32 %v5234, %v5287
      %v5300 = vmul.f32 %v5237, %v5287
      %v5301 = vmul.f32 %v5239, %v5287
      %v5302 = vmul.f32 %v5242, %v5287
      %v5303 = vmul.f32 %v5244, %v5287
      %v5304 = vmul.f32 %v5247, %v5287
      %v5305 = vmul.f32 %v5249, %v5287
      %v5306 = vmul.f32 %v5252, %v5287
      %v5307 = vmul.f32 %v5254, %v5287
      %v5308 = vmul.f32 %v5257, %v5287
      %v5309 = vmul.f32 %v5259, %v5287
      %v5310 = vmul.f32 %v5262, %v5287
      %v5311 = vmul.f32 %v5264, %v5287
      %v5312 = vmul.f32 %v5267, %v5287
      %v5313 = vmul.f32 %v5269, %v5287
      %v5314 = vmul.f32 %v5272, %v5287
      %v5315 = vmul.f32 %v5274, %v5287
      %v5316 = vmul.f32 %v5277, %v5287
      %v5317 = vmul.f32 %v5279, %v5287
      %v5318 = vmul.f32 %v5282, %v5287
      %v5319 = vmul.f32 %v5284, %v5287
      %v5320 = vld [vmem:[%s6 + $0x2] sm:$0x1]
      %v5321 = vperm.slane %v5320, 0
      %v5322 = vadd.f32 %v5288, %v5321
      %v5323 = vadd.f32 %v5289, %v5321
      %v5324 = vadd.f32 %v5290, %v5321
      %v5325 = vadd.f32 %v5291, %v5321
      %v5326 = vadd.f32 %v5292, %v5321
      %v5327 = vadd.f32 %v5293, %v5321
      %v5328 = vadd.f32 %v5294, %v5321
      %v5329 = vadd.f32 %v5295, %v5321
      %v5330 = vadd.f32 %v5296, %v5321
      %v5331 = vadd.f32 %v5297, %v5321
      %v5332 = vadd.f32 %v5298, %v5321
      %v5333 = vadd.f32 %v5299, %v5321
      %v5334 = vadd.f32 %v5300, %v5321
      %v5335 = vadd.f32 %v5301, %v5321
      %v5336 = vadd.f32 %v5302, %v5321
      %v5337 = vadd.f32 %v5303, %v5321
      %v5338 = vadd.f32 %v5304, %v5321
      %v5339 = vadd.f32 %v5305, %v5321
      %v5340 = vadd.f32 %v5306, %v5321
      %v5341 = vadd.f32 %v5307, %v5321
      %v5342 = vadd.f32 %v5308, %v5321
      %v5343 = vadd.f32 %v5309, %v5321
      %v5344 = vadd.f32 %v5310, %v5321
      %v5345 = vadd.f32 %v5311, %v5321
      %v5346 = vadd.f32 %v5312, %v5321
      %v5347 = vadd.f32 %v5313, %v5321
      %v5348 = vadd.f32 %v5314, %v5321
      %v5349 = vadd.f32 %v5315, %v5321
      %v5350 = vadd.f32 %v5316, %v5321
      %v5351 = vadd.f32 %v5317, %v5321
      %v5352 = vadd.f32 %v5318, %v5321
      %v5353 = vadd.f32 %v5319, %v5321
      %v5354 = vadd.f32 %v1242, %v5322
      %v5355 = vadd.f32 %v1243, %v5323
      %v5356 = vadd.f32 %v1244, %v5324
      %v5357 = vadd.f32 %v1245, %v5325
      %v5358 = vadd.f32 %v1246, %v5326
      %v5359 = vadd.f32 %v1247, %v5327
      %v5360 = vadd.f32 %v1248, %v5328
      %v5361 = vadd.f32 %v1249, %v5329
      %v5362 = vadd.f32 %v1250, %v5330
      %v5363 = vadd.f32 %v1251, %v5331
      %v5364 = vadd.f32 %v1252, %v5332
      %v5365 = vadd.f32 %v1253, %v5333
      %v5366 = vadd.f32 %v1254, %v5334
      %v5367 = vadd.f32 %v1255, %v5335
      %v5368 = vadd.f32 %v1256, %v5336
      %v5369 = vadd.f32 %v1257, %v5337
      %v5370 = vadd.f32 %v1258, %v5338
      %v5371 = vadd.f32 %v1259, %v5339
      %v5372 = vadd.f32 %v1260, %v5340
      %v5373 = vadd.f32 %v1261, %v5341
      %v5374 = vadd.f32 %v1262, %v5342
      %v5375 = vadd.f32 %v1263, %v5343
      %v5376 = vadd.f32 %v1264, %v5344
      %v5377 = vadd.f32 %v1265, %v5345
      %v5378 = vadd.f32 %v1266, %v5346
      %v5379 = vadd.f32 %v1267, %v5347
      %v5380 = vadd.f32 %v1268, %v5348
      %v5381 = vadd.f32 %v1269, %v5349
      %v5382 = vadd.f32 %v1270, %v5350
      %v5383 = vadd.f32 %v1271, %v5351
      %v5384 = vadd.f32 %v1272, %v5352
      %v5385 = vadd.f32 %v1273, %v5353
      %v5386 = vpack.c.bf16 %v5355, %v5354
      %v5387 = vpack.c.bf16 %v5357, %v5356
      %v5388 = vpack.c.bf16 %v5359, %v5358
      %v5389 = vpack.c.bf16 %v5361, %v5360
      %v5390 = vpack.c.bf16 %v5363, %v5362
      %v5391 = vpack.c.bf16 %v5365, %v5364
      %v5392 = vpack.c.bf16 %v5367, %v5366
      %v5393 = vpack.c.bf16 %v5369, %v5368
      %v5394 = vpack.c.bf16 %v5371, %v5370
      %v5395 = vpack.c.bf16 %v5373, %v5372
      %v5396 = vpack.c.bf16 %v5375, %v5374
      %v5397 = vpack.c.bf16 %v5377, %v5376
      %v5398 = vpack.c.bf16 %v5379, %v5378
      %v5399 = vpack.c.bf16 %v5381, %v5380
      %v5400 = vpack.c.bf16 %v5383, %v5382
      %v5401 = vpack.c.bf16 %v5385, %v5384
      %s5402 = scalar_lea.vmem %s2, 128
      %v5403 = vld [vmem:[%s5402] sm:$0xf]
      %v5404 = vld [vmem:[%s5402 + $0x4] sm:$0xf]
      %v5405 = vld [vmem:[%s5402 + $0x8] sm:$0xf]
      %v5406 = vld [vmem:[%s5402 + $0xc] sm:$0xf]
      %v5407 = vld [vmem:[%s5402 + $0x10] sm:$0xf]
      %v5408 = vld [vmem:[%s5402 + $0x14] sm:$0xf]
      %v5409 = vld [vmem:[%s5402 + $0x18] sm:$0xf]
      %v5410 = vld [vmem:[%s5402 + $0x1c] sm:$0xf]
      %v5411 = vld [vmem:[%s5402 + $0x20] sm:$0xf]
      %v5412 = vld [vmem:[%s5402 + $0x24] sm:$0xf]
      %v5413 = vld [vmem:[%s5402 + $0x28] sm:$0xf]
      %v5414 = vld [vmem:[%s5402 + $0x2c] sm:$0xf]
      %v5415 = vld [vmem:[%s5402 + $0x30] sm:$0xf]
      %v5416 = vld [vmem:[%s5402 + $0x34] sm:$0xf]
      %v5417 = vld [vmem:[%s5402 + $0x38] sm:$0xf]
      %v5418 = vld [vmem:[%s5402 + $0x3c] sm:$0xf]
      %v5435 = vunpack.c.l.b16 %v5403
      %v5436 = vunpack.c.l.b16 %v5404
      %v5437 = vunpack.c.l.b16 %v5405
      %v5438 = vunpack.c.l.b16 %v5406
      %v5439 = vunpack.c.l.b16 %v5407
      %v5440 = vunpack.c.l.b16 %v5408
      %v5441 = vunpack.c.l.b16 %v5409
      %v5442 = vunpack.c.l.b16 %v5410
      %v5443 = vunpack.c.l.b16 %v5411
      %v5444 = vunpack.c.l.b16 %v5412
      %v5445 = vunpack.c.l.b16 %v5413
      %v5446 = vunpack.c.l.b16 %v5414
      %v5447 = vunpack.c.l.b16 %v5415
      %v5448 = vunpack.c.l.b16 %v5416
      %v5449 = vunpack.c.l.b16 %v5417
      %v5450 = vunpack.c.l.b16 %v5418
      %v5451 = vpack.c.b16 %v5436, %v5435
      %v5452 = vpack.c.b16 %v5438, %v5437
      %v5453 = vpack.c.b16 %v5440, %v5439
      %v5454 = vpack.c.b16 %v5442, %v5441
      %v5455 = vpack.c.b16 %v5444, %v5443
      %v5456 = vpack.c.b16 %v5446, %v5445
      %v5457 = vpack.c.b16 %v5448, %v5447
      %v5458 = vpack.c.b16 %v5450, %v5449
      %5467 = vmatpush.bf16.msra.mxu0 %v5458
      %5468 = vmatpush.bf16.msra.mxu0 %v5457
      %5469 = vmatpush.bf16.msra.mxu0 %v5456
      %5470 = vmatpush.bf16.msra.mxu0 %v5455
      %5471 = vmatpush.bf16.msra.mxu0 %v5454
      %5472 = vmatpush.bf16.msra.mxu0 %v5453
      %5473 = vmatpush.bf16.msra.mxu0 %v5452
      %5474 = vmatpush.bf16.msra.mxu0 %v5451
      %5475 = vmatmul.bf16.gmra.mxu0 %v5386
      %v5476 = vpop.f32.mrf.mxu0
      %v5477 = vadd.f32 0.0, %v5476
      %v5478 = vpop.f32.mrf.mxu0
      %v5479 = vadd.f32 0.0, %v5478
      %5480 = vmatmul.bf16.gmra.mxu0 %v5387
      %v5481 = vpop.f32.mrf.mxu0
      %v5482 = vadd.f32 0.0, %v5481
      %v5483 = vpop.f32.mrf.mxu0
      %v5484 = vadd.f32 0.0, %v5483
      %5485 = vmatmul.bf16.gmra.mxu0 %v5388
      %v5486 = vpop.f32.mrf.mxu0
      %v5487 = vadd.f32 0.0, %v5486
      %v5488 = vpop.f32.mrf.mxu0
      %v5489 = vadd.f32 0.0, %v5488
      %5490 = vmatmul.bf16.gmra.mxu0 %v5389
      %v5491 = vpop.f32.mrf.mxu0
      %v5492 = vadd.f32 0.0, %v5491
      %v5493 = vpop.f32.mrf.mxu0
      %v5494 = vadd.f32 0.0, %v5493
      %5495 = vmatmul.bf16.gmra.mxu0 %v5390
      %v5496 = vpop.f32.mrf.mxu0
      %v5497 = vadd.f32 0.0, %v5496
      %v5498 = vpop.f32.mrf.mxu0
      %v5499 = vadd.f32 0.0, %v5498
      %5500 = vmatmul.bf16.gmra.mxu0 %v5391
      %v5501 = vpop.f32.mrf.mxu0
      %v5502 = vadd.f32 0.0, %v5501
      %v5503 = vpop.f32.mrf.mxu0
      %v5504 = vadd.f32 0.0, %v5503
      %5505 = vmatmul.bf16.gmra.mxu0 %v5392
      %v5506 = vpop.f32.mrf.mxu0
      %v5507 = vadd.f32 0.0, %v5506
      %v5508 = vpop.f32.mrf.mxu0
      %v5509 = vadd.f32 0.0, %v5508
      %5510 = vmatmul.bf16.gmra.mxu0 %v5393
      %v5511 = vpop.f32.mrf.mxu0
      %v5512 = vadd.f32 0.0, %v5511
      %v5513 = vpop.f32.mrf.mxu0
      %v5514 = vadd.f32 0.0, %v5513
      %5515 = vmatmul.bf16.gmra.mxu0 %v5394
      %v5516 = vpop.f32.mrf.mxu0
      %v5517 = vadd.f32 0.0, %v5516
      %v5518 = vpop.f32.mrf.mxu0
      %v5519 = vadd.f32 0.0, %v5518
      %5520 = vmatmul.bf16.gmra.mxu0 %v5395
      %v5521 = vpop.f32.mrf.mxu0
      %v5522 = vadd.f32 0.0, %v5521
      %v5523 = vpop.f32.mrf.mxu0
      %v5524 = vadd.f32 0.0, %v5523
      %5525 = vmatmul.bf16.gmra.mxu0 %v5396
      %v5526 = vpop.f32.mrf.mxu0
      %v5527 = vadd.f32 0.0, %v5526
      %v5528 = vpop.f32.mrf.mxu0
      %v5529 = vadd.f32 0.0, %v5528
      %5530 = vmatmul.bf16.gmra.mxu0 %v5397
      %v5531 = vpop.f32.mrf.mxu0
      %v5532 = vadd.f32 0.0, %v5531
      %v5533 = vpop.f32.mrf.mxu0
      %v5534 = vadd.f32 0.0, %v5533
      %5535 = vmatmul.bf16.gmra.mxu0 %v5398
      %v5536 = vpop.f32.mrf.mxu0
      %v5537 = vadd.f32 0.0, %v5536
      %v5538 = vpop.f32.mrf.mxu0
      %v5539 = vadd.f32 0.0, %v5538
      %5540 = vmatmul.bf16.gmra.mxu0 %v5399
      %v5541 = vpop.f32.mrf.mxu0
      %v5542 = vadd.f32 0.0, %v5541
      %v5543 = vpop.f32.mrf.mxu0
      %v5544 = vadd.f32 0.0, %v5543
      %5545 = vmatmul.bf16.gmra.mxu0 %v5400
      %v5546 = vpop.f32.mrf.mxu0
      %v5547 = vadd.f32 0.0, %v5546
      %v5548 = vpop.f32.mrf.mxu0
      %v5549 = vadd.f32 0.0, %v5548
      %5550 = vmatmul.bf16.gmra.mxu0 %v5401
      %v5551 = vpop.f32.mrf.mxu0
      %v5552 = vadd.f32 0.0, %v5551
      %v5553 = vpop.f32.mrf.mxu0
      %v5554 = vadd.f32 0.0, %v5553
      %5555 = vdwg.mxu0
      %v5556 = vld [vmem:[%s5 + $0x3] sm:$0x1]
      %v5557 = vperm.slane %v5556, 0
      %v5558 = vmul.f32 %v5477, %v5557
      %v5559 = vmul.f32 %v5479, %v5557
      %v5560 = vmul.f32 %v5482, %v5557
      %v5561 = vmul.f32 %v5484, %v5557
      %v5562 = vmul.f32 %v5487, %v5557
      %v5563 = vmul.f32 %v5489, %v5557
      %v5564 = vmul.f32 %v5492, %v5557
      %v5565 = vmul.f32 %v5494, %v5557
      %v5566 = vmul.f32 %v5497, %v5557
      %v5567 = vmul.f32 %v5499, %v5557
      %v5568 = vmul.f32 %v5502, %v5557
      %v5569 = vmul.f32 %v5504, %v5557
      %v5570 = vmul.f32 %v5507, %v5557
      %v5571 = vmul.f32 %v5509, %v5557
      %v5572 = vmul.f32 %v5512, %v5557
      %v5573 = vmul.f32 %v5514, %v5557
      %v5574 = vmul.f32 %v5517, %v5557
      %v5575 = vmul.f32 %v5519, %v5557
      %v5576 = vmul.f32 %v5522, %v5557
      %v5577 = vmul.f32 %v5524, %v5557
      %v5578 = vmul.f32 %v5527, %v5557
      %v5579 = vmul.f32 %v5529, %v5557
      %v5580 = vmul.f32 %v5532, %v5557
      %v5581 = vmul.f32 %v5534, %v5557
      %v5582 = vmul.f32 %v5537, %v5557
      %v5583 = vmul.f32 %v5539, %v5557
      %v5584 = vmul.f32 %v5542, %v5557
      %v5585 = vmul.f32 %v5544, %v5557
      %v5586 = vmul.f32 %v5547, %v5557
      %v5587 = vmul.f32 %v5549, %v5557
      %v5588 = vmul.f32 %v5552, %v5557
      %v5589 = vmul.f32 %v5554, %v5557
      %v5590 = vld [vmem:[%s6 + $0x3] sm:$0x1]
      %v5591 = vperm.slane %v5590, 0
      %v5592 = vadd.f32 %v5558, %v5591
      %v5593 = vadd.f32 %v5559, %v5591
      %v5594 = vadd.f32 %v5560, %v5591
      %v5595 = vadd.f32 %v5561, %v5591
      %v5596 = vadd.f32 %v5562, %v5591
      %v5597 = vadd.f32 %v5563, %v5591
      %v5598 = vadd.f32 %v5564, %v5591
      %v5599 = vadd.f32 %v5565, %v5591
      %v5600 = vadd.f32 %v5566, %v5591
      %v5601 = vadd.f32 %v5567, %v5591
      %v5602 = vadd.f32 %v5568, %v5591
      %v5603 = vadd.f32 %v5569, %v5591
      %v5604 = vadd.f32 %v5570, %v5591
      %v5605 = vadd.f32 %v5571, %v5591
      %v5606 = vadd.f32 %v5572, %v5591
      %v5607 = vadd.f32 %v5573, %v5591
      %v5608 = vadd.f32 %v5574, %v5591
      %v5609 = vadd.f32 %v5575, %v5591
      %v5610 = vadd.f32 %v5576, %v5591
      %v5611 = vadd.f32 %v5577, %v5591
      %v5612 = vadd.f32 %v5578, %v5591
      %v5613 = vadd.f32 %v5579, %v5591
      %v5614 = vadd.f32 %v5580, %v5591
      %v5615 = vadd.f32 %v5581, %v5591
      %v5616 = vadd.f32 %v5582, %v5591
      %v5617 = vadd.f32 %v5583, %v5591
      %v5618 = vadd.f32 %v5584, %v5591
      %v5619 = vadd.f32 %v5585, %v5591
      %v5620 = vadd.f32 %v5586, %v5591
      %v5621 = vadd.f32 %v5587, %v5591
      %v5622 = vadd.f32 %v5588, %v5591
      %v5623 = vadd.f32 %v5589, %v5591
      %v5624 = vxor.u32 %v5592, 2147483648
      %v5625 = vxor.u32 %v5593, 2147483648
      %v5626 = vxor.u32 %v5594, 2147483648
      %v5627 = vxor.u32 %v5595, 2147483648
      %v5628 = vxor.u32 %v5596, 2147483648
      %v5629 = vxor.u32 %v5597, 2147483648
      %v5630 = vxor.u32 %v5598, 2147483648
      %v5631 = vxor.u32 %v5599, 2147483648
      %v5632 = vxor.u32 %v5600, 2147483648
      %v5633 = vxor.u32 %v5601, 2147483648
      %v5634 = vxor.u32 %v5602, 2147483648
      %v5635 = vxor.u32 %v5603, 2147483648
      %v5636 = vxor.u32 %v5604, 2147483648
      %v5637 = vxor.u32 %v5605, 2147483648
      %v5638 = vxor.u32 %v5606, 2147483648
      %v5639 = vxor.u32 %v5607, 2147483648
      %v5640 = vxor.u32 %v5608, 2147483648
      %v5641 = vxor.u32 %v5609, 2147483648
      %v5642 = vxor.u32 %v5610, 2147483648
      %v5643 = vxor.u32 %v5611, 2147483648
      %v5644 = vxor.u32 %v5612, 2147483648
      %v5645 = vxor.u32 %v5613, 2147483648
      %v5646 = vxor.u32 %v5614, 2147483648
      %v5647 = vxor.u32 %v5615, 2147483648
      %v5648 = vxor.u32 %v5616, 2147483648
      %v5649 = vxor.u32 %v5617, 2147483648
      %v5650 = vxor.u32 %v5618, 2147483648
      %v5651 = vxor.u32 %v5619, 2147483648
      %v5652 = vxor.u32 %v5620, 2147483648
      %v5653 = vxor.u32 %v5621, 2147483648
      %v5654 = vxor.u32 %v5622, 2147483648
      %v5655 = vxor.u32 %v5623, 2147483648
      %v5656 = vmul.f32 %v5624, 1.442695
      %v5657 = vpow.pop %v5656
      %v5658 = vmul.f32 %v5625, 1.442695
      %v5659 = vpow.pop %v5658
      %v5660 = vmul.f32 %v5626, 1.442695
      %v5661 = vpow.pop %v5660
      %v5662 = vmul.f32 %v5627, 1.442695
      %v5663 = vpow.pop %v5662
      %v5664 = vmul.f32 %v5628, 1.442695
      %v5665 = vpow.pop %v5664
      %v5666 = vmul.f32 %v5629, 1.442695
      %v5667 = vpow.pop %v5666
      %v5668 = vmul.f32 %v5630, 1.442695
      %v5669 = vpow.pop %v5668
      %v5670 = vmul.f32 %v5631, 1.442695
      %v5671 = vpow.pop %v5670
      %v5672 = vmul.f32 %v5632, 1.442695
      %v5673 = vpow.pop %v5672
      %v5674 = vmul.f32 %v5633, 1.442695
      %v5675 = vpow.pop %v5674
      %v5676 = vmul.f32 %v5634, 1.442695
      %v5677 = vpow.pop %v5676
      %v5678 = vmul.f32 %v5635, 1.442695
      %v5679 = vpow.pop %v5678
      %v5680 = vmul.f32 %v5636, 1.442695
      %v5681 = vpow.pop %v5680
      %v5682 = vmul.f32 %v5637, 1.442695
      %v5683 = vpow.pop %v5682
      %v5684 = vmul.f32 %v5638, 1.442695
      %v5685 = vpow.pop %v5684
      %v5686 = vmul.f32 %v5639, 1.442695
      %v5687 = vpow.pop %v5686
      %v5688 = vmul.f32 %v5640, 1.442695
      %v5689 = vpow.pop %v5688
      %v5690 = vmul.f32 %v5641, 1.442695
      %v5691 = vpow.pop %v5690
      %v5692 = vmul.f32 %v5642, 1.442695
      %v5693 = vpow.pop %v5692
      %v5694 = vmul.f32 %v5643, 1.442695
      %v5695 = vpow.pop %v5694
      %v5696 = vmul.f32 %v5644, 1.442695
      %v5697 = vpow.pop %v5696
      %v5698 = vmul.f32 %v5645, 1.442695
      %v5699 = vpow.pop %v5698
      %v5700 = vmul.f32 %v5646, 1.442695
      %v5701 = vpow.pop %v5700
      %v5702 = vmul.f32 %v5647, 1.442695
      %v5703 = vpow.pop %v5702
      %v5704 = vmul.f32 %v5648, 1.442695
      %v5705 = vpow.pop %v5704
      %v5706 = vmul.f32 %v5649, 1.442695
      %v5707 = vpow.pop %v5706
      %v5708 = vmul.f32 %v5650, 1.442695
      %v5709 = vpow.pop %v5708
      %v5710 = vmul.f32 %v5651, 1.442695
      %v5711 = vpow.pop %v5710
      %v5712 = vmul.f32 %v5652, 1.442695
      %v5713 = vpow.pop %v5712
      %v5714 = vmul.f32 %v5653, 1.442695
      %v5715 = vpow.pop %v5714
      %v5716 = vmul.f32 %v5654, 1.442695
      %v5717 = vpow.pop %v5716
      %v5718 = vmul.f32 %v5655, 1.442695
      %v5719 = vpow.pop %v5718
      %v5720 = vadd.f32 %v5657, 1.0
      %v5721 = vadd.f32 %v5659, 1.0
      %v5722 = vadd.f32 %v5661, 1.0
      %v5723 = vadd.f32 %v5663, 1.0
      %v5724 = vadd.f32 %v5665, 1.0
      %v5725 = vadd.f32 %v5667, 1.0
      %v5726 = vadd.f32 %v5669, 1.0
      %v5727 = vadd.f32 %v5671, 1.0
      %v5728 = vadd.f32 %v5673, 1.0
      %v5729 = vadd.f32 %v5675, 1.0
      %v5730 = vadd.f32 %v5677, 1.0
      %v5731 = vadd.f32 %v5679, 1.0
      %v5732 = vadd.f32 %v5681, 1.0
      %v5733 = vadd.f32 %v5683, 1.0
      %v5734 = vadd.f32 %v5685, 1.0
      %v5735 = vadd.f32 %v5687, 1.0
      %v5736 = vadd.f32 %v5689, 1.0
      %v5737 = vadd.f32 %v5691, 1.0
      %v5738 = vadd.f32 %v5693, 1.0
      %v5739 = vadd.f32 %v5695, 1.0
      %v5740 = vadd.f32 %v5697, 1.0
      %v5741 = vadd.f32 %v5699, 1.0
      %v5742 = vadd.f32 %v5701, 1.0
      %v5743 = vadd.f32 %v5703, 1.0
      %v5744 = vadd.f32 %v5705, 1.0
      %v5745 = vadd.f32 %v5707, 1.0
      %v5746 = vadd.f32 %v5709, 1.0
      %v5747 = vadd.f32 %v5711, 1.0
      %v5748 = vadd.f32 %v5713, 1.0
      %v5749 = vadd.f32 %v5715, 1.0
      %v5750 = vadd.f32 %v5717, 1.0
      %v5751 = vadd.f32 %v5719, 1.0
      %v5752 = vrcp.pop %v5720
      %v5753 = vmul.f32 %v5720, %v5752
      %v5754 = vsub.f32 1.0, %v5753
      %v5755 = vmul.f32 %v5752, %v5754
      %v5756 = vadd.f32 %v5752, %v5755
      %vm5757 = vweird.f32 %v5720
      %vm5758 = vweird.f32 %v5752
      %vm5759 = vmor %vm5757, %vm5758
      %v5760 = vsel %vm5759, %v5752, %v5756
      %v5761 = vand.u32 2147483647, %v5720
      %vm5762 = vcmp.eq.f32.partialorder %v5761, 8.507059e+37
      %v5763 = vand.u32 %v5720, 2147483648
      %v5764 = vor.u32 1.1754944e-38, %v5763
      %v5765 = vsel %vm5762, %v5764, %v5760
      %v5766 = vmul.f32 1.0, %v5765
      %v5767 = vrcp.pop %v5721
      %v5768 = vmul.f32 %v5721, %v5767
      %v5769 = vsub.f32 1.0, %v5768
      %v5770 = vmul.f32 %v5767, %v5769
      %v5771 = vadd.f32 %v5767, %v5770
      %vm5772 = vweird.f32 %v5721
      %vm5773 = vweird.f32 %v5767
      %vm5774 = vmor %vm5772, %vm5773
      %v5775 = vsel %vm5774, %v5767, %v5771
      %v5776 = vand.u32 2147483647, %v5721
      %vm5777 = vcmp.eq.f32.partialorder %v5776, 8.507059e+37
      %v5778 = vand.u32 %v5721, 2147483648
      %v5779 = vor.u32 1.1754944e-38, %v5778
      %v5780 = vsel %vm5777, %v5779, %v5775
      %v5781 = vmul.f32 1.0, %v5780
      %v5782 = vrcp.pop %v5722
      %v5783 = vmul.f32 %v5722, %v5782
      %v5784 = vsub.f32 1.0, %v5783
      %v5785 = vmul.f32 %v5782, %v5784
      %v5786 = vadd.f32 %v5782, %v5785
      %vm5787 = vweird.f32 %v5722
      %vm5788 = vweird.f32 %v5782
      %vm5789 = vmor %vm5787, %vm5788
      %v5790 = vsel %vm5789, %v5782, %v5786
      %v5791 = vand.u32 2147483647, %v5722
      %vm5792 = vcmp.eq.f32.partialorder %v5791, 8.507059e+37
      %v5793 = vand.u32 %v5722, 2147483648
      %v5794 = vor.u32 1.1754944e-38, %v5793
      %v5795 = vsel %vm5792, %v5794, %v5790
      %v5796 = vmul.f32 1.0, %v5795
      %v5797 = vrcp.pop %v5723
      %v5798 = vmul.f32 %v5723, %v5797
      %v5799 = vsub.f32 1.0, %v5798
      %v5800 = vmul.f32 %v5797, %v5799
      %v5801 = vadd.f32 %v5797, %v5800
      %vm5802 = vweird.f32 %v5723
      %vm5803 = vweird.f32 %v5797
      %vm5804 = vmor %vm5802, %vm5803
      %v5805 = vsel %vm5804, %v5797, %v5801
      %v5806 = vand.u32 2147483647, %v5723
      %vm5807 = vcmp.eq.f32.partialorder %v5806, 8.507059e+37
      %v5808 = vand.u32 %v5723, 2147483648
      %v5809 = vor.u32 1.1754944e-38, %v5808
      %v5810 = vsel %vm5807, %v5809, %v5805
      %v5811 = vmul.f32 1.0, %v5810
      %v5812 = vrcp.pop %v5724
      %v5813 = vmul.f32 %v5724, %v5812
      %v5814 = vsub.f32 1.0, %v5813
      %v5815 = vmul.f32 %v5812, %v5814
      %v5816 = vadd.f32 %v5812, %v5815
      %vm5817 = vweird.f32 %v5724
      %vm5818 = vweird.f32 %v5812
      %vm5819 = vmor %vm5817, %vm5818
      %v5820 = vsel %vm5819, %v5812, %v5816
      %v5821 = vand.u32 2147483647, %v5724
      %vm5822 = vcmp.eq.f32.partialorder %v5821, 8.507059e+37
      %v5823 = vand.u32 %v5724, 2147483648
      %v5824 = vor.u32 1.1754944e-38, %v5823
      %v5825 = vsel %vm5822, %v5824, %v5820
      %v5826 = vmul.f32 1.0, %v5825
      %v5827 = vrcp.pop %v5725
      %v5828 = vmul.f32 %v5725, %v5827
      %v5829 = vsub.f32 1.0, %v5828
      %v5830 = vmul.f32 %v5827, %v5829
      %v5831 = vadd.f32 %v5827, %v5830
      %vm5832 = vweird.f32 %v5725
      %vm5833 = vweird.f32 %v5827
      %vm5834 = vmor %vm5832, %vm5833
      %v5835 = vsel %vm5834, %v5827, %v5831
      %v5836 = vand.u32 2147483647, %v5725
      %vm5837 = vcmp.eq.f32.partialorder %v5836, 8.507059e+37
      %v5838 = vand.u32 %v5725, 2147483648
      %v5839 = vor.u32 1.1754944e-38, %v5838
      %v5840 = vsel %vm5837, %v5839, %v5835
      %v5841 = vmul.f32 1.0, %v5840
      %v5842 = vrcp.pop %v5726
      %v5843 = vmul.f32 %v5726, %v5842
      %v5844 = vsub.f32 1.0, %v5843
      %v5845 = vmul.f32 %v5842, %v5844
      %v5846 = vadd.f32 %v5842, %v5845
      %vm5847 = vweird.f32 %v5726
      %vm5848 = vweird.f32 %v5842
      %vm5849 = vmor %vm5847, %vm5848
      %v5850 = vsel %vm5849, %v5842, %v5846
      %v5851 = vand.u32 2147483647, %v5726
      %vm5852 = vcmp.eq.f32.partialorder %v5851, 8.507059e+37
      %v5853 = vand.u32 %v5726, 2147483648
      %v5854 = vor.u32 1.1754944e-38, %v5853
      %v5855 = vsel %vm5852, %v5854, %v5850
      %v5856 = vmul.f32 1.0, %v5855
      %v5857 = vrcp.pop %v5727
      %v5858 = vmul.f32 %v5727, %v5857
      %v5859 = vsub.f32 1.0, %v5858
      %v5860 = vmul.f32 %v5857, %v5859
      %v5861 = vadd.f32 %v5857, %v5860
      %vm5862 = vweird.f32 %v5727
      %vm5863 = vweird.f32 %v5857
      %vm5864 = vmor %vm5862, %vm5863
      %v5865 = vsel %vm5864, %v5857, %v5861
      %v5866 = vand.u32 2147483647, %v5727
      %vm5867 = vcmp.eq.f32.partialorder %v5866, 8.507059e+37
      %v5868 = vand.u32 %v5727, 2147483648
      %v5869 = vor.u32 1.1754944e-38, %v5868
      %v5870 = vsel %vm5867, %v5869, %v5865
      %v5871 = vmul.f32 1.0, %v5870
      %v5872 = vrcp.pop %v5728
      %v5873 = vmul.f32 %v5728, %v5872
      %v5874 = vsub.f32 1.0, %v5873
      %v5875 = vmul.f32 %v5872, %v5874
      %v5876 = vadd.f32 %v5872, %v5875
      %vm5877 = vweird.f32 %v5728
      %vm5878 = vweird.f32 %v5872
      %vm5879 = vmor %vm5877, %vm5878
      %v5880 = vsel %vm5879, %v5872, %v5876
      %v5881 = vand.u32 2147483647, %v5728
      %vm5882 = vcmp.eq.f32.partialorder %v5881, 8.507059e+37
      %v5883 = vand.u32 %v5728, 2147483648
      %v5884 = vor.u32 1.1754944e-38, %v5883
      %v5885 = vsel %vm5882, %v5884, %v5880
      %v5886 = vmul.f32 1.0, %v5885
      %v5887 = vrcp.pop %v5729
      %v5888 = vmul.f32 %v5729, %v5887
      %v5889 = vsub.f32 1.0, %v5888
      %v5890 = vmul.f32 %v5887, %v5889
      %v5891 = vadd.f32 %v5887, %v5890
      %vm5892 = vweird.f32 %v5729
      %vm5893 = vweird.f32 %v5887
      %vm5894 = vmor %vm5892, %vm5893
      %v5895 = vsel %vm5894, %v5887, %v5891
      %v5896 = vand.u32 2147483647, %v5729
      %vm5897 = vcmp.eq.f32.partialorder %v5896, 8.507059e+37
      %v5898 = vand.u32 %v5729, 2147483648
      %v5899 = vor.u32 1.1754944e-38, %v5898
      %v5900 = vsel %vm5897, %v5899, %v5895
      %v5901 = vmul.f32 1.0, %v5900
      %v5902 = vrcp.pop %v5730
      %v5903 = vmul.f32 %v5730, %v5902
      %v5904 = vsub.f32 1.0, %v5903
      %v5905 = vmul.f32 %v5902, %v5904
      %v5906 = vadd.f32 %v5902, %v5905
      %vm5907 = vweird.f32 %v5730
      %vm5908 = vweird.f32 %v5902
      %vm5909 = vmor %vm5907, %vm5908
      %v5910 = vsel %vm5909, %v5902, %v5906
      %v5911 = vand.u32 2147483647, %v5730
      %vm5912 = vcmp.eq.f32.partialorder %v5911, 8.507059e+37
      %v5913 = vand.u32 %v5730, 2147483648
      %v5914 = vor.u32 1.1754944e-38, %v5913
      %v5915 = vsel %vm5912, %v5914, %v5910
      %v5916 = vmul.f32 1.0, %v5915
      %v5917 = vrcp.pop %v5731
      %v5918 = vmul.f32 %v5731, %v5917
      %v5919 = vsub.f32 1.0, %v5918
      %v5920 = vmul.f32 %v5917, %v5919
      %v5921 = vadd.f32 %v5917, %v5920
      %vm5922 = vweird.f32 %v5731
      %vm5923 = vweird.f32 %v5917
      %vm5924 = vmor %vm5922, %vm5923
      %v5925 = vsel %vm5924, %v5917, %v5921
      %v5926 = vand.u32 2147483647, %v5731
      %vm5927 = vcmp.eq.f32.partialorder %v5926, 8.507059e+37
      %v5928 = vand.u32 %v5731, 2147483648
      %v5929 = vor.u32 1.1754944e-38, %v5928
      %v5930 = vsel %vm5927, %v5929, %v5925
      %v5931 = vmul.f32 1.0, %v5930
      %v5932 = vrcp.pop %v5732
      %v5933 = vmul.f32 %v5732, %v5932
      %v5934 = vsub.f32 1.0, %v5933
      %v5935 = vmul.f32 %v5932, %v5934
      %v5936 = vadd.f32 %v5932, %v5935
      %vm5937 = vweird.f32 %v5732
      %vm5938 = vweird.f32 %v5932
      %vm5939 = vmor %vm5937, %vm5938
      %v5940 = vsel %vm5939, %v5932, %v5936
      %v5941 = vand.u32 2147483647, %v5732
      %vm5942 = vcmp.eq.f32.partialorder %v5941, 8.507059e+37
      %v5943 = vand.u32 %v5732, 2147483648
      %v5944 = vor.u32 1.1754944e-38, %v5943
      %v5945 = vsel %vm5942, %v5944, %v5940
      %v5946 = vmul.f32 1.0, %v5945
      %v5947 = vrcp.pop %v5733
      %v5948 = vmul.f32 %v5733, %v5947
      %v5949 = vsub.f32 1.0, %v5948
      %v5950 = vmul.f32 %v5947, %v5949
      %v5951 = vadd.f32 %v5947, %v5950
      %vm5952 = vweird.f32 %v5733
      %vm5953 = vweird.f32 %v5947
      %vm5954 = vmor %vm5952, %vm5953
      %v5955 = vsel %vm5954, %v5947, %v5951
      %v5956 = vand.u32 2147483647, %v5733
      %vm5957 = vcmp.eq.f32.partialorder %v5956, 8.507059e+37
      %v5958 = vand.u32 %v5733, 2147483648
      %v5959 = vor.u32 1.1754944e-38, %v5958
      %v5960 = vsel %vm5957, %v5959, %v5955
      %v5961 = vmul.f32 1.0, %v5960
      %v5962 = vrcp.pop %v5734
      %v5963 = vmul.f32 %v5734, %v5962
      %v5964 = vsub.f32 1.0, %v5963
      %v5965 = vmul.f32 %v5962, %v5964
      %v5966 = vadd.f32 %v5962, %v5965
      %vm5967 = vweird.f32 %v5734
      %vm5968 = vweird.f32 %v5962
      %vm5969 = vmor %vm5967, %vm5968
      %v5970 = vsel %vm5969, %v5962, %v5966
      %v5971 = vand.u32 2147483647, %v5734
      %vm5972 = vcmp.eq.f32.partialorder %v5971, 8.507059e+37
      %v5973 = vand.u32 %v5734, 2147483648
      %v5974 = vor.u32 1.1754944e-38, %v5973
      %v5975 = vsel %vm5972, %v5974, %v5970
      %v5976 = vmul.f32 1.0, %v5975
      %v5977 = vrcp.pop %v5735
      %v5978 = vmul.f32 %v5735, %v5977
      %v5979 = vsub.f32 1.0, %v5978
      %v5980 = vmul.f32 %v5977, %v5979
      %v5981 = vadd.f32 %v5977, %v5980
      %vm5982 = vweird.f32 %v5735
      %vm5983 = vweird.f32 %v5977
      %vm5984 = vmor %vm5982, %vm5983
      %v5985 = vsel %vm5984, %v5977, %v5981
      %v5986 = vand.u32 2147483647, %v5735
      %vm5987 = vcmp.eq.f32.partialorder %v5986, 8.507059e+37
      %v5988 = vand.u32 %v5735, 2147483648
      %v5989 = vor.u32 1.1754944e-38, %v5988
      %v5990 = vsel %vm5987, %v5989, %v5985
      %v5991 = vmul.f32 1.0, %v5990
      %v5992 = vrcp.pop %v5736
      %v5993 = vmul.f32 %v5736, %v5992
      %v5994 = vsub.f32 1.0, %v5993
      %v5995 = vmul.f32 %v5992, %v5994
      %v5996 = vadd.f32 %v5992, %v5995
      %vm5997 = vweird.f32 %v5736
      %vm5998 = vweird.f32 %v5992
      %vm5999 = vmor %vm5997, %vm5998
      %v6000 = vsel %vm5999, %v5992, %v5996
      %v6001 = vand.u32 2147483647, %v5736
      %vm6002 = vcmp.eq.f32.partialorder %v6001, 8.507059e+37
      %v6003 = vand.u32 %v5736, 2147483648
      %v6004 = vor.u32 1.1754944e-38, %v6003
      %v6005 = vsel %vm6002, %v6004, %v6000
      %v6006 = vmul.f32 1.0, %v6005
      %v6007 = vrcp.pop %v5737
      %v6008 = vmul.f32 %v5737, %v6007
      %v6009 = vsub.f32 1.0, %v6008
      %v6010 = vmul.f32 %v6007, %v6009
      %v6011 = vadd.f32 %v6007, %v6010
      %vm6012 = vweird.f32 %v5737
      %vm6013 = vweird.f32 %v6007
      %vm6014 = vmor %vm6012, %vm6013
      %v6015 = vsel %vm6014, %v6007, %v6011
      %v6016 = vand.u32 2147483647, %v5737
      %vm6017 = vcmp.eq.f32.partialorder %v6016, 8.507059e+37
      %v6018 = vand.u32 %v5737, 2147483648
      %v6019 = vor.u32 1.1754944e-38, %v6018
      %v6020 = vsel %vm6017, %v6019, %v6015
      %v6021 = vmul.f32 1.0, %v6020
      %v6022 = vrcp.pop %v5738
      %v6023 = vmul.f32 %v5738, %v6022
      %v6024 = vsub.f32 1.0, %v6023
      %v6025 = vmul.f32 %v6022, %v6024
      %v6026 = vadd.f32 %v6022, %v6025
      %vm6027 = vweird.f32 %v5738
      %vm6028 = vweird.f32 %v6022
      %vm6029 = vmor %vm6027, %vm6028
      %v6030 = vsel %vm6029, %v6022, %v6026
      %v6031 = vand.u32 2147483647, %v5738
      %vm6032 = vcmp.eq.f32.partialorder %v6031, 8.507059e+37
      %v6033 = vand.u32 %v5738, 2147483648
      %v6034 = vor.u32 1.1754944e-38, %v6033
      %v6035 = vsel %vm6032, %v6034, %v6030
      %v6036 = vmul.f32 1.0, %v6035
      %v6037 = vrcp.pop %v5739
      %v6038 = vmul.f32 %v5739, %v6037
      %v6039 = vsub.f32 1.0, %v6038
      %v6040 = vmul.f32 %v6037, %v6039
      %v6041 = vadd.f32 %v6037, %v6040
      %vm6042 = vweird.f32 %v5739
      %vm6043 = vweird.f32 %v6037
      %vm6044 = vmor %vm6042, %vm6043
      %v6045 = vsel %vm6044, %v6037, %v6041
      %v6046 = vand.u32 2147483647, %v5739
      %vm6047 = vcmp.eq.f32.partialorder %v6046, 8.507059e+37
      %v6048 = vand.u32 %v5739, 2147483648
      %v6049 = vor.u32 1.1754944e-38, %v6048
      %v6050 = vsel %vm6047, %v6049, %v6045
      %v6051 = vmul.f32 1.0, %v6050
      %v6052 = vrcp.pop %v5740
      %v6053 = vmul.f32 %v5740, %v6052
      %v6054 = vsub.f32 1.0, %v6053
      %v6055 = vmul.f32 %v6052, %v6054
      %v6056 = vadd.f32 %v6052, %v6055
      %vm6057 = vweird.f32 %v5740
      %vm6058 = vweird.f32 %v6052
      %vm6059 = vmor %vm6057, %vm6058
      %v6060 = vsel %vm6059, %v6052, %v6056
      %v6061 = vand.u32 2147483647, %v5740
      %vm6062 = vcmp.eq.f32.partialorder %v6061, 8.507059e+37
      %v6063 = vand.u32 %v5740, 2147483648
      %v6064 = vor.u32 1.1754944e-38, %v6063
      %v6065 = vsel %vm6062, %v6064, %v6060
      %v6066 = vmul.f32 1.0, %v6065
      %v6067 = vrcp.pop %v5741
      %v6068 = vmul.f32 %v5741, %v6067
      %v6069 = vsub.f32 1.0, %v6068
      %v6070 = vmul.f32 %v6067, %v6069
      %v6071 = vadd.f32 %v6067, %v6070
      %vm6072 = vweird.f32 %v5741
      %vm6073 = vweird.f32 %v6067
      %vm6074 = vmor %vm6072, %vm6073
      %v6075 = vsel %vm6074, %v6067, %v6071
      %v6076 = vand.u32 2147483647, %v5741
      %vm6077 = vcmp.eq.f32.partialorder %v6076, 8.507059e+37
      %v6078 = vand.u32 %v5741, 2147483648
      %v6079 = vor.u32 1.1754944e-38, %v6078
      %v6080 = vsel %vm6077, %v6079, %v6075
      %v6081 = vmul.f32 1.0, %v6080
      %v6082 = vrcp.pop %v5742
      %v6083 = vmul.f32 %v5742, %v6082
      %v6084 = vsub.f32 1.0, %v6083
      %v6085 = vmul.f32 %v6082, %v6084
      %v6086 = vadd.f32 %v6082, %v6085
      %vm6087 = vweird.f32 %v5742
      %vm6088 = vweird.f32 %v6082
      %vm6089 = vmor %vm6087, %vm6088
      %v6090 = vsel %vm6089, %v6082, %v6086
      %v6091 = vand.u32 2147483647, %v5742
      %vm6092 = vcmp.eq.f32.partialorder %v6091, 8.507059e+37
      %v6093 = vand.u32 %v5742, 2147483648
      %v6094 = vor.u32 1.1754944e-38, %v6093
      %v6095 = vsel %vm6092, %v6094, %v6090
      %v6096 = vmul.f32 1.0, %v6095
      %v6097 = vrcp.pop %v5743
      %v6098 = vmul.f32 %v5743, %v6097
      %v6099 = vsub.f32 1.0, %v6098
      %v6100 = vmul.f32 %v6097, %v6099
      %v6101 = vadd.f32 %v6097, %v6100
      %vm6102 = vweird.f32 %v5743
      %vm6103 = vweird.f32 %v6097
      %vm6104 = vmor %vm6102, %vm6103
      %v6105 = vsel %vm6104, %v6097, %v6101
      %v6106 = vand.u32 2147483647, %v5743
      %vm6107 = vcmp.eq.f32.partialorder %v6106, 8.507059e+37
      %v6108 = vand.u32 %v5743, 2147483648
      %v6109 = vor.u32 1.1754944e-38, %v6108
      %v6110 = vsel %vm6107, %v6109, %v6105
      %v6111 = vmul.f32 1.0, %v6110
      %v6112 = vrcp.pop %v5744
      %v6113 = vmul.f32 %v5744, %v6112
      %v6114 = vsub.f32 1.0, %v6113
      %v6115 = vmul.f32 %v6112, %v6114
      %v6116 = vadd.f32 %v6112, %v6115
      %vm6117 = vweird.f32 %v5744
      %vm6118 = vweird.f32 %v6112
      %vm6119 = vmor %vm6117, %vm6118
      %v6120 = vsel %vm6119, %v6112, %v6116
      %v6121 = vand.u32 2147483647, %v5744
      %vm6122 = vcmp.eq.f32.partialorder %v6121, 8.507059e+37
      %v6123 = vand.u32 %v5744, 2147483648
      %v6124 = vor.u32 1.1754944e-38, %v6123
      %v6125 = vsel %vm6122, %v6124, %v6120
      %v6126 = vmul.f32 1.0, %v6125
      %v6127 = vrcp.pop %v5745
      %v6128 = vmul.f32 %v5745, %v6127
      %v6129 = vsub.f32 1.0, %v6128
      %v6130 = vmul.f32 %v6127, %v6129
      %v6131 = vadd.f32 %v6127, %v6130
      %vm6132 = vweird.f32 %v5745
      %vm6133 = vweird.f32 %v6127
      %vm6134 = vmor %vm6132, %vm6133
      %v6135 = vsel %vm6134, %v6127, %v6131
      %v6136 = vand.u32 2147483647, %v5745
      %vm6137 = vcmp.eq.f32.partialorder %v6136, 8.507059e+37
      %v6138 = vand.u32 %v5745, 2147483648
      %v6139 = vor.u32 1.1754944e-38, %v6138
      %v6140 = vsel %vm6137, %v6139, %v6135
      %v6141 = vmul.f32 1.0, %v6140
      %v6142 = vrcp.pop %v5746
      %v6143 = vmul.f32 %v5746, %v6142
      %v6144 = vsub.f32 1.0, %v6143
      %v6145 = vmul.f32 %v6142, %v6144
      %v6146 = vadd.f32 %v6142, %v6145
      %vm6147 = vweird.f32 %v5746
      %vm6148 = vweird.f32 %v6142
      %vm6149 = vmor %vm6147, %vm6148
      %v6150 = vsel %vm6149, %v6142, %v6146
      %v6151 = vand.u32 2147483647, %v5746
      %vm6152 = vcmp.eq.f32.partialorder %v6151, 8.507059e+37
      %v6153 = vand.u32 %v5746, 2147483648
      %v6154 = vor.u32 1.1754944e-38, %v6153
      %v6155 = vsel %vm6152, %v6154, %v6150
      %v6156 = vmul.f32 1.0, %v6155
      %v6157 = vrcp.pop %v5747
      %v6158 = vmul.f32 %v5747, %v6157
      %v6159 = vsub.f32 1.0, %v6158
      %v6160 = vmul.f32 %v6157, %v6159
      %v6161 = vadd.f32 %v6157, %v6160
      %vm6162 = vweird.f32 %v5747
      %vm6163 = vweird.f32 %v6157
      %vm6164 = vmor %vm6162, %vm6163
      %v6165 = vsel %vm6164, %v6157, %v6161
      %v6166 = vand.u32 2147483647, %v5747
      %vm6167 = vcmp.eq.f32.partialorder %v6166, 8.507059e+37
      %v6168 = vand.u32 %v5747, 2147483648
      %v6169 = vor.u32 1.1754944e-38, %v6168
      %v6170 = vsel %vm6167, %v6169, %v6165
      %v6171 = vmul.f32 1.0, %v6170
      %v6172 = vrcp.pop %v5748
      %v6173 = vmul.f32 %v5748, %v6172
      %v6174 = vsub.f32 1.0, %v6173
      %v6175 = vmul.f32 %v6172, %v6174
      %v6176 = vadd.f32 %v6172, %v6175
      %vm6177 = vweird.f32 %v5748
      %vm6178 = vweird.f32 %v6172
      %vm6179 = vmor %vm6177, %vm6178
      %v6180 = vsel %vm6179, %v6172, %v6176
      %v6181 = vand.u32 2147483647, %v5748
      %vm6182 = vcmp.eq.f32.partialorder %v6181, 8.507059e+37
      %v6183 = vand.u32 %v5748, 2147483648
      %v6184 = vor.u32 1.1754944e-38, %v6183
      %v6185 = vsel %vm6182, %v6184, %v6180
      %v6186 = vmul.f32 1.0, %v6185
      %v6187 = vrcp.pop %v5749
      %v6188 = vmul.f32 %v5749, %v6187
      %v6189 = vsub.f32 1.0, %v6188
      %v6190 = vmul.f32 %v6187, %v6189
      %v6191 = vadd.f32 %v6187, %v6190
      %vm6192 = vweird.f32 %v5749
      %vm6193 = vweird.f32 %v6187
      %vm6194 = vmor %vm6192, %vm6193
      %v6195 = vsel %vm6194, %v6187, %v6191
      %v6196 = vand.u32 2147483647, %v5749
      %vm6197 = vcmp.eq.f32.partialorder %v6196, 8.507059e+37
      %v6198 = vand.u32 %v5749, 2147483648
      %v6199 = vor.u32 1.1754944e-38, %v6198
      %v6200 = vsel %vm6197, %v6199, %v6195
      %v6201 = vmul.f32 1.0, %v6200
      %v6202 = vrcp.pop %v5750
      %v6203 = vmul.f32 %v5750, %v6202
      %v6204 = vsub.f32 1.0, %v6203
      %v6205 = vmul.f32 %v6202, %v6204
      %v6206 = vadd.f32 %v6202, %v6205
      %vm6207 = vweird.f32 %v5750
      %vm6208 = vweird.f32 %v6202
      %vm6209 = vmor %vm6207, %vm6208
      %v6210 = vsel %vm6209, %v6202, %v6206
      %v6211 = vand.u32 2147483647, %v5750
      %vm6212 = vcmp.eq.f32.partialorder %v6211, 8.507059e+37
      %v6213 = vand.u32 %v5750, 2147483648
      %v6214 = vor.u32 1.1754944e-38, %v6213
      %v6215 = vsel %vm6212, %v6214, %v6210
      %v6216 = vmul.f32 1.0, %v6215
      %v6217 = vrcp.pop %v5751
      %v6218 = vmul.f32 %v5751, %v6217
      %v6219 = vsub.f32 1.0, %v6218
      %v6220 = vmul.f32 %v6217, %v6219
      %v6221 = vadd.f32 %v6217, %v6220
      %vm6222 = vweird.f32 %v5751
      %vm6223 = vweird.f32 %v6217
      %vm6224 = vmor %vm6222, %vm6223
      %v6225 = vsel %vm6224, %v6217, %v6221
      %v6226 = vand.u32 2147483647, %v5751
      %vm6227 = vcmp.eq.f32.partialorder %v6226, 8.507059e+37
      %v6228 = vand.u32 %v5751, 2147483648
      %v6229 = vor.u32 1.1754944e-38, %v6228
      %v6230 = vsel %vm6227, %v6229, %v6225
      %v6231 = vmul.f32 1.0, %v6230
      %v6232 = vmul.f32 %v5592, %v5766
      %v6233 = vmul.f32 %v5593, %v5781
      %v6234 = vmul.f32 %v5594, %v5796
      %v6235 = vmul.f32 %v5595, %v5811
      %v6236 = vmul.f32 %v5596, %v5826
      %v6237 = vmul.f32 %v5597, %v5841
      %v6238 = vmul.f32 %v5598, %v5856
      %v6239 = vmul.f32 %v5599, %v5871
      %v6240 = vmul.f32 %v5600, %v5886
      %v6241 = vmul.f32 %v5601, %v5901
      %v6242 = vmul.f32 %v5602, %v5916
      %v6243 = vmul.f32 %v5603, %v5931
      %v6244 = vmul.f32 %v5604, %v5946
      %v6245 = vmul.f32 %v5605, %v5961
      %v6246 = vmul.f32 %v5606, %v5976
      %v6247 = vmul.f32 %v5607, %v5991
      %v6248 = vmul.f32 %v5608, %v6006
      %v6249 = vmul.f32 %v5609, %v6021
      %v6250 = vmul.f32 %v5610, %v6036
      %v6251 = vmul.f32 %v5611, %v6051
      %v6252 = vmul.f32 %v5612, %v6066
      %v6253 = vmul.f32 %v5613, %v6081
      %v6254 = vmul.f32 %v5614, %v6096
      %v6255 = vmul.f32 %v5615, %v6111
      %v6256 = vmul.f32 %v5616, %v6126
      %v6257 = vmul.f32 %v5617, %v6141
      %v6258 = vmul.f32 %v5618, %v6156
      %v6259 = vmul.f32 %v5619, %v6171
      %v6260 = vmul.f32 %v5620, %v6186
      %v6261 = vmul.f32 %v5621, %v6201
      %v6262 = vmul.f32 %v5622, %v6216
      %v6263 = vmul.f32 %v5623, %v6231
      %6264 = vst [vmem:[#allocation2 + $0x18] sm:$0xff] %v6232
      %6265 = vst [vmem:[#allocation2 + $0x20] sm:$0xff] %v6233
      %6266 = vst [vmem:[#allocation2 + $0x28] sm:$0xff] %v6234
      %6267 = vst [vmem:[#allocation2 + $0x30] sm:$0xff] %v6235
      %6268 = vst [vmem:[#allocation2 + $0x38] sm:$0xff] %v6236
      %6269 = vst [vmem:[#allocation2 + $0x40] sm:$0xff] %v6237
      %6270 = vst [vmem:[#allocation2 + $0x48] sm:$0xff] %v6238
      %6271 = vst [vmem:[#allocation2 + $0x50] sm:$0xff] %v6239
      %6272 = vst [vmem:[#allocation2 + $0x58] sm:$0xff] %v6240
      %6273 = vst [vmem:[#allocation2 + $0x60] sm:$0xff] %v6241
      %6274 = vst [vmem:[#allocation2 + $0x68] sm:$0xff] %v6242
      %6275 = vst [vmem:[#allocation2 + $0x70] sm:$0xff] %v6243
      %6276 = vst [vmem:[#allocation2 + $0x78] sm:$0xff] %v6244
      %6277 = vst [vmem:[#allocation2 + $0x80] sm:$0xff] %v6245
      %6278 = vst [vmem:[#allocation2 + $0x88] sm:$0xff] %v6246
      %6279 = vst [vmem:[#allocation2 + $0x90] sm:$0xff] %v6247
      %6280 = vst [vmem:[#allocation2 + $0x98] sm:$0xff] %v6248
      %6281 = vst [vmem:[#allocation2 + $0xa0] sm:$0xff] %v6249
      %6282 = vst [vmem:[#allocation2 + $0xa8] sm:$0xff] %v6250
      %6283 = vst [vmem:[#allocation2 + $0xb0] sm:$0xff] %v6251
      %6284 = vst [vmem:[#allocation2 + $0xb8] sm:$0xff] %v6252
      %6285 = vst [vmem:[#allocation2 + $0xc0] sm:$0xff] %v6253
      %6286 = vst [vmem:[#allocation2 + $0xc8] sm:$0xff] %v6254
      %6287 = vst [vmem:[#allocation2 + $0xd0] sm:$0xff] %v6255
      %6288 = vst [vmem:[#allocation2 + $0xd8] sm:$0xff] %v6256
      %6289 = vst [vmem:[#allocation2 + $0xe0] sm:$0xff] %v6257
      %6290 = vst [vmem:[#allocation2 + $0xe8] sm:$0xff] %v6258
      %6291 = vst [vmem:[#allocation2 + $0xf0] sm:$0xff] %v6259
      %6292 = vst [vmem:[#allocation2 + $0xf8] sm:$0xff] %v6260
      %6293 = vst [vmem:[#allocation2 + $0x100] sm:$0xff] %v6261
      %6294 = vst [vmem:[#allocation2 + $0x108] sm:$0xff] %v6262
      %6295 = vst [vmem:[#allocation2 + $0x110] sm:$0xff] %v6263
      %v6296 = vld [vmem:[#allocation2 + $0x18] sm:$0xff]
      %v6297 = vld [vmem:[#allocation2 + $0x20] sm:$0xff]
      %v6298 = vld [vmem:[#allocation2 + $0x28] sm:$0xff]
      %v6299 = vld [vmem:[#allocation2 + $0x30] sm:$0xff]
      %v6300 = vld [vmem:[#allocation2 + $0x38] sm:$0xff]
      %v6301 = vld [vmem:[#allocation2 + $0x40] sm:$0xff]
      %v6302 = vld [vmem:[#allocation2 + $0x48] sm:$0xff]
      %v6303 = vld [vmem:[#allocation2 + $0x50] sm:$0xff]
      %v6304 = vld [vmem:[#allocation2 + $0x58] sm:$0xff]
      %v6305 = vld [vmem:[#allocation2 + $0x60] sm:$0xff]
      %v6306 = vld [vmem:[#allocation2 + $0x68] sm:$0xff]
      %v6307 = vld [vmem:[#allocation2 + $0x70] sm:$0xff]
      %v6308 = vld [vmem:[#allocation2 + $0x78] sm:$0xff]
      %v6309 = vld [vmem:[#allocation2 + $0x80] sm:$0xff]
      %v6310 = vld [vmem:[#allocation2 + $0x88] sm:$0xff]
      %v6311 = vld [vmem:[#allocation2 + $0x90] sm:$0xff]
      %v6312 = vld [vmem:[#allocation2 + $0x98] sm:$0xff]
      %v6313 = vld [vmem:[#allocation2 + $0xa0] sm:$0xff]
      %v6314 = vld [vmem:[#allocation2 + $0xa8] sm:$0xff]
      %v6315 = vld [vmem:[#allocation2 + $0xb0] sm:$0xff]
      %v6316 = vld [vmem:[#allocation2 + $0xb8] sm:$0xff]
      %v6317 = vld [vmem:[#allocation2 + $0xc0] sm:$0xff]
      %v6318 = vld [vmem:[#allocation2 + $0xc8] sm:$0xff]
      %v6319 = vld [vmem:[#allocation2 + $0xd0] sm:$0xff]
      %v6320 = vld [vmem:[#allocation2 + $0xd8] sm:$0xff]
      %v6321 = vld [vmem:[#allocation2 + $0xe0] sm:$0xff]
      %v6322 = vld [vmem:[#allocation2 + $0xe8] sm:$0xff]
      %v6323 = vld [vmem:[#allocation2 + $0xf0] sm:$0xff]
      %v6324 = vld [vmem:[#allocation2 + $0xf8] sm:$0xff]
      %v6325 = vld [vmem:[#allocation2 + $0x100] sm:$0xff]
      %v6326 = vld [vmem:[#allocation2 + $0x108] sm:$0xff]
      %v6327 = vld [vmem:[#allocation2 + $0x110] sm:$0xff]
      %v6328 = vld [vmem:[%s3] sm:$0x1]
      %v6329 = vperm.slane %v6328, 0
      %v6330 = vmul.f32 %v6296, %v6329
      %v6331 = vmul.f32 %v6297, %v6329
      %v6332 = vmul.f32 %v6298, %v6329
      %v6333 = vmul.f32 %v6299, %v6329
      %v6334 = vmul.f32 %v6300, %v6329
      %v6335 = vmul.f32 %v6301, %v6329
      %v6336 = vmul.f32 %v6302, %v6329
      %v6337 = vmul.f32 %v6303, %v6329
      %v6338 = vmul.f32 %v6304, %v6329
      %v6339 = vmul.f32 %v6305, %v6329
      %v6340 = vmul.f32 %v6306, %v6329
      %v6341 = vmul.f32 %v6307, %v6329
      %v6342 = vmul.f32 %v6308, %v6329
      %v6343 = vmul.f32 %v6309, %v6329
      %v6344 = vmul.f32 %v6310, %v6329
      %v6345 = vmul.f32 %v6311, %v6329
      %v6346 = vmul.f32 %v6312, %v6329
      %v6347 = vmul.f32 %v6313, %v6329
      %v6348 = vmul.f32 %v6314, %v6329
      %v6349 = vmul.f32 %v6315, %v6329
      %v6350 = vmul.f32 %v6316, %v6329
      %v6351 = vmul.f32 %v6317, %v6329
      %v6352 = vmul.f32 %v6318, %v6329
      %v6353 = vmul.f32 %v6319, %v6329
      %v6354 = vmul.f32 %v6320, %v6329
      %v6355 = vmul.f32 %v6321, %v6329
      %v6356 = vmul.f32 %v6322, %v6329
      %v6357 = vmul.f32 %v6323, %v6329
      %v6358 = vmul.f32 %v6324, %v6329
      %v6359 = vmul.f32 %v6325, %v6329
      %v6360 = vmul.f32 %v6326, %v6329
      %v6361 = vmul.f32 %v6327, %v6329
      %v6362 = vld [vmem:[#allocation2 + $0x19] sm:$0xff]
      %v6363 = vld [vmem:[#allocation2 + $0x21] sm:$0xff]
      %v6364 = vld [vmem:[#allocation2 + $0x29] sm:$0xff]
      %v6365 = vld [vmem:[#allocation2 + $0x31] sm:$0xff]
      %v6366 = vld [vmem:[#allocation2 + $0x39] sm:$0xff]
      %v6367 = vld [vmem:[#allocation2 + $0x41] sm:$0xff]
      %v6368 = vld [vmem:[#allocation2 + $0x49] sm:$0xff]
      %v6369 = vld [vmem:[#allocation2 + $0x51] sm:$0xff]
      %v6370 = vld [vmem:[#allocation2 + $0x59] sm:$0xff]
      %v6371 = vld [vmem:[#allocation2 + $0x61] sm:$0xff]
      %v6372 = vld [vmem:[#allocation2 + $0x69] sm:$0xff]
      %v6373 = vld [vmem:[#allocation2 + $0x71] sm:$0xff]
      %v6374 = vld [vmem:[#allocation2 + $0x79] sm:$0xff]
      %v6375 = vld [vmem:[#allocation2 + $0x81] sm:$0xff]
      %v6376 = vld [vmem:[#allocation2 + $0x89] sm:$0xff]
      %v6377 = vld [vmem:[#allocation2 + $0x91] sm:$0xff]
      %v6378 = vld [vmem:[#allocation2 + $0x99] sm:$0xff]
      %v6379 = vld [vmem:[#allocation2 + $0xa1] sm:$0xff]
      %v6380 = vld [vmem:[#allocation2 + $0xa9] sm:$0xff]
      %v6381 = vld [vmem:[#allocation2 + $0xb1] sm:$0xff]
      %v6382 = vld [vmem:[#allocation2 + $0xb9] sm:$0xff]
      %v6383 = vld [vmem:[#allocation2 + $0xc1] sm:$0xff]
      %v6384 = vld [vmem:[#allocation2 + $0xc9] sm:$0xff]
      %v6385 = vld [vmem:[#allocation2 + $0xd1] sm:$0xff]
      %v6386 = vld [vmem:[#allocation2 + $0xd9] sm:$0xff]
      %v6387 = vld [vmem:[#allocation2 + $0xe1] sm:$0xff]
      %v6388 = vld [vmem:[#allocation2 + $0xe9] sm:$0xff]
      %v6389 = vld [vmem:[#allocation2 + $0xf1] sm:$0xff]
      %v6390 = vld [vmem:[#allocation2 + $0xf9] sm:$0xff]
      %v6391 = vld [vmem:[#allocation2 + $0x101] sm:$0xff]
      %v6392 = vld [vmem:[#allocation2 + $0x109] sm:$0xff]
      %v6393 = vld [vmem:[#allocation2 + $0x111] sm:$0xff]
      %v6394 = vld [vmem:[%s3 + $0x1] sm:$0x1]
      %v6395 = vperm.slane %v6394, 0
      %v6396 = vmul.f32 %v6362, %v6395
      %v6397 = vmul.f32 %v6363, %v6395
      %v6398 = vmul.f32 %v6364, %v6395
      %v6399 = vmul.f32 %v6365, %v6395
      %v6400 = vmul.f32 %v6366, %v6395
      %v6401 = vmul.f32 %v6367, %v6395
      %v6402 = vmul.f32 %v6368, %v6395
      %v6403 = vmul.f32 %v6369, %v6395
      %v6404 = vmul.f32 %v6370, %v6395
      %v6405 = vmul.f32 %v6371, %v6395
      %v6406 = vmul.f32 %v6372, %v6395
      %v6407 = vmul.f32 %v6373, %v6395
      %v6408 = vmul.f32 %v6374, %v6395
      %v6409 = vmul.f32 %v6375, %v6395
      %v6410 = vmul.f32 %v6376, %v6395
      %v6411 = vmul.f32 %v6377, %v6395
      %v6412 = vmul.f32 %v6378, %v6395
      %v6413 = vmul.f32 %v6379, %v6395
      %v6414 = vmul.f32 %v6380, %v6395
      %v6415 = vmul.f32 %v6381, %v6395
      %v6416 = vmul.f32 %v6382, %v6395
      %v6417 = vmul.f32 %v6383, %v6395
      %v6418 = vmul.f32 %v6384, %v6395
      %v6419 = vmul.f32 %v6385, %v6395
      %v6420 = vmul.f32 %v6386, %v6395
      %v6421 = vmul.f32 %v6387, %v6395
      %v6422 = vmul.f32 %v6388, %v6395
      %v6423 = vmul.f32 %v6389, %v6395
      %v6424 = vmul.f32 %v6390, %v6395
      %v6425 = vmul.f32 %v6391, %v6395
      %v6426 = vmul.f32 %v6392, %v6395
      %v6427 = vmul.f32 %v6393, %v6395
      %v6428 = vadd.f32 %v6330, %v6396
      %v6429 = vadd.f32 %v6331, %v6397
      %v6430 = vadd.f32 %v6332, %v6398
      %v6431 = vadd.f32 %v6333, %v6399
      %v6432 = vadd.f32 %v6334, %v6400
      %v6433 = vadd.f32 %v6335, %v6401
      %v6434 = vadd.f32 %v6336, %v6402
      %v6435 = vadd.f32 %v6337, %v6403
      %v6436 = vadd.f32 %v6338, %v6404
      %v6437 = vadd.f32 %v6339, %v6405
      %v6438 = vadd.f32 %v6340, %v6406
      %v6439 = vadd.f32 %v6341, %v6407
      %v6440 = vadd.f32 %v6342, %v6408
      %v6441 = vadd.f32 %v6343, %v6409
      %v6442 = vadd.f32 %v6344, %v6410
      %v6443 = vadd.f32 %v6345, %v6411
      %v6444 = vadd.f32 %v6346, %v6412
      %v6445 = vadd.f32 %v6347, %v6413
      %v6446 = vadd.f32 %v6348, %v6414
      %v6447 = vadd.f32 %v6349, %v6415
      %v6448 = vadd.f32 %v6350, %v6416
      %v6449 = vadd.f32 %v6351, %v6417
      %v6450 = vadd.f32 %v6352, %v6418
      %v6451 = vadd.f32 %v6353, %v6419
      %v6452 = vadd.f32 %v6354, %v6420
      %v6453 = vadd.f32 %v6355, %v6421
      %v6454 = vadd.f32 %v6356, %v6422
      %v6455 = vadd.f32 %v6357, %v6423
      %v6456 = vadd.f32 %v6358, %v6424
      %v6457 = vadd.f32 %v6359, %v6425
      %v6458 = vadd.f32 %v6360, %v6426
      %v6459 = vadd.f32 %v6361, %v6427
      %v6460 = vld [vmem:[#allocation2 + $0x1a] sm:$0xff]
      %v6461 = vld [vmem:[#allocation2 + $0x22] sm:$0xff]
      %v6462 = vld [vmem:[#allocation2 + $0x2a] sm:$0xff]
      %v6463 = vld [vmem:[#allocation2 + $0x32] sm:$0xff]
      %v6464 = vld [vmem:[#allocation2 + $0x3a] sm:$0xff]
      %v6465 = vld [vmem:[#allocation2 + $0x42] sm:$0xff]
      %v6466 = vld [vmem:[#allocation2 + $0x4a] sm:$0xff]
      %v6467 = vld [vmem:[#allocation2 + $0x52] sm:$0xff]
      %v6468 = vld [vmem:[#allocation2 + $0x5a] sm:$0xff]
      %v6469 = vld [vmem:[#allocation2 + $0x62] sm:$0xff]
      %v6470 = vld [vmem:[#allocation2 + $0x6a] sm:$0xff]
      %v6471 = vld [vmem:[#allocation2 + $0x72] sm:$0xff]
      %v6472 = vld [vmem:[#allocation2 + $0x7a] sm:$0xff]
      %v6473 = vld [vmem:[#allocation2 + $0x82] sm:$0xff]
      %v6474 = vld [vmem:[#allocation2 + $0x8a] sm:$0xff]
      %v6475 = vld [vmem:[#allocation2 + $0x92] sm:$0xff]
      %v6476 = vld [vmem:[#allocation2 + $0x9a] sm:$0xff]
      %v6477 = vld [vmem:[#allocation2 + $0xa2] sm:$0xff]
      %v6478 = vld [vmem:[#allocation2 + $0xaa] sm:$0xff]
      %v6479 = vld [vmem:[#allocation2 + $0xb2] sm:$0xff]
      %v6480 = vld [vmem:[#allocation2 + $0xba] sm:$0xff]
      %v6481 = vld [vmem:[#allocation2 + $0xc2] sm:$0xff]
      %v6482 = vld [vmem:[#allocation2 + $0xca] sm:$0xff]
      %v6483 = vld [vmem:[#allocation2 + $0xd2] sm:$0xff]
      %v6484 = vld [vmem:[#allocation2 + $0xda] sm:$0xff]
      %v6485 = vld [vmem:[#allocation2 + $0xe2] sm:$0xff]
      %v6486 = vld [vmem:[#allocation2 + $0xea] sm:$0xff]
      %v6487 = vld [vmem:[#allocation2 + $0xf2] sm:$0xff]
      %v6488 = vld [vmem:[#allocation2 + $0xfa] sm:$0xff]
      %v6489 = vld [vmem:[#allocation2 + $0x102] sm:$0xff]
      %v6490 = vld [vmem:[#allocation2 + $0x10a] sm:$0xff]
      %v6491 = vld [vmem:[#allocation2 + $0x112] sm:$0xff]
      %v6492 = vsel %vm1755, %v6460, 0.0
      %v6493 = vsel %vm1756, %v6461, 0.0
      %v6494 = vsel %vm1757, %v6462, 0.0
      %v6495 = vsel %vm1758, %v6463, 0.0
      %v6496 = vsel %vm1759, %v6464, 0.0
      %v6497 = vsel %vm1760, %v6465, 0.0
      %v6498 = vsel %vm1761, %v6466, 0.0
      %v6499 = vsel %vm1762, %v6467, 0.0
      %v6500 = vsel %vm1763, %v6468, 0.0
      %v6501 = vsel %vm1764, %v6469, 0.0
      %v6502 = vsel %vm1765, %v6470, 0.0
      %v6503 = vsel %vm1766, %v6471, 0.0
      %v6504 = vsel %vm1767, %v6472, 0.0
      %v6505 = vsel %vm1768, %v6473, 0.0
      %v6506 = vsel %vm1769, %v6474, 0.0
      %v6507 = vsel %vm1770, %v6475, 0.0
      %v6508 = vsel %vm1771, %v6476, 0.0
      %v6509 = vsel %vm1772, %v6477, 0.0
      %v6510 = vsel %vm1773, %v6478, 0.0
      %v6511 = vsel %vm1774, %v6479, 0.0
      %v6512 = vsel %vm1775, %v6480, 0.0
      %v6513 = vsel %vm1776, %v6481, 0.0
      %v6514 = vsel %vm1777, %v6482, 0.0
      %v6515 = vsel %vm1778, %v6483, 0.0
      %v6516 = vsel %vm1779, %v6484, 0.0
      %v6517 = vsel %vm1780, %v6485, 0.0
      %v6518 = vsel %vm1781, %v6486, 0.0
      %v6519 = vsel %vm1782, %v6487, 0.0
      %v6520 = vsel %vm1783, %v6488, 0.0
      %v6521 = vsel %vm1784, %v6489, 0.0
      %v6522 = vsel %vm1785, %v6490, 0.0
      %v6523 = vsel %vm1786, %v6491, 0.0
      %v6524 = vld [vmem:[%s3 + $0x2] sm:$0x1]
      %v6525 = vperm.slane %v6524, 0
      %v6526 = vmul.f32 %v6492, %v6525
      %v6527 = vmul.f32 %v6493, %v6525
      %v6528 = vmul.f32 %v6494, %v6525
      %v6529 = vmul.f32 %v6495, %v6525
      %v6530 = vmul.f32 %v6496, %v6525
      %v6531 = vmul.f32 %v6497, %v6525
      %v6532 = vmul.f32 %v6498, %v6525
      %v6533 = vmul.f32 %v6499, %v6525
      %v6534 = vmul.f32 %v6500, %v6525
      %v6535 = vmul.f32 %v6501, %v6525
      %v6536 = vmul.f32 %v6502, %v6525
      %v6537 = vmul.f32 %v6503, %v6525
      %v6538 = vmul.f32 %v6504, %v6525
      %v6539 = vmul.f32 %v6505, %v6525
      %v6540 = vmul.f32 %v6506, %v6525
      %v6541 = vmul.f32 %v6507, %v6525
      %v6542 = vmul.f32 %v6508, %v6525
      %v6543 = vmul.f32 %v6509, %v6525
      %v6544 = vmul.f32 %v6510, %v6525
      %v6545 = vmul.f32 %v6511, %v6525
      %v6546 = vmul.f32 %v6512, %v6525
      %v6547 = vmul.f32 %v6513, %v6525
      %v6548 = vmul.f32 %v6514, %v6525
      %v6549 = vmul.f32 %v6515, %v6525
      %v6550 = vmul.f32 %v6516, %v6525
      %v6551 = vmul.f32 %v6517, %v6525
      %v6552 = vmul.f32 %v6518, %v6525
      %v6553 = vmul.f32 %v6519, %v6525
      %v6554 = vmul.f32 %v6520, %v6525
      %v6555 = vmul.f32 %v6521, %v6525
      %v6556 = vmul.f32 %v6522, %v6525
      %v6557 = vmul.f32 %v6523, %v6525
      %v6558 = vadd.f32 %v6428, %v6526
      %v6559 = vadd.f32 %v6429, %v6527
      %v6560 = vadd.f32 %v6430, %v6528
      %v6561 = vadd.f32 %v6431, %v6529
      %v6562 = vadd.f32 %v6432, %v6530
      %v6563 = vadd.f32 %v6433, %v6531
      %v6564 = vadd.f32 %v6434, %v6532
      %v6565 = vadd.f32 %v6435, %v6533
      %v6566 = vadd.f32 %v6436, %v6534
      %v6567 = vadd.f32 %v6437, %v6535
      %v6568 = vadd.f32 %v6438, %v6536
      %v6569 = vadd.f32 %v6439, %v6537
      %v6570 = vadd.f32 %v6440, %v6538
      %v6571 = vadd.f32 %v6441, %v6539
      %v6572 = vadd.f32 %v6442, %v6540
      %v6573 = vadd.f32 %v6443, %v6541
      %v6574 = vadd.f32 %v6444, %v6542
      %v6575 = vadd.f32 %v6445, %v6543
      %v6576 = vadd.f32 %v6446, %v6544
      %v6577 = vadd.f32 %v6447, %v6545
      %v6578 = vadd.f32 %v6448, %v6546
      %v6579 = vadd.f32 %v6449, %v6547
      %v6580 = vadd.f32 %v6450, %v6548
      %v6581 = vadd.f32 %v6451, %v6549
      %v6582 = vadd.f32 %v6452, %v6550
      %v6583 = vadd.f32 %v6453, %v6551
      %v6584 = vadd.f32 %v6454, %v6552
      %v6585 = vadd.f32 %v6455, %v6553
      %v6586 = vadd.f32 %v6456, %v6554
      %v6587 = vadd.f32 %v6457, %v6555
      %v6588 = vadd.f32 %v6458, %v6556
      %v6589 = vadd.f32 %v6459, %v6557
      %v6590 = vld [vmem:[#allocation2 + $0x118] sm:$0xff]
      %v6591 = vld [vmem:[#allocation2 + $0x120] sm:$0xff]
      %v6592 = vld [vmem:[%s3 + $0x3] sm:$0x1]
      %v6593 = vperm.slane %v6592, 0
      %v6594 = vmul.f32 %v6298, %v6593
      %v6595 = vmul.f32 %v6299, %v6593
      %v6596 = vmul.f32 %v6300, %v6593
      %v6597 = vmul.f32 %v6301, %v6593
      %v6598 = vmul.f32 %v6302, %v6593
      %v6599 = vmul.f32 %v6303, %v6593
      %v6600 = vmul.f32 %v6304, %v6593
      %v6601 = vmul.f32 %v6305, %v6593
      %v6602 = vmul.f32 %v6306, %v6593
      %v6603 = vmul.f32 %v6307, %v6593
      %v6604 = vmul.f32 %v6308, %v6593
      %v6605 = vmul.f32 %v6309, %v6593
      %v6606 = vmul.f32 %v6310, %v6593
      %v6607 = vmul.f32 %v6311, %v6593
      %v6608 = vmul.f32 %v6312, %v6593
      %v6609 = vmul.f32 %v6313, %v6593
      %v6610 = vmul.f32 %v6314, %v6593
      %v6611 = vmul.f32 %v6315, %v6593
      %v6612 = vmul.f32 %v6316, %v6593
      %v6613 = vmul.f32 %v6317, %v6593
      %v6614 = vmul.f32 %v6318, %v6593
      %v6615 = vmul.f32 %v6319, %v6593
      %v6616 = vmul.f32 %v6320, %v6593
      %v6617 = vmul.f32 %v6321, %v6593
      %v6618 = vmul.f32 %v6322, %v6593
      %v6619 = vmul.f32 %v6323, %v6593
      %v6620 = vmul.f32 %v6324, %v6593
      %v6621 = vmul.f32 %v6325, %v6593
      %v6622 = vmul.f32 %v6326, %v6593
      %v6623 = vmul.f32 %v6327, %v6593
      %v6624 = vmul.f32 %v6590, %v6593
      %v6625 = vmul.f32 %v6591, %v6593
      %v6626 = vadd.f32 %v6558, %v6594
      %v6627 = vadd.f32 %v6559, %v6595
      %v6628 = vadd.f32 %v6560, %v6596
      %v6629 = vadd.f32 %v6561, %v6597
      %v6630 = vadd.f32 %v6562, %v6598
      %v6631 = vadd.f32 %v6563, %v6599
      %v6632 = vadd.f32 %v6564, %v6600
      %v6633 = vadd.f32 %v6565, %v6601
      %v6634 = vadd.f32 %v6566, %v6602
      %v6635 = vadd.f32 %v6567, %v6603
      %v6636 = vadd.f32 %v6568, %v6604
      %v6637 = vadd.f32 %v6569, %v6605
      %v6638 = vadd.f32 %v6570, %v6606
      %v6639 = vadd.f32 %v6571, %v6607
      %v6640 = vadd.f32 %v6572, %v6608
      %v6641 = vadd.f32 %v6573, %v6609
      %v6642 = vadd.f32 %v6574, %v6610
      %v6643 = vadd.f32 %v6575, %v6611
      %v6644 = vadd.f32 %v6576, %v6612
      %v6645 = vadd.f32 %v6577, %v6613
      %v6646 = vadd.f32 %v6578, %v6614
      %v6647 = vadd.f32 %v6579, %v6615
      %v6648 = vadd.f32 %v6580, %v6616
      %v6649 = vadd.f32 %v6581, %v6617
      %v6650 = vadd.f32 %v6582, %v6618
      %v6651 = vadd.f32 %v6583, %v6619
      %v6652 = vadd.f32 %v6584, %v6620
      %v6653 = vadd.f32 %v6585, %v6621
      %v6654 = vadd.f32 %v6586, %v6622
      %v6655 = vadd.f32 %v6587, %v6623
      %v6656 = vadd.f32 %v6588, %v6624
      %v6657 = vadd.f32 %v6589, %v6625
      %v6658 = vld [vmem:[#allocation2 + $0x119] sm:$0xff]
      %v6659 = vld [vmem:[#allocation2 + $0x121] sm:$0xff]
      %v6660 = vld [vmem:[%s3 + $0x4] sm:$0x1]
      %v6661 = vperm.slane %v6660, 0
      %v6662 = vmul.f32 %v6364, %v6661
      %v6663 = vmul.f32 %v6365, %v6661
      %v6664 = vmul.f32 %v6366, %v6661
      %v6665 = vmul.f32 %v6367, %v6661
      %v6666 = vmul.f32 %v6368, %v6661
      %v6667 = vmul.f32 %v6369, %v6661
      %v6668 = vmul.f32 %v6370, %v6661
      %v6669 = vmul.f32 %v6371, %v6661
      %v6670 = vmul.f32 %v6372, %v6661
      %v6671 = vmul.f32 %v6373, %v6661
      %v6672 = vmul.f32 %v6374, %v6661
      %v6673 = vmul.f32 %v6375, %v6661
      %v6674 = vmul.f32 %v6376, %v6661
      %v6675 = vmul.f32 %v6377, %v6661
      %v6676 = vmul.f32 %v6378, %v6661
      %v6677 = vmul.f32 %v6379, %v6661
      %v6678 = vmul.f32 %v6380, %v6661
      %v6679 = vmul.f32 %v6381, %v6661
      %v6680 = vmul.f32 %v6382, %v6661
      %v6681 = vmul.f32 %v6383, %v6661
      %v6682 = vmul.f32 %v6384, %v6661
      %v6683 = vmul.f32 %v6385, %v6661
      %v6684 = vmul.f32 %v6386, %v6661
      %v6685 = vmul.f32 %v6387, %v6661
      %v6686 = vmul.f32 %v6388, %v6661
      %v6687 = vmul.f32 %v6389, %v6661
      %v6688 = vmul.f32 %v6390, %v6661
      %v6689 = vmul.f32 %v6391, %v6661
      %v6690 = vmul.f32 %v6392, %v6661
      %v6691 = vmul.f32 %v6393, %v6661
      %v6692 = vmul.f32 %v6658, %v6661
      %v6693 = vmul.f32 %v6659, %v6661
      %v6694 = vadd.f32 %v6626, %v6662
      %v6695 = vadd.f32 %v6627, %v6663
      %v6696 = vadd.f32 %v6628, %v6664
      %v6697 = vadd.f32 %v6629, %v6665
      %v6698 = vadd.f32 %v6630, %v6666
      %v6699 = vadd.f32 %v6631, %v6667
      %v6700 = vadd.f32 %v6632, %v6668
      %v6701 = vadd.f32 %v6633, %v6669
      %v6702 = vadd.f32 %v6634, %v6670
      %v6703 = vadd.f32 %v6635, %v6671
      %v6704 = vadd.f32 %v6636, %v6672
      %v6705 = vadd.f32 %v6637, %v6673
      %v6706 = vadd.f32 %v6638, %v6674
      %v6707 = vadd.f32 %v6639, %v6675
      %v6708 = vadd.f32 %v6640, %v6676
      %v6709 = vadd.f32 %v6641, %v6677
      %v6710 = vadd.f32 %v6642, %v6678
      %v6711 = vadd.f32 %v6643, %v6679
      %v6712 = vadd.f32 %v6644, %v6680
      %v6713 = vadd.f32 %v6645, %v6681
      %v6714 = vadd.f32 %v6646, %v6682
      %v6715 = vadd.f32 %v6647, %v6683
      %v6716 = vadd.f32 %v6648, %v6684
      %v6717 = vadd.f32 %v6649, %v6685
      %v6718 = vadd.f32 %v6650, %v6686
      %v6719 = vadd.f32 %v6651, %v6687
      %v6720 = vadd.f32 %v6652, %v6688
      %v6721 = vadd.f32 %v6653, %v6689
      %v6722 = vadd.f32 %v6654, %v6690
      %v6723 = vadd.f32 %v6655, %v6691
      %v6724 = vadd.f32 %v6656, %v6692
      %v6725 = vadd.f32 %v6657, %v6693
      %v6726 = vld [vmem:[#allocation2 + $0x11a] sm:$0xff]
      %v6727 = vld [vmem:[#allocation2 + $0x122] sm:$0xff]
      %v6728 = vsel %vm1755, %v6462, 0.0
      %v6729 = vsel %vm1756, %v6463, 0.0
      %v6730 = vsel %vm1757, %v6464, 0.0
      %v6731 = vsel %vm1758, %v6465, 0.0
      %v6732 = vsel %vm1759, %v6466, 0.0
      %v6733 = vsel %vm1760, %v6467, 0.0
      %v6734 = vsel %vm1761, %v6468, 0.0
      %v6735 = vsel %vm1762, %v6469, 0.0
      %v6736 = vsel %vm1763, %v6470, 0.0
      %v6737 = vsel %vm1764, %v6471, 0.0
      %v6738 = vsel %vm1765, %v6472, 0.0
      %v6739 = vsel %vm1766, %v6473, 0.0
      %v6740 = vsel %vm1767, %v6474, 0.0
      %v6741 = vsel %vm1768, %v6475, 0.0
      %v6742 = vsel %vm1769, %v6476, 0.0
      %v6743 = vsel %vm1770, %v6477, 0.0
      %v6744 = vsel %vm1771, %v6478, 0.0
      %v6745 = vsel %vm1772, %v6479, 0.0
      %v6746 = vsel %vm1773, %v6480, 0.0
      %v6747 = vsel %vm1774, %v6481, 0.0
      %v6748 = vsel %vm1775, %v6482, 0.0
      %v6749 = vsel %vm1776, %v6483, 0.0
      %v6750 = vsel %vm1777, %v6484, 0.0
      %v6751 = vsel %vm1778, %v6485, 0.0
      %v6752 = vsel %vm1779, %v6486, 0.0
      %v6753 = vsel %vm1780, %v6487, 0.0
      %v6754 = vsel %vm1781, %v6488, 0.0
      %v6755 = vsel %vm1782, %v6489, 0.0
      %v6756 = vsel %vm1783, %v6490, 0.0
      %v6757 = vsel %vm1784, %v6491, 0.0
      %v6758 = vsel %vm1785, %v6726, 0.0
      %v6759 = vsel %vm1786, %v6727, 0.0
      %v6760 = vld [vmem:[%s3 + $0x5] sm:$0x1]
      %v6761 = vperm.slane %v6760, 0
      %v6762 = vmul.f32 %v6728, %v6761
      %v6763 = vmul.f32 %v6729, %v6761
      %v6764 = vmul.f32 %v6730, %v6761
      %v6765 = vmul.f32 %v6731, %v6761
      %v6766 = vmul.f32 %v6732, %v6761
      %v6767 = vmul.f32 %v6733, %v6761
      %v6768 = vmul.f32 %v6734, %v6761
      %v6769 = vmul.f32 %v6735, %v6761
      %v6770 = vmul.f32 %v6736, %v6761
      %v6771 = vmul.f32 %v6737, %v6761
      %v6772 = vmul.f32 %v6738, %v6761
      %v6773 = vmul.f32 %v6739, %v6761
      %v6774 = vmul.f32 %v6740, %v6761
      %v6775 = vmul.f32 %v6741, %v6761
      %v6776 = vmul.f32 %v6742, %v6761
      %v6777 = vmul.f32 %v6743, %v6761
      %v6778 = vmul.f32 %v6744, %v6761
      %v6779 = vmul.f32 %v6745, %v6761
      %v6780 = vmul.f32 %v6746, %v6761
      %v6781 = vmul.f32 %v6747, %v6761
      %v6782 = vmul.f32 %v6748, %v6761
      %v6783 = vmul.f32 %v6749, %v6761
      %v6784 = vmul.f32 %v6750, %v6761
      %v6785 = vmul.f32 %v6751, %v6761
      %v6786 = vmul.f32 %v6752, %v6761
      %v6787 = vmul.f32 %v6753, %v6761
      %v6788 = vmul.f32 %v6754, %v6761
      %v6789 = vmul.f32 %v6755, %v6761
      %v6790 = vmul.f32 %v6756, %v6761
      %v6791 = vmul.f32 %v6757, %v6761
      %v6792 = vmul.f32 %v6758, %v6761
      %v6793 = vmul.f32 %v6759, %v6761
      %v6794 = vadd.f32 %v6694, %v6762
      %v6795 = vadd.f32 %v6695, %v6763
      %v6796 = vadd.f32 %v6696, %v6764
      %v6797 = vadd.f32 %v6697, %v6765
      %v6798 = vadd.f32 %v6698, %v6766
      %v6799 = vadd.f32 %v6699, %v6767
      %v6800 = vadd.f32 %v6700, %v6768
      %v6801 = vadd.f32 %v6701, %v6769
      %v6802 = vadd.f32 %v6702, %v6770
      %v6803 = vadd.f32 %v6703, %v6771
      %v6804 = vadd.f32 %v6704, %v6772
      %v6805 = vadd.f32 %v6705, %v6773
      %v6806 = vadd.f32 %v6706, %v6774
      %v6807 = vadd.f32 %v6707, %v6775
      %v6808 = vadd.f32 %v6708, %v6776
      %v6809 = vadd.f32 %v6709, %v6777
      %v6810 = vadd.f32 %v6710, %v6778
      %v6811 = vadd.f32 %v6711, %v6779
      %v6812 = vadd.f32 %v6712, %v6780
      %v6813 = vadd.f32 %v6713, %v6781
      %v6814 = vadd.f32 %v6714, %v6782
      %v6815 = vadd.f32 %v6715, %v6783
      %v6816 = vadd.f32 %v6716, %v6784
      %v6817 = vadd.f32 %v6717, %v6785
      %v6818 = vadd.f32 %v6718, %v6786
      %v6819 = vadd.f32 %v6719, %v6787
      %v6820 = vadd.f32 %v6720, %v6788
      %v6821 = vadd.f32 %v6721, %v6789
      %v6822 = vadd.f32 %v6722, %v6790
      %v6823 = vadd.f32 %v6723, %v6791
      %v6824 = vadd.f32 %v6724, %v6792
      %v6825 = vadd.f32 %v6725, %v6793
      %v6826 = vld [vmem:[#allocation2 + $0x128] sm:$0xff]
      %v6827 = vld [vmem:[#allocation2 + $0x130] sm:$0xff]
      %v6828 = vld [vmem:[%s3 + $0x6] sm:$0x1]
      %v6829 = vperm.slane %v6828, 0
      %v6830 = vmul.f32 %v6300, %v6829
      %v6831 = vmul.f32 %v6301, %v6829
      %v6832 = vmul.f32 %v6302, %v6829
      %v6833 = vmul.f32 %v6303, %v6829
      %v6834 = vmul.f32 %v6304, %v6829
      %v6835 = vmul.f32 %v6305, %v6829
      %v6836 = vmul.f32 %v6306, %v6829
      %v6837 = vmul.f32 %v6307, %v6829
      %v6838 = vmul.f32 %v6308, %v6829
      %v6839 = vmul.f32 %v6309, %v6829
      %v6840 = vmul.f32 %v6310, %v6829
      %v6841 = vmul.f32 %v6311, %v6829
      %v6842 = vmul.f32 %v6312, %v6829
      %v6843 = vmul.f32 %v6313, %v6829
      %v6844 = vmul.f32 %v6314, %v6829
      %v6845 = vmul.f32 %v6315, %v6829
      %v6846 = vmul.f32 %v6316, %v6829
      %v6847 = vmul.f32 %v6317, %v6829
      %v6848 = vmul.f32 %v6318, %v6829
      %v6849 = vmul.f32 %v6319, %v6829
      %v6850 = vmul.f32 %v6320, %v6829
      %v6851 = vmul.f32 %v6321, %v6829
      %v6852 = vmul.f32 %v6322, %v6829
      %v6853 = vmul.f32 %v6323, %v6829
      %v6854 = vmul.f32 %v6324, %v6829
      %v6855 = vmul.f32 %v6325, %v6829
      %v6856 = vmul.f32 %v6326, %v6829
      %v6857 = vmul.f32 %v6327, %v6829
      %v6858 = vmul.f32 %v6590, %v6829
      %v6859 = vmul.f32 %v6591, %v6829
      %v6860 = vmul.f32 %v6826, %v6829
      %v6861 = vmul.f32 %v6827, %v6829
      %v6862 = vadd.f32 %v6794, %v6830
      %v6863 = vadd.f32 %v6795, %v6831
      %v6864 = vadd.f32 %v6796, %v6832
      %v6865 = vadd.f32 %v6797, %v6833
      %v6866 = vadd.f32 %v6798, %v6834
      %v6867 = vadd.f32 %v6799, %v6835
      %v6868 = vadd.f32 %v6800, %v6836
      %v6869 = vadd.f32 %v6801, %v6837
      %v6870 = vadd.f32 %v6802, %v6838
      %v6871 = vadd.f32 %v6803, %v6839
      %v6872 = vadd.f32 %v6804, %v6840
      %v6873 = vadd.f32 %v6805, %v6841
      %v6874 = vadd.f32 %v6806, %v6842
      %v6875 = vadd.f32 %v6807, %v6843
      %v6876 = vadd.f32 %v6808, %v6844
      %v6877 = vadd.f32 %v6809, %v6845
      %v6878 = vadd.f32 %v6810, %v6846
      %v6879 = vadd.f32 %v6811, %v6847
      %v6880 = vadd.f32 %v6812, %v6848
      %v6881 = vadd.f32 %v6813, %v6849
      %v6882 = vadd.f32 %v6814, %v6850
      %v6883 = vadd.f32 %v6815, %v6851
      %v6884 = vadd.f32 %v6816, %v6852
      %v6885 = vadd.f32 %v6817, %v6853
      %v6886 = vadd.f32 %v6818, %v6854
      %v6887 = vadd.f32 %v6819, %v6855
      %v6888 = vadd.f32 %v6820, %v6856
      %v6889 = vadd.f32 %v6821, %v6857
      %v6890 = vadd.f32 %v6822, %v6858
      %v6891 = vadd.f32 %v6823, %v6859
      %v6892 = vadd.f32 %v6824, %v6860
      %v6893 = vadd.f32 %v6825, %v6861
      %v6894 = vld [vmem:[#allocation2 + $0x129] sm:$0xff]
      %v6895 = vld [vmem:[#allocation2 + $0x131] sm:$0xff]
      %v6896 = vld [vmem:[%s3 + $0x7] sm:$0x1]
      %v6897 = vperm.slane %v6896, 0
      %v6898 = vmul.f32 %v6366, %v6897
      %v6899 = vmul.f32 %v6367, %v6897
      %v6900 = vmul.f32 %v6368, %v6897
      %v6901 = vmul.f32 %v6369, %v6897
      %v6902 = vmul.f32 %v6370, %v6897
      %v6903 = vmul.f32 %v6371, %v6897
      %v6904 = vmul.f32 %v6372, %v6897
      %v6905 = vmul.f32 %v6373, %v6897
      %v6906 = vmul.f32 %v6374, %v6897
      %v6907 = vmul.f32 %v6375, %v6897
      %v6908 = vmul.f32 %v6376, %v6897
      %v6909 = vmul.f32 %v6377, %v6897
      %v6910 = vmul.f32 %v6378, %v6897
      %v6911 = vmul.f32 %v6379, %v6897
      %v6912 = vmul.f32 %v6380, %v6897
      %v6913 = vmul.f32 %v6381, %v6897
      %v6914 = vmul.f32 %v6382, %v6897
      %v6915 = vmul.f32 %v6383, %v6897
      %v6916 = vmul.f32 %v6384, %v6897
      %v6917 = vmul.f32 %v6385, %v6897
      %v6918 = vmul.f32 %v6386, %v6897
      %v6919 = vmul.f32 %v6387, %v6897
      %v6920 = vmul.f32 %v6388, %v6897
      %v6921 = vmul.f32 %v6389, %v6897
      %v6922 = vmul.f32 %v6390, %v6897
      %v6923 = vmul.f32 %v6391, %v6897
      %v6924 = vmul.f32 %v6392, %v6897
      %v6925 = vmul.f32 %v6393, %v6897
      %v6926 = vmul.f32 %v6658, %v6897
      %v6927 = vmul.f32 %v6659, %v6897
      %v6928 = vmul.f32 %v6894, %v6897
      %v6929 = vmul.f32 %v6895, %v6897
      %v6930 = vadd.f32 %v6862, %v6898
      %v6931 = vadd.f32 %v6863, %v6899
      %v6932 = vadd.f32 %v6864, %v6900
      %v6933 = vadd.f32 %v6865, %v6901
      %v6934 = vadd.f32 %v6866, %v6902
      %v6935 = vadd.f32 %v6867, %v6903
      %v6936 = vadd.f32 %v6868, %v6904
      %v6937 = vadd.f32 %v6869, %v6905
      %v6938 = vadd.f32 %v6870, %v6906
      %v6939 = vadd.f32 %v6871, %v6907
      %v6940 = vadd.f32 %v6872, %v6908
      %v6941 = vadd.f32 %v6873, %v6909
      %v6942 = vadd.f32 %v6874, %v6910
      %v6943 = vadd.f32 %v6875, %v6911
      %v6944 = vadd.f32 %v6876, %v6912
      %v6945 = vadd.f32 %v6877, %v6913
      %v6946 = vadd.f32 %v6878, %v6914
      %v6947 = vadd.f32 %v6879, %v6915
      %v6948 = vadd.f32 %v6880, %v6916
      %v6949 = vadd.f32 %v6881, %v6917
      %v6950 = vadd.f32 %v6882, %v6918
      %v6951 = vadd.f32 %v6883, %v6919
      %v6952 = vadd.f32 %v6884, %v6920
      %v6953 = vadd.f32 %v6885, %v6921
      %v6954 = vadd.f32 %v6886, %v6922
      %v6955 = vadd.f32 %v6887, %v6923
      %v6956 = vadd.f32 %v6888, %v6924
      %v6957 = vadd.f32 %v6889, %v6925
      %v6958 = vadd.f32 %v6890, %v6926
      %v6959 = vadd.f32 %v6891, %v6927
      %v6960 = vadd.f32 %v6892, %v6928
      %v6961 = vadd.f32 %v6893, %v6929
      %v6962 = vld [vmem:[#allocation2 + $0x12a] sm:$0xff]
      %v6963 = vld [vmem:[#allocation2 + $0x132] sm:$0xff]
      %v6964 = vsel %vm1755, %v6464, 0.0
      %v6965 = vsel %vm1756, %v6465, 0.0
      %v6966 = vsel %vm1757, %v6466, 0.0
      %v6967 = vsel %vm1758, %v6467, 0.0
      %v6968 = vsel %vm1759, %v6468, 0.0
      %v6969 = vsel %vm1760, %v6469, 0.0
      %v6970 = vsel %vm1761, %v6470, 0.0
      %v6971 = vsel %vm1762, %v6471, 0.0
      %v6972 = vsel %vm1763, %v6472, 0.0
      %v6973 = vsel %vm1764, %v6473, 0.0
      %v6974 = vsel %vm1765, %v6474, 0.0
      %v6975 = vsel %vm1766, %v6475, 0.0
      %v6976 = vsel %vm1767, %v6476, 0.0
      %v6977 = vsel %vm1768, %v6477, 0.0
      %v6978 = vsel %vm1769, %v6478, 0.0
      %v6979 = vsel %vm1770, %v6479, 0.0
      %v6980 = vsel %vm1771, %v6480, 0.0
      %v6981 = vsel %vm1772, %v6481, 0.0
      %v6982 = vsel %vm1773, %v6482, 0.0
      %v6983 = vsel %vm1774, %v6483, 0.0
      %v6984 = vsel %vm1775, %v6484, 0.0
      %v6985 = vsel %vm1776, %v6485, 0.0
      %v6986 = vsel %vm1777, %v6486, 0.0
      %v6987 = vsel %vm1778, %v6487, 0.0
      %v6988 = vsel %vm1779, %v6488, 0.0
      %v6989 = vsel %vm1780, %v6489, 0.0
      %v6990 = vsel %vm1781, %v6490, 0.0
      %v6991 = vsel %vm1782, %v6491, 0.0
      %v6992 = vsel %vm1783, %v6726, 0.0
      %v6993 = vsel %vm1784, %v6727, 0.0
      %v6994 = vsel %vm1785, %v6962, 0.0
      %v6995 = vsel %vm1786, %v6963, 0.0
      %v6996 = vld [vmem:[%s3 + $0x8] sm:$0x1]
      %v6997 = vperm.slane %v6996, 0
      %v6998 = vmul.f32 %v6964, %v6997
      %v6999 = vmul.f32 %v6965, %v6997
      %v7000 = vmul.f32 %v6966, %v6997
      %v7001 = vmul.f32 %v6967, %v6997
      %v7002 = vmul.f32 %v6968, %v6997
      %v7003 = vmul.f32 %v6969, %v6997
      %v7004 = vmul.f32 %v6970, %v6997
      %v7005 = vmul.f32 %v6971, %v6997
      %v7006 = vmul.f32 %v6972, %v6997
      %v7007 = vmul.f32 %v6973, %v6997
      %v7008 = vmul.f32 %v6974, %v6997
      %v7009 = vmul.f32 %v6975, %v6997
      %v7010 = vmul.f32 %v6976, %v6997
      %v7011 = vmul.f32 %v6977, %v6997
      %v7012 = vmul.f32 %v6978, %v6997
      %v7013 = vmul.f32 %v6979, %v6997
      %v7014 = vmul.f32 %v6980, %v6997
      %v7015 = vmul.f32 %v6981, %v6997
      %v7016 = vmul.f32 %v6982, %v6997
      %v7017 = vmul.f32 %v6983, %v6997
      %v7018 = vmul.f32 %v6984, %v6997
      %v7019 = vmul.f32 %v6985, %v6997
      %v7020 = vmul.f32 %v6986, %v6997
      %v7021 = vmul.f32 %v6987, %v6997
      %v7022 = vmul.f32 %v6988, %v6997
      %v7023 = vmul.f32 %v6989, %v6997
      %v7024 = vmul.f32 %v6990, %v6997
      %v7025 = vmul.f32 %v6991, %v6997
      %v7026 = vmul.f32 %v6992, %v6997
      %v7027 = vmul.f32 %v6993, %v6997
      %v7028 = vmul.f32 %v6994, %v6997
      %v7029 = vmul.f32 %v6995, %v6997
      %v7030 = vadd.f32 %v6930, %v6998
      %v7031 = vadd.f32 %v6931, %v6999
      %v7032 = vadd.f32 %v6932, %v7000
      %v7033 = vadd.f32 %v6933, %v7001
      %v7034 = vadd.f32 %v6934, %v7002
      %v7035 = vadd.f32 %v6935, %v7003
      %v7036 = vadd.f32 %v6936, %v7004
      %v7037 = vadd.f32 %v6937, %v7005
      %v7038 = vadd.f32 %v6938, %v7006
      %v7039 = vadd.f32 %v6939, %v7007
      %v7040 = vadd.f32 %v6940, %v7008
      %v7041 = vadd.f32 %v6941, %v7009
      %v7042 = vadd.f32 %v6942, %v7010
      %v7043 = vadd.f32 %v6943, %v7011
      %v7044 = vadd.f32 %v6944, %v7012
      %v7045 = vadd.f32 %v6945, %v7013
      %v7046 = vadd.f32 %v6946, %v7014
      %v7047 = vadd.f32 %v6947, %v7015
      %v7048 = vadd.f32 %v6948, %v7016
      %v7049 = vadd.f32 %v6949, %v7017
      %v7050 = vadd.f32 %v6950, %v7018
      %v7051 = vadd.f32 %v6951, %v7019
      %v7052 = vadd.f32 %v6952, %v7020
      %v7053 = vadd.f32 %v6953, %v7021
      %v7054 = vadd.f32 %v6954, %v7022
      %v7055 = vadd.f32 %v6955, %v7023
      %v7056 = vadd.f32 %v6956, %v7024
      %v7057 = vadd.f32 %v6957, %v7025
      %v7058 = vadd.f32 %v6958, %v7026
      %v7059 = vadd.f32 %v6959, %v7027
      %v7060 = vadd.f32 %v6960, %v7028
      %v7061 = vadd.f32 %v6961, %v7029
      %v7062 = vld [vmem:[%s4] sm:$0xff]
      %v7063 = vld [vmem:[%s4 + $0x8] sm:$0xff]
      %v7064 = vld [vmem:[%s4 + $0x10] sm:$0xff]
      %v7065 = vld [vmem:[%s4 + $0x18] sm:$0xff]
      %v7066 = vld [vmem:[%s4 + $0x20] sm:$0xff]
      %v7067 = vld [vmem:[%s4 + $0x28] sm:$0xff]
      %v7068 = vld [vmem:[%s4 + $0x30] sm:$0xff]
      %v7069 = vld [vmem:[%s4 + $0x38] sm:$0xff]
      %v7070 = vpack.c.bf16 %v7031, %v7030
      %v7071 = vpack.c.bf16 %v7033, %v7032
      %v7072 = vpack.c.bf16 %v7035, %v7034
      %v7073 = vpack.c.bf16 %v7037, %v7036
      %v7074 = vpack.c.bf16 %v7039, %v7038
      %v7075 = vpack.c.bf16 %v7041, %v7040
      %v7076 = vpack.c.bf16 %v7043, %v7042
      %v7077 = vpack.c.bf16 %v7045, %v7044
      %v7078 = vpack.c.bf16 %v7047, %v7046
      %v7079 = vpack.c.bf16 %v7049, %v7048
      %v7080 = vpack.c.bf16 %v7051, %v7050
      %v7081 = vpack.c.bf16 %v7053, %v7052
      %v7082 = vpack.c.bf16 %v7055, %v7054
      %v7083 = vpack.c.bf16 %v7057, %v7056
      %v7084 = vpack.c.bf16 %v7059, %v7058
      %v7085 = vpack.c.bf16 %v7061, %v7060
      %v7094 = vunpack.c.l.b16 %v7062
      %v7095 = vunpack.c.h.b16 %v7062
      %v7096 = vunpack.c.l.b16 %v7063
      %v7097 = vunpack.c.h.b16 %v7063
      %v7098 = vunpack.c.l.b16 %v7064
      %v7099 = vunpack.c.h.b16 %v7064
      %v7100 = vunpack.c.l.b16 %v7065
      %v7101 = vunpack.c.h.b16 %v7065
      %v7102 = vunpack.c.l.b16 %v7066
      %v7103 = vunpack.c.h.b16 %v7066
      %v7104 = vunpack.c.l.b16 %v7067
      %v7105 = vunpack.c.h.b16 %v7067
      %v7106 = vunpack.c.l.b16 %v7068
      %v7107 = vunpack.c.h.b16 %v7068
      %v7108 = vunpack.c.l.b16 %v7069
      %v7109 = vunpack.c.h.b16 %v7069
      %v7110 = vpack.c.b16 %v7096, %v7094
      %v7111 = vpack.c.b16 %v7097, %v7095
      %v7112 = vpack.c.b16 %v7100, %v7098
      %v7113 = vpack.c.b16 %v7101, %v7099
      %v7114 = vpack.c.b16 %v7104, %v7102
      %v7115 = vpack.c.b16 %v7105, %v7103
      %v7116 = vpack.c.b16 %v7108, %v7106
      %v7117 = vpack.c.b16 %v7109, %v7107
      %7126 = vmatpush.bf16.msra.mxu0 %v7077
      %7127 = vmatpush.bf16.msra.mxu0 %v7076
      %7128 = vmatpush.bf16.msra.mxu0 %v7075
      %7129 = vmatpush.bf16.msra.mxu0 %v7074
      %7130 = vmatpush.bf16.msra.mxu0 %v7073
      %7131 = vmatpush.bf16.msra.mxu0 %v7072
      %7132 = vmatpush.bf16.msra.mxu0 %v7071
      %7133 = vmatpush.bf16.msra.mxu0 %v7070
      %7134 = vmatmul.bf16.gmra.mxu0 %v7110
      %v7135 = vpop.f32.mrf.mxu0
      %v7136 = vadd.f32 0.0, %v7135
      %v7137 = vpop.f32.mrf.mxu0
      %v7138 = vadd.f32 0.0, %v7137
      %7139 = vmatmul.bf16.gmra.mxu0 %v7112
      %v7140 = vpop.f32.mrf.mxu0
      %v7141 = vadd.f32 0.0, %v7140
      %v7142 = vpop.f32.mrf.mxu0
      %v7143 = vadd.f32 0.0, %v7142
      %7144 = vmatmul.bf16.gmra.mxu0 %v7114
      %v7145 = vpop.f32.mrf.mxu0
      %v7146 = vadd.f32 0.0, %v7145
      %v7147 = vpop.f32.mrf.mxu0
      %v7148 = vadd.f32 0.0, %v7147
      %7149 = vmatmul.bf16.gmra.mxu0 %v7116
      %v7150 = vpop.f32.mrf.mxu0
      %v7151 = vadd.f32 0.0, %v7150
      %v7152 = vpop.f32.mrf.mxu0
      %v7153 = vadd.f32 0.0, %v7152
      %7154 = vdwg.mxu0
      %7155 = vmatpush.bf16.msra.mxu0 %v7085
      %7156 = vmatpush.bf16.msra.mxu0 %v7084
      %7157 = vmatpush.bf16.msra.mxu0 %v7083
      %7158 = vmatpush.bf16.msra.mxu0 %v7082
      %7159 = vmatpush.bf16.msra.mxu0 %v7081
      %7160 = vmatpush.bf16.msra.mxu0 %v7080
      %7161 = vmatpush.bf16.msra.mxu0 %v7079
      %7162 = vmatpush.bf16.msra.mxu0 %v7078
      %7163 = vmatmul.bf16.gmra.mxu0 %v7111
      %v7164 = vpop.f32.mrf.mxu0
      %v7165 = vadd.f32 %v7136, %v7164
      %v7166 = vpop.f32.mrf.mxu0
      %v7167 = vadd.f32 %v7138, %v7166
      %7168 = vmatmul.bf16.gmra.mxu0 %v7113
      %v7169 = vpop.f32.mrf.mxu0
      %v7170 = vadd.f32 %v7141, %v7169
      %v7171 = vpop.f32.mrf.mxu0
      %v7172 = vadd.f32 %v7143, %v7171
      %7173 = vmatmul.bf16.gmra.mxu0 %v7115
      %v7174 = vpop.f32.mrf.mxu0
      %v7175 = vadd.f32 %v7146, %v7174
      %v7176 = vpop.f32.mrf.mxu0
      %v7177 = vadd.f32 %v7148, %v7176
      %7178 = vmatmul.bf16.gmra.mxu0 %v7117
      %v7179 = vpop.f32.mrf.mxu0
      %v7180 = vadd.f32 %v7151, %v7179
      %v7181 = vpop.f32.mrf.mxu0
      %v7182 = vadd.f32 %v7153, %v7181
      %7183 = vdwg.mxu0
      %v7184 = vld [vmem:[%s5 + $0x4] sm:$0x1]
      %v7185 = vperm.slane %v7184, 0
      %v7186 = vmul.f32 %v7165, %v7185
      %v7187 = vmul.f32 %v7167, %v7185
      %v7188 = vmul.f32 %v7170, %v7185
      %v7189 = vmul.f32 %v7172, %v7185
      %v7190 = vmul.f32 %v7175, %v7185
      %v7191 = vmul.f32 %v7177, %v7185
      %v7192 = vmul.f32 %v7180, %v7185
      %v7193 = vmul.f32 %v7182, %v7185
      %v7194 = vld [vmem:[%s6 + $0x4] sm:$0x1]
      %v7195 = vperm.slane %v7194, 0
      %v7196 = vadd.f32 %v7186, %v7195
      %v7197 = vadd.f32 %v7187, %v7195
      %v7198 = vadd.f32 %v7188, %v7195
      %v7199 = vadd.f32 %v7189, %v7195
      %v7200 = vadd.f32 %v7190, %v7195
      %v7201 = vadd.f32 %v7191, %v7195
      %v7202 = vadd.f32 %v7192, %v7195
      %v7203 = vadd.f32 %v7193, %v7195
      %v7204 = vxor.u32 %v7196, 2147483648
      %v7205 = vxor.u32 %v7197, 2147483648
      %v7206 = vxor.u32 %v7198, 2147483648
      %v7207 = vxor.u32 %v7199, 2147483648
      %v7208 = vxor.u32 %v7200, 2147483648
      %v7209 = vxor.u32 %v7201, 2147483648
      %v7210 = vxor.u32 %v7202, 2147483648
      %v7211 = vxor.u32 %v7203, 2147483648
      %v7212 = vmul.f32 %v7204, 1.442695
      %v7213 = vpow.pop %v7212
      %v7214 = vmul.f32 %v7205, 1.442695
      %v7215 = vpow.pop %v7214
      %v7216 = vmul.f32 %v7206, 1.442695
      %v7217 = vpow.pop %v7216
      %v7218 = vmul.f32 %v7207, 1.442695
      %v7219 = vpow.pop %v7218
      %v7220 = vmul.f32 %v7208, 1.442695
      %v7221 = vpow.pop %v7220
      %v7222 = vmul.f32 %v7209, 1.442695
      %v7223 = vpow.pop %v7222
      %v7224 = vmul.f32 %v7210, 1.442695
      %v7225 = vpow.pop %v7224
      %v7226 = vmul.f32 %v7211, 1.442695
      %v7227 = vpow.pop %v7226
      %v7228 = vadd.f32 %v7213, 1.0
      %v7229 = vadd.f32 %v7215, 1.0
      %v7230 = vadd.f32 %v7217, 1.0
      %v7231 = vadd.f32 %v7219, 1.0
      %v7232 = vadd.f32 %v7221, 1.0
      %v7233 = vadd.f32 %v7223, 1.0
      %v7234 = vadd.f32 %v7225, 1.0
      %v7235 = vadd.f32 %v7227, 1.0
      %v7236 = vrcp.pop %v7228
      %v7237 = vmul.f32 %v7228, %v7236
      %v7238 = vsub.f32 1.0, %v7237
      %v7239 = vmul.f32 %v7236, %v7238
      %v7240 = vadd.f32 %v7236, %v7239
      %vm7241 = vweird.f32 %v7228
      %vm7242 = vweird.f32 %v7236
      %vm7243 = vmor %vm7241, %vm7242
      %v7244 = vsel %vm7243, %v7236, %v7240
      %v7245 = vand.u32 2147483647, %v7228
      %vm7246 = vcmp.eq.f32.partialorder %v7245, 8.507059e+37
      %v7247 = vand.u32 %v7228, 2147483648
      %v7248 = vor.u32 1.1754944e-38, %v7247
      %v7249 = vsel %vm7246, %v7248, %v7244
      %v7250 = vmul.f32 1.0, %v7249
      %v7251 = vrcp.pop %v7229
      %v7252 = vmul.f32 %v7229, %v7251
      %v7253 = vsub.f32 1.0, %v7252
      %v7254 = vmul.f32 %v7251, %v7253
      %v7255 = vadd.f32 %v7251, %v7254
      %vm7256 = vweird.f32 %v7229
      %vm7257 = vweird.f32 %v7251
      %vm7258 = vmor %vm7256, %vm7257
      %v7259 = vsel %vm7258, %v7251, %v7255
      %v7260 = vand.u32 2147483647, %v7229
      %vm7261 = vcmp.eq.f32.partialorder %v7260, 8.507059e+37
      %v7262 = vand.u32 %v7229, 2147483648
      %v7263 = vor.u32 1.1754944e-38, %v7262
      %v7264 = vsel %vm7261, %v7263, %v7259
      %v7265 = vmul.f32 1.0, %v7264
      %v7266 = vrcp.pop %v7230
      %v7267 = vmul.f32 %v7230, %v7266
      %v7268 = vsub.f32 1.0, %v7267
      %v7269 = vmul.f32 %v7266, %v7268
      %v7270 = vadd.f32 %v7266, %v7269
      %vm7271 = vweird.f32 %v7230
      %vm7272 = vweird.f32 %v7266
      %vm7273 = vmor %vm7271, %vm7272
      %v7274 = vsel %vm7273, %v7266, %v7270
      %v7275 = vand.u32 2147483647, %v7230
      %vm7276 = vcmp.eq.f32.partialorder %v7275, 8.507059e+37
      %v7277 = vand.u32 %v7230, 2147483648
      %v7278 = vor.u32 1.1754944e-38, %v7277
      %v7279 = vsel %vm7276, %v7278, %v7274
      %v7280 = vmul.f32 1.0, %v7279
      %v7281 = vrcp.pop %v7231
      %v7282 = vmul.f32 %v7231, %v7281
      %v7283 = vsub.f32 1.0, %v7282
      %v7284 = vmul.f32 %v7281, %v7283
      %v7285 = vadd.f32 %v7281, %v7284
      %vm7286 = vweird.f32 %v7231
      %vm7287 = vweird.f32 %v7281
      %vm7288 = vmor %vm7286, %vm7287
      %v7289 = vsel %vm7288, %v7281, %v7285
      %v7290 = vand.u32 2147483647, %v7231
      %vm7291 = vcmp.eq.f32.partialorder %v7290, 8.507059e+37
      %v7292 = vand.u32 %v7231, 2147483648
      %v7293 = vor.u32 1.1754944e-38, %v7292
      %v7294 = vsel %vm7291, %v7293, %v7289
      %v7295 = vmul.f32 1.0, %v7294
      %v7296 = vrcp.pop %v7232
      %v7297 = vmul.f32 %v7232, %v7296
      %v7298 = vsub.f32 1.0, %v7297
      %v7299 = vmul.f32 %v7296, %v7298
      %v7300 = vadd.f32 %v7296, %v7299
      %vm7301 = vweird.f32 %v7232
      %vm7302 = vweird.f32 %v7296
      %vm7303 = vmor %vm7301, %vm7302
      %v7304 = vsel %vm7303, %v7296, %v7300
      %v7305 = vand.u32 2147483647, %v7232
      %vm7306 = vcmp.eq.f32.partialorder %v7305, 8.507059e+37
      %v7307 = vand.u32 %v7232, 2147483648
      %v7308 = vor.u32 1.1754944e-38, %v7307
      %v7309 = vsel %vm7306, %v7308, %v7304
      %v7310 = vmul.f32 1.0, %v7309
      %v7311 = vrcp.pop %v7233
      %v7312 = vmul.f32 %v7233, %v7311
      %v7313 = vsub.f32 1.0, %v7312
      %v7314 = vmul.f32 %v7311, %v7313
      %v7315 = vadd.f32 %v7311, %v7314
      %vm7316 = vweird.f32 %v7233
      %vm7317 = vweird.f32 %v7311
      %vm7318 = vmor %vm7316, %vm7317
      %v7319 = vsel %vm7318, %v7311, %v7315
      %v7320 = vand.u32 2147483647, %v7233
      %vm7321 = vcmp.eq.f32.partialorder %v7320, 8.507059e+37
      %v7322 = vand.u32 %v7233, 2147483648
      %v7323 = vor.u32 1.1754944e-38, %v7322
      %v7324 = vsel %vm7321, %v7323, %v7319
      %v7325 = vmul.f32 1.0, %v7324
      %v7326 = vrcp.pop %v7234
      %v7327 = vmul.f32 %v7234, %v7326
      %v7328 = vsub.f32 1.0, %v7327
      %v7329 = vmul.f32 %v7326, %v7328
      %v7330 = vadd.f32 %v7326, %v7329
      %vm7331 = vweird.f32 %v7234
      %vm7332 = vweird.f32 %v7326
      %vm7333 = vmor %vm7331, %vm7332
      %v7334 = vsel %vm7333, %v7326, %v7330
      %v7335 = vand.u32 2147483647, %v7234
      %vm7336 = vcmp.eq.f32.partialorder %v7335, 8.507059e+37
      %v7337 = vand.u32 %v7234, 2147483648
      %v7338 = vor.u32 1.1754944e-38, %v7337
      %v7339 = vsel %vm7336, %v7338, %v7334
      %v7340 = vmul.f32 1.0, %v7339
      %v7341 = vrcp.pop %v7235
      %v7342 = vmul.f32 %v7235, %v7341
      %v7343 = vsub.f32 1.0, %v7342
      %v7344 = vmul.f32 %v7341, %v7343
      %v7345 = vadd.f32 %v7341, %v7344
      %vm7346 = vweird.f32 %v7235
      %vm7347 = vweird.f32 %v7341
      %vm7348 = vmor %vm7346, %vm7347
      %v7349 = vsel %vm7348, %v7341, %v7345
      %v7350 = vand.u32 2147483647, %v7235
      %vm7351 = vcmp.eq.f32.partialorder %v7350, 8.507059e+37
      %v7352 = vand.u32 %v7235, 2147483648
      %v7353 = vor.u32 1.1754944e-38, %v7352
      %v7354 = vsel %vm7351, %v7353, %v7349
      %v7355 = vmul.f32 1.0, %v7354
      %v7356 = vmul.f32 %v7196, %v7250
      %v7357 = vmul.f32 %v7197, %v7265
      %v7358 = vmul.f32 %v7198, %v7280
      %v7359 = vmul.f32 %v7199, %v7295
      %v7360 = vmul.f32 %v7200, %v7310
      %v7361 = vmul.f32 %v7201, %v7325
      %v7362 = vmul.f32 %v7202, %v7340
      %v7363 = vmul.f32 %v7203, %v7355
      %v7364 = vadd.f32 %v7356, %v7357
      %v7365 = vadd.f32 %v7364, %v7358
      %v7366 = vadd.f32 %v7365, %v7359
      %v7367 = vadd.f32 %v7366, %v7360
      %v7368 = vadd.f32 %v7367, %v7361
      %v7369 = vadd.f32 %v7368, %v7362
      %v7370 = vadd.f32 %v7369, %v7363
      %v7371 = vrot.slane %v7370, 4
      %v7372 = vadd.f32 %v7370, %v7371
      %v7373 = vrot.slane %v7372, 2
      %v7374 = vadd.f32 %v7372, %v7373
      %v7375 = vrot.slane %v7374, 1
      %v7376 = vadd.f32 %v7374, %v7375
      %v7377 = vrcp.pop 64.0
      %v7378 = vmul.f32 64.0, %v7377
      %v7379 = vsub.f32 1.0, %v7378
      %v7380 = vmul.f32 %v7377, %v7379
      %v7381 = vadd.f32 %v7377, %v7380
      %vm7382 = vweird.f32 %v7377
      %v7383 = vsel %vm7382, %v7377, %v7381
      %v7384 = vmul.f32 %v7376, %v7383
      %v7385 = vpack.c.bf16 %v7384, %v7384
      %s7386 = scalar_lea.vmem %s2, 192
      %v7387 = vld [vmem:[%s7386] sm:$0xf]
      %v7388 = vld [vmem:[%s7386 + $0x4] sm:$0xf]
      %v7389 = vld [vmem:[%s7386 + $0x8] sm:$0xf]
      %v7390 = vld [vmem:[%s7386 + $0xc] sm:$0xf]
      %v7391 = vld [vmem:[%s7386 + $0x10] sm:$0xf]
      %v7392 = vld [vmem:[%s7386 + $0x14] sm:$0xf]
      %v7393 = vld [vmem:[%s7386 + $0x18] sm:$0xf]
      %v7394 = vld [vmem:[%s7386 + $0x1c] sm:$0xf]
      %v7395 = vld [vmem:[%s7386 + $0x20] sm:$0xf]
      %v7396 = vld [vmem:[%s7386 + $0x24] sm:$0xf]
      %v7397 = vld [vmem:[%s7386 + $0x28] sm:$0xf]
      %v7398 = vld [vmem:[%s7386 + $0x2c] sm:$0xf]
      %v7399 = vld [vmem:[%s7386 + $0x30] sm:$0xf]
      %v7400 = vld [vmem:[%s7386 + $0x34] sm:$0xf]
      %v7401 = vld [vmem:[%s7386 + $0x38] sm:$0xf]
      %v7402 = vld [vmem:[%s7386 + $0x3c] sm:$0xf]
      %v7403 = vld [vmem:[%s6 + $0x5] sm:$0x1]
      %v7420 = vunpack.c.l.b16 %v7387
      %v7421 = vunpack.c.l.b16 %v7388
      %v7422 = vunpack.c.l.b16 %v7389
      %v7423 = vunpack.c.l.b16 %v7390
      %v7424 = vunpack.c.l.b16 %v7391
      %v7425 = vunpack.c.l.b16 %v7392
      %v7426 = vunpack.c.l.b16 %v7393
      %v7427 = vunpack.c.l.b16 %v7394
      %v7428 = vunpack.c.l.b16 %v7395
      %v7429 = vunpack.c.l.b16 %v7396
      %v7430 = vunpack.c.l.b16 %v7397
      %v7431 = vunpack.c.l.b16 %v7398
      %v7432 = vunpack.c.l.b16 %v7399
      %v7433 = vunpack.c.l.b16 %v7400
      %v7434 = vunpack.c.l.b16 %v7401
      %v7435 = vunpack.c.l.b16 %v7402
      %v7436 = vpack.c.b16 %v7421, %v7420
      %v7437 = vpack.c.b16 %v7423, %v7422
      %v7438 = vpack.c.b16 %v7425, %v7424
      %v7439 = vpack.c.b16 %v7427, %v7426
      %v7440 = vpack.c.b16 %v7429, %v7428
      %v7441 = vpack.c.b16 %v7431, %v7430
      %v7442 = vpack.c.b16 %v7433, %v7432
      %v7443 = vpack.c.b16 %v7435, %v7434
      %7452 = vmatpush.bf16.msra.mxu0 %v7443
      %7453 = vmatpush.bf16.msra.mxu0 %v7442
      %7454 = vmatpush.bf16.msra.mxu0 %v7441
      %7455 = vmatpush.bf16.msra.mxu0 %v7440
      %7456 = vmatpush.bf16.msra.mxu0 %v7439
      %7457 = vmatpush.bf16.msra.mxu0 %v7438
      %7458 = vmatpush.bf16.msra.mxu0 %v7437
      %7459 = vmatpush.bf16.msra.mxu0 %v7436
      %7460 = vmatmul.bf16.gmra.mxu0 %v7385
      %v7461 = vpop.f32.mrf.mxu0
      %v7462 = vadd.f32 %v7403, %v7461
      %v7463 = vpop.f32.mrf.mxu0
      %7464 = vdwg.mxu0
      %v7465 = vxor.u32 %v7462, 2147483648
      %v7466 = vmul.f32 %v7465, 1.442695
      %v7467 = vpow.pop %v7466
      %v7468 = vadd.f32 %v7467, 1.0
      %v7469 = vrcp.pop %v7468
      %v7470 = vmul.f32 %v7468, %v7469
      %v7471 = vsub.f32 1.0, %v7470
      %v7472 = vmul.f32 %v7469, %v7471
      %v7473 = vadd.f32 %v7469, %v7472
      %vm7474 = vweird.f32 %v7468
      %vm7475 = vweird.f32 %v7469
      %vm7476 = vmor %vm7474, %vm7475
      %v7477 = vsel %vm7476, %v7469, %v7473
      %v7478 = vand.u32 2147483647, %v7468
      %vm7479 = vcmp.eq.f32.partialorder %v7478, 8.507059e+37
      %v7480 = vand.u32 %v7468, 2147483648
      %v7481 = vor.u32 1.1754944e-38, %v7480
      %v7482 = vsel %vm7479, %v7481, %v7477
      %v7483 = vmul.f32 1.0, %v7482
      %v7484 = vmul.f32 %v7462, %v7483
      %v7485 = vpack.c.bf16 %v7484, %v7484
      %s7486 = scalar_lea.vmem %s2, 256
      %v7487 = vld [vmem:[%s7486] sm:$0xf]
      %v7488 = vld [vmem:[%s7486 + $0x4] sm:$0xf]
      %v7489 = vld [vmem:[%s7486 + $0x8] sm:$0xf]
      %v7490 = vld [vmem:[%s7486 + $0xc] sm:$0xf]
      %v7491 = vld [vmem:[%s7486 + $0x10] sm:$0xf]
      %v7492 = vld [vmem:[%s7486 + $0x14] sm:$0xf]
      %v7493 = vld [vmem:[%s7486 + $0x18] sm:$0xf]
      %v7494 = vld [vmem:[%s7486 + $0x1c] sm:$0xf]
      %v7495 = vld [vmem:[%s7486 + $0x20] sm:$0xf]
      %v7496 = vld [vmem:[%s7486 + $0x24] sm:$0xf]
      %v7497 = vld [vmem:[%s7486 + $0x28] sm:$0xf]
      %v7498 = vld [vmem:[%s7486 + $0x2c] sm:$0xf]
      %v7499 = vld [vmem:[%s7486 + $0x30] sm:$0xf]
      %v7500 = vld [vmem:[%s7486 + $0x34] sm:$0xf]
      %v7501 = vld [vmem:[%s7486 + $0x38] sm:$0xf]
      %v7502 = vld [vmem:[%s7486 + $0x3c] sm:$0xf]
      %v7503 = vld [vmem:[%s6 + $0x6] sm:$0x1]
      %v7520 = vunpack.c.l.b16 %v7487
      %v7521 = vunpack.c.l.b16 %v7488
      %v7522 = vunpack.c.l.b16 %v7489
      %v7523 = vunpack.c.l.b16 %v7490
      %v7524 = vunpack.c.l.b16 %v7491
      %v7525 = vunpack.c.l.b16 %v7492
      %v7526 = vunpack.c.l.b16 %v7493
      %v7527 = vunpack.c.l.b16 %v7494
      %v7528 = vunpack.c.l.b16 %v7495
      %v7529 = vunpack.c.l.b16 %v7496
      %v7530 = vunpack.c.l.b16 %v7497
      %v7531 = vunpack.c.l.b16 %v7498
      %v7532 = vunpack.c.l.b16 %v7499
      %v7533 = vunpack.c.l.b16 %v7500
      %v7534 = vunpack.c.l.b16 %v7501
      %v7535 = vunpack.c.l.b16 %v7502
      %v7536 = vpack.c.b16 %v7521, %v7520
      %v7537 = vpack.c.b16 %v7523, %v7522
      %v7538 = vpack.c.b16 %v7525, %v7524
      %v7539 = vpack.c.b16 %v7527, %v7526
      %v7540 = vpack.c.b16 %v7529, %v7528
      %v7541 = vpack.c.b16 %v7531, %v7530
      %v7542 = vpack.c.b16 %v7533, %v7532
      %v7543 = vpack.c.b16 %v7535, %v7534
      %7552 = vmatpush.bf16.msra.mxu0 %v7543
      %7553 = vmatpush.bf16.msra.mxu0 %v7542
      %7554 = vmatpush.bf16.msra.mxu0 %v7541
      %7555 = vmatpush.bf16.msra.mxu0 %v7540
      %7556 = vmatpush.bf16.msra.mxu0 %v7539
      %7557 = vmatpush.bf16.msra.mxu0 %v7538
      %7558 = vmatpush.bf16.msra.mxu0 %v7537
      %7559 = vmatpush.bf16.msra.mxu0 %v7536
      %7560 = vmatmul.bf16.gmra.mxu0 %v7485
      %v7561 = vpop.f32.mrf.mxu0
      %v7562 = vadd.f32 %v7503, %v7561
      %v7563 = vpop.f32.mrf.mxu0
      %7564 = vdwg.mxu0
      %v7565 = vxor.u32 %v7562, 2147483648
      %v7566 = vmul.f32 %v7565, 1.442695
      %v7567 = vpow.pop %v7566
      %v7568 = vadd.f32 %v7567, 1.0
      %v7569 = vrcp.pop %v7568
      %v7570 = vmul.f32 %v7568, %v7569
      %v7571 = vsub.f32 1.0, %v7570
      %v7572 = vmul.f32 %v7569, %v7571
      %v7573 = vadd.f32 %v7569, %v7572
      %vm7574 = vweird.f32 %v7568
      %vm7575 = vweird.f32 %v7569
      %vm7576 = vmor %vm7574, %vm7575
      %v7577 = vsel %vm7576, %v7569, %v7573
      %v7578 = vand.u32 2147483647, %v7568
      %vm7579 = vcmp.eq.f32.partialorder %v7578, 8.507059e+37
      %v7580 = vand.u32 %v7568, 2147483648
      %v7581 = vor.u32 1.1754944e-38, %v7580
      %v7582 = vsel %vm7579, %v7581, %v7577
      %v7583 = vmul.f32 1.0, %v7582
      %v7584 = vperm.slane %v7583, 0
      %v7585 = vmul.f32 %v7356, %v7584
      %v7586 = vmul.f32 %v7357, %v7584
      %v7587 = vmul.f32 %v7358, %v7584
      %v7588 = vmul.f32 %v7359, %v7584
      %v7589 = vmul.f32 %v7360, %v7584
      %v7590 = vmul.f32 %v7361, %v7584
      %v7591 = vmul.f32 %v7362, %v7584
      %v7592 = vmul.f32 %v7363, %v7584
      %v7593 = vpack.c.bf16 %v7586, %v7585
      %v7594 = vpack.c.bf16 %v7588, %v7587
      %v7595 = vpack.c.bf16 %v7590, %v7589
      %v7596 = vpack.c.bf16 %v7592, %v7591
      %s7597 = scalar_lea.vmem %s2, 320
      %v7598 = vld [vmem:[%s7597] sm:$0xf]
      %v7599 = vld [vmem:[%s7597 + $0x4] sm:$0xf]
      %v7600 = vld [vmem:[%s7597 + $0x8] sm:$0xf]
      %v7601 = vld [vmem:[%s7597 + $0xc] sm:$0xf]
      %v7602 = vld [vmem:[%s7597 + $0x10] sm:$0xf]
      %v7603 = vld [vmem:[%s7597 + $0x14] sm:$0xf]
      %v7604 = vld [vmem:[%s7597 + $0x18] sm:$0xf]
      %v7605 = vld [vmem:[%s7597 + $0x1c] sm:$0xf]
      %v7606 = vld [vmem:[%s7597 + $0x20] sm:$0xf]
      %v7607 = vld [vmem:[%s7597 + $0x24] sm:$0xf]
      %v7608 = vld [vmem:[%s7597 + $0x28] sm:$0xf]
      %v7609 = vld [vmem:[%s7597 + $0x2c] sm:$0xf]
      %v7610 = vld [vmem:[%s7597 + $0x30] sm:$0xf]
      %v7611 = vld [vmem:[%s7597 + $0x34] sm:$0xf]
      %v7612 = vld [vmem:[%s7597 + $0x38] sm:$0xf]
      %v7613 = vld [vmem:[%s7597 + $0x3c] sm:$0xf]
      %v7630 = vunpack.c.l.b16 %v7598
      %v7631 = vunpack.c.l.b16 %v7599
      %v7632 = vunpack.c.l.b16 %v7600
      %v7633 = vunpack.c.l.b16 %v7601
      %v7634 = vunpack.c.l.b16 %v7602
      %v7635 = vunpack.c.l.b16 %v7603
      %v7636 = vunpack.c.l.b16 %v7604
      %v7637 = vunpack.c.l.b16 %v7605
      %v7638 = vunpack.c.l.b16 %v7606
      %v7639 = vunpack.c.l.b16 %v7607
      %v7640 = vunpack.c.l.b16 %v7608
      %v7641 = vunpack.c.l.b16 %v7609
      %v7642 = vunpack.c.l.b16 %v7610
      %v7643 = vunpack.c.l.b16 %v7611
      %v7644 = vunpack.c.l.b16 %v7612
      %v7645 = vunpack.c.l.b16 %v7613
      %v7646 = vpack.c.b16 %v7631, %v7630
      %v7647 = vpack.c.b16 %v7633, %v7632
      %v7648 = vpack.c.b16 %v7635, %v7634
      %v7649 = vpack.c.b16 %v7637, %v7636
      %v7650 = vpack.c.b16 %v7639, %v7638
      %v7651 = vpack.c.b16 %v7641, %v7640
      %v7652 = vpack.c.b16 %v7643, %v7642
      %v7653 = vpack.c.b16 %v7645, %v7644
      %7662 = vmatpush.bf16.msra.mxu0 %v7653
      %7663 = vmatpush.bf16.msra.mxu0 %v7652
      %7664 = vmatpush.bf16.msra.mxu0 %v7651
      %7665 = vmatpush.bf16.msra.mxu0 %v7650
      %7666 = vmatpush.bf16.msra.mxu0 %v7649
      %7667 = vmatpush.bf16.msra.mxu0 %v7648
      %7668 = vmatpush.bf16.msra.mxu0 %v7647
      %7669 = vmatpush.bf16.msra.mxu0 %v7646
      %7670 = vmatmul.bf16.gmra.mxu0 %v7593
      %v7671 = vpop.f32.mrf.mxu0
      %v7672 = vadd.f32 0.0, %v7671
      %v7673 = vpop.f32.mrf.mxu0
      %v7674 = vadd.f32 0.0, %v7673
      %7675 = vmatmul.bf16.gmra.mxu0 %v7594
      %v7676 = vpop.f32.mrf.mxu0
      %v7677 = vadd.f32 0.0, %v7676
      %v7678 = vpop.f32.mrf.mxu0
      %v7679 = vadd.f32 0.0, %v7678
      %7680 = vmatmul.bf16.gmra.mxu0 %v7595
      %v7681 = vpop.f32.mrf.mxu0
      %v7682 = vadd.f32 0.0, %v7681
      %v7683 = vpop.f32.mrf.mxu0
      %v7684 = vadd.f32 0.0, %v7683
      %7685 = vmatmul.bf16.gmra.mxu0 %v7596
      %v7686 = vpop.f32.mrf.mxu0
      %v7687 = vadd.f32 0.0, %v7686
      %v7688 = vpop.f32.mrf.mxu0
      %v7689 = vadd.f32 0.0, %v7688
      %7690 = vdwg.mxu0
      %v7691 = vld [vmem:[%s5 + $0x5] sm:$0x1]
      %v7692 = vperm.slane %v7691, 0
      %v7693 = vmul.f32 %v7672, %v7692
      %v7694 = vmul.f32 %v7674, %v7692
      %v7695 = vmul.f32 %v7677, %v7692
      %v7696 = vmul.f32 %v7679, %v7692
      %v7697 = vmul.f32 %v7682, %v7692
      %v7698 = vmul.f32 %v7684, %v7692
      %v7699 = vmul.f32 %v7687, %v7692
      %v7700 = vmul.f32 %v7689, %v7692
      %v7701 = vld [vmem:[%s6 + $0x7] sm:$0x1]
      %v7702 = vperm.slane %v7701, 0
      %v7703 = vadd.f32 %v7693, %v7702
      %v7704 = vadd.f32 %v7694, %v7702
      %v7705 = vadd.f32 %v7695, %v7702
      %v7706 = vadd.f32 %v7696, %v7702
      %v7707 = vadd.f32 %v7697, %v7702
      %v7708 = vadd.f32 %v7698, %v7702
      %v7709 = vadd.f32 %v7699, %v7702
      %v7710 = vadd.f32 %v7700, %v7702
      %v7711 = vpack.c.bf16 %v7704, %v7703
      %v7712 = vpack.c.bf16 %v7706, %v7705
      %v7713 = vpack.c.bf16 %v7708, %v7707
      %v7714 = vpack.c.bf16 %v7710, %v7709
      %s7715 = scalar_lea.vmem %s2, 384
      %v7716 = vld [vmem:[%s7715] sm:$0xf]
      %v7717 = vld [vmem:[%s7715 + $0x4] sm:$0xf]
      %v7718 = vld [vmem:[%s7715 + $0x8] sm:$0xf]
      %v7719 = vld [vmem:[%s7715 + $0xc] sm:$0xf]
      %v7720 = vld [vmem:[%s7715 + $0x10] sm:$0xf]
      %v7721 = vld [vmem:[%s7715 + $0x14] sm:$0xf]
      %v7722 = vld [vmem:[%s7715 + $0x18] sm:$0xf]
      %v7723 = vld [vmem:[%s7715 + $0x1c] sm:$0xf]
      %v7724 = vld [vmem:[%s7715 + $0x20] sm:$0xf]
      %v7725 = vld [vmem:[%s7715 + $0x24] sm:$0xf]
      %v7726 = vld [vmem:[%s7715 + $0x28] sm:$0xf]
      %v7727 = vld [vmem:[%s7715 + $0x2c] sm:$0xf]
      %v7728 = vld [vmem:[%s7715 + $0x30] sm:$0xf]
      %v7729 = vld [vmem:[%s7715 + $0x34] sm:$0xf]
      %v7730 = vld [vmem:[%s7715 + $0x38] sm:$0xf]
      %v7731 = vld [vmem:[%s7715 + $0x3c] sm:$0xf]
      %v7748 = vunpack.c.l.b16 %v7716
      %v7749 = vunpack.c.l.b16 %v7717
      %v7750 = vunpack.c.l.b16 %v7718
      %v7751 = vunpack.c.l.b16 %v7719
      %v7752 = vunpack.c.l.b16 %v7720
      %v7753 = vunpack.c.l.b16 %v7721
      %v7754 = vunpack.c.l.b16 %v7722
      %v7755 = vunpack.c.l.b16 %v7723
      %v7756 = vunpack.c.l.b16 %v7724
      %v7757 = vunpack.c.l.b16 %v7725
      %v7758 = vunpack.c.l.b16 %v7726
      %v7759 = vunpack.c.l.b16 %v7727
      %v7760 = vunpack.c.l.b16 %v7728
      %v7761 = vunpack.c.l.b16 %v7729
      %v7762 = vunpack.c.l.b16 %v7730
      %v7763 = vunpack.c.l.b16 %v7731
      %v7764 = vpack.c.b16 %v7749, %v7748
      %v7765 = vpack.c.b16 %v7751, %v7750
      %v7766 = vpack.c.b16 %v7753, %v7752
      %v7767 = vpack.c.b16 %v7755, %v7754
      %v7768 = vpack.c.b16 %v7757, %v7756
      %v7769 = vpack.c.b16 %v7759, %v7758
      %v7770 = vpack.c.b16 %v7761, %v7760
      %v7771 = vpack.c.b16 %v7763, %v7762
      %7780 = vmatpush.bf16.msra.mxu0 %v7771
      %7781 = vmatpush.bf16.msra.mxu0 %v7770
      %7782 = vmatpush.bf16.msra.mxu0 %v7769
      %7783 = vmatpush.bf16.msra.mxu0 %v7768
      %7784 = vmatpush.bf16.msra.mxu0 %v7767
      %7785 = vmatpush.bf16.msra.mxu0 %v7766
      %7786 = vmatpush.bf16.msra.mxu0 %v7765
      %7787 = vmatpush.bf16.msra.mxu0 %v7764
      %7788 = vmatmul.bf16.gmra.mxu0 %v7711
      %v7789 = vpop.f32.mrf.mxu0
      %v7790 = vadd.f32 0.0, %v7789
      %v7791 = vpop.f32.mrf.mxu0
      %v7792 = vadd.f32 0.0, %v7791
      %7793 = vmatmul.bf16.gmra.mxu0 %v7712
      %v7794 = vpop.f32.mrf.mxu0
      %v7795 = vadd.f32 0.0, %v7794
      %v7796 = vpop.f32.mrf.mxu0
      %v7797 = vadd.f32 0.0, %v7796
      %7798 = vmatmul.bf16.gmra.mxu0 %v7713
      %v7799 = vpop.f32.mrf.mxu0
      %v7800 = vadd.f32 0.0, %v7799
      %v7801 = vpop.f32.mrf.mxu0
      %v7802 = vadd.f32 0.0, %v7801
      %7803 = vmatmul.bf16.gmra.mxu0 %v7714
      %v7804 = vpop.f32.mrf.mxu0
      %v7805 = vadd.f32 0.0, %v7804
      %v7806 = vpop.f32.mrf.mxu0
      %v7807 = vadd.f32 0.0, %v7806
      %7808 = vdwg.mxu0
      %v7809 = vld [vmem:[%s5 + $0x6] sm:$0x1]
      %v7810 = vperm.slane %v7809, 0
      %v7811 = vmul.f32 %v7790, %v7810
      %v7812 = vmul.f32 %v7792, %v7810
      %v7813 = vmul.f32 %v7795, %v7810
      %v7814 = vmul.f32 %v7797, %v7810
      %v7815 = vmul.f32 %v7800, %v7810
      %v7816 = vmul.f32 %v7802, %v7810
      %v7817 = vmul.f32 %v7805, %v7810
      %v7818 = vmul.f32 %v7807, %v7810
      %v7819 = vld [vmem:[%s6 + $0x8] sm:$0x1]
      %v7820 = vperm.slane %v7819, 0
      %v7821 = vadd.f32 %v7811, %v7820
      %v7822 = vadd.f32 %v7812, %v7820
      %v7823 = vadd.f32 %v7813, %v7820
      %v7824 = vadd.f32 %v7814, %v7820
      %v7825 = vadd.f32 %v7815, %v7820
      %v7826 = vadd.f32 %v7816, %v7820
      %v7827 = vadd.f32 %v7817, %v7820
      %v7828 = vadd.f32 %v7818, %v7820
      %v7829 = vxor.u32 %v7821, 2147483648
      %v7830 = vxor.u32 %v7822, 2147483648
      %v7831 = vxor.u32 %v7823, 2147483648
      %v7832 = vxor.u32 %v7824, 2147483648
      %v7833 = vxor.u32 %v7825, 2147483648
      %v7834 = vxor.u32 %v7826, 2147483648
      %v7835 = vxor.u32 %v7827, 2147483648
      %v7836 = vxor.u32 %v7828, 2147483648
      %v7837 = vmul.f32 %v7829, 1.442695
      %v7838 = vpow.pop %v7837
      %v7839 = vmul.f32 %v7830, 1.442695
      %v7840 = vpow.pop %v7839
      %v7841 = vmul.f32 %v7831, 1.442695
      %v7842 = vpow.pop %v7841
      %v7843 = vmul.f32 %v7832, 1.442695
      %v7844 = vpow.pop %v7843
      %v7845 = vmul.f32 %v7833, 1.442695
      %v7846 = vpow.pop %v7845
      %v7847 = vmul.f32 %v7834, 1.442695
      %v7848 = vpow.pop %v7847
      %v7849 = vmul.f32 %v7835, 1.442695
      %v7850 = vpow.pop %v7849
      %v7851 = vmul.f32 %v7836, 1.442695
      %v7852 = vpow.pop %v7851
      %v7853 = vadd.f32 %v7838, 1.0
      %v7854 = vadd.f32 %v7840, 1.0
      %v7855 = vadd.f32 %v7842, 1.0
      %v7856 = vadd.f32 %v7844, 1.0
      %v7857 = vadd.f32 %v7846, 1.0
      %v7858 = vadd.f32 %v7848, 1.0
      %v7859 = vadd.f32 %v7850, 1.0
      %v7860 = vadd.f32 %v7852, 1.0
      %v7861 = vrcp.pop %v7853
      %v7862 = vmul.f32 %v7853, %v7861
      %v7863 = vsub.f32 1.0, %v7862
      %v7864 = vmul.f32 %v7861, %v7863
      %v7865 = vadd.f32 %v7861, %v7864
      %vm7866 = vweird.f32 %v7853
      %vm7867 = vweird.f32 %v7861
      %vm7868 = vmor %vm7866, %vm7867
      %v7869 = vsel %vm7868, %v7861, %v7865
      %v7870 = vand.u32 2147483647, %v7853
      %vm7871 = vcmp.eq.f32.partialorder %v7870, 8.507059e+37
      %v7872 = vand.u32 %v7853, 2147483648
      %v7873 = vor.u32 1.1754944e-38, %v7872
      %v7874 = vsel %vm7871, %v7873, %v7869
      %v7875 = vmul.f32 1.0, %v7874
      %v7876 = vrcp.pop %v7854
      %v7877 = vmul.f32 %v7854, %v7876
      %v7878 = vsub.f32 1.0, %v7877
      %v7879 = vmul.f32 %v7876, %v7878
      %v7880 = vadd.f32 %v7876, %v7879
      %vm7881 = vweird.f32 %v7854
      %vm7882 = vweird.f32 %v7876
      %vm7883 = vmor %vm7881, %vm7882
      %v7884 = vsel %vm7883, %v7876, %v7880
      %v7885 = vand.u32 2147483647, %v7854
      %vm7886 = vcmp.eq.f32.partialorder %v7885, 8.507059e+37
      %v7887 = vand.u32 %v7854, 2147483648
      %v7888 = vor.u32 1.1754944e-38, %v7887
      %v7889 = vsel %vm7886, %v7888, %v7884
      %v7890 = vmul.f32 1.0, %v7889
      %v7891 = vrcp.pop %v7855
      %v7892 = vmul.f32 %v7855, %v7891
      %v7893 = vsub.f32 1.0, %v7892
      %v7894 = vmul.f32 %v7891, %v7893
      %v7895 = vadd.f32 %v7891, %v7894
      %vm7896 = vweird.f32 %v7855
      %vm7897 = vweird.f32 %v7891
      %vm7898 = vmor %vm7896, %vm7897
      %v7899 = vsel %vm7898, %v7891, %v7895
      %v7900 = vand.u32 2147483647, %v7855
      %vm7901 = vcmp.eq.f32.partialorder %v7900, 8.507059e+37
      %v7902 = vand.u32 %v7855, 2147483648
      %v7903 = vor.u32 1.1754944e-38, %v7902
      %v7904 = vsel %vm7901, %v7903, %v7899
      %v7905 = vmul.f32 1.0, %v7904
      %v7906 = vrcp.pop %v7856
      %v7907 = vmul.f32 %v7856, %v7906
      %v7908 = vsub.f32 1.0, %v7907
      %v7909 = vmul.f32 %v7906, %v7908
      %v7910 = vadd.f32 %v7906, %v7909
      %vm7911 = vweird.f32 %v7856
      %vm7912 = vweird.f32 %v7906
      %vm7913 = vmor %vm7911, %vm7912
      %v7914 = vsel %vm7913, %v7906, %v7910
      %v7915 = vand.u32 2147483647, %v7856
      %vm7916 = vcmp.eq.f32.partialorder %v7915, 8.507059e+37
      %v7917 = vand.u32 %v7856, 2147483648
      %v7918 = vor.u32 1.1754944e-38, %v7917
      %v7919 = vsel %vm7916, %v7918, %v7914
      %v7920 = vmul.f32 1.0, %v7919
      %v7921 = vrcp.pop %v7857
      %v7922 = vmul.f32 %v7857, %v7921
      %v7923 = vsub.f32 1.0, %v7922
      %v7924 = vmul.f32 %v7921, %v7923
      %v7925 = vadd.f32 %v7921, %v7924
      %vm7926 = vweird.f32 %v7857
      %vm7927 = vweird.f32 %v7921
      %vm7928 = vmor %vm7926, %vm7927
      %v7929 = vsel %vm7928, %v7921, %v7925
      %v7930 = vand.u32 2147483647, %v7857
      %vm7931 = vcmp.eq.f32.partialorder %v7930, 8.507059e+37
      %v7932 = vand.u32 %v7857, 2147483648
      %v7933 = vor.u32 1.1754944e-38, %v7932
      %v7934 = vsel %vm7931, %v7933, %v7929
      %v7935 = vmul.f32 1.0, %v7934
      %v7936 = vrcp.pop %v7858
      %v7937 = vmul.f32 %v7858, %v7936
      %v7938 = vsub.f32 1.0, %v7937
      %v7939 = vmul.f32 %v7936, %v7938
      %v7940 = vadd.f32 %v7936, %v7939
      %vm7941 = vweird.f32 %v7858
      %vm7942 = vweird.f32 %v7936
      %vm7943 = vmor %vm7941, %vm7942
      %v7944 = vsel %vm7943, %v7936, %v7940
      %v7945 = vand.u32 2147483647, %v7858
      %vm7946 = vcmp.eq.f32.partialorder %v7945, 8.507059e+37
      %v7947 = vand.u32 %v7858, 2147483648
      %v7948 = vor.u32 1.1754944e-38, %v7947
      %v7949 = vsel %vm7946, %v7948, %v7944
      %v7950 = vmul.f32 1.0, %v7949
      %v7951 = vrcp.pop %v7859
      %v7952 = vmul.f32 %v7859, %v7951
      %v7953 = vsub.f32 1.0, %v7952
      %v7954 = vmul.f32 %v7951, %v7953
      %v7955 = vadd.f32 %v7951, %v7954
      %vm7956 = vweird.f32 %v7859
      %vm7957 = vweird.f32 %v7951
      %vm7958 = vmor %vm7956, %vm7957
      %v7959 = vsel %vm7958, %v7951, %v7955
      %v7960 = vand.u32 2147483647, %v7859
      %vm7961 = vcmp.eq.f32.partialorder %v7960, 8.507059e+37
      %v7962 = vand.u32 %v7859, 2147483648
      %v7963 = vor.u32 1.1754944e-38, %v7962
      %v7964 = vsel %vm7961, %v7963, %v7959
      %v7965 = vmul.f32 1.0, %v7964
      %v7966 = vrcp.pop %v7860
      %v7967 = vmul.f32 %v7860, %v7966
      %v7968 = vsub.f32 1.0, %v7967
      %v7969 = vmul.f32 %v7966, %v7968
      %v7970 = vadd.f32 %v7966, %v7969
      %vm7971 = vweird.f32 %v7860
      %vm7972 = vweird.f32 %v7966
      %vm7973 = vmor %vm7971, %vm7972
      %v7974 = vsel %vm7973, %v7966, %v7970
      %v7975 = vand.u32 2147483647, %v7860
      %vm7976 = vcmp.eq.f32.partialorder %v7975, 8.507059e+37
      %v7977 = vand.u32 %v7860, 2147483648
      %v7978 = vor.u32 1.1754944e-38, %v7977
      %v7979 = vsel %vm7976, %v7978, %v7974
      %v7980 = vmul.f32 1.0, %v7979
      %v7981 = vmul.f32 %v7821, %v7875
      %v7982 = vmul.f32 %v7822, %v7890
      %v7983 = vmul.f32 %v7823, %v7905
      %v7984 = vmul.f32 %v7824, %v7920
      %v7985 = vmul.f32 %v7825, %v7935
      %v7986 = vmul.f32 %v7826, %v7950
      %v7987 = vmul.f32 %v7827, %v7965
      %v7988 = vmul.f32 %v7828, %v7980
      %v7989 = vadd.f32 %v7981, %v7982
      %v7990 = vadd.f32 %v7989, %v7983
      %v7991 = vadd.f32 %v7990, %v7984
      %v7992 = vadd.f32 %v7991, %v7985
      %v7993 = vadd.f32 %v7992, %v7986
      %v7994 = vadd.f32 %v7993, %v7987
      %v7995 = vadd.f32 %v7994, %v7988
      %v7996 = vrot.slane %v7995, 4
      %v7997 = vadd.f32 %v7995, %v7996
      %v7998 = vrot.slane %v7997, 2
      %v7999 = vadd.f32 %v7997, %v7998
      %v8000 = vrot.slane %v7999, 1
      %v8001 = vadd.f32 %v7999, %v8000
      %v8002 = vmul.f32 %v8001, %v7383
      %v8003 = vpack.c.bf16 %v8002, %v8002
      %s8004 = scalar_lea.vmem %s2, 448
      %v8005 = vld [vmem:[%s8004] sm:$0xf]
      %v8006 = vld [vmem:[%s8004 + $0x4] sm:$0xf]
      %v8007 = vld [vmem:[%s8004 + $0x8] sm:$0xf]
      %v8008 = vld [vmem:[%s8004 + $0xc] sm:$0xf]
      %v8009 = vld [vmem:[%s8004 + $0x10] sm:$0xf]
      %v8010 = vld [vmem:[%s8004 + $0x14] sm:$0xf]
      %v8011 = vld [vmem:[%s8004 + $0x18] sm:$0xf]
      %v8012 = vld [vmem:[%s8004 + $0x1c] sm:$0xf]
      %v8013 = vld [vmem:[%s8004 + $0x20] sm:$0xf]
      %v8014 = vld [vmem:[%s8004 + $0x24] sm:$0xf]
      %v8015 = vld [vmem:[%s8004 + $0x28] sm:$0xf]
      %v8016 = vld [vmem:[%s8004 + $0x2c] sm:$0xf]
      %v8017 = vld [vmem:[%s8004 + $0x30] sm:$0xf]
      %v8018 = vld [vmem:[%s8004 + $0x34] sm:$0xf]
      %v8019 = vld [vmem:[%s8004 + $0x38] sm:$0xf]
      %v8020 = vld [vmem:[%s8004 + $0x3c] sm:$0xf]
      %v8021 = vld [vmem:[%s6 + $0x9] sm:$0x1]
      %v8038 = vunpack.c.l.b16 %v8005
      %v8039 = vunpack.c.l.b16 %v8006
      %v8040 = vunpack.c.l.b16 %v8007
      %v8041 = vunpack.c.l.b16 %v8008
      %v8042 = vunpack.c.l.b16 %v8009
      %v8043 = vunpack.c.l.b16 %v8010
      %v8044 = vunpack.c.l.b16 %v8011
      %v8045 = vunpack.c.l.b16 %v8012
      %v8046 = vunpack.c.l.b16 %v8013
      %v8047 = vunpack.c.l.b16 %v8014
      %v8048 = vunpack.c.l.b16 %v8015
      %v8049 = vunpack.c.l.b16 %v8016
      %v8050 = vunpack.c.l.b16 %v8017
      %v8051 = vunpack.c.l.b16 %v8018
      %v8052 = vunpack.c.l.b16 %v8019
      %v8053 = vunpack.c.l.b16 %v8020
      %v8054 = vpack.c.b16 %v8039, %v8038
      %v8055 = vpack.c.b16 %v8041, %v8040
      %v8056 = vpack.c.b16 %v8043, %v8042
      %v8057 = vpack.c.b16 %v8045, %v8044
      %v8058 = vpack.c.b16 %v8047, %v8046
      %v8059 = vpack.c.b16 %v8049, %v8048
      %v8060 = vpack.c.b16 %v8051, %v8050
      %v8061 = vpack.c.b16 %v8053, %v8052
      %8070 = vmatpush.bf16.msra.mxu0 %v8061
      %8071 = vmatpush.bf16.msra.mxu0 %v8060
      %8072 = vmatpush.bf16.msra.mxu0 %v8059
      %8073 = vmatpush.bf16.msra.mxu0 %v8058
      %8074 = vmatpush.bf16.msra.mxu0 %v8057
      %8075 = vmatpush.bf16.msra.mxu0 %v8056
      %8076 = vmatpush.bf16.msra.mxu0 %v8055
      %8077 = vmatpush.bf16.msra.mxu0 %v8054
      %8078 = vmatmul.bf16.gmra.mxu0 %v8003
      %v8079 = vpop.f32.mrf.mxu0
      %v8080 = vadd.f32 %v8021, %v8079
      %v8081 = vpop.f32.mrf.mxu0
      %8082 = vdwg.mxu0
      %v8083 = vperm.slane %v8080, 0
      %8084 = vst [vmem:[%s276] sm:$0xff] %v8083
      %p8085 = scmp.lt.s32.totalorder %s18, 1
      %s8086 = scalar_select %p8085, %s18, 1
      %s8087 = smul.addr %s8086, 8
      %s8088 = scalar_lea.vmem %s7, %s8087
      // Predicated region
      $region49: #{maxvit_v2_forward.1} parent=47 // pred_check
        %p8089 = pneg %p188
      $region50: #{maxvit_v2_forward.1} parent=47 // pred_check_branch
        %8091 = sbr.rel (%p8089) target = $region52
      $region51: #{maxvit_v2_forward.1} parent=47 // pred_region
        _
      $region52: #{maxvit_v2_forward.1} parent=47 // pred_fallthru
        _
    $region48: #{maxvit_v2_forward.1} parent=5 // pred_fallthru
      _
    %p8092 = scmp.le.s32.totalorder 2, %s13
    // Predicated region
    $region53: #{maxvit_v2_forward.1} parent=5 // pred_check
      %p8093 = pneg %p8092
    $region54: #{maxvit_v2_forward.1} parent=5 // pred_check_branch
      %8095 = sbr.rel (%p8093) target = $region56
    $region55: #{maxvit_v2_forward.1} parent=5 // pred_region
      %s8096 = ssub.s32 %s13, 2
      // Predicated region
      $region57: #{maxvit_v2_forward.1} parent=55 // pred_check
        %p8097 = pneg %p194
      $region58: #{maxvit_v2_forward.1} parent=55 // pred_check_branch
        %8099 = sbr.rel (%p8097) target = $region60
      $region59: #{maxvit_v2_forward.1} parent=55 // pred_region
        %p8100 = scmp.lt.s32.totalorder %s19, 1
        %s8101 = scalar_select %p8100, %s19, 1
        %s8102 = smul.addr %s8101, 8
        %s8103 = scalar_lea.vmem %s7, %s8102
      $region60: #{maxvit_v2_forward.1} parent=55 // pred_fallthru
        _
    $region56: #{maxvit_v2_forward.1} parent=5 // pred_fallthru
      _
  $region6: #{maxvit_v2_forward.1} parent=0 // loop_footer
    %s17 = sadd.s32 1, %s13
  $region7: #{maxvit_v2_forward.1} parent=0 // loop_footer_branch
    %12 = sbr.rel target = $region3
  $region8: #{maxvit_v2_forward.1} parent=0 // loop_exit
    _

</llo_original>
